<compile_context>
chip_gen: v7x
topology: tpu7x:2x2x1
jax: 0.10.0
libtpu: 0.0.40
codegen_flags: <defaults>
</compile_context>

<pallas_src>
import math
import functools

import jax
import jax.numpy as jnp
from jax import lax
from jax.experimental import pallas as pl
from jax.experimental.pallas import tpu as pltpu


# -----------------------------------------------------------------------------
# numerically-stable helpers usable inside Pallas kernels
# -----------------------------------------------------------------------------
def _softplus(x):
    return jnp.maximum(x, 0.0) + jnp.log(1.0 + jnp.exp(-jnp.abs(x)))


def _sigmoid(x):
    # EUP approx reciprocal keeps the divide off the VALU critical path.
    return pl.reciprocal(1.0 + jnp.exp(-x), approx=True)


# -----------------------------------------------------------------------------
# Kernel 1: fused bilinear grid_sample (zeros padding, align_corners=False)
#           + decoder MLP (Linear -> softplus -> Linear, sigmoid on rgb).
# Layout: channels in sublanes, samples in lanes everywhere.
# -----------------------------------------------------------------------------
def sample_decode_kernel(proj_ref, fmap_ref, w1_ref, b1_ref, w2_ref, b2_ref,
                         out_ref, *, H, W):
    proj = proj_ref[0]                    # (3, TM)  f32, already scaled/projected
    fmap = fmap_ref[0]                    # (C, HW)  bf16, pixel index in lanes

    TM = proj.shape[1]
    HW = fmap.shape[1]

    gx = proj[0:1, :]                     # (1, TM) normalized x in [-1, 1] (width)
    gy = proj[1:2, :]                     # (1, TM) normalized y in [-1, 1] (height)

    # grid_sample, align_corners=False -> pixel coords (all mask math stays f32).
    ix = ((gx + 1.0) * W - 1.0) * 0.5
    iy = ((gy + 1.0) * H - 1.0) * 0.5
    ix0 = jnp.floor(ix)
    iy0 = jnp.floor(iy)
    ix1 = ix0 + 1.0
    iy1 = iy0 + 1.0
    wx1 = ix - ix0
    wx0 = 1.0 - wx1
    wy1 = iy - iy0
    wy0 = 1.0 - wy1

    # flat pixel index along sublanes; one compare + one select per corner.
    pix = lax.broadcasted_iota(jnp.int32, (HW, TM), 0)

    def corner(cx, cy, w):
        inb = (cx >= 0.0) & (cx <= float(W - 1)) & (cy >= 0.0) & (cy <= float(H - 1))
        idx = jnp.where(inb, cy.astype(jnp.int32) * W + cx.astype(jnp.int32), -1)
        return jnp.where(pix == idx, w, 0.0)          # (HW, TM), zeros padding OOB

    A = (corner(ix0, iy0, wx0 * wy0) + corner(ix1, iy0, wx1 * wy0)
         + corner(ix0, iy1, wx0 * wy1) + corner(ix1, iy1, wx1 * wy1))

    # bf16 x bf16 MXU matmul, f32 accumulate: feats (C, TM)
    feats = jnp.dot(fmap, A.astype(jnp.bfloat16), preferred_element_type=jnp.float32)

    # decoder MLP evaluated transposed (outputs stay lane-dense on TM)
    h = _softplus(jnp.dot(w1_ref[...], feats,
                          preferred_element_type=jnp.float32) + b1_ref[...])
    o = jnp.dot(w2_ref[...], h, preferred_element_type=jnp.float32) + b2_ref[...]

    # row 0 = sigma (raw), rows 1:4 = rgb = sigmoid(x)*(1+2e-3)-1e-3
    row = lax.broadcasted_iota(jnp.int32, o.shape, 0)
    o = jnp.where(row == 0, o, _sigmoid(o) * (1.0 + 2 * 0.001) - 0.001)
    out_ref[0] = o                                     # (4, TM) lane-dense store


# -----------------------------------------------------------------------------
# Kernel 2: MipRayMarcher2 (alpha compositing), tiled over rays.
# Layout: samples in sublanes, rays in lanes.
# -----------------------------------------------------------------------------
def mip_ray_marcher_kernel(colors_ref, dens_ref, dep_ref, tri_ref,
                           packed_ref, weights_ref):
    S = dep_ref.shape[1]
    Sm1 = S - 1

    dep = dep_ref[0]                        # (S, MT)
    MT = dep.shape[1]
    d0 = dep[0:Sm1, :]
    d1 = dep[1:S, :]
    deltas = d1 - d0
    depths_mid = (d0 + d1) * 0.5

    dens = dens_ref[0]                      # (S, MT)
    dens_mid = _softplus((dens[0:Sm1, :] + dens[1:S, :]) * 0.5 - 1.0)   # 'softplus' clamp
    alpha = 1.0 - jnp.exp(-dens_mid * deltas)                           # (Sm1, MT)

    # cumulative transmittance T[i] = prod_{j<i}(1 - alpha[j] + 1e-10) via a
    # strictly-lower-triangular ones matmul in log space (MXU, no serial scan).
    log_t = jnp.log(1.0 - alpha + 1e-10)
    T = jnp.exp(jnp.dot(tri_ref[...], log_t, preferred_element_type=jnp.float32))
    weights = alpha * T                                                  # (Sm1, MT)
    weights_ref[0] = weights

    wsum = jnp.sum(weights, axis=0, keepdims=True)                       # (1, MT)
    dnum = jnp.sum(weights * depths_mid, axis=0, keepdims=True)
    inv_w = pl.reciprocal(wsum, approx=True)
    inv_w = inv_w * (2.0 - wsum * inv_w)            # one Newton refinement step
    # explicit wsum==0 guard (replaces the 0/0 -> NaN -> inf path of the reference)
    comp_depth = jnp.where(wsum > 0.0, dnum * inv_w, jnp.inf)

    cols = colors_ref[0]                            # (3, S, MT)
    rgb_rows = []
    for c in range(3):
        cmid = (cols[c, 0:Sm1, :] + cols[c, 1:S, :]) * 0.5
        rgb_rows.append(jnp.sum(weights * cmid, axis=0, keepdims=True) * 2.0 - 1.0)

    # pack rgb(3) + depth(1) + wsum(1) + pad(3) into one 8-sublane lane-dense block
    packed = jnp.concatenate(
        rgb_rows + [comp_depth, wsum, jnp.zeros((3, MT), jnp.float32)], axis=0)
    packed_ref[0] = packed


# -----------------------------------------------------------------------------
# glue: ray/box limits, stratified + importance sampling, unify/sort
# -----------------------------------------------------------------------------
def get_ray_limits_box(rays_o, rays_d, box_side_length):
    h = box_side_length / 2.0
    invdir = 1.0 / rays_d
    t1 = (-h - rays_o) * invdir
    t2 = (h - rays_o) * invdir
    tmin_ax = jnp.minimum(t1, t2)
    tmax_ax = jnp.maximum(t1, t2)
    tmin = jnp.max(tmin_ax, axis=-1, keepdims=True)
    tmax = jnp.min(tmax_ax, axis=-1, keepdims=True)
    valid = tmin <= tmax
    tmin = jnp.where(valid, tmin, -1.0)
    tmax = jnp.where(valid, tmax, -2.0)
    return tmin, tmax


def sample_pdf(bins, weights, n_importance, key, eps=1e-5):
    # TODO(synk): searchsorted / take_along_axis (inverse-CDF sampling) stay in JAX glue.
    NR, Ns = weights.shape
    weights = weights + eps
    pdf = weights / jnp.sum(weights, -1, keepdims=True)
    cdf = jnp.cumsum(pdf, -1)
    cdf = jnp.concatenate([jnp.zeros_like(cdf[:, :1]), cdf], -1)          # (NR, Ns+1)
    u = jax.random.uniform(key, (NR, n_importance), dtype=jnp.float32)
    inds = jax.vmap(lambda c, uu: jnp.searchsorted(c, uu, side='right'))(cdf, u)
    below = jnp.maximum(inds - 1, 0)
    above = jnp.minimum(inds, Ns)
    inds_sampled = jnp.stack([below, above], -1).reshape(NR, 2 * n_importance)
    cdf_g = jnp.take_along_axis(cdf, inds_sampled, axis=1).reshape(NR, n_importance, 2)
    bins_g = jnp.take_along_axis(bins, inds_sampled, axis=1).reshape(NR, n_importance, 2)
    denom = cdf_g[..., 1] - cdf_g[..., 0]
    denom = jnp.where(denom < eps, 1.0, denom)
    samples = bins_g[..., 0] + (u - cdf_g[..., 0]) / denom * (bins_g[..., 1] - bins_g[..., 0])
    return samples


def unify_samples(d1, c1, s1, d2, c2, s2):
    # TODO(synk): sort/gather along the sample axis stays in JAX glue.
    # d*, s*: (N, S, M); c*: (N, 3, S, M)
    all_d = jnp.concatenate([d1, d2], axis=1)
    all_s = jnp.concatenate([s1, s2], axis=1)
    all_c = jnp.concatenate([c1, c2], axis=2)
    idx = jnp.argsort(all_d, axis=1)
    all_d = jnp.take_along_axis(all_d, idx, axis=1)
    all_s = jnp.take_along_axis(all_s, idx, axis=1)
    idx_c = jnp.broadcast_to(idx[:, None, :, :], all_c.shape)
    all_c = jnp.take_along_axis(all_c, idx_c, axis=2)
    return all_d, all_c, all_s


# -----------------------------------------------------------------------------
# the renderer
# -----------------------------------------------------------------------------
class ImportanceRendererPallas:
    def __init__(self, feature_channels=32, hidden=64, tm=512):
        # plane axes (identity single-plane axes)
        self.plane_axes = jnp.array([[[1., 0., 0.], [0., 1., 0.], [0., 0., 1.]]],
                                    dtype=jnp.float32)
        self.rendering_options = {
            'image_resolution': 512, 'disparity_space_sampling': False,
            'clamp_mode': 'softplus', 'superresolution_module': None,
            'c_gen_conditioning_zero': None, 'gpc_reg_prob': None, 'c_scale': 0.5,
            'superresolution_noise_mode': None, 'density_reg': 0.25,
            'density_reg_p_dist': 0.004, 'reg_type': 'l1', 'decoder_lr_mul': 1,
            'sr_antialias': True,
            'ray_start': 'auto', 'ray_end': 'auto', 'box_warp': 1,
            'depth_resolution': 48, 'depth_resolution_importance': 48,
            'avg_camera_radius': 2.7, 'avg_camera_pivot': [0, 0, -0.06],
        }
        # deterministic decoder parameters, stored pre-transposed for the kernel
        k1, k2 = jax.random.split(jax.random.PRNGKey(42), 2)
        C, HID = feature_channels, hidden
        w1 = jax.random.normal(k1, (C, HID), jnp.float32) / math.sqrt(C)
        w2 = jax.random.normal(k2, (HID, 4), jnp.float32) / math.sqrt(HID)
        self.w1t = jnp.asarray(w1.T)                      # (HID, C)
        self.b1t = jnp.zeros((HID, 1), jnp.float32)
        self.w2t = jnp.asarray(w2.T)                      # (4, HID)
        self.b2t = jnp.zeros((4, 1), jnp.float32)
        self.hidden = HID
        self.channels = C
        self.tm = tm                                      # decode sample-tile size

    # ---- Pallas wrappers ---------------------------------------------------
    def _decode_pallas(self, proj_t, fmap_cm, *, H, W, TM):
        N, _, Mp = proj_t.shape
        C, HW = fmap_cm.shape[1], fmap_cm.shape[2]
        HID = self.hidden
        n_tiles = Mp // TM
        # TODO(synk): at production plane sizes the fmap spec (constant block index
        # over t) should be single-buffered (pipeline_mode) or staged via pl.ANY.
        out = pl.pallas_call(
            functools.partial(sample_decode_kernel, H=H, W=W),
            out_shape=jax.ShapeDtypeStruct((N, 4, Mp), jnp.float32),
            grid=(N, n_tiles),
            in_specs=[
                pl.BlockSpec((1, 3, TM), lambda b, t: (b, 0, t)),
                pl.BlockSpec((1, C, HW), lambda b, t: (b, 0, 0)),
                pl.BlockSpec((HID, C), lambda b, t: (0, 0)),
                pl.BlockSpec((HID, 1), lambda b, t: (0, 0)),
                pl.BlockSpec((4, HID), lambda b, t: (0, 0)),
                pl.BlockSpec((4, 1), lambda b, t: (0, 0)),
            ],
            out_specs=pl.BlockSpec((1, 4, TM), lambda b, t: (b, 0, t)),
            compiler_params=pltpu.CompilerParams(
                dimension_semantics=("parallel", "parallel"),
                vmem_limit_bytes=32 * 1024 * 1024),
        )(proj_t, fmap_cm, self.w1t, self.b1t, self.w2t, self.b2t)
        return out

    def ray_march(self, colors, densities, depths):
        # colors (N,3,S,M), densities (N,S,M), depths (N,S,M) — rays in lanes.
        N, _, S, M = colors.shape
        Sm1 = S - 1
        MT = min(512, 128 * ((M + 127) // 128))      # ray-tile, multiple of 128
        Mpad = MT * ((M + MT - 1) // MT)
        if Mpad != M:
            pr = Mpad - M
            colors_p = jnp.pad(colors, ((0, 0), (0, 0), (0, 0), (0, pr)))
            dens_p = jnp.pad(densities, ((0, 0), (0, 0), (0, pr)))
            dep_p = jnp.pad(depths, ((0, 0), (0, 0), (0, pr)))
        else:
            colors_p, dens_p, dep_p = colors, densities, depths

        # strictly-lower-triangular ones matrix for the cumulative product
        tri = jnp.tril(jnp.ones((Sm1, Sm1), jnp.float32), k=-1)

        packed, weights = pl.pallas_call(
            mip_ray_marcher_kernel,
            out_shape=(jax.ShapeDtypeStruct((N, 8, Mpad), jnp.float32),
                       jax.ShapeDtypeStruct((N, Sm1, Mpad), jnp.float32)),
            grid=(N, Mpad // MT),
            in_specs=[pl.BlockSpec((1, 3, S, MT), lambda b, r: (b, 0, 0, r)),
                      pl.BlockSpec((1, S, MT), lambda b, r: (b, 0, r)),
                      pl.BlockSpec((1, S, MT), lambda b, r: (b, 0, r)),
                      pl.BlockSpec((Sm1, Sm1), lambda b, r: (0, 0))],
            out_specs=(pl.BlockSpec((1, 8, MT), lambda b, r: (b, 0, r)),
                       pl.BlockSpec((1, Sm1, MT), lambda b, r: (b, 0, r))),
            compiler_params=pltpu.CompilerParams(
                dimension_semantics=("parallel", "parallel"),
                vmem_limit_bytes=32 * 1024 * 1024),
        )(colors_p, dens_p, dep_p, tri)

        rgb = packed[:, 0:3, :M]                     # (N, 3, M)
        depth = packed[:, 3, :M]                     # (N, M)  (inf where wsum==0)
        wsum = packed[:, 4, :M]                      # (N, M)
        # reference semantics: clamp composite depth to the global depth range
        depth = jnp.clip(depth, jnp.min(depths), jnp.max(depths))
        weights = weights[:, :, :M]                  # (N, Sm1, M)
        return rgb, depth, weights, wsum

    # ---- model evaluation (featuremap sampling + decoder) -------------------
    def run_model(self, feature_map, coords_cm):
        # feature_map NCHW; coords_cm (N, 3, Mflat) channel-major sample coords.
        N, C, H, W = feature_map.shape
        box_warp = self.rendering_options['box_warp']
        coords_cm = (2.0 / box_warp) * coords_cm
        inv_planes = jnp.linalg.inv(self.plane_axes)[0]                   # (3,3)
        proj = jnp.einsum('cd,nci->ndi', inv_planes, coords_cm)           # (N,3,Mflat)
        # NCHW flattens to channel-major (C, H*W) with no transpose; bf16 for MXU.
        fmap_cm = feature_map.reshape(N, C, H * W).astype(jnp.bfloat16)

        Mflat = proj.shape[2]
        TM = self.tm
        Mp = TM * ((Mflat + TM - 1) // TM)
        if Mp != Mflat:
            proj = jnp.pad(proj, ((0, 0), (0, 0), (0, Mp - Mflat)))
        out = self._decode_pallas(proj, fmap_cm, H=H, W=W, TM=TM)[:, :, :Mflat]
        # decoder ignores sample_directions (OSGDecoder-style)
        return out[:, 0, :], out[:, 1:4, :]          # sigma (N,Mflat), rgb (N,3,Mflat)

    # ---- sampling -----------------------------------------------------------
    def sample_stratified(self, ray_start, ray_end, depth_resolution, key):
        # ray_start/ray_end (N, M, 1) -> depths (N, D, M)
        N, M, _ = ray_start.shape
        D = depth_resolution
        rs = ray_start[..., 0][:, None, :]                                # (N,1,M)
        re = ray_end[..., 0][:, None, :]
        steps = jnp.arange(D, dtype=jnp.float32).reshape(1, D, 1)
        delta = (re - rs) / (D - 1)
        depths = rs + steps * delta
        depths = depths + jax.random.uniform(key, (N, D, M), jnp.float32) * delta
        return depths

    def sample_importance(self, z_vals, weights, n_importance, key):
        # z_vals (N, S, M), weights (N, S-1, M)
        N, S, M = z_vals.shape
        NR = N * M
        # TODO(synk): per-ray pooling + inverse-CDF sampling stay in JAX glue
        # (only depth/weight-sized tensors are transposed here).
        z = jnp.transpose(z_vals, (0, 2, 1)).reshape(NR, S)
        w = jnp.transpose(weights, (0, 2, 1)).reshape(NR, S - 1)
        neg_inf = jnp.full((NR, 1), -jnp.inf, w.dtype)
        wp = jnp.concatenate([neg_inf, w, neg_inf], axis=1)               # max_pool pad=1
        wmax = jnp.maximum(wp[:, :-1], wp[:, 1:])                         # kernel 2, stride 1
        wavg = 0.5 * (wmax[:, :-1] + wmax[:, 1:])                         # avg_pool kernel 2
        w = wavg + 0.01
        z_mid = 0.5 * (z[:, :-1] + z[:, 1:])
        samples = sample_pdf(z_mid, w[:, 1:-1], n_importance, key)        # (NR, n_imp)
        return jnp.transpose(samples.reshape(N, M, n_importance), (0, 2, 1))  # (N,n_imp,M)

    # ---- forward -------------------------------------------------------------
    def forward(self, feature_map, ray_origins, ray_directions, key):
        opts = self.rendering_options
        key_c, key_u = jax.random.split(key)

        ray_start, ray_end = get_ray_limits_box(ray_origins, ray_directions,
                                                box_side_length=opts['box_warp'])
        is_valid = ray_end > ray_start
        any_valid = jnp.any(is_valid)
        vmin = jnp.min(jnp.where(is_valid, ray_start, jnp.inf))
        vmax = jnp.max(jnp.where(is_valid, ray_start, -jnp.inf))  # NOTE: matches reference
        keep = is_valid | jnp.logical_not(any_valid)
        ray_start = jnp.where(keep, ray_start, vmin)
        ray_end = jnp.where(keep, ray_end, vmax)

        N, M, _ = ray_origins.shape
        S = opts['depth_resolution']
        depths_coarse = self.sample_stratified(ray_start, ray_end, S, key_c)  # (N,S,M)

        ro_t = jnp.transpose(ray_origins, (0, 2, 1))       # (N,3,M)  (tiny)
        rd_t = jnp.transpose(ray_directions, (0, 2, 1))    # (N,3,M)

        def make_coords(depths):
            Sx = depths.shape[1]
            c = ro_t[:, :, None, :] + depths[:, None, :, :] * rd_t[:, :, None, :]
            return c.reshape(N, 3, Sx * M)                 # flat sample index = s*M + m

        sigma, rgb = self.run_model(feature_map, make_coords(depths_coarse))
        densities_coarse = sigma.reshape(N, S, M)
        colors_coarse = rgb.reshape(N, 3, S, M)

        n_imp = opts['depth_resolution_importance']
        _, _, weights, _ = self.ray_march(colors_coarse, densities_coarse, depths_coarse)
        depths_fine = self.sample_importance(depths_coarse, weights, n_imp, key_u)

        sigma, rgb = self.run_model(feature_map, make_coords(depths_fine))
        densities_fine = sigma.reshape(N, n_imp, M)
        colors_fine = rgb.reshape(N, 3, n_imp, M)

        all_d, all_c, all_s = unify_samples(depths_coarse, colors_coarse, densities_coarse,
                                            depths_fine, colors_fine, densities_fine)
        rgb_f, depth_f, _, wsum = self.ray_march(all_c, all_s, all_d)

        rgb_final = jnp.transpose(rgb_f, (0, 2, 1))        # (N, M, 3)
        depth_final = depth_f[:, :, None]                  # (N, M, 1)
        wsum_final = wsum[:, :, None]                      # (N, M, 1)
        return rgb_final, depth_final, wsum_final


# -----------------------------------------------------------------------------
if __name__ == "__main__":
    key = jax.random.PRNGKey(0)
    k_fmap, k_o, k_t, k_fwd = jax.random.split(key, 4)

    N, C, H, W = 2, 32, 16, 16      # feature_map: NCHW (PyTorch layout)
    M = 16                          # rays per batch element

    feature_map = jax.random.normal(k_fmap, (N, C, H, W), jnp.float32)

    # camera-like rays pointing into the unit box
    origin = jnp.array([0.0, 0.0, 2.7], jnp.float32)
    ray_origins = jnp.broadcast_to(origin, (N, M, 3)) \
        + 0.01 * jax.random.normal(k_o, (N, M, 3), jnp.float32)
    targets = 0.3 * jax.random.uniform(k_t, (N, M, 3), minval=-1.0, maxval=1.0)
    d = targets - ray_origins
    ray_directions = d / jnp.linalg.norm(d, axis=-1, keepdims=True)

    renderer = ImportanceRendererPallas(feature_channels=C, hidden=64)
    fwd = jax.jit(renderer.forward)
    rgb, depth, wsum = fwd(feature_map, ray_origins, ray_directions, k_fwd)
    (rgb, depth, wsum) = jax.block_until_ready((rgb, depth, wsum))

    assert rgb.shape == (N, M, 3)
    assert depth.shape == (N, M, 1)
    assert wsum.shape == (N, M, 1)
    assert bool(jnp.all(jnp.isfinite(rgb))) and bool(jnp.all(jnp.isfinite(depth)))
    assert bool(jnp.all(jnp.isfinite(wsum)))
    print("KERNEL_OK")
</pallas_src>

<mosaic_0001>
module attributes {stable_mosaic.version = 11 : i64} {
  func.func private @main(%arg0: i32) attributes {dimension_semantics = [#tpu.dimension_semantics<core_parallel>], iteration_bounds = array<i64: 2>, tpu.core_type = #tpu.core_type<sc_scalar_subcore>, window_params = []} {
    return
  }
}

module attributes {stable_mosaic.version = 11 : i64} {
  func.func private @main(%arg0: i32) attributes {dimension_semantics = [#tpu.dimension_semantics<core_parallel>], iteration_bounds = array<i64: 2>, tpu.core_type = #tpu.core_type<sc_scalar_subcore>, window_params = []} {
    return
  }
}

module attributes {stable_mosaic.version = 11 : i64} {
  func.func @sample_decode_kernel(%arg0: i32, %arg1: i32, %arg2: memref<1x3x512xf32, #tpu.memory_space<vmem>>, %arg3: memref<1x32x256xbf16, #tpu.memory_space<vmem>>, %arg4: memref<64x32xf32, #tpu.memory_space<vmem>>, %arg5: memref<64x1xf32, #tpu.memory_space<vmem>>, %arg6: memref<4x64xf32, #tpu.memory_space<vmem>>, %arg7: memref<4x1xf32, #tpu.memory_space<vmem>>, %arg8: memref<1x4x512xf32, #tpu.memory_space<vmem>>) attributes {dimension_semantics = [#tpu.dimension_semantics<parallel>, #tpu.dimension_semantics<parallel>], iteration_bounds = array<i64: 2, 2>, scalar_prefetch = 0 : i64, scratch_operands = 0 : i64, tpu.core_type = #tpu.core_type<tc>, window_params = [{transform_indices = @transform_0, window_bounds = array<i64: 1, 3, 512>}, {transform_indices = @transform_1, window_bounds = array<i64: 1, 32, 256>}, {pipeline_mode = #tpu.pipeline_mode<synchronous>, transform_indices = @transform_2, window_bounds = array<i64: 64, 32>}, {pipeline_mode = #tpu.pipeline_mode<synchronous>, transform_indices = @transform_3, window_bounds = array<i64: 64, 1>}, {pipeline_mode = #tpu.pipeline_mode<synchronous>, transform_indices = @transform_4, window_bounds = array<i64: 4, 64>}, {pipeline_mode = #tpu.pipeline_mode<synchronous>, transform_indices = @transform_5, window_bounds = array<i64: 4, 1>}, {transform_indices = @transform_6, window_bounds = array<i64: 1, 4, 512>}]} {
    %c0 = arith.constant 0 : index
    %c0_0 = arith.constant 0 : index
    %c0_1 = arith.constant 0 : index
    %0 = vector.load %arg2[%c0, %c0_0, %c0_1] : memref<1x3x512xf32, #tpu.memory_space<vmem>>, vector<1x3x512xf32>
    %1 = vector.shape_cast %0 : vector<1x3x512xf32> to vector<3x512xf32>
    %c0_2 = arith.constant 0 : index
    %c0_3 = arith.constant 0 : index
    %c0_4 = arith.constant 0 : index
    %2 = vector.load %arg3[%c0_2, %c0_3, %c0_4] : memref<1x32x256xbf16, #tpu.memory_space<vmem>>, vector<1x32x256xbf16>
    %3 = vector.shape_cast %2 : vector<1x32x256xbf16> to vector<32x256xbf16>
    %4 = vector.extract_strided_slice %1 {offsets = [0, 0], sizes = [1, 512], strides = [1, 1]} : vector<3x512xf32> to vector<1x512xf32>
    %5 = vector.extract_strided_slice %1 {offsets = [1, 0], sizes = [1, 512], strides = [1, 1]} : vector<3x512xf32> to vector<1x512xf32>
    %cst = arith.constant 1.000000e+00 : f32
    %6 = vector.broadcast %cst : f32 to vector<1x512xf32>
    %7 = arith.addf %4, %6 : vector<1x512xf32>
    %cst_5 = arith.constant 1.600000e+01 : f32
    %8 = vector.broadcast %cst_5 : f32 to vector<1x512xf32>
    %9 = arith.mulf %7, %8 : vector<1x512xf32>
    %cst_6 = arith.constant 1.000000e+00 : f32
    %10 = vector.broadcast %cst_6 : f32 to vector<1x512xf32>
    %11 = arith.subf %9, %10 : vector<1x512xf32>
    %cst_7 = arith.constant 5.000000e-01 : f32
    %12 = vector.broadcast %cst_7 : f32 to vector<1x512xf32>
    %13 = arith.mulf %11, %12 : vector<1x512xf32>
    %cst_8 = arith.constant 1.000000e+00 : f32
    %14 = vector.broadcast %cst_8 : f32 to vector<1x512xf32>
    %15 = arith.addf %5, %14 : vector<1x512xf32>
    %cst_9 = arith.constant 1.600000e+01 : f32
    %16 = vector.broadcast %cst_9 : f32 to vector<1x512xf32>
    %17 = arith.mulf %15, %16 : vector<1x512xf32>
    %cst_10 = arith.constant 1.000000e+00 : f32
    %18 = vector.broadcast %cst_10 : f32 to vector<1x512xf32>
    %19 = arith.subf %17, %18 : vector<1x512xf32>
    %cst_11 = arith.constant 5.000000e-01 : f32
    %20 = vector.broadcast %cst_11 : f32 to vector<1x512xf32>
    %21 = arith.mulf %19, %20 : vector<1x512xf32>
    %22 = math.floor %13 : vector<1x512xf32>
    %23 = math.floor %21 : vector<1x512xf32>
    %cst_12 = arith.constant 1.000000e+00 : f32
    %24 = vector.broadcast %cst_12 : f32 to vector<1x512xf32>
    %25 = arith.addf %22, %24 : vector<1x512xf32>
    %cst_13 = arith.constant 1.000000e+00 : f32
    %26 = vector.broadcast %cst_13 : f32 to vector<1x512xf32>
    %27 = arith.addf %23, %26 : vector<1x512xf32>
    %28 = arith.subf %13, %22 : vector<1x512xf32>
    %cst_14 = arith.constant 1.000000e+00 : f32
    %29 = vector.broadcast %cst_14 : f32 to vector<1x512xf32>
    %30 = arith.subf %29, %28 : vector<1x512xf32>
    %31 = arith.subf %21, %23 : vector<1x512xf32>
    %cst_15 = arith.constant 1.000000e+00 : f32
    %32 = vector.broadcast %cst_15 : f32 to vector<1x512xf32>
    %33 = arith.subf %32, %31 : vector<1x512xf32>
    %34 = tpu.iota {dimensions = array<i32: 0>} : vector<256x512xi32>
    %35 = arith.mulf %30, %33 : vector<1x512xf32>
    %cst_16 = arith.constant 0.000000e+00 : f32
    %36 = vector.broadcast %cst_16 : f32 to vector<1x512xf32>
    %37 = arith.cmpf oge, %22, %36 : vector<1x512xf32>
    %cst_17 = arith.constant 1.500000e+01 : f32
    %38 = vector.broadcast %cst_17 : f32 to vector<1x512xf32>
    %39 = arith.cmpf ole, %22, %38 : vector<1x512xf32>
    %40 = arith.andi %37, %39 : vector<1x512xi1>
    %cst_18 = arith.constant 0.000000e+00 : f32
    %41 = vector.broadcast %cst_18 : f32 to vector<1x512xf32>
    %42 = arith.cmpf oge, %23, %41 : vector<1x512xf32>
    %43 = arith.andi %40, %42 : vector<1x512xi1>
    %cst_19 = arith.constant 1.500000e+01 : f32
    %44 = vector.broadcast %cst_19 : f32 to vector<1x512xf32>
    %45 = arith.cmpf ole, %23, %44 : vector<1x512xf32>
    %46 = arith.andi %43, %45 : vector<1x512xi1>
    %47 = arith.fptosi %23 : vector<1x512xf32> to vector<1x512xi32>
    %c16_i32 = arith.constant 16 : i32
    %48 = vector.broadcast %c16_i32 : i32 to vector<1x512xi32>
    %49 = arith.muli %47, %48 : vector<1x512xi32>
    %50 = arith.fptosi %22 : vector<1x512xf32> to vector<1x512xi32>
    %51 = arith.addi %49, %50 : vector<1x512xi32>
    %c-1_i32 = arith.constant -1 : i32
    %52 = vector.broadcast %c-1_i32 : i32 to vector<1x512xi32>
    %53 = arith.select %46, %51, %52 : vector<1x512xi1>, vector<1x512xi32>
    %54 = vector.broadcast %53 : vector<1x512xi32> to vector<256x512xi32>
    %55 = arith.cmpi eq, %34, %54 : vector<256x512xi32>
    %cst_20 = arith.constant 0.000000e+00 : f32
    %56 = vector.shape_cast %35 : vector<1x512xf32> to vector<1x512xf32>
    %57 = vector.broadcast %56 : vector<1x512xf32> to vector<256x512xf32>
    %58 = vector.broadcast %cst_20 : f32 to vector<256x512xf32>
    %59 = arith.select %55, %57, %58 : vector<256x512xi1>, vector<256x512xf32>
    %60 = arith.mulf %28, %33 : vector<1x512xf32>
    %cst_21 = arith.constant 0.000000e+00 : f32
    %61 = vector.broadcast %cst_21 : f32 to vector<1x512xf32>
    %62 = arith.cmpf oge, %25, %61 : vector<1x512xf32>
    %cst_22 = arith.constant 1.500000e+01 : f32
    %63 = vector.broadcast %cst_22 : f32 to vector<1x512xf32>
    %64 = arith.cmpf ole, %25, %63 : vector<1x512xf32>
    %65 = arith.andi %62, %64 : vector<1x512xi1>
    %cst_23 = arith.constant 0.000000e+00 : f32
    %66 = vector.broadcast %cst_23 : f32 to vector<1x512xf32>
    %67 = arith.cmpf oge, %23, %66 : vector<1x512xf32>
    %68 = arith.andi %65, %67 : vector<1x512xi1>
    %cst_24 = arith.constant 1.500000e+01 : f32
    %69 = vector.broadcast %cst_24 : f32 to vector<1x512xf32>
    %70 = arith.cmpf ole, %23, %69 : vector<1x512xf32>
    %71 = arith.andi %68, %70 : vector<1x512xi1>
    %72 = arith.fptosi %23 : vector<1x512xf32> to vector<1x512xi32>
    %c16_i32_25 = arith.constant 16 : i32
    %73 = vector.broadcast %c16_i32_25 : i32 to vector<1x512xi32>
    %74 = arith.muli %72, %73 : vector<1x512xi32>
    %75 = arith.fptosi %25 : vector<1x512xf32> to vector<1x512xi32>
    %76 = arith.addi %74, %75 : vector<1x512xi32>
    %c-1_i32_26 = arith.constant -1 : i32
    %77 = vector.broadcast %c-1_i32_26 : i32 to vector<1x512xi32>
    %78 = arith.select %71, %76, %77 : vector<1x512xi1>, vector<1x512xi32>
    %79 = vector.broadcast %78 : vector<1x512xi32> to vector<256x512xi32>
    %80 = arith.cmpi eq, %34, %79 : vector<256x512xi32>
    %cst_27 = arith.constant 0.000000e+00 : f32
    %81 = vector.shape_cast %60 : vector<1x512xf32> to vector<1x512xf32>
    %82 = vector.broadcast %81 : vector<1x512xf32> to vector<256x512xf32>
    %83 = vector.broadcast %cst_27 : f32 to vector<256x512xf32>
    %84 = arith.select %80, %82, %83 : vector<256x512xi1>, vector<256x512xf32>
    %85 = arith.addf %59, %84 : vector<256x512xf32>
    %86 = arith.mulf %30, %31 : vector<1x512xf32>
    %cst_28 = arith.constant 0.000000e+00 : f32
    %87 = vector.broadcast %cst_28 : f32 to vector<1x512xf32>
    %88 = arith.cmpf oge, %22, %87 : vector<1x512xf32>
    %cst_29 = arith.constant 1.500000e+01 : f32
    %89 = vector.broadcast %cst_29 : f32 to vector<1x512xf32>
    %90 = arith.cmpf ole, %22, %89 : vector<1x512xf32>
    %91 = arith.andi %88, %90 : vector<1x512xi1>
    %cst_30 = arith.constant 0.000000e+00 : f32
    %92 = vector.broadcast %cst_30 : f32 to vector<1x512xf32>
    %93 = arith.cmpf oge, %27, %92 : vector<1x512xf32>
    %94 = arith.andi %91, %93 : vector<1x512xi1>
    %cst_31 = arith.constant 1.500000e+01 : f32
    %95 = vector.broadcast %cst_31 : f32 to vector<1x512xf32>
    %96 = arith.cmpf ole, %27, %95 : vector<1x512xf32>
    %97 = arith.andi %94, %96 : vector<1x512xi1>
    %98 = arith.fptosi %27 : vector<1x512xf32> to vector<1x512xi32>
    %c16_i32_32 = arith.constant 16 : i32
    %99 = vector.broadcast %c16_i32_32 : i32 to vector<1x512xi32>
    %100 = arith.muli %98, %99 : vector<1x512xi32>
    %101 = arith.fptosi %22 : vector<1x512xf32> to vector<1x512xi32>
    %102 = arith.addi %100, %101 : vector<1x512xi32>
    %c-1_i32_33 = arith.constant -1 : i32
    %103 = vector.broadcast %c-1_i32_33 : i32 to vector<1x512xi32>
    %104 = arith.select %97, %102, %103 : vector<1x512xi1>, vector<1x512xi32>
    %105 = vector.broadcast %104 : vector<1x512xi32> to vector<256x512xi32>
    %106 = arith.cmpi eq, %34, %105 : vector<256x512xi32>
    %cst_34 = arith.constant 0.000000e+00 : f32
    %107 = vector.shape_cast %86 : vector<1x512xf32> to vector<1x512xf32>
    %108 = vector.broadcast %107 : vector<1x512xf32> to vector<256x512xf32>
    %109 = vector.broadcast %cst_34 : f32 to vector<256x512xf32>
    %110 = arith.select %106, %108, %109 : vector<256x512xi1>, vector<256x512xf32>
    %111 = arith.addf %85, %110 : vector<256x512xf32>
    %112 = arith.mulf %28, %31 : vector<1x512xf32>
    %cst_35 = arith.constant 0.000000e+00 : f32
    %113 = vector.broadcast %cst_35 : f32 to vector<1x512xf32>
    %114 = arith.cmpf oge, %25, %113 : vector<1x512xf32>
    %cst_36 = arith.constant 1.500000e+01 : f32
    %115 = vector.broadcast %cst_36 : f32 to vector<1x512xf32>
    %116 = arith.cmpf ole, %25, %115 : vector<1x512xf32>
    %117 = arith.andi %114, %116 : vector<1x512xi1>
    %cst_37 = arith.constant 0.000000e+00 : f32
    %118 = vector.broadcast %cst_37 : f32 to vector<1x512xf32>
    %119 = arith.cmpf oge, %27, %118 : vector<1x512xf32>
    %120 = arith.andi %117, %119 : vector<1x512xi1>
    %cst_38 = arith.constant 1.500000e+01 : f32
    %121 = vector.broadcast %cst_38 : f32 to vector<1x512xf32>
    %122 = arith.cmpf ole, %27, %121 : vector<1x512xf32>
    %123 = arith.andi %120, %122 : vector<1x512xi1>
    %124 = arith.fptosi %27 : vector<1x512xf32> to vector<1x512xi32>
    %c16_i32_39 = arith.constant 16 : i32
    %125 = vector.broadcast %c16_i32_39 : i32 to vector<1x512xi32>
    %126 = arith.muli %124, %125 : vector<1x512xi32>
    %127 = arith.fptosi %25 : vector<1x512xf32> to vector<1x512xi32>
    %128 = arith.addi %126, %127 : vector<1x512xi32>
    %c-1_i32_40 = arith.constant -1 : i32
    %129 = vector.broadcast %c-1_i32_40 : i32 to vector<1x512xi32>
    %130 = arith.select %123, %128, %129 : vector<1x512xi1>, vector<1x512xi32>
    %131 = vector.broadcast %130 : vector<1x512xi32> to vector<256x512xi32>
    %132 = arith.cmpi eq, %34, %131 : vector<256x512xi32>
    %cst_41 = arith.constant 0.000000e+00 : f32
    %133 = vector.shape_cast %112 : vector<1x512xf32> to vector<1x512xf32>
    %134 = vector.broadcast %133 : vector<1x512xf32> to vector<256x512xf32>
    %135 = vector.broadcast %cst_41 : f32 to vector<256x512xf32>
    %136 = arith.select %132, %134, %135 : vector<256x512xi1>, vector<256x512xf32>
    %137 = arith.addf %111, %136 : vector<256x512xf32>
    %138 = arith.truncf %137 : vector<256x512xf32> to vector<256x512xbf16>
    %cst_42 = arith.constant dense<0.000000e+00> : vector<32x512xf32>
    %139 = tpu.matmul %3, %138, %cst_42 {dimension_numbers = #tpu.dot_dimension_numbers<[1], [0], [0], [1], [0, 0, 1, 1], [], []>} : vector<32x256xbf16>, vector<256x512xbf16>, vector<32x512xf32> -> vector<32x512xf32>
    %c0_43 = arith.constant 0 : index
    %c0_44 = arith.constant 0 : index
    %140 = vector.load %arg4[%c0_43, %c0_44] : memref<64x32xf32, #tpu.memory_space<vmem>>, vector<64x32xf32>
    %cst_45 = arith.constant dense<0.000000e+00> : vector<64x512xf32>
    %141 = tpu.matmul %140, %139, %cst_45 {dimension_numbers = #tpu.dot_dimension_numbers<[1], [0], [0], [1], [0, 0, 1, 1], [], []>} : vector<64x32xf32>, vector<32x512xf32>, vector<64x512xf32> -> vector<64x512xf32>
    %c0_46 = arith.constant 0 : index
    %c0_47 = arith.constant 0 : index
    %142 = vector.load %arg5[%c0_46, %c0_47] : memref<64x1xf32, #tpu.memory_space<vmem>>, vector<64x1xf32>
    %143 = vector.broadcast %142 : vector<64x1xf32> to vector<64x512xf32>
    %144 = arith.addf %141, %143 : vector<64x512xf32>
    %cst_48 = arith.constant 0.000000e+00 : f32
    %145 = vector.broadcast %cst_48 : f32 to vector<64x512xf32>
    %146 = arith.maximumf %144, %145 : vector<64x512xf32>
    %147 = math.absf %144 : vector<64x512xf32>
    %cst_49 = arith.constant 0.000000e+00 : f32
    %148 = vector.broadcast %cst_49 : f32 to vector<64x512xf32>
    %149 = arith.subf %148, %147 : vector<64x512xf32>
    %150 = math.exp %149 : vector<64x512xf32>
    %cst_50 = arith.constant 1.000000e+00 : f32
    %151 = vector.broadcast %cst_50 : f32 to vector<64x512xf32>
    %152 = arith.addf %151, %150 : vector<64x512xf32>
    %153 = math.log %152 : vector<64x512xf32>
    %154 = arith.addf %146, %153 : vector<64x512xf32>
    %c0_51 = arith.constant 0 : index
    %c0_52 = arith.constant 0 : index
    %155 = vector.load %arg6[%c0_51, %c0_52] : memref<4x64xf32, #tpu.memory_space<vmem>>, vector<4x64xf32>
    %cst_53 = arith.constant dense<0.000000e+00> : vector<4x512xf32>
    %156 = tpu.matmul %155, %154, %cst_53 {dimension_numbers = #tpu.dot_dimension_numbers<[1], [0], [0], [1], [0, 0, 1, 1], [], []>} : vector<4x64xf32>, vector<64x512xf32>, vector<4x512xf32> -> vector<4x512xf32>
    %c0_54 = arith.constant 0 : index
    %c0_55 = arith.constant 0 : index
    %157 = vector.load %arg7[%c0_54, %c0_55] : memref<4x1xf32, #tpu.memory_space<vmem>>, vector<4x1xf32>
    %158 = vector.broadcast %157 : vector<4x1xf32> to vector<4x512xf32>
    %159 = arith.addf %156, %158 : vector<4x512xf32>
    %160 = tpu.iota {dimensions = array<i32: 0>} : vector<4x512xi32>
    %c0_i32 = arith.constant 0 : i32
    %161 = vector.broadcast %c0_i32 : i32 to vector<4x512xi32>
    %162 = arith.cmpi eq, %160, %161 : vector<4x512xi32>
    %cst_56 = arith.constant 0.000000e+00 : f32
    %163 = vector.broadcast %cst_56 : f32 to vector<4x512xf32>
    %164 = arith.subf %163, %159 : vector<4x512xf32>
    %165 = math.exp %164 : vector<4x512xf32>
    %cst_57 = arith.constant 1.000000e+00 : f32
    %166 = vector.broadcast %cst_57 : f32 to vector<4x512xf32>
    %167 = arith.addf %166, %165 : vector<4x512xf32>
    %168 = tpu.reciprocal %167 {approx = true} : vector<4x512xf32> -> vector<4x512xf32>
    %cst_58 = arith.constant 1.002000e+00 : f32
    %169 = vector.broadcast %cst_58 : f32 to vector<4x512xf32>
    %170 = arith.mulf %168, %169 : vector<4x512xf32>
    %cst_59 = arith.constant 1.000000e-03 : f32
    %171 = vector.broadcast %cst_59 : f32 to vector<4x512xf32>
    %172 = arith.subf %170, %171 : vector<4x512xf32>
    %173 = arith.select %162, %159, %172 : vector<4x512xi1>, vector<4x512xf32>
    %c0_60 = arith.constant 0 : index
    %c0_61 = arith.constant 0 : index
    %c0_62 = arith.constant 0 : index
    %174 = vector.load %arg8[%c0_60, %c0_61, %c0_62] : memref<1x4x512xf32, #tpu.memory_space<vmem>>, vector<1x4x512xf32>
    %175 = vector.shape_cast %174 : vector<1x4x512xf32> to vector<4x512xf32>
    %176 = vector.shape_cast %173 : vector<4x512xf32> to vector<1x4x512xf32>
    tpu.vector_store %arg8[%c0_60, %c0_61, %c0_62], %176 {strides = array<i32>} : memref<1x4x512xf32, #tpu.memory_space<vmem>>, vector<1x4x512xf32>,
    return
  }
  func.func @transform_0(%arg0: i32, %arg1: i32) -> (i32, i32, i32) {
    %c0_i32 = arith.constant 0 : i32
    %c0_i32_0 = arith.constant 0 : i32
    return %arg0, %c0_i32, %arg1 : i32, i32, i32
  }
  func.func @transform_1(%arg0: i32, %arg1: i32) -> (i32, i32, i32) {
    %c0_i32 = arith.constant 0 : i32
    %c0_i32_0 = arith.constant 0 : i32
    %c0_i32_1 = arith.constant 0 : i32
    return %arg0, %c0_i32, %c0_i32_0 : i32, i32, i32
  }
  func.func @transform_2(%arg0: i32, %arg1: i32) -> (i32, i32) {
    %c0_i32 = arith.constant 0 : i32
    %c0_i32_0 = arith.constant 0 : i32
    %c0_i32_1 = arith.constant 0 : i32
    return %c0_i32, %c0_i32_0 : i32, i32
  }
  func.func @transform_3(%arg0: i32, %arg1: i32) -> (i32, i32) {
    %c0_i32 = arith.constant 0 : i32
    %c0_i32_0 = arith.constant 0 : i32
    %c0_i32_1 = arith.constant 0 : i32
    return %c0_i32, %c0_i32_0 : i32, i32
  }
  func.func @transform_4(%arg0: i32, %arg1: i32) -> (i32, i32) {
    %c0_i32 = arith.constant 0 : i32
    %c0_i32_0 = arith.constant 0 : i32
    %c0_i32_1 = arith.constant 0 : i32
    return %c0_i32, %c0_i32_0 : i32, i32
  }
  func.func @transform_5(%arg0: i32, %arg1: i32) -> (i32, i32) {
    %c0_i32 = arith.constant 0 : i32
    %c0_i32_0 = arith.constant 0 : i32
    %c0_i32_1 = arith.constant 0 : i32
    return %c0_i32, %c0_i32_0 : i32, i32
  }
  func.func @transform_6(%arg0: i32, %arg1: i32) -> (i32, i32, i32) {
    %c0_i32 = arith.constant 0 : i32
    %c0_i32_0 = arith.constant 0 : i32
    return %arg0, %c0_i32, %arg1 : i32, i32, i32
  }
}

module attributes {stable_mosaic.version = 11 : i64} {
  func.func @mip_ray_marcher_kernel(%arg0: i32, %arg1: i32, %arg2: memref<1x3x48x128xf32, #tpu.memory_space<vmem>>, %arg3: memref<1x48x128xf32, #tpu.memory_space<vmem>>, %arg4: memref<1x48x128xf32, #tpu.memory_space<vmem>>, %arg5: memref<47x47xf32, #tpu.memory_space<vmem>>, %arg6: memref<1x8x128xf32, #tpu.memory_space<vmem>>, %arg7: memref<1x47x128xf32, #tpu.memory_space<vmem>>) attributes {dimension_semantics = [#tpu.dimension_semantics<parallel>, #tpu.dimension_semantics<parallel>], iteration_bounds = array<i64: 2, 1>, scalar_prefetch = 0 : i64, scratch_operands = 0 : i64, tpu.core_type = #tpu.core_type<tc>, window_params = [{transform_indices = @transform_0, window_bounds = array<i64: 1, 3, 48, 128>}, {transform_indices = @transform_1, window_bounds = array<i64: 1, 48, 128>}, {transform_indices = @transform_2, window_bounds = array<i64: 1, 48, 128>}, {pipeline_mode = #tpu.pipeline_mode<synchronous>, transform_indices = @transform_3, window_bounds = array<i64: 47, 47>}, {transform_indices = @transform_4, window_bounds = array<i64: 1, 8, 128>}, {transform_indices = @transform_5, window_bounds = array<i64: 1, 47, 128>}]} {
    %c0 = arith.constant 0 : index
    %c0_0 = arith.constant 0 : index
    %c0_1 = arith.constant 0 : index
    %0 = vector.load %arg4[%c0, %c0_0, %c0_1] : memref<1x48x128xf32, #tpu.memory_space<vmem>>, vector<1x48x128xf32>
    %1 = vector.shape_cast %0 : vector<1x48x128xf32> to vector<48x128xf32>
    %2 = vector.extract_strided_slice %1 {offsets = [0, 0], sizes = [47, 128], strides = [1, 1]} : vector<48x128xf32> to vector<47x128xf32>
    %3 = vector.extract_strided_slice %1 {offsets = [1, 0], sizes = [47, 128], strides = [1, 1]} : vector<48x128xf32> to vector<47x128xf32>
    %4 = arith.subf %3, %2 : vector<47x128xf32>
    %5 = arith.addf %2, %3 : vector<47x128xf32>
    %cst = arith.constant 5.000000e-01 : f32
    %6 = vector.broadcast %cst : f32 to vector<47x128xf32>
    %7 = arith.mulf %5, %6 : vector<47x128xf32>
    %c0_2 = arith.constant 0 : index
    %c0_3 = arith.constant 0 : index
    %c0_4 = arith.constant 0 : index
    %8 = vector.load %arg3[%c0_2, %c0_3, %c0_4] : memref<1x48x128xf32, #tpu.memory_space<vmem>>, vector<1x48x128xf32>
    %9 = vector.shape_cast %8 : vector<1x48x128xf32> to vector<48x128xf32>
    %10 = vector.extract_strided_slice %9 {offsets = [0, 0], sizes = [47, 128], strides = [1, 1]} : vector<48x128xf32> to vector<47x128xf32>
    %11 = vector.extract_strided_slice %9 {offsets = [1, 0], sizes = [47, 128], strides = [1, 1]} : vector<48x128xf32> to vector<47x128xf32>
    %12 = arith.addf %10, %11 : vector<47x128xf32>
    %cst_5 = arith.constant 5.000000e-01 : f32
    %13 = vector.broadcast %cst_5 : f32 to vector<47x128xf32>
    %14 = arith.mulf %12, %13 : vector<47x128xf32>
    %cst_6 = arith.constant 1.000000e+00 : f32
    %15 = vector.broadcast %cst_6 : f32 to vector<47x128xf32>
    %16 = arith.subf %14, %15 : vector<47x128xf32>
    %cst_7 = arith.constant 0.000000e+00 : f32
    %17 = vector.broadcast %cst_7 : f32 to vector<47x128xf32>
    %18 = arith.maximumf %16, %17 : vector<47x128xf32>
    %19 = math.absf %16 : vector<47x128xf32>
    %cst_8 = arith.constant 0.000000e+00 : f32
    %20 = vector.broadcast %cst_8 : f32 to vector<47x128xf32>
    %21 = arith.subf %20, %19 : vector<47x128xf32>
    %22 = math.exp %21 : vector<47x128xf32>
    %cst_9 = arith.constant 1.000000e+00 : f32
    %23 = vector.broadcast %cst_9 : f32 to vector<47x128xf32>
    %24 = arith.addf %23, %22 : vector<47x128xf32>
    %25 = math.log %24 : vector<47x128xf32>
    %26 = arith.addf %18, %25 : vector<47x128xf32>
    %cst_10 = arith.constant 0.000000e+00 : f32
    %27 = vector.broadcast %cst_10 : f32 to vector<47x128xf32>
    %28 = arith.subf %27, %26 : vector<47x128xf32>
    %29 = arith.mulf %28, %4 : vector<47x128xf32>
    %30 = math.exp %29 : vector<47x128xf32>
    %cst_11 = arith.constant 1.000000e+00 : f32
    %31 = vector.broadcast %cst_11 : f32 to vector<47x128xf32>
    %32 = arith.subf %31, %30 : vector<47x128xf32>
    %cst_12 = arith.constant 1.000000e+00 : f32
    %33 = vector.broadcast %cst_12 : f32 to vector<47x128xf32>
    %34 = arith.subf %33, %32 : vector<47x128xf32>
    %cst_13 = arith.constant 1.000000e-10 : f32
    %35 = vector.broadcast %cst_13 : f32 to vector<47x128xf32>
    %36 = arith.addf %34, %35 : vector<47x128xf32>
    %37 = math.log %36 : vector<47x128xf32>
    %c0_14 = arith.constant 0 : index
    %c0_15 = arith.constant 0 : index
    %38 = vector.load %arg5[%c0_14, %c0_15] : memref<47x47xf32, #tpu.memory_space<vmem>>, vector<47x47xf32>
    %cst_16 = arith.constant dense<0.000000e+00> : vector<47x128xf32>
    %39 = tpu.matmul %38, %37, %cst_16 {dimension_numbers = #tpu.dot_dimension_numbers<[1], [0], [0], [1], [0, 0, 1, 1], [], []>} : vector<47x47xf32>, vector<47x128xf32>, vector<47x128xf32> -> vector<47x128xf32>
    %40 = math.exp %39 : vector<47x128xf32>
    %41 = arith.mulf %32, %40 : vector<47x128xf32>
    %c0_17 = arith.constant 0 : index
    %c0_18 = arith.constant 0 : index
    %c0_19 = arith.constant 0 : index
    %42 = vector.load %arg7[%c0_17, %c0_18, %c0_19] : memref<1x47x128xf32, #tpu.memory_space<vmem>>, vector<1x47x128xf32>
    %43 = vector.shape_cast %42 : vector<1x47x128xf32> to vector<47x128xf32>
    %44 = vector.shape_cast %41 : vector<47x128xf32> to vector<1x47x128xf32>
    tpu.vector_store %arg7[%c0_17, %c0_18, %c0_19], %44 {strides = array<i32>} : memref<1x47x128xf32, #tpu.memory_space<vmem>>, vector<1x47x128xf32>,
    %cst_20 = arith.constant dense<0.000000e+00> : vector<128xf32>
    %45 = vector.multi_reduction <add>, %41, %cst_20 [0] : vector<47x128xf32> to vector<128xf32>
    %46 = vector.shape_cast %45 : vector<128xf32> to vector<1x128xf32>
    %47 = arith.mulf %41, %7 : vector<47x128xf32>
    %cst_21 = arith.constant dense<0.000000e+00> : vector<128xf32>
    %48 = vector.multi_reduction <add>, %47, %cst_21 [0] : vector<47x128xf32> to vector<128xf32>
    %49 = vector.shape_cast %48 : vector<128xf32> to vector<1x128xf32>
    %50 = tpu.reciprocal %46 {approx = true} : vector<1x128xf32> -> vector<1x128xf32>
    %51 = arith.mulf %46, %50 : vector<1x128xf32>
    %cst_22 = arith.constant 2.000000e+00 : f32
    %52 = vector.broadcast %cst_22 : f32 to vector<1x128xf32>
    %53 = arith.subf %52, %51 : vector<1x128xf32>
    %54 = arith.mulf %50, %53 : vector<1x128xf32>
    %cst_23 = arith.constant 0.000000e+00 : f32
    %55 = vector.broadcast %cst_23 : f32 to vector<1x128xf32>
    %56 = arith.cmpf ogt, %46, %55 : vector<1x128xf32>
    %57 = arith.mulf %49, %54 : vector<1x128xf32>
    %cst_24 = arith.constant 0x7F800000 : f32
    %58 = vector.broadcast %cst_24 : f32 to vector<1x128xf32>
    %59 = arith.select %56, %57, %58 : vector<1x128xi1>, vector<1x128xf32>
    %c0_25 = arith.constant 0 : index
    %c0_26 = arith.constant 0 : index
    %c0_27 = arith.constant 0 : index
    %c0_28 = arith.constant 0 : index
    %60 = vector.load %arg2[%c0_25, %c0_26, %c0_27, %c0_28] : memref<1x3x48x128xf32, #tpu.memory_space<vmem>>, vector<1x3x48x128xf32>
    %61 = vector.shape_cast %60 : vector<1x3x48x128xf32> to vector<3x48x128xf32>
    %62 = vector.extract_strided_slice %61 {offsets = [0, 0, 0], sizes = [1, 47, 128], strides = [1, 1, 1]} : vector<3x48x128xf32> to vector<1x47x128xf32>
    %63 = vector.shape_cast %62 : vector<1x47x128xf32> to vector<47x128xf32>
    %64 = vector.extract_strided_slice %61 {offsets = [0, 1, 0], sizes = [1, 47, 128], strides = [1, 1, 1]} : vector<3x48x128xf32> to vector<1x47x128xf32>
    %65 = vector.shape_cast %64 : vector<1x47x128xf32> to vector<47x128xf32>
    %66 = arith.addf %63, %65 : vector<47x128xf32>
    %cst_29 = arith.constant 5.000000e-01 : f32
    %67 = vector.broadcast %cst_29 : f32 to vector<47x128xf32>
    %68 = arith.mulf %66, %67 : vector<47x128xf32>
    %69 = arith.mulf %41, %68 : vector<47x128xf32>
    %cst_30 = arith.constant dense<0.000000e+00> : vector<128xf32>
    %70 = vector.multi_reduction <add>, %69, %cst_30 [0] : vector<47x128xf32> to vector<128xf32>
    %71 = vector.shape_cast %70 : vector<128xf32> to vector<1x128xf32>
    %cst_31 = arith.constant 2.000000e+00 : f32
    %72 = vector.broadcast %cst_31 : f32 to vector<1x128xf32>
    %73 = arith.mulf %71, %72 : vector<1x128xf32>
    %cst_32 = arith.constant 1.000000e+00 : f32
    %74 = vector.broadcast %cst_32 : f32 to vector<1x128xf32>
    %75 = arith.subf %73, %74 : vector<1x128xf32>
    %76 = vector.extract_strided_slice %61 {offsets = [1, 0, 0], sizes = [1, 47, 128], strides = [1, 1, 1]} : vector<3x48x128xf32> to vector<1x47x128xf32>
    %77 = vector.shape_cast %76 : vector<1x47x128xf32> to vector<47x128xf32>
    %78 = vector.extract_strided_slice %61 {offsets = [1, 1, 0], sizes = [1, 47, 128], strides = [1, 1, 1]} : vector<3x48x128xf32> to vector<1x47x128xf32>
    %79 = vector.shape_cast %78 : vector<1x47x128xf32> to vector<47x128xf32>
    %80 = arith.addf %77, %79 : vector<47x128xf32>
    %cst_33 = arith.constant 5.000000e-01 : f32
    %81 = vector.broadcast %cst_33 : f32 to vector<47x128xf32>
    %82 = arith.mulf %80, %81 : vector<47x128xf32>
    %83 = arith.mulf %41, %82 : vector<47x128xf32>
    %cst_34 = arith.constant dense<0.000000e+00> : vector<128xf32>
    %84 = vector.multi_reduction <add>, %83, %cst_34 [0] : vector<47x128xf32> to vector<128xf32>
    %85 = vector.shape_cast %84 : vector<128xf32> to vector<1x128xf32>
    %cst_35 = arith.constant 2.000000e+00 : f32
    %86 = vector.broadcast %cst_35 : f32 to vector<1x128xf32>
    %87 = arith.mulf %85, %86 : vector<1x128xf32>
    %cst_36 = arith.constant 1.000000e+00 : f32
    %88 = vector.broadcast %cst_36 : f32 to vector<1x128xf32>
    %89 = arith.subf %87, %88 : vector<1x128xf32>
    %90 = vector.extract_strided_slice %61 {offsets = [2, 0, 0], sizes = [1, 47, 128], strides = [1, 1, 1]} : vector<3x48x128xf32> to vector<1x47x128xf32>
    %91 = vector.shape_cast %90 : vector<1x47x128xf32> to vector<47x128xf32>
    %92 = vector.extract_strided_slice %61 {offsets = [2, 1, 0], sizes = [1, 47, 128], strides = [1, 1, 1]} : vector<3x48x128xf32> to vector<1x47x128xf32>
    %93 = vector.shape_cast %92 : vector<1x47x128xf32> to vector<47x128xf32>
    %94 = arith.addf %91, %93 : vector<47x128xf32>
    %cst_37 = arith.constant 5.000000e-01 : f32
    %95 = vector.broadcast %cst_37 : f32 to vector<47x128xf32>
    %96 = arith.mulf %94, %95 : vector<47x128xf32>
    %97 = arith.mulf %41, %96 : vector<47x128xf32>
    %cst_38 = arith.constant dense<0.000000e+00> : vector<128xf32>
    %98 = vector.multi_reduction <add>, %97, %cst_38 [0] : vector<47x128xf32> to vector<128xf32>
    %99 = vector.shape_cast %98 : vector<128xf32> to vector<1x128xf32>
    %cst_39 = arith.constant 2.000000e+00 : f32
    %100 = vector.broadcast %cst_39 : f32 to vector<1x128xf32>
    %101 = arith.mulf %99, %100 : vector<1x128xf32>
    %cst_40 = arith.constant 1.000000e+00 : f32
    %102 = vector.broadcast %cst_40 : f32 to vector<1x128xf32>
    %103 = arith.subf %101, %102 : vector<1x128xf32>
    %cst_41 = arith.constant 0.000000e+00 : f32
    %104 = vector.broadcast %cst_41 : f32 to vector<3x128xf32>
    %105 = tpu.concatenate %75, %89, %103, %59, %46, %104 in 0 : vector<1x128xf32>, vector<1x128xf32>, vector<1x128xf32>, vector<1x128xf32>, vector<1x128xf32>, vector<3x128xf32> -> vector<8x128xf32>
    %c0_42 = arith.constant 0 : index
    %c0_43 = arith.constant 0 : index
    %c0_44 = arith.constant 0 : index
    %106 = vector.load %arg6[%c0_42, %c0_43, %c0_44] : memref<1x8x128xf32, #tpu.memory_space<vmem>>, vector<1x8x128xf32>
    %107 = vector.shape_cast %106 : vector<1x8x128xf32> to vector<8x128xf32>
    %108 = vector.shape_cast %105 : vector<8x128xf32> to vector<1x8x128xf32>
    tpu.vector_store %arg6[%c0_42, %c0_43, %c0_44], %108 {strides = array<i32>} : memref<1x8x128xf32, #tpu.memory_space<vmem>>, vector<1x8x128xf32>,
    return
  }
  func.func @transform_0(%arg0: i32, %arg1: i32) -> (i32, i32, i32, i32) {
    %c0_i32 = arith.constant 0 : i32
    %c0_i32_0 = arith.constant 0 : i32
    %c0_i32_1 = arith.constant 0 : i32
    return %arg0, %c0_i32, %c0_i32_0, %arg1 : i32, i32, i32, i32
  }
  func.func @transform_1(%arg0: i32, %arg1: i32) -> (i32, i32, i32) {
    %c0_i32 = arith.constant 0 : i32
    %c0_i32_0 = arith.constant 0 : i32
    return %arg0, %c0_i32, %arg1 : i32, i32, i32
  }
  func.func @transform_2(%arg0: i32, %arg1: i32) -> (i32, i32, i32) {
    %c0_i32 = arith.constant 0 : i32
    %c0_i32_0 = arith.constant 0 : i32
    return %arg0, %c0_i32, %arg1 : i32, i32, i32
  }
  func.func @transform_3(%arg0: i32, %arg1: i32) -> (i32, i32) {
    %c0_i32 = arith.constant 0 : i32
    %c0_i32_0 = arith.constant 0 : i32
    %c0_i32_1 = arith.constant 0 : i32
    return %c0_i32, %c0_i32_0 : i32, i32
  }
  func.func @transform_4(%arg0: i32, %arg1: i32) -> (i32, i32, i32) {
    %c0_i32 = arith.constant 0 : i32
    %c0_i32_0 = arith.constant 0 : i32
    return %arg0, %c0_i32, %arg1 : i32, i32, i32
  }
  func.func @transform_5(%arg0: i32, %arg1: i32) -> (i32, i32, i32) {
    %c0_i32 = arith.constant 0 : i32
    %c0_i32_0 = arith.constant 0 : i32
    return %arg0, %c0_i32, %arg1 : i32, i32, i32
  }
}

module attributes {stable_mosaic.version = 11 : i64} {
  func.func @mip_ray_marcher_kernel(%arg0: i32, %arg1: i32, %arg2: memref<1x3x96x128xf32, #tpu.memory_space<vmem>>, %arg3: memref<1x96x128xf32, #tpu.memory_space<vmem>>, %arg4: memref<1x96x128xf32, #tpu.memory_space<vmem>>, %arg5: memref<95x95xf32, #tpu.memory_space<vmem>>, %arg6: memref<1x8x128xf32, #tpu.memory_space<vmem>>, %arg7: memref<1x95x128xf32, #tpu.memory_space<vmem>>) attributes {dimension_semantics = [#tpu.dimension_semantics<parallel>, #tpu.dimension_semantics<parallel>], iteration_bounds = array<i64: 2, 1>, scalar_prefetch = 0 : i64, scratch_operands = 0 : i64, tpu.core_type = #tpu.core_type<tc>, window_params = [{transform_indices = @transform_0, window_bounds = array<i64: 1, 3, 96, 128>}, {transform_indices = @transform_1, window_bounds = array<i64: 1, 96, 128>}, {transform_indices = @transform_2, window_bounds = array<i64: 1, 96, 128>}, {pipeline_mode = #tpu.pipeline_mode<synchronous>, transform_indices = @transform_3, window_bounds = array<i64: 95, 95>}, {transform_indices = @transform_4, window_bounds = array<i64: 1, 8, 128>}, {transform_indices = @transform_5, window_bounds = array<i64: 1, 95, 128>}]} {
    %c0 = arith.constant 0 : index
    %c0_0 = arith.constant 0 : index
    %c0_1 = arith.constant 0 : index
    %0 = vector.load %arg4[%c0, %c0_0, %c0_1] : memref<1x96x128xf32, #tpu.memory_space<vmem>>, vector<1x96x128xf32>
    %1 = vector.shape_cast %0 : vector<1x96x128xf32> to vector<96x128xf32>
    %2 = vector.extract_strided_slice %1 {offsets = [0, 0], sizes = [95, 128], strides = [1, 1]} : vector<96x128xf32> to vector<95x128xf32>
    %3 = vector.extract_strided_slice %1 {offsets = [1, 0], sizes = [95, 128], strides = [1, 1]} : vector<96x128xf32> to vector<95x128xf32>
    %4 = arith.subf %3, %2 : vector<95x128xf32>
    %5 = arith.addf %2, %3 : vector<95x128xf32>
    %cst = arith.constant 5.000000e-01 : f32
    %6 = vector.broadcast %cst : f32 to vector<95x128xf32>
    %7 = arith.mulf %5, %6 : vector<95x128xf32>
    %c0_2 = arith.constant 0 : index
    %c0_3 = arith.constant 0 : index
    %c0_4 = arith.constant 0 : index
    %8 = vector.load %arg3[%c0_2, %c0_3, %c0_4] : memref<1x96x128xf32, #tpu.memory_space<vmem>>, vector<1x96x128xf32>
    %9 = vector.shape_cast %8 : vector<1x96x128xf32> to vector<96x128xf32>
    %10 = vector.extract_strided_slice %9 {offsets = [0, 0], sizes = [95, 128], strides = [1, 1]} : vector<96x128xf32> to vector<95x128xf32>
    %11 = vector.extract_strided_slice %9 {offsets = [1, 0], sizes = [95, 128], strides = [1, 1]} : vector<96x128xf32> to vector<95x128xf32>
    %12 = arith.addf %10, %11 : vector<95x128xf32>
    %cst_5 = arith.constant 5.000000e-01 : f32
    %13 = vector.broadcast %cst_5 : f32 to vector<95x128xf32>
    %14 = arith.mulf %12, %13 : vector<95x128xf32>
    %cst_6 = arith.constant 1.000000e+00 : f32
    %15 = vector.broadcast %cst_6 : f32 to vector<95x128xf32>
    %16 = arith.subf %14, %15 : vector<95x128xf32>
    %cst_7 = arith.constant 0.000000e+00 : f32
    %17 = vector.broadcast %cst_7 : f32 to vector<95x128xf32>
    %18 = arith.maximumf %16, %17 : vector<95x128xf32>
    %19 = math.absf %16 : vector<95x128xf32>
    %cst_8 = arith.constant 0.000000e+00 : f32
    %20 = vector.broadcast %cst_8 : f32 to vector<95x128xf32>
    %21 = arith.subf %20, %19 : vector<95x128xf32>
    %22 = math.exp %21 : vector<95x128xf32>
    %cst_9 = arith.constant 1.000000e+00 : f32
    %23 = vector.broadcast %cst_9 : f32 to vector<95x128xf32>
    %24 = arith.addf %23, %22 : vector<95x128xf32>
    %25 = math.log %24 : vector<95x128xf32>
    %26 = arith.addf %18, %25 : vector<95x128xf32>
    %cst_10 = arith.constant 0.000000e+00 : f32
    %27 = vector.broadcast %cst_10 : f32 to vector<95x128xf32>
    %28 = arith.subf %27, %26 : vector<95x128xf32>
    %29 = arith.mulf %28, %4 : vector<95x128xf32>
    %30 = math.exp %29 : vector<95x128xf32>
    %cst_11 = arith.constant 1.000000e+00 : f32
    %31 = vector.broadcast %cst_11 : f32 to vector<95x128xf32>
    %32 = arith.subf %31, %30 : vector<95x128xf32>
    %cst_12 = arith.constant 1.000000e+00 : f32
    %33 = vector.broadcast %cst_12 : f32 to vector<95x128xf32>
    %34 = arith.subf %33, %32 : vector<95x128xf32>
    %cst_13 = arith.constant 1.000000e-10 : f32
    %35 = vector.broadcast %cst_13 : f32 to vector<95x128xf32>
    %36 = arith.addf %34, %35 : vector<95x128xf32>
    %37 = math.log %36 : vector<95x128xf32>
    %c0_14 = arith.constant 0 : index
    %c0_15 = arith.constant 0 : index
    %38 = vector.load %arg5[%c0_14, %c0_15] : memref<95x95xf32, #tpu.memory_space<vmem>>, vector<95x95xf32>
    %cst_16 = arith.constant dense<0.000000e+00> : vector<95x128xf32>
    %39 = tpu.matmul %38, %37, %cst_16 {dimension_numbers = #tpu.dot_dimension_numbers<[1], [0], [0], [1], [0, 0, 1, 1], [], []>} : vector<95x95xf32>, vector<95x128xf32>, vector<95x128xf32> -> vector<95x128xf32>
    %40 = math.exp %39 : vector<95x128xf32>
    %41 = arith.mulf %32, %40 : vector<95x128xf32>
    %c0_17 = arith.constant 0 : index
    %c0_18 = arith.constant 0 : index
    %c0_19 = arith.constant 0 : index
    %42 = vector.load %arg7[%c0_17, %c0_18, %c0_19] : memref<1x95x128xf32, #tpu.memory_space<vmem>>, vector<1x95x128xf32>
    %43 = vector.shape_cast %42 : vector<1x95x128xf32> to vector<95x128xf32>
    %44 = vector.shape_cast %41 : vector<95x128xf32> to vector<1x95x128xf32>
    tpu.vector_store %arg7[%c0_17, %c0_18, %c0_19], %44 {strides = array<i32>} : memref<1x95x128xf32, #tpu.memory_space<vmem>>, vector<1x95x128xf32>,
    %cst_20 = arith.constant dense<0.000000e+00> : vector<128xf32>
    %45 = vector.multi_reduction <add>, %41, %cst_20 [0] : vector<95x128xf32> to vector<128xf32>
    %46 = vector.shape_cast %45 : vector<128xf32> to vector<1x128xf32>
    %47 = arith.mulf %41, %7 : vector<95x128xf32>
    %cst_21 = arith.constant dense<0.000000e+00> : vector<128xf32>
    %48 = vector.multi_reduction <add>, %47, %cst_21 [0] : vector<95x128xf32> to vector<128xf32>
    %49 = vector.shape_cast %48 : vector<128xf32> to vector<1x128xf32>
    %50 = tpu.reciprocal %46 {approx = true} : vector<1x128xf32> -> vector<1x128xf32>
    %51 = arith.mulf %46, %50 : vector<1x128xf32>
    %cst_22 = arith.constant 2.000000e+00 : f32
    %52 = vector.broadcast %cst_22 : f32 to vector<1x128xf32>
    %53 = arith.subf %52, %51 : vector<1x128xf32>
    %54 = arith.mulf %50, %53 : vector<1x128xf32>
    %cst_23 = arith.constant 0.000000e+00 : f32
    %55 = vector.broadcast %cst_23 : f32 to vector<1x128xf32>
    %56 = arith.cmpf ogt, %46, %55 : vector<1x128xf32>
    %57 = arith.mulf %49, %54 : vector<1x128xf32>
    %cst_24 = arith.constant 0x7F800000 : f32
    %58 = vector.broadcast %cst_24 : f32 to vector<1x128xf32>
    %59 = arith.select %56, %57, %58 : vector<1x128xi1>, vector<1x128xf32>
    %c0_25 = arith.constant 0 : index
    %c0_26 = arith.constant 0 : index
    %c0_27 = arith.constant 0 : index
    %c0_28 = arith.constant 0 : index
    %60 = vector.load %arg2[%c0_25, %c0_26, %c0_27, %c0_28] : memref<1x3x96x128xf32, #tpu.memory_space<vmem>>, vector<1x3x96x128xf32>
    %61 = vector.shape_cast %60 : vector<1x3x96x128xf32> to vector<3x96x128xf32>
    %62 = vector.extract_strided_slice %61 {offsets = [0, 0, 0], sizes = [1, 95, 128], strides = [1, 1, 1]} : vector<3x96x128xf32> to vector<1x95x128xf32>
    %63 = vector.shape_cast %62 : vector<1x95x128xf32> to vector<95x128xf32>
    %64 = vector.extract_strided_slice %61 {offsets = [0, 1, 0], sizes = [1, 95, 128], strides = [1, 1, 1]} : vector<3x96x128xf32> to vector<1x95x128xf32>
    %65 = vector.shape_cast %64 : vector<1x95x128xf32> to vector<95x128xf32>
    %66 = arith.addf %63, %65 : vector<95x128xf32>
    %cst_29 = arith.constant 5.000000e-01 : f32
    %67 = vector.broadcast %cst_29 : f32 to vector<95x128xf32>
    %68 = arith.mulf %66, %67 : vector<95x128xf32>
    %69 = arith.mulf %41, %68 : vector<95x128xf32>
    %cst_30 = arith.constant dense<0.000000e+00> : vector<128xf32>
    %70 = vector.multi_reduction <add>, %69, %cst_30 [0] : vector<95x128xf32> to vector<128xf32>
    %71 = vector.shape_cast %70 : vector<128xf32> to vector<1x128xf32>
    %cst_31 = arith.constant 2.000000e+00 : f32
    %72 = vector.broadcast %cst_31 : f32 to vector<1x128xf32>
    %73 = arith.mulf %71, %72 : vector<1x128xf32>
    %cst_32 = arith.constant 1.000000e+00 : f32
    %74 = vector.broadcast %cst_32 : f32 to vector<1x128xf32>
    %75 = arith.subf %73, %74 : vector<1x128xf32>
    %76 = vector.extract_strided_slice %61 {offsets = [1, 0, 0], sizes = [1, 95, 128], strides = [1, 1, 1]} : vector<3x96x128xf32> to vector<1x95x128xf32>
    %77 = vector.shape_cast %76 : vector<1x95x128xf32> to vector<95x128xf32>
    %78 = vector.extract_strided_slice %61 {offsets = [1, 1, 0], sizes = [1, 95, 128], strides = [1, 1, 1]} : vector<3x96x128xf32> to vector<1x95x128xf32>
    %79 = vector.shape_cast %78 : vector<1x95x128xf32> to vector<95x128xf32>
    %80 = arith.addf %77, %79 : vector<95x128xf32>
    %cst_33 = arith.constant 5.000000e-01 : f32
    %81 = vector.broadcast %cst_33 : f32 to vector<95x128xf32>
    %82 = arith.mulf %80, %81 : vector<95x128xf32>
    %83 = arith.mulf %41, %82 : vector<95x128xf32>
    %cst_34 = arith.constant dense<0.000000e+00> : vector<128xf32>
    %84 = vector.multi_reduction <add>, %83, %cst_34 [0] : vector<95x128xf32> to vector<128xf32>
    %85 = vector.shape_cast %84 : vector<128xf32> to vector<1x128xf32>
    %cst_35 = arith.constant 2.000000e+00 : f32
    %86 = vector.broadcast %cst_35 : f32 to vector<1x128xf32>
    %87 = arith.mulf %85, %86 : vector<1x128xf32>
    %cst_36 = arith.constant 1.000000e+00 : f32
    %88 = vector.broadcast %cst_36 : f32 to vector<1x128xf32>
    %89 = arith.subf %87, %88 : vector<1x128xf32>
    %90 = vector.extract_strided_slice %61 {offsets = [2, 0, 0], sizes = [1, 95, 128], strides = [1, 1, 1]} : vector<3x96x128xf32> to vector<1x95x128xf32>
    %91 = vector.shape_cast %90 : vector<1x95x128xf32> to vector<95x128xf32>
    %92 = vector.extract_strided_slice %61 {offsets = [2, 1, 0], sizes = [1, 95, 128], strides = [1, 1, 1]} : vector<3x96x128xf32> to vector<1x95x128xf32>
    %93 = vector.shape_cast %92 : vector<1x95x128xf32> to vector<95x128xf32>
    %94 = arith.addf %91, %93 : vector<95x128xf32>
    %cst_37 = arith.constant 5.000000e-01 : f32
    %95 = vector.broadcast %cst_37 : f32 to vector<95x128xf32>
    %96 = arith.mulf %94, %95 : vector<95x128xf32>
    %97 = arith.mulf %41, %96 : vector<95x128xf32>
    %cst_38 = arith.constant dense<0.000000e+00> : vector<128xf32>
    %98 = vector.multi_reduction <add>, %97, %cst_38 [0] : vector<95x128xf32> to vector<128xf32>
    %99 = vector.shape_cast %98 : vector<128xf32> to vector<1x128xf32>
    %cst_39 = arith.constant 2.000000e+00 : f32
    %100 = vector.broadcast %cst_39 : f32 to vector<1x128xf32>
    %101 = arith.mulf %99, %100 : vector<1x128xf32>
    %cst_40 = arith.constant 1.000000e+00 : f32
    %102 = vector.broadcast %cst_40 : f32 to vector<1x128xf32>
    %103 = arith.subf %101, %102 : vector<1x128xf32>
    %cst_41 = arith.constant 0.000000e+00 : f32
    %104 = vector.broadcast %cst_41 : f32 to vector<3x128xf32>
    %105 = tpu.concatenate %75, %89, %103, %59, %46, %104 in 0 : vector<1x128xf32>, vector<1x128xf32>, vector<1x128xf32>, vector<1x128xf32>, vector<1x128xf32>, vector<3x128xf32> -> vector<8x128xf32>
    %c0_42 = arith.constant 0 : index
    %c0_43 = arith.constant 0 : index
    %c0_44 = arith.constant 0 : index
    %106 = vector.load %arg6[%c0_42, %c0_43, %c0_44] : memref<1x8x128xf32, #tpu.memory_space<vmem>>, vector<1x8x128xf32>
    %107 = vector.shape_cast %106 : vector<1x8x128xf32> to vector<8x128xf32>
    %108 = vector.shape_cast %105 : vector<8x128xf32> to vector<1x8x128xf32>
    tpu.vector_store %arg6[%c0_42, %c0_43, %c0_44], %108 {strides = array<i32>} : memref<1x8x128xf32, #tpu.memory_space<vmem>>, vector<1x8x128xf32>,
    return
  }
  func.func @transform_0(%arg0: i32, %arg1: i32) -> (i32, i32, i32, i32) {
    %c0_i32 = arith.constant 0 : i32
    %c0_i32_0 = arith.constant 0 : i32
    %c0_i32_1 = arith.constant 0 : i32
    return %arg0, %c0_i32, %c0_i32_0, %arg1 : i32, i32, i32, i32
  }
  func.func @transform_1(%arg0: i32, %arg1: i32) -> (i32, i32, i32) {
    %c0_i32 = arith.constant 0 : i32
    %c0_i32_0 = arith.constant 0 : i32
    return %arg0, %c0_i32, %arg1 : i32, i32, i32
  }
  func.func @transform_2(%arg0: i32, %arg1: i32) -> (i32, i32, i32) {
    %c0_i32 = arith.constant 0 : i32
    %c0_i32_0 = arith.constant 0 : i32
    return %arg0, %c0_i32, %arg1 : i32, i32, i32
  }
  func.func @transform_3(%arg0: i32, %arg1: i32) -> (i32, i32) {
    %c0_i32 = arith.constant 0 : i32
    %c0_i32_0 = arith.constant 0 : i32
    %c0_i32_1 = arith.constant 0 : i32
    return %c0_i32, %c0_i32_0 : i32, i32
  }
  func.func @transform_4(%arg0: i32, %arg1: i32) -> (i32, i32, i32) {
    %c0_i32 = arith.constant 0 : i32
    %c0_i32_0 = arith.constant 0 : i32
    return %arg0, %c0_i32, %arg1 : i32, i32, i32
  }
  func.func @transform_5(%arg0: i32, %arg1: i32) -> (i32, i32, i32) {
    %c0_i32 = arith.constant 0 : i32
    %c0_i32_0 = arith.constant 0 : i32
    return %arg0, %c0_i32, %arg1 : i32, i32, i32
  }
}

</mosaic_0001>

<llo_original>
// kernel: custom-call.16
$region0: #{custom-call.16}
  %s0 = inlined_call_operand.vmem [shape: u32[32,48], index: 0, kind: output, shape index: {}]

// kernel: custom-call.18
$region0: #{custom-call.18}
  %s0 = inlined_call_operand.hbm [shape: f32[3,3], index: 0, kind: input, shape index: {}]
  %s1 = inlined_call_operand.vmem [shape: f32[3,3], index: 1, kind: output, shape index: {0}]
  %s2 = inlined_call_operand.hbm [shape: s32[3], index: 2, kind: output, shape index: {1}]
  %s3 = inlined_call_operand.vmem [shape: s32[3], index: 3, kind: output, shape index: {2}]
  %4 = xla_tuple %s1, %s2, %s3
  $region1: #{custom-call.18} parent=0
    #allocation0 [shape = 'u8[4096]{0}', space=vmem, size = 0x1000, scoped, tag = 'operand span for operand 0']
    #allocation1 [shape = 'u8[2048]{0}', space=vmem, size = 0x800, scoped, tag = 'packed  for operand 0']
    #allocation2 [shape = 's32[1]{0}', space=sflag, size = 0x4, scoped, tag = 'scoped memory for custom-call.18']
    #allocation3 [shape = 's32[1]{0}', space=sflag, size = 0x4, scoped, tag = 'scoped memory for custom-call.18']
    #allocation4 [shape = 'u8[4096]{0}', space=vmem, size = 0x1000, scoped, tag = 'operand span for operand 1']
    #allocation5 [shape = 'u8[2048]{0}', space=vmem, size = 0x800, scoped, tag = 'packed  for operand 1']
    #allocation6 [shape = 'u8[4096]{0}', space=vmem, size = 0x1000, scoped, tag = 'operand span for operand 2']
    #allocation7 [shape = 'u8[512]{0}', space=vmem, size = 0x400, scoped, tag = 'packed  for operand 2']
    #allocation8 [shape = 'u8[4096]{0}', space=vmem, size = 0x1000, scoped, tag = 'operand span for operand 3']
    #allocation9 [shape = 'u8[512]{0}', space=vmem, size = 0x400, scoped, tag = 'packed  for operand 3']
    #allocation10 [shape = 's32[3,128]{1,0}', space=vmem, size = 0x1000, scoped, tag = 'scratch for permutations']
    %5 = vsyncpa [#allocation2], 0
    %6 = vsyncpa [#allocation3], 0
    %s8 = ssub.s32 64, 64
    %9 = vsyncadd [#allocation2], %s8
    %s10 = sshll.u32 [#allocation1], 4
    %s11 = int_to_ptr.vmem [resolvable:$true] %s10
    %13 = dma.hbm_to_vmem [thread:$0]  %s0, 64, %s11, [#allocation2]
    %14 = dma.done [#allocation2], 64
    %s16 = sshllo.u32 0, 4
    %v17 = vld [vmem:[#allocation1] sm:%s16]
    %18 = vst [vmem:[#allocation0] sm:%s16] %v17
    %v19 = vld [vmem:[#allocation0] sm:$0xff]
    %20 = vst [vmem:[#allocation4] sm:$0xff] %v19
    %21 = vst [vmem:[#allocation6] sm:$0x1] 0
    %v22 = vlaneseq
    %v23 = vshrl.u32 %v22, 7
    %v24 = vmov %v23
    %26 = vst [vmem:[#allocation10] sm:$0xff] %v24
    loop: start=0, step=1, limit=3
    $region3: #{custom-call.18} parent=1 // loop_pre_header
      _
    $region4: #{custom-call.18} parent=1 // loop_header
      %s28 = sphi 0, %s32
      %p29 = scmp.ge.s32.totalorder %s28, 3
    $region5: #{custom-call.18} parent=1 // loop_header_branch
      %31 = sbr.rel (%p29) target = $region9
    $region6: #{custom-call.18} parent=1 // loop_body
      %v33 = vstv %s28
      %v34 = vlaneseq
      %v35 = vshrl.u32 %v34, 7
      %v36 = vmov %v35
      %v37 = vld [vmem:[#allocation4] sm:$0xff]
      %v38 = vand.u32 2147483647, %v37
      %v40 = vstv %s28
      %vm41 = vcmp.ge.s32.totalorder %v36, %v40
      %vm42 = vcmp.lt.s32.totalorder %v36, 3
      %vm43 = vmand %vm41, %vm42
      %vm44 = vcmp.lt.f32.partialorder -inf, %v38
      %vm45 = vmand %vm43, %vm44
      %v46 = vsel %vm45, %v36, %v33
      %v47 = vsel %vm45, %v38, -inf
      %v48 = vrot.slane %v47, 1
      %v49 = vrot.slane %v46, 1
      %vm50 = vcmp.ge.f32.partialorder %v48, %v47
      %v51 = vsel %vm50, %v48, %v47
      %v52 = vsel %vm50, %v49, %v46
      %v53 = vrot.slane %v48, 1
      %v54 = vrot.slane %v49, 1
      %vm55 = vcmp.ge.f32.partialorder %v53, %v51
      %v56 = vsel %vm55, %v53, %v51
      %v57 = vsel %vm55, %v54, %v52
      %v58 = vrot.slane %v53, 1
      %v59 = vrot.slane %v54, 1
      %vm60 = vcmp.ge.f32.partialorder %v58, %v56
      %v61 = vsel %vm60, %v58, %v56
      %v62 = vsel %vm60, %v59, %v57
      %v63 = vrot.slane %v58, 1
      %v64 = vrot.slane %v59, 1
      %vm65 = vcmp.ge.f32.partialorder %v63, %v61
      %v66 = vsel %vm65, %v63, %v61
      %v67 = vsel %vm65, %v64, %v62
      %v68 = vrot.slane %v63, 1
      %v69 = vrot.slane %v64, 1
      %vm70 = vcmp.ge.f32.partialorder %v68, %v66
      %v71 = vsel %vm70, %v68, %v66
      %v72 = vsel %vm70, %v69, %v67
      %v73 = vrot.slane %v68, 1
      %v74 = vrot.slane %v69, 1
      %vm75 = vcmp.ge.f32.partialorder %v73, %v71
      %v76 = vsel %vm75, %v73, %v71
      %v77 = vsel %vm75, %v74, %v72
      %v78 = vrot.slane %v73, 1
      %v79 = vrot.slane %v74, 1
      %vm80 = vcmp.ge.f32.partialorder %v78, %v76
      %v81 = vsel %vm80, %v78, %v76
      %v82 = vsel %vm80, %v79, %v77
      %s83 = ssub.s32 128, %s28
      %84 = vrot.lane.b32.xlu0 %v82, %s83
      %v85 = vpop.permute.xlu0 %84
      %s86 = vtos %v85
      %v87 = vstv %s28
      %v88 = vlaneseq
      %v89 = vand.u32 %v88, 127
      %vm90 = vcmp.eq.s32.totalorder %v89, %v87
      %v91 = vstv %s86
      %v92 = vld [vmem:[#allocation6] ss:$0 sm:$0xff]
      %v93 = vsel %vm90, %v91, %v92
      %94 = vst [vmem:[#allocation6] sm:$0x1] %v93
      %s95 = scalar_lea.vmem [#allocation4], %s28
      %s96 = scalar_lea.vmem [#allocation4], %s86
      %v97 = vld [vmem:[%s95] ss:$0 sm:$0xff]
      %v98 = vld [vmem:[%s96] ss:$0 sm:$0xff]
      %99 = vst [vmem:[%s96] sm:$0x1] %v97
      %100 = vst [vmem:[%s95] sm:$0x1] %v98
      %s101 = scalar_lea.vmem [#allocation10], %s28
      %s102 = scalar_lea.vmem [#allocation10], %s86
      %v103 = vld [vmem:[%s101] ss:$0 sm:$0xff]
      %v104 = vld [vmem:[%s102] ss:$0 sm:$0xff]
      %105 = vst [vmem:[%s102] sm:$0x1] %v103
      %106 = vst [vmem:[%s101] sm:$0x1] %v104
      %vm107 = vcmp.ne.f32.partialorder %v98, 0.0
      %vm108 = vmand %vm90, %vm107
      %v109 = vsel %vm108, %v98, 1.0
      %v110 = vlaneseq
      %v111 = vand.u32 %v110, 127
      %v112 = vstv %s28
      %vm113 = vcmp.gt.s32.totalorder %v111, %v112
      %v114 = vsel %vm113, %v98, 0.0
      %v115 = vlaneseq
      %v116 = vshrl.u32 %v115, 7
      %v117 = vmov %v116
      %v118 = vld [vmem:[#allocation4] sm:$0xff]
      %v120 = vstv %s28
      %vm121 = vcmp.gt.s32.totalorder %v117, %v120
      %v122 = vsel %vm121, %v109, 1.0
      %v123 = vrcp.pop %v122
      %v124 = vmul.f32 %v118, %v123
      %vm125 = vmand %vm121, %vm90
      %v126 = vsel %vm125, %v124, 0.0
      %127 = vadd.xlane.f32.xlu0 %v126
      %v128 = vpop.xlane.xlu0 %127
      %v129 = vmul.f32 %v128, %v114
      %v130 = vsub.f32 %v124, %v129
      %131 = vst [vmem:[#allocation4] sm:$0xff] %v130
    $region7: #{custom-call.18} parent=1 // loop_footer
      %s32 = sadd.s32 1, %s28
    $region8: #{custom-call.18} parent=1 // loop_footer_branch
      %27 = sbr.rel target = $region4
    $region9: #{custom-call.18} parent=1 // loop_exit
      _
    %v132 = vld [vmem:[#allocation10] sm:$0xff]
    %s133 = scalar_lea.vmem [#allocation10], 8
    %s134 = scalar_lea.vmem [#allocation10], 16
    %s135 = scalar_lea.vmem [#allocation10], 24
    %s136 = scalar_lea.vmem [#allocation10], 32
    %s137 = scalar_lea.vmem [#allocation10], 40
    %s138 = scalar_lea.vmem [#allocation10], 48
    %s139 = scalar_lea.vmem [#allocation10], 56
    %s140 = scalar_lea.vmem [#allocation10], 64
    %s141 = scalar_lea.vmem [#allocation10], 72
    %s142 = scalar_lea.vmem [#allocation10], 80
    %s143 = scalar_lea.vmem [#allocation10], 88
    %s144 = scalar_lea.vmem [#allocation10], 96
    %s145 = scalar_lea.vmem [#allocation10], 104
    %s146 = scalar_lea.vmem [#allocation10], 112
    %s147 = scalar_lea.vmem [#allocation10], 120
    %148 = vxpose.xlu0.b32.start [1/16] %v132, 128
    %149 = vxpose.xlu0.b32.cont [2/16] 0, 128
    %150 = vxpose.xlu0.b32.cont [3/16] 0, 128
    %151 = vxpose.xlu0.b32.cont [4/16] 0, 128
    %152 = vxpose.xlu0.b32.cont [5/16] 0, 128
    %153 = vxpose.xlu0.b32.cont [6/16] 0, 128
    %154 = vxpose.xlu0.b32.cont [7/16] 0, 128
    %155 = vxpose.xlu0.b32.cont [8/16] 0, 128
    %156 = vxpose.xlu0.b32.cont [9/16] 0, 128
    %157 = vxpose.xlu0.b32.cont [10/16] 0, 128
    %158 = vxpose.xlu0.b32.cont [11/16] 0, 128
    %159 = vxpose.xlu0.b32.cont [12/16] 0, 128
    %160 = vxpose.xlu0.b32.cont [13/16] 0, 128
    %161 = vxpose.xlu0.b32.cont [14/16] 0, 128
    %162 = vxpose.xlu0.b32.cont [15/16] 0, 128
    %163 = vxpose.xlu0.b32.end [16/16] 0, 128
    %v164 = vpop.trf.xlu0
    %v165 = vpop.trf.xlu0
    %v166 = vpop.trf.xlu0
    %v167 = vpop.trf.xlu0
    %v168 = vpop.trf.xlu0
    %v169 = vpop.trf.xlu0
    %v170 = vpop.trf.xlu0
    %v171 = vpop.trf.xlu0
    %v172 = vpop.trf.xlu0
    %v173 = vpop.trf.xlu0
    %v174 = vpop.trf.xlu0
    %v175 = vpop.trf.xlu0
    %v176 = vpop.trf.xlu0
    %v177 = vpop.trf.xlu0
    %v178 = vpop.trf.xlu0
    %v179 = vpop.trf.xlu0
    %180 = vst [vmem:[#allocation8] sm:$0x1] %v164
    %s182 = sshllo.u32 0, 4
    %v184 = vld [vmem:[#allocation4] sm:%s182]
    %s185 = sshllo.u32 0, 4
    %186 = vst [vmem:[#allocation5] sm:%s185] %v184
    %s188 = sshllo.u32 0, 1
    %v190 = vld [vmem:[#allocation6] sm:%s188]
    %s191 = sshllo.u32 0, 1
    %192 = vst [vmem:[#allocation7] sm:%s191] %v190
    %s194 = sshllo.u32 0, 1
    %v196 = vld [vmem:[#allocation8] sm:%s194]
    %s197 = sshllo.u32 0, 1
    %198 = vst [vmem:[#allocation9] sm:%s197] %v196
    %p200 = scmp.gt.s32.totalorder 4, 0
    // Predicated region
    $region10: #{custom-call.18} parent=1 // pred_check
      %p201 = pneg %p200
    $region11: #{custom-call.18} parent=1 // pred_check_branch
      %203 = sbr.rel (%p201) target = $region13
    $region12: #{custom-call.18} parent=1 // pred_region
      %s204 = sshra.s32 4, 3
      %p205 = scmp.gt.s32.totalorder %s204, 0
      // Predicated region
      $region14: #{custom-call.18} parent=12 // pred_check
        %p206 = pneg %p205
      $region15: #{custom-call.18} parent=12 // pred_check_branch
        %208 = sbr.rel (%p206) target = $region17
      $region16: #{custom-call.18} parent=12 // pred_region
        %s209 = ssub.s32 %s204, 1
        %s210 = smul.u32 %s209, 128
        %s211 = sshra.s32 %s210, 4
        %s212 = scalar_lea.vmem [#allocation5], %s211
        %v213 = vld [vmem:[#allocation5] sm:$0xff]
        // While loop
        $region18: #{custom-call.18} parent=16 // loop_pre_header
          _
        $region19: #{custom-call.18} parent=16 // loop_header
          %s214 = sphi [#allocation5], %s236
          %s215 = sphi %s1, %s237
          %v216 = vphi %v213, %v238
          %s217 = ssub.s32 %s212, 64
          %p218 = scmp.gt.s32.totalorder %s214, %s217
        $region20: #{custom-call.18} parent=16 // loop_header_branch
          %220 = sbr.rel (%p218) target = $region24
        $region21: #{custom-call.18} parent=16 // loop_body
          %221 = vst [vmem:[%s215] sm:$0xff] %v216
          %v222 = vld [vmem:[%s214 + $0x8] sm:$0xff]
          %223 = vst [vmem:[%s215 + $0x8] sm:$0xff] %v222
          %v224 = vld [vmem:[%s214 + $0x10] sm:$0xff]
          %225 = vst [vmem:[%s215 + $0x10] sm:$0xff] %v224
          %v226 = vld [vmem:[%s214 + $0x18] sm:$0xff]
          %227 = vst [vmem:[%s215 + $0x18] sm:$0xff] %v226
          %v228 = vld [vmem:[%s214 + $0x20] sm:$0xff]
          %229 = vst [vmem:[%s215 + $0x20] sm:$0xff] %v228
          %v230 = vld [vmem:[%s214 + $0x28] sm:$0xff]
          %231 = vst [vmem:[%s215 + $0x28] sm:$0xff] %v230
          %v232 = vld [vmem:[%s214 + $0x30] sm:$0xff]
          %233 = vst [vmem:[%s215 + $0x30] sm:$0xff] %v232
          %v234 = vld [vmem:[%s214 + $0x38] sm:$0xff]
          %235 = vst [vmem:[%s215 + $0x38] sm:$0xff] %v234
        $region22: #{custom-call.18} parent=16 // loop_footer
          %s236 = scalar_lea.vmem %s214, 64
          %s237 = scalar_lea.vmem %s215, 64
          %v238 = vld [vmem:[%s214 + $0x40] sm:$0xff]
        $region23: #{custom-call.18} parent=16 // loop_footer_branch
          %239 = sbr.rel target = $region19
        $region24: #{custom-call.18} parent=16 // loop_exit
          _
        // While loop
        $region25: #{custom-call.18} parent=16 // loop_pre_header
          _
        $region26: #{custom-call.18} parent=16 // loop_header
          %s240 = sphi %s214, %s248
          %s241 = sphi %s215, %s249
          %v242 = vphi %v216, %v242
          %p243 = scmp.gt.s32.totalorder %s240, %s212
        $region27: #{custom-call.18} parent=16 // loop_header_branch
          %245 = sbr.rel (%p243) target = $region31
        $region28: #{custom-call.18} parent=16 // loop_body
          %v246 = vld [vmem:[%s240] sm:$0xff]
          %247 = vst [vmem:[%s241] sm:$0xff] %v246
        $region29: #{custom-call.18} parent=16 // loop_footer
          %s248 = scalar_lea.vmem %s240, 8
          %s249 = scalar_lea.vmem %s241, 8
        $region30: #{custom-call.18} parent=16 // loop_footer_branch
          %250 = sbr.rel target = $region26
        $region31: #{custom-call.18} parent=16 // loop_exit
          _
      $region17: #{custom-call.18} parent=12 // pred_fallthru
        _
      %s251 = sand.u32 4, 7
      %s252 = sshllo.u32 0, %s251
      %s253 = smul.u32 %s204, 128
      %s254 = sshra.s32 %s253, 4
      %s255 = scalar_lea.vmem %s1, %s254
      %s256 = smul.u32 %s204, 128
      %s257 = sshra.s32 %s256, 4
      %s258 = scalar_lea.vmem [#allocation5], %s257
      %v259 = vld [vmem:[%s258] sm:%s252]
      %260 = vst [vmem:[%s255] sm:%s252] %v259
    $region13: #{custom-call.18} parent=1 // pred_fallthru
      _
    // Predicated region
    $region32: #{custom-call.18} parent=1 // pred_check
      _
    $region33: #{custom-call.18} parent=1 // pred_check_branch
      %262 = sbr.rel (0) target = $region35
    $region34: #{custom-call.18} parent=1 // pred_region
      %s264 = ssub.s32 16, 16
      %265 = vsyncadd [#allocation3], %s264
      %s266 = sshll.u32 [#allocation7], 4
      %s267 = int_to_ptr.vmem [resolvable:$true] %s266
      %269 = dma.vmem_to_hbm [thread:$0]  %s267, 16, %s2, [#allocation3]
    $region35: #{custom-call.18} parent=1 // pred_fallthru
      _
    // Predicated region
    $region36: #{custom-call.18} parent=1 // pred_check
      _
    $region37: #{custom-call.18} parent=1 // pred_check_branch
      %271 = sbr.rel (0) target = $region39
    $region38: #{custom-call.18} parent=1 // pred_region
      %p273 = scmp.gt.s32.totalorder 1, 0
      // Predicated region
      $region40: #{custom-call.18} parent=38 // pred_check
        %p274 = pneg %p273
      $region41: #{custom-call.18} parent=38 // pred_check_branch
        %276 = sbr.rel (%p274) target = $region43
      $region42: #{custom-call.18} parent=38 // pred_region
        %s277 = sshra.s32 1, 3
        %p278 = scmp.gt.s32.totalorder %s277, 0
        // Predicated region
        $region44: #{custom-call.18} parent=42 // pred_check
          %p279 = pneg %p278
        $region45: #{custom-call.18} parent=42 // pred_check_branch
          %281 = sbr.rel (%p279) target = $region47
        $region46: #{custom-call.18} parent=42 // pred_region
          %s282 = ssub.s32 %s277, 1
          %s283 = smul.u32 %s282, 128
          %s284 = sshra.s32 %s283, 4
          %s285 = scalar_lea.vmem [#allocation9], %s284
          %v286 = vld [vmem:[#allocation9] sm:$0xff]
          // While loop
          $region48: #{custom-call.18} parent=46 // loop_pre_header
            _
          $region49: #{custom-call.18} parent=46 // loop_header
            %s287 = sphi [#allocation9], %s309
            %s288 = sphi %s3, %s310
            %v289 = vphi %v286, %v311
            %s290 = ssub.s32 %s285, 64
            %p291 = scmp.gt.s32.totalorder %s287, %s290
          $region50: #{custom-call.18} parent=46 // loop_header_branch
            %293 = sbr.rel (%p291) target = $region54
          $region51: #{custom-call.18} parent=46 // loop_body
            %294 = vst [vmem:[%s288] sm:$0xff] %v289
            %v295 = vld [vmem:[%s287 + $0x8] sm:$0xff]
            %296 = vst [vmem:[%s288 + $0x8] sm:$0xff] %v295
            %v297 = vld [vmem:[%s287 + $0x10] sm:$0xff]
            %298 = vst [vmem:[%s288 + $0x10] sm:$0xff] %v297
            %v299 = vld [vmem:[%s287 + $0x18] sm:$0xff]
            %300 = vst [vmem:[%s288 + $0x18] sm:$0xff] %v299
            %v301 = vld [vmem:[%s287 + $0x20] sm:$0xff]
            %302 = vst [vmem:[%s288 + $0x20] sm:$0xff] %v301
            %v303 = vld [vmem:[%s287 + $0x28] sm:$0xff]
            %304 = vst [vmem:[%s288 + $0x28] sm:$0xff] %v303
            %v305 = vld [vmem:[%s287 + $0x30] sm:$0xff]
            %306 = vst [vmem:[%s288 + $0x30] sm:$0xff] %v305
            %v307 = vld [vmem:[%s287 + $0x38] sm:$0xff]
            %308 = vst [vmem:[%s288 + $0x38] sm:$0xff] %v307
          $region52: #{custom-call.18} parent=46 // loop_footer
            %s309 = scalar_lea.vmem %s287, 64
            %s310 = scalar_lea.vmem %s288, 64
            %v311 = vld [vmem:[%s287 + $0x40] sm:$0xff]
          $region53: #{custom-call.18} parent=46 // loop_footer_branch
            %312 = sbr.rel target = $region49
          $region54: #{custom-call.18} parent=46 // loop_exit
            _
          // While loop
          $region55: #{custom-call.18} parent=46 // loop_pre_header
            _
          $region56: #{custom-call.18} parent=46 // loop_header
            %s313 = sphi %s287, %s321
            %s314 = sphi %s288, %s322
            %v315 = vphi %v289, %v315
            %p316 = scmp.gt.s32.totalorder %s313, %s285
          $region57: #{custom-call.18} parent=46 // loop_header_branch
            %318 = sbr.rel (%p316) target = $region61
          $region58: #{custom-call.18} parent=46 // loop_body
            %v319 = vld [vmem:[%s313] sm:$0xff]
            %320 = vst [vmem:[%s314] sm:$0xff] %v319
          $region59: #{custom-call.18} parent=46 // loop_footer
            %s321 = scalar_lea.vmem %s313, 8
            %s322 = scalar_lea.vmem %s314, 8
          $region60: #{custom-call.18} parent=46 // loop_footer_branch
            %323 = sbr.rel target = $region56
          $region61: #{custom-call.18} parent=46 // loop_exit
            _
        $region47: #{custom-call.18} parent=42 // pred_fallthru
          _
        %s324 = sand.u32 1, 7
        %s325 = sshllo.u32 0, %s324
        %s326 = smul.u32 %s277, 128
        %s327 = sshra.s32 %s326, 4
        %s328 = scalar_lea.vmem %s3, %s327
        %s329 = smul.u32 %s277, 128
        %s330 = sshra.s32 %s329, 4
        %s331 = scalar_lea.vmem [#allocation9], %s330
        %v332 = vld [vmem:[%s331] sm:%s325]
        %333 = vst [vmem:[%s328] sm:%s325] %v332
      $region43: #{custom-call.18} parent=38 // pred_fallthru
        _
    $region39: #{custom-call.18} parent=1 // pred_fallthru
      _
    // Predicated region
    $region62: #{custom-call.18} parent=1 // pred_check
      _
    $region63: #{custom-call.18} parent=1 // pred_check_branch
      %335 = sbr.rel (0) target = $region65
    $region64: #{custom-call.18} parent=1 // pred_region
      %336 = dma.done [#allocation3], 16
    $region65: #{custom-call.18} parent=1 // pred_fallthru
      _
    // Predicated region
    $region66: #{custom-call.18} parent=1 // pred_check
      _
    $region67: #{custom-call.18} parent=1 // pred_check_branch
      %338 = sbr.rel (0) target = $region69
    $region68: #{custom-call.18} parent=1 // pred_region
      _
    $region69: #{custom-call.18} parent=1 // pred_fallthru
      _
    %339 = vsyncpa [#allocation2], 1
    %340 = vsyncpa [#allocation3], 1

// kernel: custom-call.19
$region0: #{custom-call.19}
  %s0 = inlined_call_operand.vmem [shape: f32[1,3,3], index: 0, kind: input, shape index: {}]
  %s1 = inlined_call_operand.vmem [shape: f32[1,3,3], index: 1, kind: output, shape index: {}]
  $region1: #{custom-call.19} parent=0
    #allocation0 [shape = 'u8[4096]{0}', space=vmem, size = 0x1000, scoped, tag = 'operand span for operand 0']
    #allocation1 [shape = 'u8[2048]{0}', space=vmem, size = 0x800, scoped, tag = 'packed  for operand 0']
    #allocation2 [shape = 'u8[4096]{0}', space=vmem, size = 0x1000, scoped, tag = 'operand span for operand 1']
    #allocation3 [shape = 'u8[2048]{0}', space=vmem, size = 0x800, scoped, tag = 'packed  for operand 1']
    #allocation4 [shape = 'f32[3,3]{1,0}', space=vmem, size = 0x1000, scoped, tag = 'rescaled input a']
    // Predicated region
    $region2: #{custom-call.19} parent=1 // pred_check
      _
    $region3: #{custom-call.19} parent=1 // pred_check_branch
      %3 = sbr.rel (0) target = $region5
    $region4: #{custom-call.19} parent=1 // pred_region
      // Predicated region
      $region6: #{custom-call.19} parent=4 // pred_check
        _
      $region7: #{custom-call.19} parent=4 // pred_check_branch
        %5 = sbr.rel target = $region9
      $region8: #{custom-call.19} parent=4 // pred_region
        // Predicated region
        $region21: #{custom-call.19} parent=8 // pred_check
          _
        $region22: #{custom-call.19} parent=8 // pred_check_branch
          %20 = sbr.rel (0) target = $region24
        $region23: #{custom-call.19} parent=8 // pred_region
          loop: start=0, step=1, limit=1
          $region25: #{custom-call.19} parent=23 // loop_pre_header
            _
          $region26: #{custom-call.19} parent=23 // loop_header
            %s23 = sphi 0, %s27
            %p24 = scmp.ge.s32.totalorder %s23, 1
            %s28 = sphi %s0, %s0
            %s29 = sphi [#allocation1], [#allocation1]
          $region27: #{custom-call.19} parent=23 // loop_header_branch
            %26 = sbr.rel (%p24) target = $region31
          $region28: #{custom-call.19} parent=23 // loop_body
            %v30 = vld [vmem:[%s28] sm:$0xf]
            %31 = vst [vmem:[%s29] sm:$0xf] %v30
          $region29: #{custom-call.19} parent=23 // loop_footer
            %s27 = sadd.s32 1, %s23
          $region30: #{custom-call.19} parent=23 // loop_footer_branch
            %22 = sbr.rel target = $region26
          $region31: #{custom-call.19} parent=23 // loop_exit
            _
        $region24: #{custom-call.19} parent=8 // pred_fallthru
          _
      $region9: #{custom-call.19} parent=4 // pred_fallthru
        _
      // Predicated region
      $region10: #{custom-call.19} parent=4 // pred_check
        _
      $region11: #{custom-call.19} parent=4 // pred_check_branch
        %7 = sbr.rel (0) target = $region13
      $region12: #{custom-call.19} parent=4 // pred_region
        loop: start=0, step=1, limit=1
        $region14: #{custom-call.19} parent=12 // loop_pre_header
          _
        $region15: #{custom-call.19} parent=12 // loop_header
          %s10 = sphi 0, %s14
          %p11 = scmp.ge.s32.totalorder %s10, 1
          %s15 = sphi %s0, %s0
          %s16 = sphi [#allocation1], [#allocation1]
        $region16: #{custom-call.19} parent=12 // loop_header_branch
          %13 = sbr.rel (%p11) target = $region20
        $region17: #{custom-call.19} parent=12 // loop_body
          %v17 = vld [vmem:[%s15] sm:$0xf]
          %18 = vst [vmem:[%s16] sm:$0xf] %v17
        $region18: #{custom-call.19} parent=12 // loop_footer
          %s14 = sadd.s32 1, %s10
        $region19: #{custom-call.19} parent=12 // loop_footer_branch
          %9 = sbr.rel target = $region15
        $region20: #{custom-call.19} parent=12 // loop_exit
          _
      $region13: #{custom-call.19} parent=4 // pred_fallthru
        _
    $region5: #{custom-call.19} parent=1 // pred_fallthru
      _
    %32 = vnop
    %s34 = sshllo.u32 0, 4
    %v35 = vld [vmem:[#allocation1] sm:%s34]
    %36 = vst [vmem:[#allocation0] sm:%s34] %v35
    %v37 = vlaneseq
    %v38 = vand.u32 %v37, 127
    %vm39 = vcmp.lt.s32.totalorder %v38, 3
    %v40 = vlaneseq
    %v41 = vshrl.u32 %v40, 7
    %vm43 = vcmp.eq.s32.totalorder %v41, %v38
    %v44 = vld [vmem:[#allocation0] sm:$0xff]
    %v45 = vsel %vm43, %v44, 0.0
    %46 = vadd.xlane.f32.xlu0 %v45
    %v47 = vpop.xlane.xlu0 %46
    %vm48 = vcmp.le.s32.totalorder %v41, %v38
    %vm49 = vmand %vm48, %vm39
    %v50 = vsel %vm49, %v44, 0.0
    %v51 = vrcp.pop %v47
    %v52 = vmul.f32 %v50, %v51
    %53 = vst [vmem:[#allocation4] sm:$0xff] %v52
    %v54 = vlaneseq
    %v55 = vand.u32 %v54, 127
    %v56 = vlaneseq
    %v57 = vshrl.u32 %v56, 7
    %vm59 = vcmp.eq.s32.totalorder %v55, %v57
    %v60 = vlaneseq
    %v61 = vand.u32 %v60, 127
    %vm62 = vcmp.eq.s32.totalorder %v61, 2
    %v63 = vsel %vm62, 1.0, -1.0
    %v64 = vsel %vm59, %v63, 0.0
    %s65 = scalar_lea.vmem [#allocation4], 1
    %v66 = vld [vmem:[%s65] ss:$0 sm:$0xff]
    %v67 = vxor.u32 %v66, 2147483648
    %v68 = vlaneseq
    %v69 = vand.u32 %v68, 127
    %vm70 = vcmp.eq.s32.totalorder %v69, 1
    %v71 = vmul.f32 %v67, %v64
    %72 = vadd.xlane.f32.xlu0 %v71
    %v73 = vpop.xlane.xlu0 %72
    %v74 = vsel %vm70, %v73, %v64
    %v75 = vld [vmem:[#allocation4] ss:$0 sm:$0xff]
    %v76 = vxor.u32 %v75, 2147483648
    %v77 = vlaneseq
    %v78 = vand.u32 %v77, 127
    %vm79 = vcmp.eq.s32.totalorder %v78, 0
    %v80 = vmul.f32 %v76, %v74
    %81 = vadd.xlane.f32.xlu0 %v80
    %v82 = vpop.xlane.xlu0 %81
    %v83 = vsel %vm79, %v82, %v74
    %v84 = vrcp.pop %v47
    %v85 = vmul.f32 %v83, %v84
    %vm86 = vweird.f32 %v47
    %v87 = vsel %vm86, %v83, %v85
    %88 = vst [vmem:[#allocation2] sm:$0xff] %v87
    %s90 = sshllo.u32 0, 4
    %v92 = vld [vmem:[#allocation2] sm:%s90]
    %s93 = sshllo.u32 0, 4
    %94 = vst [vmem:[#allocation3] sm:%s93] %v92
    // Predicated region
    $region32: #{custom-call.19} parent=1 // pred_check
      _
    $region33: #{custom-call.19} parent=1 // pred_check_branch
      %96 = sbr.rel (0) target = $region35
    $region34: #{custom-call.19} parent=1 // pred_region
      // Predicated region
      $region36: #{custom-call.19} parent=34 // pred_check
        _
      $region37: #{custom-call.19} parent=34 // pred_check_branch
        %98 = sbr.rel target = $region39
      $region38: #{custom-call.19} parent=34 // pred_region
        // Predicated region
        $region51: #{custom-call.19} parent=38 // pred_check
          _
        $region52: #{custom-call.19} parent=38 // pred_check_branch
          %113 = sbr.rel (0) target = $region54
        $region53: #{custom-call.19} parent=38 // pred_region
          loop: start=0, step=1, limit=1
          $region55: #{custom-call.19} parent=53 // loop_pre_header
            _
          $region56: #{custom-call.19} parent=53 // loop_header
            %s116 = sphi 0, %s120
            %p117 = scmp.ge.s32.totalorder %s116, 1
            %s121 = sphi [#allocation3], [#allocation3]
            %s122 = sphi %s1, %s1
          $region57: #{custom-call.19} parent=53 // loop_header_branch
            %119 = sbr.rel (%p117) target = $region61
          $region58: #{custom-call.19} parent=53 // loop_body
            %v123 = vld [vmem:[%s121] sm:$0xf]
            %124 = vst [vmem:[%s122] sm:$0xf] %v123
          $region59: #{custom-call.19} parent=53 // loop_footer
            %s120 = sadd.s32 1, %s116
          $region60: #{custom-call.19} parent=53 // loop_footer_branch
            %115 = sbr.rel target = $region56
          $region61: #{custom-call.19} parent=53 // loop_exit
            _
        $region54: #{custom-call.19} parent=38 // pred_fallthru
          _
      $region39: #{custom-call.19} parent=34 // pred_fallthru
        _
      // Predicated region
      $region40: #{custom-call.19} parent=34 // pred_check
        _
      $region41: #{custom-call.19} parent=34 // pred_check_branch
        %100 = sbr.rel (0) target = $region43
      $region42: #{custom-call.19} parent=34 // pred_region
        loop: start=0, step=1, limit=1
        $region44: #{custom-call.19} parent=42 // loop_pre_header
          _
        $region45: #{custom-call.19} parent=42 // loop_header
          %s103 = sphi 0, %s107
          %p104 = scmp.ge.s32.totalorder %s103, 1
          %s108 = sphi [#allocation3], [#allocation3]
          %s109 = sphi %s1, %s1
        $region46: #{custom-call.19} parent=42 // loop_header_branch
          %106 = sbr.rel (%p104) target = $region50
        $region47: #{custom-call.19} parent=42 // loop_body
          %v110 = vld [vmem:[%s108] sm:$0xf]
          %111 = vst [vmem:[%s109] sm:$0xf] %v110
        $region48: #{custom-call.19} parent=42 // loop_footer
          %s107 = sadd.s32 1, %s103
        $region49: #{custom-call.19} parent=42 // loop_footer_branch
          %102 = sbr.rel target = $region45
        $region50: #{custom-call.19} parent=42 // loop_exit
          _
      $region43: #{custom-call.19} parent=34 // pred_fallthru
        _
    $region35: #{custom-call.19} parent=1 // pred_fallthru
      _
    %125 = vnop

// kernel: custom-call.20
$region0: #{custom-call.20}
  %s0 = inlined_call_operand.vmem [shape: f32[1,3,3], index: 0, kind: input, shape index: {}]
  %s1 = inlined_call_operand.vmem [shape: f32[1,3,3], index: 1, kind: output, shape index: {}]
  $region1: #{custom-call.20} parent=0
    #allocation0 [shape = 'u8[4096]{0}', space=vmem, size = 0x1000, scoped, tag = 'operand span for operand 0']
    #allocation1 [shape = 'u8[2048]{0}', space=vmem, size = 0x800, scoped, tag = 'packed  for operand 0']
    #allocation2 [shape = 'u8[4096]{0}', space=vmem, size = 0x1000, scoped, tag = 'operand span for operand 1']
    #allocation3 [shape = 'u8[2048]{0}', space=vmem, size = 0x800, scoped, tag = 'packed  for operand 1']
    #allocation4 [shape = 'f32[3,3]{1,0}', space=vmem, size = 0x1000, scoped, tag = 'rescaled input a']
    // Predicated region
    $region2: #{custom-call.20} parent=1 // pred_check
      _
    $region3: #{custom-call.20} parent=1 // pred_check_branch
      %3 = sbr.rel (0) target = $region5
    $region4: #{custom-call.20} parent=1 // pred_region
      // Predicated region
      $region6: #{custom-call.20} parent=4 // pred_check
        _
      $region7: #{custom-call.20} parent=4 // pred_check_branch
        %5 = sbr.rel target = $region9
      $region8: #{custom-call.20} parent=4 // pred_region
        // Predicated region
        $region21: #{custom-call.20} parent=8 // pred_check
          _
        $region22: #{custom-call.20} parent=8 // pred_check_branch
          %20 = sbr.rel (0) target = $region24
        $region23: #{custom-call.20} parent=8 // pred_region
          loop: start=0, step=1, limit=1
          $region25: #{custom-call.20} parent=23 // loop_pre_header
            _
          $region26: #{custom-call.20} parent=23 // loop_header
            %s23 = sphi 0, %s27
            %p24 = scmp.ge.s32.totalorder %s23, 1
            %s28 = sphi %s0, %s0
            %s29 = sphi [#allocation1], [#allocation1]
          $region27: #{custom-call.20} parent=23 // loop_header_branch
            %26 = sbr.rel (%p24) target = $region31
          $region28: #{custom-call.20} parent=23 // loop_body
            %v30 = vld [vmem:[%s28] sm:$0xf]
            %31 = vst [vmem:[%s29] sm:$0xf] %v30
          $region29: #{custom-call.20} parent=23 // loop_footer
            %s27 = sadd.s32 1, %s23
          $region30: #{custom-call.20} parent=23 // loop_footer_branch
            %22 = sbr.rel target = $region26
          $region31: #{custom-call.20} parent=23 // loop_exit
            _
        $region24: #{custom-call.20} parent=8 // pred_fallthru
          _
      $region9: #{custom-call.20} parent=4 // pred_fallthru
        _
      // Predicated region
      $region10: #{custom-call.20} parent=4 // pred_check
        _
      $region11: #{custom-call.20} parent=4 // pred_check_branch
        %7 = sbr.rel (0) target = $region13
      $region12: #{custom-call.20} parent=4 // pred_region
        loop: start=0, step=1, limit=1
        $region14: #{custom-call.20} parent=12 // loop_pre_header
          _
        $region15: #{custom-call.20} parent=12 // loop_header
          %s10 = sphi 0, %s14
          %p11 = scmp.ge.s32.totalorder %s10, 1
          %s15 = sphi %s0, %s0
          %s16 = sphi [#allocation1], [#allocation1]
        $region16: #{custom-call.20} parent=12 // loop_header_branch
          %13 = sbr.rel (%p11) target = $region20
        $region17: #{custom-call.20} parent=12 // loop_body
          %v17 = vld [vmem:[%s15] sm:$0xf]
          %18 = vst [vmem:[%s16] sm:$0xf] %v17
        $region18: #{custom-call.20} parent=12 // loop_footer
          %s14 = sadd.s32 1, %s10
        $region19: #{custom-call.20} parent=12 // loop_footer_branch
          %9 = sbr.rel target = $region15
        $region20: #{custom-call.20} parent=12 // loop_exit
          _
      $region13: #{custom-call.20} parent=4 // pred_fallthru
        _
    $region5: #{custom-call.20} parent=1 // pred_fallthru
      _
    %32 = vnop
    %s34 = sshllo.u32 0, 4
    %v35 = vld [vmem:[#allocation1] sm:%s34]
    %36 = vst [vmem:[#allocation0] sm:%s34] %v35
    %v37 = vlaneseq
    %v38 = vand.u32 %v37, 127
    %vm39 = vcmp.lt.s32.totalorder %v38, 3
    %v40 = vlaneseq
    %v41 = vshrl.u32 %v40, 7
    %vm43 = vcmp.eq.s32.totalorder %v41, %v38
    %v44 = vld [vmem:[#allocation0] sm:$0xff]
    %v45 = vsel %vm43, %v44, 0.0
    %46 = vadd.xlane.f32.xlu0 %v45
    %v47 = vpop.xlane.xlu0 %46
    %vm48 = vcmp.ge.s32.totalorder %v41, %v38
    %vm49 = vmand %vm48, %vm39
    %v50 = vsel %vm49, %v44, 0.0
    %v51 = vrcp.pop %v47
    %v52 = vmul.f32 %v50, %v51
    %53 = vst [vmem:[#allocation4] sm:$0xff] %v52
    %v54 = vlaneseq
    %v55 = vand.u32 %v54, 127
    %v56 = vlaneseq
    %v57 = vshrl.u32 %v56, 7
    %vm59 = vcmp.eq.s32.totalorder %v55, %v57
    %v60 = vlaneseq
    %v61 = vand.u32 %v60, 127
    %vm62 = vcmp.eq.s32.totalorder %v61, 0
    %v63 = vsel %vm62, 1.0, -1.0
    %v64 = vsel %vm59, %v63, 0.0
    %s65 = scalar_lea.vmem [#allocation4], 1
    %v66 = vld [vmem:[%s65] ss:$0 sm:$0xff]
    %v67 = vxor.u32 %v66, 2147483648
    %v68 = vlaneseq
    %v69 = vand.u32 %v68, 127
    %vm70 = vcmp.eq.s32.totalorder %v69, 1
    %v71 = vmul.f32 %v67, %v64
    %72 = vadd.xlane.f32.xlu0 %v71
    %v73 = vpop.xlane.xlu0 %72
    %v74 = vsel %vm70, %v73, %v64
    %s75 = scalar_lea.vmem [#allocation4], 2
    %v76 = vld [vmem:[%s75] ss:$0 sm:$0xff]
    %v77 = vxor.u32 %v76, 2147483648
    %v78 = vlaneseq
    %v79 = vand.u32 %v78, 127
    %vm80 = vcmp.eq.s32.totalorder %v79, 2
    %v81 = vmul.f32 %v77, %v74
    %82 = vadd.xlane.f32.xlu0 %v81
    %v83 = vpop.xlane.xlu0 %82
    %v84 = vsel %vm80, %v83, %v74
    %v85 = vrcp.pop %v47
    %v86 = vmul.f32 %v84, %v85
    %vm87 = vweird.f32 %v47
    %v88 = vsel %vm87, %v84, %v86
    %89 = vst [vmem:[#allocation2] sm:$0xff] %v88
    %s91 = sshllo.u32 0, 4
    %v93 = vld [vmem:[#allocation2] sm:%s91]
    %s94 = sshllo.u32 0, 4
    %95 = vst [vmem:[#allocation3] sm:%s94] %v93
    // Predicated region
    $region32: #{custom-call.20} parent=1 // pred_check
      _
    $region33: #{custom-call.20} parent=1 // pred_check_branch
      %97 = sbr.rel (0) target = $region35
    $region34: #{custom-call.20} parent=1 // pred_region
      // Predicated region
      $region36: #{custom-call.20} parent=34 // pred_check
        _
      $region37: #{custom-call.20} parent=34 // pred_check_branch
        %99 = sbr.rel target = $region39
      $region38: #{custom-call.20} parent=34 // pred_region
        // Predicated region
        $region51: #{custom-call.20} parent=38 // pred_check
          _
        $region52: #{custom-call.20} parent=38 // pred_check_branch
          %114 = sbr.rel (0) target = $region54
        $region53: #{custom-call.20} parent=38 // pred_region
          loop: start=0, step=1, limit=1
          $region55: #{custom-call.20} parent=53 // loop_pre_header
            _
          $region56: #{custom-call.20} parent=53 // loop_header
            %s117 = sphi 0, %s121
            %p118 = scmp.ge.s32.totalorder %s117, 1
            %s122 = sphi [#allocation3], [#allocation3]
            %s123 = sphi %s1, %s1
          $region57: #{custom-call.20} parent=53 // loop_header_branch
            %120 = sbr.rel (%p118) target = $region61
          $region58: #{custom-call.20} parent=53 // loop_body
            %v124 = vld [vmem:[%s122] sm:$0xf]
            %125 = vst [vmem:[%s123] sm:$0xf] %v124
          $region59: #{custom-call.20} parent=53 // loop_footer
            %s121 = sadd.s32 1, %s117
          $region60: #{custom-call.20} parent=53 // loop_footer_branch
            %116 = sbr.rel target = $region56
          $region61: #{custom-call.20} parent=53 // loop_exit
            _
        $region54: #{custom-call.20} parent=38 // pred_fallthru
          _
      $region39: #{custom-call.20} parent=34 // pred_fallthru
        _
      // Predicated region
      $region40: #{custom-call.20} parent=34 // pred_check
        _
      $region41: #{custom-call.20} parent=34 // pred_check_branch
        %101 = sbr.rel (0) target = $region43
      $region42: #{custom-call.20} parent=34 // pred_region
        loop: start=0, step=1, limit=1
        $region44: #{custom-call.20} parent=42 // loop_pre_header
          _
        $region45: #{custom-call.20} parent=42 // loop_header
          %s104 = sphi 0, %s108
          %p105 = scmp.ge.s32.totalorder %s104, 1
          %s109 = sphi [#allocation3], [#allocation3]
          %s110 = sphi %s1, %s1
        $region46: #{custom-call.20} parent=42 // loop_header_branch
          %107 = sbr.rel (%p105) target = $region50
        $region47: #{custom-call.20} parent=42 // loop_body
          %v111 = vld [vmem:[%s109] sm:$0xf]
          %112 = vst [vmem:[%s110] sm:$0xf] %v111
        $region48: #{custom-call.20} parent=42 // loop_footer
          %s108 = sadd.s32 1, %s104
        $region49: #{custom-call.20} parent=42 // loop_footer_branch
          %103 = sbr.rel target = $region45
        $region50: #{custom-call.20} parent=42 // loop_exit
          _
      $region43: #{custom-call.20} parent=34 // pred_fallthru
        _
    $region35: #{custom-call.20} parent=1 // pred_fallthru
      _
    %126 = vnop

// kernel: squeeze.41
$region0: #{squeeze.41}
  %s0 = inlined_call_operand.vmem [shape: f32[2,768], index: 0, kind: input, shape index: {}]
  %s1 = inlined_call_operand.vmem [shape: f32[2,48,16], index: 1, kind: output, shape index: {}]
  $region1: #{squeeze.41} parent=0
    #allocation0 [shape = 'u8[24576]{0}', space=vmem, size = 0x6000, scoped, tag = 'scoped mem for input reshape']
    %s3 = sshllo.u32 0, 2
    %s4 = smul.addr 2, 5
    %s5 = scalar_lea.vmem %s0, %s4
    %v6 = vld [vmem:[%s5] sm:%s3]
    %s7 = scalar_lea.vmem [#allocation0], 40
    %8 = vst [vmem:[%s7] sm:%s3] %v6
    %s9 = smul.addr 2, 4
    %s10 = scalar_lea.vmem %s0, %s9
    %v11 = vld [vmem:[%s10] sm:%s3]
    %s12 = scalar_lea.vmem [#allocation0], 32
    %13 = vst [vmem:[%s12] sm:%s3] %v11
    %s14 = smul.addr 2, 3
    %s15 = scalar_lea.vmem %s0, %s14
    %v16 = vld [vmem:[%s15] sm:%s3]
    %s17 = scalar_lea.vmem [#allocation0], 24
    %18 = vst [vmem:[%s17] sm:%s3] %v16
    %s19 = smul.addr 2, 2
    %s20 = scalar_lea.vmem %s0, %s19
    %v21 = vld [vmem:[%s20] sm:%s3]
    %s22 = scalar_lea.vmem [#allocation0], 16
    %23 = vst [vmem:[%s22] sm:%s3] %v21
    %s24 = scalar_lea.vmem %s0, 2
    %v25 = vld [vmem:[%s24] sm:%s3]
    %s26 = scalar_lea.vmem [#allocation0], 8
    %27 = vst [vmem:[%s26] sm:%s3] %v25
    %v28 = vld [vmem:[%s0] sm:%s3]
    %29 = vst [vmem:[#allocation0] sm:%s3] %v28
    %v30 = vld [vmem:[#allocation0] sm:$0x3]
    %vm31 = vcmask 130048
    %32 = vst.msk [vmem:[%s1] ss:$48 sm:$0x3] %vm31, %v30
    %s33 = scalar_lea.vmem [#allocation0], 8
    %v34 = vld [vmem:[%s33] sm:$0x3]
    %vm35 = vcmask 130048
    %s36 = scalar_lea.vmem %s1, 8
    %37 = vst.msk [vmem:[%s36] ss:$48 sm:$0x3] %vm35, %v34
    %s38 = scalar_lea.vmem [#allocation0], 16
    %v39 = vld [vmem:[%s38] sm:$0x3]
    %vm40 = vcmask 130048
    %s41 = scalar_lea.vmem %s1, 16
    %42 = vst.msk [vmem:[%s41] ss:$48 sm:$0x3] %vm40, %v39
    %s43 = scalar_lea.vmem [#allocation0], 24
    %v44 = vld [vmem:[%s43] sm:$0x3]
    %vm45 = vcmask 130048
    %s46 = scalar_lea.vmem %s1, 24
    %47 = vst.msk [vmem:[%s46] ss:$48 sm:$0x3] %vm45, %v44
    %s48 = scalar_lea.vmem [#allocation0], 32
    %v49 = vld [vmem:[%s48] sm:$0x3]
    %vm50 = vcmask 130048
    %s51 = scalar_lea.vmem %s1, 32
    %52 = vst.msk [vmem:[%s51] ss:$48 sm:$0x3] %vm50, %v49
    %s53 = scalar_lea.vmem [#allocation0], 40
    %v54 = vld [vmem:[%s53] sm:$0x3]
    %vm55 = vcmask 130048
    %s56 = scalar_lea.vmem %s1, 40
    %57 = vst.msk [vmem:[%s56] ss:$48 sm:$0x3] %vm55, %v54
    %v58 = vld.sshfl [vmem:[#allocation0] sm:$0xff pattern:$0x99999180]
    %s59 = scalar_lea.vmem [#allocation0], 16
    %v60 = vld.sshfl [vmem:[%s59] sm:$0xff pattern:$0x80911111]
    %vm61 = vcmask 1047556
    %v62 = vsel %vm61, %v60, %v58
    %63 = vrot.lane.b32.xlu0 %v62, 112
    %v64 = vpop.permute.xlu0 %63
    %vm65 = vcmask 130048
    %s66 = scalar_lea.vmem %s1, 1
    %67 = vst.msk [vmem:[%s66] ss:$8 sm:$0x3] %vm65, %v64
    %s68 = scalar_lea.vmem %s1, 33
    %69 = vst.msk [vmem:[%s68] ss:$8 sm:$0x3c] %vm65, %v64
    %s70 = scalar_lea.vmem %s1, 4294967265
    %71 = vst.msk [vmem:[%s70] ss:$8 sm:$0xc0] %vm65, %v64
    %s72 = scalar_lea.vmem [#allocation0], 32
    %v73 = vld.sshfl [vmem:[%s72] sm:$0xff pattern:$0x99999180]
    %74 = vrot.lane.b32.xlu0 %v73, 112
    %v75 = vpop.permute.xlu0 %74
    %vm76 = vcmask 130048
    %s77 = scalar_lea.vmem %s1, 33
    %78 = vst.msk [vmem:[%s77] ss:$8 sm:$0x3] %vm76, %v75
    %s79 = scalar_lea.vmem %s1, 65
    %80 = vst.msk [vmem:[%s79] ss:$8 sm:$0xc] %vm76, %v75
    %v81 = vld.sshfl [vmem:[#allocation0] sm:$0xff pattern:$0x99999180]
    %s82 = scalar_lea.vmem [#allocation0], 16
    %v83 = vld.sshfl [vmem:[%s82] sm:$0xff pattern:$0x80911111]
    %vm84 = vcmask 1047556
    %v85 = vsel %vm84, %v83, %v81
    %86 = vrot.lane.b32.xlu0 %v85, 96
    %v87 = vpop.permute.xlu0 %86
    %vm88 = vcmask 130048
    %s89 = scalar_lea.vmem %s1, 2
    %90 = vst.msk [vmem:[%s89] ss:$8 sm:$0x3] %vm88, %v87
    %s91 = scalar_lea.vmem %s1, 34
    %92 = vst.msk [vmem:[%s91] ss:$8 sm:$0x3c] %vm88, %v87
    %s93 = scalar_lea.vmem %s1, 4294967266
    %94 = vst.msk [vmem:[%s93] ss:$8 sm:$0xc0] %vm88, %v87
    %s95 = scalar_lea.vmem [#allocation0], 32
    %v96 = vld.sshfl [vmem:[%s95] sm:$0xff pattern:$0x99999180]
    %97 = vrot.lane.b32.xlu0 %v96, 96
    %v98 = vpop.permute.xlu0 %97
    %vm99 = vcmask 130048
    %s100 = scalar_lea.vmem %s1, 34
    %101 = vst.msk [vmem:[%s100] ss:$8 sm:$0x3] %vm99, %v98
    %s102 = scalar_lea.vmem %s1, 66
    %103 = vst.msk [vmem:[%s102] ss:$8 sm:$0xc] %vm99, %v98
    %v104 = vld.sshfl [vmem:[#allocation0] sm:$0xff pattern:$0x99999180]
    %s105 = scalar_lea.vmem [#allocation0], 16
    %v106 = vld.sshfl [vmem:[%s105] sm:$0xff pattern:$0x80911111]
    %vm107 = vcmask 1047556
    %v108 = vsel %vm107, %v106, %v104
    %109 = vrot.lane.b32.xlu0 %v108, 80
    %v110 = vpop.permute.xlu0 %109
    %vm111 = vcmask 130048
    %s112 = scalar_lea.vmem %s1, 3
    %113 = vst.msk [vmem:[%s112] ss:$8 sm:$0x3] %vm111, %v110
    %s114 = scalar_lea.vmem %s1, 35
    %115 = vst.msk [vmem:[%s114] ss:$8 sm:$0x3c] %vm111, %v110
    %s116 = scalar_lea.vmem %s1, 4294967267
    %117 = vst.msk [vmem:[%s116] ss:$8 sm:$0xc0] %vm111, %v110
    %s118 = scalar_lea.vmem [#allocation0], 32
    %v119 = vld.sshfl [vmem:[%s118] sm:$0xff pattern:$0x99999180]
    %120 = vrot.lane.b32.xlu0 %v119, 80
    %v121 = vpop.permute.xlu0 %120
    %vm122 = vcmask 130048
    %s123 = scalar_lea.vmem %s1, 35
    %124 = vst.msk [vmem:[%s123] ss:$8 sm:$0x3] %vm122, %v121
    %s125 = scalar_lea.vmem %s1, 67
    %126 = vst.msk [vmem:[%s125] ss:$8 sm:$0xc] %vm122, %v121
    %v127 = vld.sshfl [vmem:[#allocation0] sm:$0xff pattern:$0x99999180]
    %s128 = scalar_lea.vmem [#allocation0], 16
    %v129 = vld.sshfl [vmem:[%s128] sm:$0xff pattern:$0x80911111]
    %vm130 = vcmask 1047556
    %v131 = vsel %vm130, %v129, %v127
    %132 = vrot.lane.b32.xlu0 %v131, 64
    %v133 = vpop.permute.xlu0 %132
    %vm134 = vcmask 130048
    %s135 = scalar_lea.vmem %s1, 4
    %136 = vst.msk [vmem:[%s135] ss:$8 sm:$0x3] %vm134, %v133
    %s137 = scalar_lea.vmem %s1, 36
    %138 = vst.msk [vmem:[%s137] ss:$8 sm:$0x3c] %vm134, %v133
    %s139 = scalar_lea.vmem %s1, 4294967268
    %140 = vst.msk [vmem:[%s139] ss:$8 sm:$0xc0] %vm134, %v133
    %s141 = scalar_lea.vmem [#allocation0], 32
    %v142 = vld.sshfl [vmem:[%s141] sm:$0xff pattern:$0x99999180]
    %143 = vrot.lane.b32.xlu0 %v142, 64
    %v144 = vpop.permute.xlu0 %143
    %vm145 = vcmask 130048
    %s146 = scalar_lea.vmem %s1, 36
    %147 = vst.msk [vmem:[%s146] ss:$8 sm:$0x3] %vm145, %v144
    %s148 = scalar_lea.vmem %s1, 68
    %149 = vst.msk [vmem:[%s148] ss:$8 sm:$0xc] %vm145, %v144
    %v150 = vld.sshfl [vmem:[#allocation0] sm:$0xff pattern:$0x99999180]
    %s151 = scalar_lea.vmem [#allocation0], 16
    %v152 = vld.sshfl [vmem:[%s151] sm:$0xff pattern:$0x80911111]
    %vm153 = vcmask 1047556
    %v154 = vsel %vm153, %v152, %v150
    %155 = vrot.lane.b32.xlu0 %v154, 48
    %v156 = vpop.permute.xlu0 %155
    %vm157 = vcmask 130048
    %s158 = scalar_lea.vmem %s1, 5
    %159 = vst.msk [vmem:[%s158] ss:$8 sm:$0x3] %vm157, %v156
    %s160 = scalar_lea.vmem %s1, 37
    %161 = vst.msk [vmem:[%s160] ss:$8 sm:$0x3c] %vm157, %v156
    %s162 = scalar_lea.vmem %s1, 4294967269
    %163 = vst.msk [vmem:[%s162] ss:$8 sm:$0xc0] %vm157, %v156
    %s164 = scalar_lea.vmem [#allocation0], 32
    %v165 = vld.sshfl [vmem:[%s164] sm:$0xff pattern:$0x99999180]
    %166 = vrot.lane.b32.xlu0 %v165, 48
    %v167 = vpop.permute.xlu0 %166
    %vm168 = vcmask 130048
    %s169 = scalar_lea.vmem %s1, 37
    %170 = vst.msk [vmem:[%s169] ss:$8 sm:$0x3] %vm168, %v167
    %s171 = scalar_lea.vmem %s1, 69
    %172 = vst.msk [vmem:[%s171] ss:$8 sm:$0xc] %vm168, %v167
    %v173 = vld.sshfl [vmem:[#allocation0] sm:$0xff pattern:$0x99999180]
    %s174 = scalar_lea.vmem [#allocation0], 16
    %v175 = vld.sshfl [vmem:[%s174] sm:$0xff pattern:$0x80911111]
    %vm176 = vcmask 1047556
    %v177 = vsel %vm176, %v175, %v173
    %178 = vrot.lane.b32.xlu0 %v177, 32
    %v179 = vpop.permute.xlu0 %178
    %vm180 = vcmask 130048
    %s181 = scalar_lea.vmem %s1, 6
    %182 = vst.msk [vmem:[%s181] ss:$8 sm:$0x3] %vm180, %v179
    %s183 = scalar_lea.vmem %s1, 38
    %184 = vst.msk [vmem:[%s183] ss:$8 sm:$0x3c] %vm180, %v179
    %s185 = scalar_lea.vmem %s1, 4294967270
    %186 = vst.msk [vmem:[%s185] ss:$8 sm:$0xc0] %vm180, %v179
    %s187 = scalar_lea.vmem [#allocation0], 32
    %v188 = vld.sshfl [vmem:[%s187] sm:$0xff pattern:$0x99999180]
    %189 = vrot.lane.b32.xlu0 %v188, 32
    %v190 = vpop.permute.xlu0 %189
    %vm191 = vcmask 130048
    %s192 = scalar_lea.vmem %s1, 38
    %193 = vst.msk [vmem:[%s192] ss:$8 sm:$0x3] %vm191, %v190
    %s194 = scalar_lea.vmem %s1, 70
    %195 = vst.msk [vmem:[%s194] ss:$8 sm:$0xc] %vm191, %v190
    %v196 = vld.sshfl [vmem:[#allocation0] sm:$0xff pattern:$0x99999180]
    %s197 = scalar_lea.vmem [#allocation0], 16
    %v198 = vld.sshfl [vmem:[%s197] sm:$0xff pattern:$0x80911111]
    %vm199 = vcmask 1047556
    %v200 = vsel %vm199, %v198, %v196
    %201 = vrot.lane.b32.xlu0 %v200, 16
    %v202 = vpop.permute.xlu0 %201
    %vm203 = vcmask 130048
    %s204 = scalar_lea.vmem %s1, 7
    %205 = vst.msk [vmem:[%s204] ss:$8 sm:$0x3] %vm203, %v202
    %s206 = scalar_lea.vmem %s1, 39
    %207 = vst.msk [vmem:[%s206] ss:$8 sm:$0x3c] %vm203, %v202
    %s208 = scalar_lea.vmem %s1, 4294967271
    %209 = vst.msk [vmem:[%s208] ss:$8 sm:$0xc0] %vm203, %v202
    %s210 = scalar_lea.vmem [#allocation0], 32
    %v211 = vld.sshfl [vmem:[%s210] sm:$0xff pattern:$0x99999180]
    %212 = vrot.lane.b32.xlu0 %v211, 16
    %v213 = vpop.permute.xlu0 %212
    %vm214 = vcmask 130048
    %s215 = scalar_lea.vmem %s1, 39
    %216 = vst.msk [vmem:[%s215] ss:$8 sm:$0x3] %vm214, %v213
    %s217 = scalar_lea.vmem %s1, 71
    %218 = vst.msk [vmem:[%s217] ss:$8 sm:$0xc] %vm214, %v213

// kernel: squeeze.15
$region0: #{squeeze.15}
  %s0 = inlined_call_operand.hbm [shape: f32[1536], index: 0, kind: input, shape index: {}]
  %s1 = inlined_call_operand.vmem [shape: f32[32,48], index: 1, kind: output, shape index: {}]
  $region1: #{squeeze.15} parent=0
    #allocation0 [shape = 'u8[8192]{0}', space=vmem, size = 0x2000, scoped, tag = 'operand span for operand 0']
    #allocation1 [shape = 's32[1]{0}', space=sflag, size = 0x4, scoped, tag = 'scoped memory for squeeze.15']
    %2 = vsyncpa [#allocation1], 0
    %s4 = ssub.s32 256, 256
    %5 = vsyncadd [#allocation1], %s4
    %s7 = sshll.u32 [#allocation0], 4
    %s8 = int_to_ptr.vmem [resolvable:$true] %s7
    %10 = dma.hbm_to_vmem [thread:$0]  %s0, 256, %s8, [#allocation1]
    %11 = dma.done [#allocation1], 256
    %v12 = vld [vmem:[#allocation0] ss:$3 sm:$0xf]
    %vm13 = vcmask 392192
    %14 = vst.msk [vmem:[%s1] ss:$8 sm:$0xf] %vm13, %v12
    %s15 = scalar_lea.vmem [#allocation0], 1
    %v16 = vld [vmem:[%s15] ss:$3 sm:$0xf]
    %17 = vrot.lane.b32.xlu0 %v16, 112
    %v18 = vpop.permute.xlu0 %17
    %vm19 = vcmask 392192
    %s20 = scalar_lea.vmem %s1, 3
    %21 = vst.msk [vmem:[%s20] ss:$8 sm:$0xf] %vm19, %v18
    %s22 = scalar_lea.vmem [#allocation0], 2
    %v23 = vld [vmem:[%s22] ss:$3 sm:$0xf]
    %24 = vrot.lane.b32.xlu0 %v23, 96
    %v25 = vpop.permute.xlu0 %24
    %vm26 = vcmask 392192
    %s27 = scalar_lea.vmem %s1, 6
    %28 = vst.msk [vmem:[%s27] ss:$8 sm:$0xf] %vm26, %v25
    %v29 = vld [vmem:[#allocation0] ss:$3 sm:$0xf]
    %30 = vrot.lane.b32.xlu0 %v29, 80
    %v31 = vpop.permute.xlu0 %30
    %vm32 = vcmask 392192
    %s33 = scalar_lea.vmem %s1, 1
    %34 = vst.msk [vmem:[%s33] ss:$8 sm:$0xf] %vm32, %v31
    %s35 = scalar_lea.vmem [#allocation0], 1
    %v36 = vld [vmem:[%s35] ss:$3 sm:$0xf]
    %37 = vrot.lane.b32.xlu0 %v36, 64
    %v38 = vpop.permute.xlu0 %37
    %vm39 = vcmask 392192
    %s40 = scalar_lea.vmem %s1, 4
    %41 = vst.msk [vmem:[%s40] ss:$8 sm:$0xf] %vm39, %v38
    %s42 = scalar_lea.vmem [#allocation0], 2
    %v43 = vld [vmem:[%s42] ss:$3 sm:$0xf]
    %44 = vrot.lane.b32.xlu0 %v43, 48
    %v45 = vpop.permute.xlu0 %44
    %vm46 = vcmask 392192
    %s47 = scalar_lea.vmem %s1, 7
    %48 = vst.msk [vmem:[%s47] ss:$8 sm:$0xf] %vm46, %v45
    %v49 = vld [vmem:[#allocation0] ss:$3 sm:$0xf]
    %s50 = scalar_lea.vmem [#allocation0], 1
    %v51 = vld [vmem:[%s50] ss:$3 sm:$0xf]
    %vm52 = vcmask 785408
    %v53 = vsel %vm52, %v51, %v49
    %54 = vrot.lane.b32.xlu0 %v53, 32
    %v55 = vpop.permute.xlu0 %54
    %vm56 = vcmask 261120
    %s57 = scalar_lea.vmem %s1, 2
    %58 = vst.msk [vmem:[%s57] ss:$8 sm:$0xf] %vm56, %v55
    %vm59 = vcmask 392448
    %s60 = scalar_lea.vmem %s1, 2
    %61 = vst.msk [vmem:[%s60] ss:$8 sm:$0xf] %vm59, %v55
    %s62 = scalar_lea.vmem [#allocation0], 1
    %v63 = vld [vmem:[%s62] ss:$3 sm:$0xf]
    %s64 = scalar_lea.vmem [#allocation0], 2
    %v65 = vld [vmem:[%s64] ss:$3 sm:$0xf]
    %vm66 = vcmask 916480
    %v67 = vsel %vm66, %v65, %v63
    %68 = vrot.lane.b32.xlu0 %v67, 16
    %v69 = vpop.permute.xlu0 %68
    %vm70 = vcmask 130048
    %s71 = scalar_lea.vmem %s1, 5
    %72 = vst.msk [vmem:[%s71] ss:$8 sm:$0xf] %vm70, %v69
    %vm73 = vcmask 392320
    %s74 = scalar_lea.vmem %s1, 5
    %75 = vst.msk [vmem:[%s74] ss:$8 sm:$0xf] %vm73, %v69
    %76 = vsyncpa [#allocation1], 1

// kernel: forward.5
$region0: #{forward.5}
  #allocation0 [shape = 'u32[]', space=smem, size = 0x4, offset = 0x4, fixed_abs, tag = 'smem constant byte address 0x4 - core index']
  #allocation1 [shape = 'u32[144,128]{1,0:T(1,128)}', space=vmem, size = 0x12000, scoped, tag = 'internal scratch']
  %s0 = inlined_call_operand.vmem [shape: f32[2,3,48,128], index: 0, kind: input, shape index: {}]
  %s1 = inlined_call_operand.vmem [shape: f32[2,48,128], index: 1, kind: input, shape index: {}]
  %s2 = inlined_call_operand.vmem [shape: f32[2,48,128], index: 2, kind: input, shape index: {}]
  %s3 = inlined_call_operand.vmem [shape: f32[47,47], index: 3, kind: input, shape index: {}]
  %s4 = inlined_call_operand.hbm [shape: f32[2,8,128], index: 4, kind: output, shape index: {0}]
  %s5 = inlined_call_operand.vmem [shape: f32[2,47,128], index: 5, kind: output, shape index: {1}]
  %6 = xla_tuple %s4, %s5
  %s7 = sld [smem:[#allocation0]]
  $region57: #{forward.5} parent=0
    _
  %s9 = ssub.s32 1, %s7
  %s10 = scalar_select 0, %s9, %s7
  $region1: #{forward.5} parent=0
    #allocation2 [shape = 'u8[8192]{0}', space=vmem, size = 0x2000, scoped, tag = 'output window, operand 0']
    #allocation3 [shape = 's32[2]{0}', space=sflag, size = 0x8, scoped, tag = 'scoped memory for forward.5']
    %11 = vsyncpa [#allocation3], 0
    %s12 = scalar_lea.sflag [#allocation3], 1
    %13 = vsyncpa %s12, 0
    loop: start=0, step=1, limit=4
    $region2: #{forward.5} parent=1 // loop_pre_header
      _
    $region3: #{forward.5} parent=1 // loop_header
      %s15 = sphi 0, %s19
      %p16 = scmp.ge.s32.totalorder %s15, 4
      %s22 = sphi 0, %s34
      %s23 = sphi 0, %s30
      %s24 = sphi 0, %s22
      %s25 = sphi 0, %s23
      %s26 = sphi 0, %s24
      %s27 = sphi 0, %s25
      %s39 = sphi 0, %s41
      %s42 = sphi 0, %s39
      %s43 = sphi 0, %s42
      %s59 = sphi 0, %s43
      %s67 = sphi 0, %s69
      %s70 = sphi 0, %s67
      %s71 = sphi 0, %s70
      %s87 = sphi 0, %s71
      %s95 = sphi 0, %s97
      %s98 = sphi 0, %s95
      %s99 = sphi 0, %s98
      %s115 = sphi 0, %s99
      %s119 = sphi 0, %s119
      %s121 = sphi 0, %s119
      %s122 = sphi 0, %s121
      %s136 = sphi 0, %s122
      %s144 = sphi 0, %s146
      %s147 = sphi 0, %s144
      %s148 = sphi 0, %s147
      %s164 = sphi 0, %s148
      %s172 = sphi 0, %s174
      %s175 = sphi 0, %s172
      %s176 = sphi 0, %s175
      %s192 = sphi 0, %s176
    $region4: #{forward.5} parent=1 // loop_header_branch
      %18 = sbr.rel (%p16) target = $region8
    $region5: #{forward.5} parent=1 // loop_body
      %s20 = ssub.s32 %s15, 1
      %s21 = ssub.s32 %s15, 2
      %s28 = sadd.s32 1, %s23
      %p29 = scmp.ge.s32.totalorder %s28, 1
      %s30 = scalar_select %p29, 0, %s28
      %s31 = sadd.s32 1, %s22
      %s32 = scalar_select %p29, %s31, %s22
      %p33 = scmp.ge.s32.totalorder %s32, 2
      %s34 = scalar_select %p33, 0, %s32
      %s35 = ssub.s32 %s22, %s34
      %s36 = ssub.s32 %s23, %s30
      %s37 = sor.u32 %s35, %s36
      %p38 = scmp.eq.s32.totalorder %s37, 0
      %s40 = sadd.s32 %s39, 1
      %s41 = scalar_select %p38, %s39, %s40
      %p44 = pneg %p38
      %p45 = scmp.eq.s32.totalorder %s15, 1
      %p46 = por %p44, %p45
      %p47 = scmp.ne.s32.totalorder %s39, %s42
      %p48 = scmp.eq.s32.totalorder %s15, 0
      %p49 = por %p47, %p48
      %p50 = scmp.ne.s32.totalorder %s39, %s42
      %p51 = scmp.eq.s32.totalorder %s20, 1
      %p52 = por %p50, %p51
      %p53 = scmp.ne.s32.totalorder %s42, %s43
      %p54 = scmp.eq.s32.totalorder %s20, 0
      %p55 = por %p53, %p54
      %p56 = scmp.ne.s32.totalorder %s42, %s43
      %p57 = scmp.eq.s32.totalorder %s21, 1
      %p58 = por %p56, %p57
      %p60 = scmp.ne.s32.totalorder %s43, %s59
      %p61 = scmp.eq.s32.totalorder %s21, 0
      %p62 = por %p60, %p61
      %s63 = ssub.s32 %s22, %s34
      %s64 = ssub.s32 %s23, %s30
      %s65 = sor.u32 %s63, %s64
      %p66 = scmp.eq.s32.totalorder %s65, 0
      %s68 = sadd.s32 %s67, 1
      %s69 = scalar_select %p66, %s67, %s68
      %p72 = pneg %p66
      %p73 = scmp.eq.s32.totalorder %s15, 1
      %p74 = por %p72, %p73
      %p75 = scmp.ne.s32.totalorder %s67, %s70
      %p76 = scmp.eq.s32.totalorder %s15, 0
      %p77 = por %p75, %p76
      %p78 = scmp.ne.s32.totalorder %s67, %s70
      %p79 = scmp.eq.s32.totalorder %s20, 1
      %p80 = por %p78, %p79
      %p81 = scmp.ne.s32.totalorder %s70, %s71
      %p82 = scmp.eq.s32.totalorder %s20, 0
      %p83 = por %p81, %p82
      %p84 = scmp.ne.s32.totalorder %s70, %s71
      %p85 = scmp.eq.s32.totalorder %s21, 1
      %p86 = por %p84, %p85
      %p88 = scmp.ne.s32.totalorder %s71, %s87
      %p89 = scmp.eq.s32.totalorder %s21, 0
      %p90 = por %p88, %p89
      %s91 = ssub.s32 %s22, %s34
      %s92 = ssub.s32 %s23, %s30
      %s93 = sor.u32 %s91, %s92
      %p94 = scmp.eq.s32.totalorder %s93, 0
      %s96 = sadd.s32 %s95, 1
      %s97 = scalar_select %p94, %s95, %s96
      %p100 = pneg %p94
      %p101 = scmp.eq.s32.totalorder %s15, 1
      %p102 = por %p100, %p101
      %p103 = scmp.ne.s32.totalorder %s95, %s98
      %p104 = scmp.eq.s32.totalorder %s15, 0
      %p105 = por %p103, %p104
      %p106 = scmp.ne.s32.totalorder %s95, %s98
      %p107 = scmp.eq.s32.totalorder %s20, 1
      %p108 = por %p106, %p107
      %p109 = scmp.ne.s32.totalorder %s98, %s99
      %p110 = scmp.eq.s32.totalorder %s20, 0
      %p111 = por %p109, %p110
      %p112 = scmp.ne.s32.totalorder %s98, %s99
      %p113 = scmp.eq.s32.totalorder %s21, 1
      %p114 = por %p112, %p113
      %p116 = scmp.ne.s32.totalorder %s99, %s115
      %p117 = scmp.eq.s32.totalorder %s21, 0
      %p118 = por %p116, %p117
      %s120 = sadd.s32 %s119, 1
      %p123 = scmp.eq.s32.totalorder %s15, 1
      %p124 = scmp.ne.s32.totalorder %s119, %s121
      %p125 = scmp.eq.s32.totalorder %s15, 0
      %p126 = por %p124, %p125
      %p127 = scmp.ne.s32.totalorder %s119, %s121
      %p128 = scmp.eq.s32.totalorder %s20, 1
      %p129 = por %p127, %p128
      %p130 = scmp.ne.s32.totalorder %s121, %s122
      %p131 = scmp.eq.s32.totalorder %s20, 0
      %p132 = por %p130, %p131
      %p133 = scmp.ne.s32.totalorder %s121, %s122
      %p134 = scmp.eq.s32.totalorder %s21, 1
      %p135 = por %p133, %p134
      %p137 = scmp.ne.s32.totalorder %s122, %s136
      %p138 = scmp.eq.s32.totalorder %s21, 0
      %p139 = por %p137, %p138
      %s140 = ssub.s32 %s22, %s34
      %s141 = ssub.s32 %s23, %s30
      %s142 = sor.u32 %s140, %s141
      %p143 = scmp.eq.s32.totalorder %s142, 0
      %s145 = sadd.s32 %s144, 1
      %s146 = scalar_select %p143, %s144, %s145
      %p149 = pneg %p143
      %p150 = scmp.eq.s32.totalorder %s15, 1
      %p151 = por %p149, %p150
      %p152 = scmp.ne.s32.totalorder %s144, %s147
      %p153 = scmp.eq.s32.totalorder %s15, 0
      %p154 = por %p152, %p153
      %p155 = scmp.ne.s32.totalorder %s144, %s147
      %p156 = scmp.eq.s32.totalorder %s20, 1
      %p157 = por %p155, %p156
      %p158 = scmp.ne.s32.totalorder %s147, %s148
      %p159 = scmp.eq.s32.totalorder %s20, 0
      %p160 = por %p158, %p159
      %p161 = scmp.ne.s32.totalorder %s147, %s148
      %p162 = scmp.eq.s32.totalorder %s21, 1
      %p163 = por %p161, %p162
      %p165 = scmp.ne.s32.totalorder %s148, %s164
      %p166 = scmp.eq.s32.totalorder %s21, 0
      %p167 = por %p165, %p166
      %s168 = ssub.s32 %s22, %s34
      %s169 = ssub.s32 %s23, %s30
      %s170 = sor.u32 %s168, %s169
      %p171 = scmp.eq.s32.totalorder %s170, 0
      %s173 = sadd.s32 %s172, 1
      %s174 = scalar_select %p171, %s172, %s173
      %p177 = pneg %p171
      %p178 = scmp.eq.s32.totalorder %s15, 1
      %p179 = por %p177, %p178
      %p180 = scmp.ne.s32.totalorder %s172, %s175
      %p181 = scmp.eq.s32.totalorder %s15, 0
      %p182 = por %p180, %p181
      %p183 = scmp.ne.s32.totalorder %s172, %s175
      %p184 = scmp.eq.s32.totalorder %s20, 1
      %p185 = por %p183, %p184
      %p186 = scmp.ne.s32.totalorder %s175, %s176
      %p187 = scmp.eq.s32.totalorder %s20, 0
      %p188 = por %p186, %p187
      %p189 = scmp.ne.s32.totalorder %s175, %s176
      %p190 = scmp.eq.s32.totalorder %s21, 1
      %p191 = por %p189, %p190
      %p193 = scmp.ne.s32.totalorder %s176, %s192
      %p194 = scmp.eq.s32.totalorder %s21, 0
      %p195 = por %p193, %p194
      %p196 = scmp.le.s32.totalorder 1, %s15
      %p197 = scmp.lt.s32.totalorder %s15, 3
      %p198 = pnand %p196, %p197
      %p199 = pneg %p198
      // Predicated region
      $region9: #{forward.5} parent=5 // pred_check
        _
      $region10: #{forward.5} parent=5 // pred_check_branch
        %201 = sbr.rel (%p198) target = $region12
      $region11: #{forward.5} parent=5 // pred_region
        %s202 = ssub.s32 %s15, 1
        // Predicated region
        $region13: #{forward.5} parent=11 // pred_check
          %p203 = pneg %p132
        $region14: #{forward.5} parent=11 // pred_check_branch
          %205 = sbr.rel (%p203) target = $region16
        $region15: #{forward.5} parent=11 // pred_region
          _
        $region16: #{forward.5} parent=11 // pred_fallthru
          _
      $region12: #{forward.5} parent=5 // pred_fallthru
        _
      %p206 = scmp.lt.s32.totalorder %s15, 2
      // Predicated region
      $region17: #{forward.5} parent=5 // pred_check
        %p207 = pneg %p206
      $region18: #{forward.5} parent=5 // pred_check_branch
        %209 = sbr.rel (%p207) target = $region20
      $region19: #{forward.5} parent=5 // pred_region
        // Predicated region
        $region21: #{forward.5} parent=19 // pred_check
          %p210 = pneg %p49
        $region22: #{forward.5} parent=19 // pred_check_branch
          %212 = sbr.rel (%p210) target = $region24
        $region23: #{forward.5} parent=19 // pred_region
          %p213 = scmp.lt.s32.totalorder %s22, 1
          %s214 = scalar_select %p213, %s22, 1
          %p215 = scmp.lt.s32.totalorder %s23, 0
          %s216 = scalar_select %p215, %s23, 0
          %s217 = smul.addr %s214, 18
          %s218 = sadd.s32 %s216, %s217
          %s219 = smul.addr %s218, 8
          %s220 = scalar_lea.vmem %s0, %s219
        $region24: #{forward.5} parent=19 // pred_fallthru
          _
        // Predicated region
        $region25: #{forward.5} parent=19 // pred_check
          %p221 = pneg %p77
        $region26: #{forward.5} parent=19 // pred_check_branch
          %223 = sbr.rel (%p221) target = $region28
        $region27: #{forward.5} parent=19 // pred_region
          %p224 = scmp.lt.s32.totalorder %s22, 1
          %s225 = scalar_select %p224, %s22, 1
          %p226 = scmp.lt.s32.totalorder %s23, 0
          %s227 = scalar_select %p226, %s23, 0
          %s228 = smul.addr %s225, 6
          %s229 = sadd.s32 %s227, %s228
          %s230 = smul.addr %s229, 8
          %s231 = scalar_lea.vmem %s1, %s230
        $region28: #{forward.5} parent=19 // pred_fallthru
          _
        // Predicated region
        $region29: #{forward.5} parent=19 // pred_check
          %p232 = pneg %p105
        $region30: #{forward.5} parent=19 // pred_check_branch
          %234 = sbr.rel (%p232) target = $region32
        $region31: #{forward.5} parent=19 // pred_region
          %p235 = scmp.lt.s32.totalorder %s22, 1
          %s236 = scalar_select %p235, %s22, 1
          %p237 = scmp.lt.s32.totalorder %s23, 0
          %s238 = scalar_select %p237, %s23, 0
          %s239 = smul.addr %s236, 6
          %s240 = sadd.s32 %s238, %s239
          %s241 = smul.addr %s240, 8
          %s242 = scalar_lea.vmem %s2, %s241
        $region32: #{forward.5} parent=19 // pred_fallthru
          _
      $region20: #{forward.5} parent=5 // pred_fallthru
        _
      %p243 = scmp.le.s32.totalorder 1, %s15
      %p244 = scmp.lt.s32.totalorder %s15, 3
      %p245 = pnand %p243, %p244
      %p246 = pneg %p245
      // Predicated region
      $region33: #{forward.5} parent=5 // pred_check
        _
      $region34: #{forward.5} parent=5 // pred_check_branch
        %248 = sbr.rel (%p245) target = $region36
      $region35: #{forward.5} parent=5 // pred_region
        %s249 = ssub.s32 %s15, 1
        %p250 = scmp.lt.s32.totalorder %s24, 1
        %s251 = scalar_select %p250, %s24, 1
        %p252 = scmp.lt.s32.totalorder %s25, 0
        %s253 = scalar_select %p252, %s25, 0
        %s254 = smul.addr %s251, 18
        %s255 = sadd.s32 %s253, %s254
        %s256 = smul.addr %s255, 8
        %s257 = scalar_lea.vmem %s0, %s256
        %p258 = pneg %p55
        %p259 = pneg %p52
        %p260 = scmp.lt.s32.totalorder %s24, 1
        %s261 = scalar_select %p260, %s24, 1
        %p262 = scmp.lt.s32.totalorder %s25, 0
        %s263 = scalar_select %p262, %s25, 0
        %s264 = smul.addr %s261, 6
        %s265 = sadd.s32 %s263, %s264
        %s266 = smul.addr %s265, 8
        %s267 = scalar_lea.vmem %s1, %s266
        %p268 = pneg %p83
        %p269 = pneg %p80
        %p270 = scmp.lt.s32.totalorder %s24, 1
        %s271 = scalar_select %p270, %s24, 1
        %p272 = scmp.lt.s32.totalorder %s25, 0
        %s273 = scalar_select %p272, %s25, 0
        %s274 = smul.addr %s271, 6
        %s275 = sadd.s32 %s273, %s274
        %s276 = smul.addr %s275, 8
        %s277 = scalar_lea.vmem %s2, %s276
        %p278 = pneg %p111
        %p279 = pneg %p108
        %p280 = pneg %p132
        %p281 = pneg %p129
        %p282 = pneg %p160
        %p283 = pneg %p157
        %s284 = sand.u32 %s147, 1
        %s285 = scalar_lea.sflag [#allocation3], %s284
        %s286 = sand.u32 %s147, 1
        %s287 = smul.addr %s286, 8
        %s288 = scalar_lea.vmem [#allocation2], %s287
        %p289 = pneg %p188
        %p290 = pneg %p185
        %p291 = scmp.lt.s32.totalorder %s24, 1
        %s292 = scalar_select %p291, %s24, 1
        %p293 = scmp.lt.s32.totalorder %s25, 0
        %s294 = scalar_select %p293, %s25, 0
        %s295 = smul.addr %s292, 6
        %s296 = sadd.s32 %s294, %s295
        %s297 = smul.addr %s296, 8
        %s298 = scalar_lea.vmem %s5, %s297
        %p299 = scmp.lt.s32.totalorder %s24, 1
        %s300 = scalar_select %p299, %s24, 1
        %p301 = scmp.lt.s32.totalorder %s25, 0
        %s302 = scalar_select %p301, %s25, 0
        %s303 = smul.addr %s300, 18
        %s304 = sadd.s32 %s302, %s303
        %s305 = smul.addr %s304, 8
        %s306 = scalar_lea.vmem %s0, %s305
        %p307 = scmp.lt.s32.totalorder %s24, 1
        %s308 = scalar_select %p307, %s24, 1
        %p309 = scmp.lt.s32.totalorder %s25, 0
        %s310 = scalar_select %p309, %s25, 0
        %s311 = smul.addr %s308, 6
        %s312 = sadd.s32 %s310, %s311
        %s313 = smul.addr %s312, 8
        %s314 = scalar_lea.vmem %s1, %s313
        %p315 = scmp.lt.s32.totalorder %s24, 1
        %s316 = scalar_select %p315, %s24, 1
        %p317 = scmp.lt.s32.totalorder %s25, 0
        %s318 = scalar_select %p317, %s25, 0
        %s319 = smul.addr %s316, 6
        %s320 = sadd.s32 %s318, %s319
        %s321 = smul.addr %s320, 8
        %s322 = scalar_lea.vmem %s2, %s321
        %p323 = scmp.lt.s32.totalorder %s24, 1
        %s324 = scalar_select %p323, %s24, 1
        %p325 = scmp.lt.s32.totalorder %s25, 0
        %s326 = scalar_select %p325, %s25, 0
        %s327 = smul.addr %s324, 6
        %s328 = sadd.s32 %s326, %s327
        %s329 = smul.addr %s328, 8
        %s330 = scalar_lea.vmem %s5, %s329
        %v331 = vld [vmem:[%s322] sm:$0xff]
        %v332 = vld [vmem:[%s322 + $0x8] sm:$0xff]
        %v333 = vld [vmem:[%s322 + $0x10] sm:$0xff]
        %v334 = vld [vmem:[%s322 + $0x18] sm:$0xff]
        %v335 = vld [vmem:[%s322 + $0x20] sm:$0xff]
        %v336 = vld [vmem:[%s322 + $0x28] sm:$0xff]
        %vm343 = vcmask 1040384
        %v344 = vrot.slane %v331, 7
        %v345 = vrot.slane %v332, 7
        %v346 = vsel %vm343, %v344, %v345
        %v347 = vrot.slane %v333, 7
        %v348 = vsel %vm343, %v345, %v347
        %v349 = vrot.slane %v334, 7
        %v350 = vsel %vm343, %v347, %v349
        %v351 = vrot.slane %v335, 7
        %v352 = vsel %vm343, %v349, %v351
        %v353 = vrot.slane %v336, 7
        %v354 = vsel %vm343, %v351, %v353
        %v361 = vsub.f32 %v331, %v344
        %v362 = vsub.f32 %v332, %v346
        %v363 = vsub.f32 %v333, %v348
        %v364 = vsub.f32 %v334, %v350
        %v365 = vsub.f32 %v335, %v352
        %v366 = vsub.f32 %v336, %v354
        %vm367 = vcmask 1046528
        %v368 = vrot.slane %v331, 1
        %v369 = vrot.slane %v332, 1
        %v370 = vsel %vm367, %v368, %v369
        %v371 = vrot.slane %v333, 1
        %v372 = vsel %vm367, %v369, %v371
        %v373 = vrot.slane %v334, 1
        %v374 = vsel %vm367, %v371, %v373
        %v375 = vrot.slane %v335, 1
        %v376 = vsel %vm367, %v373, %v375
        %v377 = vrot.slane %v336, 1
        %v378 = vsel %vm367, %v375, %v377
        %v385 = vadd.f32 %v331, %v370
        %v386 = vadd.f32 %v332, %v372
        %v387 = vadd.f32 %v333, %v374
        %v388 = vadd.f32 %v334, %v376
        %v389 = vadd.f32 %v335, %v378
        %v390 = vadd.f32 %v336, %v377
        %v391 = vmul.f32 %v385, 0.5
        %v392 = vmul.f32 %v386, 0.5
        %v393 = vmul.f32 %v387, 0.5
        %v394 = vmul.f32 %v388, 0.5
        %v395 = vmul.f32 %v389, 0.5
        %v396 = vmul.f32 %v390, 0.5
        %v397 = vld [vmem:[%s314] sm:$0xff]
        %v398 = vld [vmem:[%s314 + $0x8] sm:$0xff]
        %v399 = vld [vmem:[%s314 + $0x10] sm:$0xff]
        %v400 = vld [vmem:[%s314 + $0x18] sm:$0xff]
        %v401 = vld [vmem:[%s314 + $0x20] sm:$0xff]
        %v402 = vld [vmem:[%s314 + $0x28] sm:$0xff]
        %v409 = vrot.slane %v397, 1
        %v410 = vrot.slane %v398, 1
        %v411 = vsel %vm367, %v409, %v410
        %v412 = vrot.slane %v399, 1
        %v413 = vsel %vm367, %v410, %v412
        %v414 = vrot.slane %v400, 1
        %v415 = vsel %vm367, %v412, %v414
        %v416 = vrot.slane %v401, 1
        %v417 = vsel %vm367, %v414, %v416
        %v418 = vrot.slane %v402, 1
        %v419 = vsel %vm367, %v416, %v418
        %v426 = vadd.f32 %v397, %v411
        %v427 = vadd.f32 %v398, %v413
        %v428 = vadd.f32 %v399, %v415
        %v429 = vadd.f32 %v400, %v417
        %v430 = vadd.f32 %v401, %v419
        %v431 = vadd.f32 %v402, %v418
        %v432 = vmul.f32 %v426, 0.5
        %v433 = vmul.f32 %v427, 0.5
        %v434 = vmul.f32 %v428, 0.5
        %v435 = vmul.f32 %v429, 0.5
        %v436 = vmul.f32 %v430, 0.5
        %v437 = vmul.f32 %v431, 0.5
        %v438 = vsub.f32 %v432, 1.0
        %v439 = vsub.f32 %v433, 1.0
        %v440 = vsub.f32 %v434, 1.0
        %v441 = vsub.f32 %v435, 1.0
        %v442 = vsub.f32 %v436, 1.0
        %v443 = vsub.f32 %v437, 1.0
        %v444 = vmax.f32 %v438, 0.0
        %v445 = vmax.f32 %v439, 0.0
        %v446 = vmax.f32 %v440, 0.0
        %v447 = vmax.f32 %v441, 0.0
        %v448 = vmax.f32 %v442, 0.0
        %v449 = vmax.f32 %v443, 0.0
        %v450 = vand.u32 2147483647, %v438
        %v451 = vand.u32 2147483647, %v439
        %v452 = vand.u32 2147483647, %v440
        %v453 = vand.u32 2147483647, %v441
        %v454 = vand.u32 2147483647, %v442
        %v455 = vand.u32 2147483647, %v443
        %v456 = vsub.f32 0.0, %v450
        %v457 = vsub.f32 0.0, %v451
        %v458 = vsub.f32 0.0, %v452
        %v459 = vsub.f32 0.0, %v453
        %v460 = vsub.f32 0.0, %v454
        %v461 = vsub.f32 0.0, %v455
        %v462 = vmul.f32 %v456, 1.442695
        %v463 = vpow.pop %v462
        %v464 = vmul.f32 %v457, 1.442695
        %v465 = vpow.pop %v464
        %v466 = vmul.f32 %v458, 1.442695
        %v467 = vpow.pop %v466
        %v468 = vmul.f32 %v459, 1.442695
        %v469 = vpow.pop %v468
        %v470 = vmul.f32 %v460, 1.442695
        %v471 = vpow.pop %v470
        %v472 = vmul.f32 %v461, 1.442695
        %v473 = vpow.pop %v472
        %v474 = vadd.f32 %v463, 1.0
        %v475 = vadd.f32 %v465, 1.0
        %v476 = vadd.f32 %v467, 1.0
        %v477 = vadd.f32 %v469, 1.0
        %v478 = vadd.f32 %v471, 1.0
        %v479 = vadd.f32 %v473, 1.0
        %v480 = vlog2.pop %v474
        %v481 = vmul.f32 %v480, 0.6931472
        %v482 = vlog2.pop %v475
        %v483 = vmul.f32 %v482, 0.6931472
        %v484 = vlog2.pop %v476
        %v485 = vmul.f32 %v484, 0.6931472
        %v486 = vlog2.pop %v477
        %v487 = vmul.f32 %v486, 0.6931472
        %v488 = vlog2.pop %v478
        %v489 = vmul.f32 %v488, 0.6931472
        %v490 = vlog2.pop %v479
        %v491 = vmul.f32 %v490, 0.6931472
        %v492 = vadd.f32 %v444, %v481
        %v493 = vadd.f32 %v445, %v483
        %v494 = vadd.f32 %v446, %v485
        %v495 = vadd.f32 %v447, %v487
        %v496 = vadd.f32 %v448, %v489
        %v497 = vadd.f32 %v449, %v491
        %v498 = vsub.f32 0.0, %v492
        %v499 = vsub.f32 0.0, %v493
        %v500 = vsub.f32 0.0, %v494
        %v501 = vsub.f32 0.0, %v495
        %v502 = vsub.f32 0.0, %v496
        %v503 = vsub.f32 0.0, %v497
        %v510 = vrot.slane %v361, 1
        %v511 = vrot.slane %v362, 1
        %v512 = vsel %vm367, %v510, %v511
        %v513 = vrot.slane %v363, 1
        %v514 = vsel %vm367, %v511, %v513
        %v515 = vrot.slane %v364, 1
        %v516 = vsel %vm367, %v513, %v515
        %v517 = vrot.slane %v365, 1
        %v518 = vsel %vm367, %v515, %v517
        %v519 = vrot.slane %v366, 1
        %v520 = vsel %vm367, %v517, %v519
        %v527 = vmul.f32 %v498, %v512
        %v528 = vmul.f32 %v499, %v514
        %v529 = vmul.f32 %v500, %v516
        %v530 = vmul.f32 %v501, %v518
        %v531 = vmul.f32 %v502, %v520
        %v532 = vmul.f32 %v503, %v519
        %v533 = vmul.f32 %v527, 1.442695
        %v534 = vpow.pop %v533
        %v535 = vmul.f32 %v528, 1.442695
        %v536 = vpow.pop %v535
        %v537 = vmul.f32 %v529, 1.442695
        %v538 = vpow.pop %v537
        %v539 = vmul.f32 %v530, 1.442695
        %v540 = vpow.pop %v539
        %v541 = vmul.f32 %v531, 1.442695
        %v542 = vpow.pop %v541
        %v543 = vmul.f32 %v532, 1.442695
        %v544 = vpow.pop %v543
        %v545 = vsub.f32 1.0, %v534
        %v546 = vsub.f32 1.0, %v536
        %v547 = vsub.f32 1.0, %v538
        %v548 = vsub.f32 1.0, %v540
        %v549 = vsub.f32 1.0, %v542
        %v550 = vsub.f32 1.0, %v544
        %v551 = vsub.f32 1.0, %v545
        %v552 = vsub.f32 1.0, %v546
        %v553 = vsub.f32 1.0, %v547
        %v554 = vsub.f32 1.0, %v548
        %v555 = vsub.f32 1.0, %v549
        %v556 = vsub.f32 1.0, %v550
        %v557 = vadd.f32 %v551, 1e-10
        %v558 = vadd.f32 %v552, 1e-10
        %v559 = vadd.f32 %v553, 1e-10
        %v560 = vadd.f32 %v554, 1e-10
        %v561 = vadd.f32 %v555, 1e-10
        %v562 = vadd.f32 %v556, 1e-10
        %v563 = vlog2.pop %v557
        %v564 = vmul.f32 %v563, 0.6931472
        %v565 = vlog2.pop %v558
        %v566 = vmul.f32 %v565, 0.6931472
        %v567 = vlog2.pop %v559
        %v568 = vmul.f32 %v567, 0.6931472
        %v569 = vlog2.pop %v560
        %v570 = vmul.f32 %v569, 0.6931472
        %v571 = vlog2.pop %v561
        %v572 = vmul.f32 %v571, 0.6931472
        %v573 = vlog2.pop %v562
        %v574 = vmul.f32 %v573, 0.6931472
        %v575 = vld [vmem:[%s3] sm:$0xff]
        %v576 = vld [vmem:[%s3 + $0x8] sm:$0xff]
        %v577 = vld [vmem:[%s3 + $0x10] sm:$0xff]
        %v578 = vld [vmem:[%s3 + $0x18] sm:$0xff]
        %v579 = vld [vmem:[%s3 + $0x20] sm:$0xff]
        %v580 = vld [vmem:[%s3 + $0x28] sm:$0x7f]
        %vm581 = vcmask 384000
        %v583 = vsel %vm581, %v575, 0
        %v586 = vsel %vm581, %v576, 0
        %v589 = vsel %vm581, %v577, 0
        %v592 = vsel %vm581, %v578, 0
        %v595 = vsel %vm581, %v579, 0
        %v598 = vsel %vm581, %v580, 0
        %v601 = vsel %vm367, %v574, 0
        %603 = vmatprep.subr.mxu0 0.0
        %604 = vmatpush1.msra.mxu0 %v564
        %605 = vmatprep.subr.mxu0 0.0
        %606 = vmatpush1.msra.mxu0 %v566
        %607 = vmatprep.subr.mxu0 0.0
        %608 = vmatpush1.msra.mxu0 %v568
        %609 = vmatprep.subr.mxu0 0.0
        %610 = vmatpush1.msra.mxu0 %v570
        %611 = vmatprep.subr.mxu0 0.0
        %612 = vmatpush1.msra.mxu0 %v572
        %613 = vmatprep.subr.mxu0 0.0
        %614 = vmatpush1.msra.mxu0 %v601
        %615 = vmatprep.subr.mxu0 0.0
        %616 = vmatpush1.msra.mxu0 0.0
        %617 = vmatprep.subr.mxu0 0.0
        %618 = vmatpush1.msra.mxu0 0.0
        %619 = vmatprep.subr.mxu0 0.0
        %620 = vmatpush1.msra.mxu0 0.0
        %621 = vmatprep.subr.mxu0 0.0
        %622 = vmatpush1.msra.mxu0 0.0
        %623 = vmatprep.subr.mxu0 0.0
        %624 = vmatpush1.msra.mxu0 0.0
        %625 = vmatprep.subr.mxu0 0.0
        %626 = vmatpush1.msra.mxu0 0.0
        %627 = vmatprep.subr.mxu0 0.0
        %628 = vmatpush1.msra.mxu0 0.0
        %629 = vmatprep.subr.mxu0 0.0
        %630 = vmatpush1.msra.mxu0 0.0
        %631 = vmatprep.subr.mxu0 0.0
        %632 = vmatpush1.msra.mxu0 0.0
        %633 = vmatprep.subr.mxu0 0.0
        %634 = vmatpush1.msra.mxu0 0.0
        %635 = vmatprep.subr.mxu0 0.0
        %636 = vmatpush1.msra.mxu0 0.0
        %637 = vmatprep.subr.mxu0 0.0
        %638 = vmatpush1.msra.mxu0 0.0
        %639 = vmatprep.subr.mxu0 0.0
        %640 = vmatpush1.msra.mxu0 0.0
        %641 = vmatprep.subr.mxu0 0.0
        %642 = vmatpush1.msra.mxu0 0.0
        %643 = vmatprep.subr.mxu0 0.0
        %644 = vmatpush1.msra.mxu0 0.0
        %645 = vmatprep.subr.mxu0 0.0
        %646 = vmatpush1.msra.mxu0 0.0
        %647 = vmatprep.subr.mxu0 0.0
        %648 = vmatpush1.msra.mxu0 0.0
        %649 = vmatprep.subr.mxu0 0.0
        %650 = vmatpush1.msra.mxu0 0.0
        %651 = vmatprep.subr.mxu0 0.0
        %652 = vmatpush1.msra.mxu0 0.0
        %653 = vmatprep.subr.mxu0 0.0
        %654 = vmatpush1.msra.mxu0 0.0
        %655 = vmatprep.subr.mxu0 0.0
        %656 = vmatpush1.msra.mxu0 0.0
        %657 = vmatprep.subr.mxu0 0.0
        %658 = vmatpush1.msra.mxu0 0.0
        %659 = vmatprep.subr.mxu0 0.0
        %660 = vmatpush1.msra.mxu0 0.0
        %661 = vmatprep.subr.mxu0 0.0
        %662 = vmatpush1.msra.mxu0 0.0
        %663 = vmatprep.subr.mxu0 0.0
        %664 = vmatpush1.msra.mxu0 0.0
        %665 = vmatprep.subr.mxu0 0.0
        %666 = vmatpush1.msra.mxu0 0.0
        %667 = vmatprep.mubr.f32.mxu0 0.0
        %668 = vmatmul.mubr.f32.gmra.mrb[0].mxu0 %v583
        %v669 = vpop.f32.mrb[0].mxu0
        %v670 = vadd.f32 0.0, %v669
        %v671 = vpop.f32.mrb[0].mxu0
        %672 = vmatprep.mubr.f32.mxu0 0.0
        %673 = vmatmul.mubr.f32.gmra.mrb[0].mxu0 %v586
        %v674 = vpop.f32.mrb[0].mxu0
        %v675 = vadd.f32 0.0, %v674
        %v676 = vpop.f32.mrb[0].mxu0
        %677 = vmatprep.mubr.f32.mxu0 0.0
        %678 = vmatmul.mubr.f32.gmra.mrb[0].mxu0 %v589
        %v679 = vpop.f32.mrb[0].mxu0
        %v680 = vadd.f32 0.0, %v679
        %v681 = vpop.f32.mrb[0].mxu0
        %682 = vmatprep.mubr.f32.mxu0 0.0
        %683 = vmatmul.mubr.f32.gmra.mrb[0].mxu0 %v592
        %v684 = vpop.f32.mrb[0].mxu0
        %v685 = vadd.f32 0.0, %v684
        %v686 = vpop.f32.mrb[0].mxu0
        %687 = vmatprep.mubr.f32.mxu0 0.0
        %688 = vmatmul.mubr.f32.gmra.mrb[0].mxu0 %v595
        %v689 = vpop.f32.mrb[0].mxu0
        %v690 = vadd.f32 0.0, %v689
        %v691 = vpop.f32.mrb[0].mxu0
        %692 = vmatprep.mubr.f32.mxu0 0.0
        %693 = vmatmul.mubr.f32.gmra.mrb[0].mxu0 %v598
        %v694 = vpop.f32.mrb[0].mxu0
        %v695 = vadd.f32 0.0, %v694
        %v696 = vpop.f32.mrb[0].mxu0
        %697 = vdwg.mxu0
        %v698 = vmul.f32 %v670, 1.442695
        %v699 = vpow.pop %v698
        %v700 = vmul.f32 %v675, 1.442695
        %v701 = vpow.pop %v700
        %v702 = vmul.f32 %v680, 1.442695
        %v703 = vpow.pop %v702
        %v704 = vmul.f32 %v685, 1.442695
        %v705 = vpow.pop %v704
        %v706 = vmul.f32 %v690, 1.442695
        %v707 = vpow.pop %v706
        %v708 = vmul.f32 %v695, 1.442695
        %v709 = vpow.pop %v708
        %v710 = vmul.f32 %v545, %v699
        %v711 = vmul.f32 %v546, %v701
        %v712 = vmul.f32 %v547, %v703
        %v713 = vmul.f32 %v548, %v705
        %v714 = vmul.f32 %v549, %v707
        %v715 = vmul.f32 %v550, %v709
        %716 = vst [vmem:[%s330] sm:$0xff] %v710
        %717 = vst [vmem:[%s330 + $0x8] sm:$0xff] %v711
        %718 = vst [vmem:[%s330 + $0x10] sm:$0xff] %v712
        %719 = vst [vmem:[%s330 + $0x18] sm:$0xff] %v713
        %720 = vst [vmem:[%s330 + $0x20] sm:$0xff] %v714
        %721 = vst [vmem:[%s330 + $0x28] sm:$0x7f] %v715
        %v722 = vadd.f32 %v710, %v711
        %v723 = vadd.f32 %v722, %v712
        %v724 = vadd.f32 %v723, %v713
        %v725 = vadd.f32 %v724, %v714
        %v726 = vsel %vm367, %v715, 0.0
        %v727 = vadd.f32 %v725, %v726
        %v728 = vrot.slane %v727, 4
        %v729 = vadd.f32 %v727, %v728
        %v730 = vrot.slane %v729, 2
        %v731 = vadd.f32 %v729, %v730
        %v732 = vrot.slane %v731, 1
        %v733 = vadd.f32 %v731, %v732
        %v734 = vmul.f32 %v710, %v391
        %v735 = vmul.f32 %v711, %v392
        %v736 = vmul.f32 %v712, %v393
        %v737 = vmul.f32 %v713, %v394
        %v738 = vmul.f32 %v714, %v395
        %v739 = vmul.f32 %v715, %v396
        %v740 = vadd.f32 %v734, %v735
        %v741 = vadd.f32 %v740, %v736
        %v742 = vadd.f32 %v741, %v737
        %v743 = vadd.f32 %v742, %v738
        %v744 = vsel %vm367, %v739, 0.0
        %v745 = vadd.f32 %v743, %v744
        %v746 = vrot.slane %v745, 4
        %v747 = vadd.f32 %v745, %v746
        %v748 = vrot.slane %v747, 2
        %v749 = vadd.f32 %v747, %v748
        %v750 = vrot.slane %v749, 1
        %v751 = vadd.f32 %v749, %v750
        %v752 = vrcp.pop %v733
        %v753 = vmul.f32 %v733, %v752
        %v754 = vsub.f32 2.0, %v753
        %v755 = vmul.f32 %v752, %v754
        %vm756 = vcmp.gt.f32.partialorder %v733, 0.0
        %v757 = vmul.f32 %v751, %v755
        %v758 = vsel %vm756, %v757, inf
        %v759 = vld [vmem:[%s306] sm:$0xff]
        %v760 = vld [vmem:[%s306 + $0x8] sm:$0xff]
        %v761 = vld [vmem:[%s306 + $0x10] sm:$0xff]
        %v762 = vld [vmem:[%s306 + $0x18] sm:$0xff]
        %v763 = vld [vmem:[%s306 + $0x20] sm:$0xff]
        %v764 = vld [vmem:[%s306 + $0x28] sm:$0xff]
        %v765 = vld [vmem:[%s306 + $0x30] sm:$0xff]
        %v766 = vld [vmem:[%s306 + $0x38] sm:$0xff]
        %v767 = vld [vmem:[%s306 + $0x40] sm:$0xff]
        %v768 = vld [vmem:[%s306 + $0x48] sm:$0xff]
        %v769 = vld [vmem:[%s306 + $0x50] sm:$0xff]
        %v770 = vld [vmem:[%s306 + $0x58] sm:$0xff]
        %v771 = vld [vmem:[%s306 + $0x60] sm:$0xff]
        %v772 = vld [vmem:[%s306 + $0x68] sm:$0xff]
        %v773 = vld [vmem:[%s306 + $0x70] sm:$0xff]
        %v774 = vld [vmem:[%s306 + $0x78] sm:$0xff]
        %v775 = vld [vmem:[%s306 + $0x80] sm:$0xff]
        %v776 = vld [vmem:[%s306 + $0x88] sm:$0xff]
        %v783 = vrot.slane %v759, 1
        %v784 = vrot.slane %v760, 1
        %v785 = vsel %vm367, %v783, %v784
        %v786 = vrot.slane %v761, 1
        %v787 = vsel %vm367, %v784, %v786
        %v788 = vrot.slane %v762, 1
        %v789 = vsel %vm367, %v786, %v788
        %v790 = vrot.slane %v763, 1
        %v791 = vsel %vm367, %v788, %v790
        %v792 = vrot.slane %v764, 1
        %v793 = vsel %vm367, %v790, %v792
        %v800 = vadd.f32 %v759, %v785
        %v801 = vadd.f32 %v760, %v787
        %v802 = vadd.f32 %v761, %v789
        %v803 = vadd.f32 %v762, %v791
        %v804 = vadd.f32 %v763, %v793
        %v805 = vadd.f32 %v764, %v792
        %v806 = vmul.f32 %v800, 0.5
        %v807 = vmul.f32 %v801, 0.5
        %v808 = vmul.f32 %v802, 0.5
        %v809 = vmul.f32 %v803, 0.5
        %v810 = vmul.f32 %v804, 0.5
        %v811 = vmul.f32 %v805, 0.5
        %v812 = vmul.f32 %v710, %v806
        %v813 = vmul.f32 %v711, %v807
        %v814 = vmul.f32 %v712, %v808
        %v815 = vmul.f32 %v713, %v809
        %v816 = vmul.f32 %v714, %v810
        %v817 = vmul.f32 %v715, %v811
        %v818 = vadd.f32 %v812, %v813
        %v819 = vadd.f32 %v818, %v814
        %v820 = vadd.f32 %v819, %v815
        %v821 = vadd.f32 %v820, %v816
        %v822 = vsel %vm367, %v817, 0.0
        %v823 = vadd.f32 %v821, %v822
        %v824 = vrot.slane %v823, 4
        %v825 = vadd.f32 %v823, %v824
        %v826 = vrot.slane %v825, 2
        %v827 = vadd.f32 %v825, %v826
        %v828 = vrot.slane %v827, 1
        %v829 = vadd.f32 %v827, %v828
        %v830 = vmul.f32 %v829, 2.0
        %v831 = vsub.f32 %v830, 1.0
        %v838 = vrot.slane %v765, 1
        %v839 = vrot.slane %v766, 1
        %v840 = vsel %vm367, %v838, %v839
        %v841 = vrot.slane %v767, 1
        %v842 = vsel %vm367, %v839, %v841
        %v843 = vrot.slane %v768, 1
        %v844 = vsel %vm367, %v841, %v843
        %v845 = vrot.slane %v769, 1
        %v846 = vsel %vm367, %v843, %v845
        %v847 = vrot.slane %v770, 1
        %v848 = vsel %vm367, %v845, %v847
        %v855 = vadd.f32 %v765, %v840
        %v856 = vadd.f32 %v766, %v842
        %v857 = vadd.f32 %v767, %v844
        %v858 = vadd.f32 %v768, %v846
        %v859 = vadd.f32 %v769, %v848
        %v860 = vadd.f32 %v770, %v847
        %v861 = vmul.f32 %v855, 0.5
        %v862 = vmul.f32 %v856, 0.5
        %v863 = vmul.f32 %v857, 0.5
        %v864 = vmul.f32 %v858, 0.5
        %v865 = vmul.f32 %v859, 0.5
        %v866 = vmul.f32 %v860, 0.5
        %v867 = vmul.f32 %v710, %v861
        %v868 = vmul.f32 %v711, %v862
        %v869 = vmul.f32 %v712, %v863
        %v870 = vmul.f32 %v713, %v864
        %v871 = vmul.f32 %v714, %v865
        %v872 = vmul.f32 %v715, %v866
        %v873 = vadd.f32 %v867, %v868
        %v874 = vadd.f32 %v873, %v869
        %v875 = vadd.f32 %v874, %v870
        %v876 = vadd.f32 %v875, %v871
        %v877 = vsel %vm367, %v872, 0.0
        %v878 = vadd.f32 %v876, %v877
        %v879 = vrot.slane %v878, 4
        %v880 = vadd.f32 %v878, %v879
        %v881 = vrot.slane %v880, 2
        %v882 = vadd.f32 %v880, %v881
        %v883 = vrot.slane %v882, 1
        %v884 = vadd.f32 %v882, %v883
        %v885 = vmul.f32 %v884, 2.0
        %v886 = vsub.f32 %v885, 1.0
        %v893 = vrot.slane %v771, 1
        %v894 = vrot.slane %v772, 1
        %v895 = vsel %vm367, %v893, %v894
        %v896 = vrot.slane %v773, 1
        %v897 = vsel %vm367, %v894, %v896
        %v898 = vrot.slane %v774, 1
        %v899 = vsel %vm367, %v896, %v898
        %v900 = vrot.slane %v775, 1
        %v901 = vsel %vm367, %v898, %v900
        %v902 = vrot.slane %v776, 1
        %v903 = vsel %vm367, %v900, %v902
        %v910 = vadd.f32 %v771, %v895
        %v911 = vadd.f32 %v772, %v897
        %v912 = vadd.f32 %v773, %v899
        %v913 = vadd.f32 %v774, %v901
        %v914 = vadd.f32 %v775, %v903
        %v915 = vadd.f32 %v776, %v902
        %v916 = vmul.f32 %v910, 0.5
        %v917 = vmul.f32 %v911, 0.5
        %v918 = vmul.f32 %v912, 0.5
        %v919 = vmul.f32 %v913, 0.5
        %v920 = vmul.f32 %v914, 0.5
        %v921 = vmul.f32 %v915, 0.5
        %v922 = vmul.f32 %v710, %v916
        %v923 = vmul.f32 %v711, %v917
        %v924 = vmul.f32 %v712, %v918
        %v925 = vmul.f32 %v713, %v919
        %v926 = vmul.f32 %v714, %v920
        %v927 = vmul.f32 %v715, %v921
        %v928 = vadd.f32 %v922, %v923
        %v929 = vadd.f32 %v928, %v924
        %v930 = vadd.f32 %v929, %v925
        %v931 = vadd.f32 %v930, %v926
        %v932 = vsel %vm367, %v927, 0.0
        %v933 = vadd.f32 %v931, %v932
        %v934 = vrot.slane %v933, 4
        %v935 = vadd.f32 %v933, %v934
        %v936 = vrot.slane %v935, 2
        %v937 = vadd.f32 %v935, %v936
        %v938 = vrot.slane %v937, 1
        %v939 = vadd.f32 %v937, %v938
        %v940 = vmul.f32 %v939, 2.0
        %v941 = vsub.f32 %v940, 1.0
        %v942 = vsel %vm343, %v831, %v886
        %vm943 = vcmask 1041408
        %v944 = vsel %vm943, %v942, %v941
        %vm945 = vcmask 1042432
        %v946 = vsel %vm945, %v944, %v758
        %vm947 = vcmask 1043456
        %v948 = vsel %vm947, %v946, %v733
        %vm949 = vcmask 1044480
        %v950 = vsel %vm949, %v948, 0.0
        %951 = vst [vmem:[%s288] sm:$0xff] %v950
        %s952 = sand.u32 %s147, 1
        %s953 = scalar_lea.sflag [#allocation3], %s952
        %s954 = sand.u32 %s147, 1
        %s955 = smul.addr %s954, 8
        %s956 = scalar_lea.vmem [#allocation2], %s955
        %p957 = scmp.lt.s32.totalorder %s24, 1
        %s958 = scalar_select %p957, %s24, 1
        %p959 = scmp.lt.s32.totalorder %s25, 0
        %s960 = scalar_select %p959, %s25, 0
        %s961 = smul.addr %s958, 6
        %s962 = sadd.s32 %s960, %s961
        %s963 = smul.addr %s962, 8
        %s964 = scalar_lea.vmem %s5, %s963
        // Predicated region
        $region37: #{forward.5} parent=35 // pred_check
          %p965 = pneg %p157
        $region38: #{forward.5} parent=35 // pred_check_branch
          %967 = sbr.rel (%p965) target = $region40
        $region39: #{forward.5} parent=35 // pred_region
          %s969 = ssub.s32 128, 128
          %970 = vsyncadd %s953, %s969
          %s971 = sadd.s32 %s25, %s24
          %s972 = smul.addr %s971, 128
          %s973 = scalar_lea.hbm %s4, %s972
          %s975 = sshll.u32 %s956, 4
          %s976 = int_to_ptr.vmem [resolvable:$true] %s975
          %978 = dma.vmem_to_hbm [thread:$0]  %s976, 128, %s973, %s953
        $region40: #{forward.5} parent=35 // pred_fallthru
          _
        // Predicated region
        $region41: #{forward.5} parent=35 // pred_check
          %p979 = pneg %p185
        $region42: #{forward.5} parent=35 // pred_check_branch
          %981 = sbr.rel (%p979) target = $region44
        $region43: #{forward.5} parent=35 // pred_region
          _
        $region44: #{forward.5} parent=35 // pred_fallthru
          _
      $region36: #{forward.5} parent=5 // pred_fallthru
        _
      %p982 = scmp.le.s32.totalorder 2, %s15
      // Predicated region
      $region45: #{forward.5} parent=5 // pred_check
        %p983 = pneg %p982
      $region46: #{forward.5} parent=5 // pred_check_branch
        %985 = sbr.rel (%p983) target = $region48
      $region47: #{forward.5} parent=5 // pred_region
        %s986 = ssub.s32 %s15, 2
        // Predicated region
        $region49: #{forward.5} parent=47 // pred_check
          %p987 = pneg %p163
        $region50: #{forward.5} parent=47 // pred_check_branch
          %989 = sbr.rel (%p987) target = $region52
        $region51: #{forward.5} parent=47 // pred_region
          %s990 = sand.u32 %s148, 1
          %s991 = scalar_lea.sflag [#allocation3], %s990
          %s992 = sand.u32 %s148, 1
          %s993 = smul.addr %s992, 8
          %s994 = scalar_lea.vmem [#allocation2], %s993
          %995 = dma.done %s991, 128
        $region52: #{forward.5} parent=47 // pred_fallthru
          _
        // Predicated region
        $region53: #{forward.5} parent=47 // pred_check
          %p996 = pneg %p191
        $region54: #{forward.5} parent=47 // pred_check_branch
          %998 = sbr.rel (%p996) target = $region56
        $region55: #{forward.5} parent=47 // pred_region
          %p999 = scmp.lt.s32.totalorder %s26, 1
          %s1000 = scalar_select %p999, %s26, 1
          %p1001 = scmp.lt.s32.totalorder %s27, 0
          %s1002 = scalar_select %p1001, %s27, 0
          %s1003 = smul.addr %s1000, 6
          %s1004 = sadd.s32 %s1002, %s1003
          %s1005 = smul.addr %s1004, 8
          %s1006 = scalar_lea.vmem %s5, %s1005
        $region56: #{forward.5} parent=47 // pred_fallthru
          _
      $region48: #{forward.5} parent=5 // pred_fallthru
        _
    $region6: #{forward.5} parent=1 // loop_footer
      %s19 = sadd.s32 1, %s15
    $region7: #{forward.5} parent=1 // loop_footer_branch
      %14 = sbr.rel target = $region3
    $region8: #{forward.5} parent=1 // loop_exit
      _
    %1007 = vsyncpa [#allocation3], 1
    %s1008 = scalar_lea.sflag [#allocation3], 1
    %1009 = vsyncpa %s1008, 1

// kernel: forward.4
$region0: #{forward.4}
  #allocation0 [shape = 'u32[]', space=smem, size = 0x4, offset = 0x4, fixed_abs, tag = 'smem constant byte address 0x4 - core index']
  #allocation1 [shape = 'u32[144,128]{1,0:T(1,128)}', space=vmem, size = 0x12000, scoped, tag = 'internal scratch']
  %s0 = inlined_call_operand.vmem [shape: f32[2,3,1024], index: 0, kind: input, shape index: {}]
  %s1 = inlined_call_operand.vmem [shape: bf16[2,32,256], index: 1, kind: input, shape index: {}]
  %s2 = inlined_call_operand.vmem [shape: f32[64,32], index: 2, kind: input, shape index: {}]
  %s3 = inlined_call_operand.vmem [shape: f32[64,1], index: 3, kind: input, shape index: {}]
  %s4 = inlined_call_operand.vmem [shape: f32[4,64], index: 4, kind: input, shape index: {}]
  %s5 = inlined_call_operand.vmem [shape: f32[4,1], index: 5, kind: input, shape index: {}]
  %s6 = inlined_call_operand.vmem [shape: f32[2,4,1024], index: 6, kind: output, shape index: {}]
  %s7 = sld [smem:[#allocation0]]
  $region57: #{forward.4} parent=0
    _
  %s9 = ssub.s32 1, %s7
  %s10 = scalar_select 0, %s9, %s7
  loop: start=0, step=1, limit=6
  $region2: #{forward.4} parent=0 // loop_pre_header
    _
  $region3: #{forward.4} parent=0 // loop_header
    %s12 = sphi 0, %s16
    %p13 = scmp.ge.s32.totalorder %s12, 6
    %s19 = sphi 0, %s31
    %s20 = sphi 0, %s27
    %s21 = sphi 0, %s19
    %s22 = sphi 0, %s20
    %s23 = sphi 0, %s21
    %s24 = sphi 0, %s22
    %s36 = sphi 0, %s38
    %s39 = sphi 0, %s36
    %s40 = sphi 0, %s39
    %s56 = sphi 0, %s40
    %s62 = sphi 0, %s64
    %s65 = sphi 0, %s62
    %s66 = sphi 0, %s65
    %s82 = sphi 0, %s66
    %s86 = sphi 0, %s86
    %s88 = sphi 0, %s86
    %s89 = sphi 0, %s88
    %s103 = sphi 0, %s89
    %s107 = sphi 0, %s107
    %s109 = sphi 0, %s107
    %s110 = sphi 0, %s109
    %s124 = sphi 0, %s110
    %s128 = sphi 0, %s128
    %s130 = sphi 0, %s128
    %s131 = sphi 0, %s130
    %s145 = sphi 0, %s131
    %s149 = sphi 0, %s149
    %s151 = sphi 0, %s149
    %s152 = sphi 0, %s151
    %s166 = sphi 0, %s152
    %s174 = sphi 0, %s176
    %s177 = sphi 0, %s174
    %s178 = sphi 0, %s177
    %s194 = sphi 0, %s178
  $region4: #{forward.4} parent=0 // loop_header_branch
    %15 = sbr.rel (%p13) target = $region8
  $region5: #{forward.4} parent=0 // loop_body
    %s17 = ssub.s32 %s12, 1
    %s18 = ssub.s32 %s12, 2
    %s25 = sadd.s32 1, %s20
    %p26 = scmp.ge.s32.totalorder %s25, 2
    %s27 = scalar_select %p26, 0, %s25
    %s28 = sadd.s32 1, %s19
    %s29 = scalar_select %p26, %s28, %s19
    %p30 = scmp.ge.s32.totalorder %s29, 2
    %s31 = scalar_select %p30, 0, %s29
    %s32 = ssub.s32 %s19, %s31
    %s33 = ssub.s32 %s20, %s27
    %s34 = sor.u32 %s32, %s33
    %p35 = scmp.eq.s32.totalorder %s34, 0
    %s37 = sadd.s32 %s36, 1
    %s38 = scalar_select %p35, %s36, %s37
    %p41 = pneg %p35
    %p42 = scmp.eq.s32.totalorder %s12, 3
    %p43 = por %p41, %p42
    %p44 = scmp.ne.s32.totalorder %s36, %s39
    %p45 = scmp.eq.s32.totalorder %s12, 0
    %p46 = por %p44, %p45
    %p47 = scmp.ne.s32.totalorder %s36, %s39
    %p48 = scmp.eq.s32.totalorder %s17, 3
    %p49 = por %p47, %p48
    %p50 = scmp.ne.s32.totalorder %s39, %s40
    %p51 = scmp.eq.s32.totalorder %s17, 0
    %p52 = por %p50, %p51
    %p53 = scmp.ne.s32.totalorder %s39, %s40
    %p54 = scmp.eq.s32.totalorder %s18, 3
    %p55 = por %p53, %p54
    %p57 = scmp.ne.s32.totalorder %s40, %s56
    %p58 = scmp.eq.s32.totalorder %s18, 0
    %p59 = por %p57, %p58
    %s60 = ssub.s32 %s19, %s31
    %p61 = scmp.eq.s32.totalorder %s60, 0
    %s63 = sadd.s32 %s62, 1
    %s64 = scalar_select %p61, %s62, %s63
    %p67 = pneg %p61
    %p68 = scmp.eq.s32.totalorder %s12, 3
    %p69 = por %p67, %p68
    %p70 = scmp.ne.s32.totalorder %s62, %s65
    %p71 = scmp.eq.s32.totalorder %s12, 0
    %p72 = por %p70, %p71
    %p73 = scmp.ne.s32.totalorder %s62, %s65
    %p74 = scmp.eq.s32.totalorder %s17, 3
    %p75 = por %p73, %p74
    %p76 = scmp.ne.s32.totalorder %s65, %s66
    %p77 = scmp.eq.s32.totalorder %s17, 0
    %p78 = por %p76, %p77
    %p79 = scmp.ne.s32.totalorder %s65, %s66
    %p80 = scmp.eq.s32.totalorder %s18, 3
    %p81 = por %p79, %p80
    %p83 = scmp.ne.s32.totalorder %s66, %s82
    %p84 = scmp.eq.s32.totalorder %s18, 0
    %p85 = por %p83, %p84
    %s87 = sadd.s32 %s86, 1
    %p90 = scmp.eq.s32.totalorder %s12, 3
    %p91 = scmp.ne.s32.totalorder %s86, %s88
    %p92 = scmp.eq.s32.totalorder %s12, 0
    %p93 = por %p91, %p92
    %p94 = scmp.ne.s32.totalorder %s86, %s88
    %p95 = scmp.eq.s32.totalorder %s17, 3
    %p96 = por %p94, %p95
    %p97 = scmp.ne.s32.totalorder %s88, %s89
    %p98 = scmp.eq.s32.totalorder %s17, 0
    %p99 = por %p97, %p98
    %p100 = scmp.ne.s32.totalorder %s88, %s89
    %p101 = scmp.eq.s32.totalorder %s18, 3
    %p102 = por %p100, %p101
    %p104 = scmp.ne.s32.totalorder %s89, %s103
    %p105 = scmp.eq.s32.totalorder %s18, 0
    %p106 = por %p104, %p105
    %s108 = sadd.s32 %s107, 1
    %p111 = scmp.eq.s32.totalorder %s12, 3
    %p112 = scmp.ne.s32.totalorder %s107, %s109
    %p113 = scmp.eq.s32.totalorder %s12, 0
    %p114 = por %p112, %p113
    %p115 = scmp.ne.s32.totalorder %s107, %s109
    %p116 = scmp.eq.s32.totalorder %s17, 3
    %p117 = por %p115, %p116
    %p118 = scmp.ne.s32.totalorder %s109, %s110
    %p119 = scmp.eq.s32.totalorder %s17, 0
    %p120 = por %p118, %p119
    %p121 = scmp.ne.s32.totalorder %s109, %s110
    %p122 = scmp.eq.s32.totalorder %s18, 3
    %p123 = por %p121, %p122
    %p125 = scmp.ne.s32.totalorder %s110, %s124
    %p126 = scmp.eq.s32.totalorder %s18, 0
    %p127 = por %p125, %p126
    %s129 = sadd.s32 %s128, 1
    %p132 = scmp.eq.s32.totalorder %s12, 3
    %p133 = scmp.ne.s32.totalorder %s128, %s130
    %p134 = scmp.eq.s32.totalorder %s12, 0
    %p135 = por %p133, %p134
    %p136 = scmp.ne.s32.totalorder %s128, %s130
    %p137 = scmp.eq.s32.totalorder %s17, 3
    %p138 = por %p136, %p137
    %p139 = scmp.ne.s32.totalorder %s130, %s131
    %p140 = scmp.eq.s32.totalorder %s17, 0
    %p141 = por %p139, %p140
    %p142 = scmp.ne.s32.totalorder %s130, %s131
    %p143 = scmp.eq.s32.totalorder %s18, 3
    %p144 = por %p142, %p143
    %p146 = scmp.ne.s32.totalorder %s131, %s145
    %p147 = scmp.eq.s32.totalorder %s18, 0
    %p148 = por %p146, %p147
    %s150 = sadd.s32 %s149, 1
    %p153 = scmp.eq.s32.totalorder %s12, 3
    %p154 = scmp.ne.s32.totalorder %s149, %s151
    %p155 = scmp.eq.s32.totalorder %s12, 0
    %p156 = por %p154, %p155
    %p157 = scmp.ne.s32.totalorder %s149, %s151
    %p158 = scmp.eq.s32.totalorder %s17, 3
    %p159 = por %p157, %p158
    %p160 = scmp.ne.s32.totalorder %s151, %s152
    %p161 = scmp.eq.s32.totalorder %s17, 0
    %p162 = por %p160, %p161
    %p163 = scmp.ne.s32.totalorder %s151, %s152
    %p164 = scmp.eq.s32.totalorder %s18, 3
    %p165 = por %p163, %p164
    %p167 = scmp.ne.s32.totalorder %s152, %s166
    %p168 = scmp.eq.s32.totalorder %s18, 0
    %p169 = por %p167, %p168
    %s170 = ssub.s32 %s19, %s31
    %s171 = ssub.s32 %s20, %s27
    %s172 = sor.u32 %s170, %s171
    %p173 = scmp.eq.s32.totalorder %s172, 0
    %s175 = sadd.s32 %s174, 1
    %s176 = scalar_select %p173, %s174, %s175
    %p179 = pneg %p173
    %p180 = scmp.eq.s32.totalorder %s12, 3
    %p181 = por %p179, %p180
    %p182 = scmp.ne.s32.totalorder %s174, %s177
    %p183 = scmp.eq.s32.totalorder %s12, 0
    %p184 = por %p182, %p183
    %p185 = scmp.ne.s32.totalorder %s174, %s177
    %p186 = scmp.eq.s32.totalorder %s17, 3
    %p187 = por %p185, %p186
    %p188 = scmp.ne.s32.totalorder %s177, %s178
    %p189 = scmp.eq.s32.totalorder %s17, 0
    %p190 = por %p188, %p189
    %p191 = scmp.ne.s32.totalorder %s177, %s178
    %p192 = scmp.eq.s32.totalorder %s18, 3
    %p193 = por %p191, %p192
    %p195 = scmp.ne.s32.totalorder %s178, %s194
    %p196 = scmp.eq.s32.totalorder %s18, 0
    %p197 = por %p195, %p196
    %p198 = scmp.le.s32.totalorder 1, %s12
    %p199 = scmp.lt.s32.totalorder %s12, 5
    %p200 = pnand %p198, %p199
    %p201 = pneg %p200
    // Predicated region
    $region9: #{forward.4} parent=5 // pred_check
      _
    $region10: #{forward.4} parent=5 // pred_check_branch
      %203 = sbr.rel (%p200) target = $region12
    $region11: #{forward.4} parent=5 // pred_region
      %s204 = ssub.s32 %s12, 1
      // Predicated region
      $region13: #{forward.4} parent=11 // pred_check
        %p205 = pneg %p99
      $region14: #{forward.4} parent=11 // pred_check_branch
        %207 = sbr.rel (%p205) target = $region16
      $region15: #{forward.4} parent=11 // pred_region
        _
      $region16: #{forward.4} parent=11 // pred_fallthru
        _
      // Predicated region
      $region17: #{forward.4} parent=11 // pred_check
        %p208 = pneg %p120
      $region18: #{forward.4} parent=11 // pred_check_branch
        %210 = sbr.rel (%p208) target = $region20
      $region19: #{forward.4} parent=11 // pred_region
        _
      $region20: #{forward.4} parent=11 // pred_fallthru
        _
      // Predicated region
      $region21: #{forward.4} parent=11 // pred_check
        %p211 = pneg %p141
      $region22: #{forward.4} parent=11 // pred_check_branch
        %213 = sbr.rel (%p211) target = $region24
      $region23: #{forward.4} parent=11 // pred_region
        _
      $region24: #{forward.4} parent=11 // pred_fallthru
        _
      // Predicated region
      $region25: #{forward.4} parent=11 // pred_check
        %p214 = pneg %p162
      $region26: #{forward.4} parent=11 // pred_check_branch
        %216 = sbr.rel (%p214) target = $region28
      $region27: #{forward.4} parent=11 // pred_region
        _
      $region28: #{forward.4} parent=11 // pred_fallthru
        _
    $region12: #{forward.4} parent=5 // pred_fallthru
      _
    %p217 = scmp.lt.s32.totalorder %s12, 4
    // Predicated region
    $region29: #{forward.4} parent=5 // pred_check
      %p218 = pneg %p217
    $region30: #{forward.4} parent=5 // pred_check_branch
      %220 = sbr.rel (%p218) target = $region32
    $region31: #{forward.4} parent=5 // pred_region
      // Predicated region
      $region33: #{forward.4} parent=31 // pred_check
        %p221 = pneg %p46
      $region34: #{forward.4} parent=31 // pred_check_branch
        %223 = sbr.rel (%p221) target = $region36
      $region35: #{forward.4} parent=31 // pred_region
        %s224 = smul.u32 4, %s20
        %p225 = scmp.lt.s32.totalorder %s19, 1
        %s226 = scalar_select %p225, %s19, 1
        %p227 = scmp.lt.s32.totalorder %s224, 7
        %s228 = scalar_select %p227, %s224, 7
        %s229 = smul.addr %s226, 8
        %s230 = sadd.s32 %s228, %s229
        %s231 = smul.addr %s230, 4
        %s232 = scalar_lea.vmem %s0, %s231
        %s233 = smul.u32 4, %s20
      $region36: #{forward.4} parent=31 // pred_fallthru
        _
      // Predicated region
      $region37: #{forward.4} parent=31 // pred_check
        %p234 = pneg %p72
      $region38: #{forward.4} parent=31 // pred_check_branch
        %236 = sbr.rel (%p234) target = $region40
      $region39: #{forward.4} parent=31 // pred_region
        %p237 = scmp.lt.s32.totalorder %s19, 1
        %s238 = scalar_select %p237, %s19, 1
        %s239 = smul.addr %s238, 8
        %s240 = smul.addr %s239, 4
        %s241 = scalar_lea.vmem %s1, %s240
      $region40: #{forward.4} parent=31 // pred_fallthru
        _
    $region32: #{forward.4} parent=5 // pred_fallthru
      _
    %p242 = scmp.le.s32.totalorder 1, %s12
    %p243 = scmp.lt.s32.totalorder %s12, 5
    %p244 = pnand %p242, %p243
    %p245 = pneg %p244
    // Predicated region
    $region41: #{forward.4} parent=5 // pred_check
      _
    $region42: #{forward.4} parent=5 // pred_check_branch
      %247 = sbr.rel (%p244) target = $region44
    $region43: #{forward.4} parent=5 // pred_region
      %s248 = ssub.s32 %s12, 1
      %s249 = smul.u32 4, %s22
      %p250 = scmp.lt.s32.totalorder %s21, 1
      %s251 = scalar_select %p250, %s21, 1
      %p252 = scmp.lt.s32.totalorder %s249, 7
      %s253 = scalar_select %p252, %s249, 7
      %s254 = smul.addr %s251, 8
      %s255 = sadd.s32 %s253, %s254
      %s256 = smul.addr %s255, 4
      %s257 = scalar_lea.vmem %s0, %s256
      %p258 = pneg %p52
      %p259 = pneg %p49
      %p260 = scmp.lt.s32.totalorder %s21, 1
      %s261 = scalar_select %p260, %s21, 1
      %s262 = smul.addr %s261, 8
      %s263 = smul.addr %s262, 4
      %s264 = scalar_lea.vmem %s1, %s263
      %p265 = pneg %p78
      %p266 = pneg %p75
      %p267 = pneg %p99
      %p268 = pneg %p96
      %p269 = pneg %p120
      %p270 = pneg %p117
      %p271 = pneg %p141
      %p272 = pneg %p138
      %p273 = pneg %p162
      %p274 = pneg %p159
      %p275 = pneg %p190
      %p276 = pneg %p187
      %s277 = smul.u32 4, %s22
      %p278 = scmp.lt.s32.totalorder %s21, 1
      %s279 = scalar_select %p278, %s21, 1
      %p280 = scmp.lt.s32.totalorder %s277, 7
      %s281 = scalar_select %p280, %s277, 7
      %s282 = smul.addr %s279, 8
      %s283 = sadd.s32 %s281, %s282
      %s284 = smul.addr %s283, 4
      %s285 = scalar_lea.vmem %s6, %s284
      %s286 = smul.u32 4, %s22
      %p287 = scmp.lt.s32.totalorder %s21, 1
      %s288 = scalar_select %p287, %s21, 1
      %p289 = scmp.lt.s32.totalorder %s286, 7
      %s290 = scalar_select %p289, %s286, 7
      %s291 = smul.addr %s288, 8
      %s292 = sadd.s32 %s290, %s291
      %s293 = smul.addr %s292, 4
      %s294 = scalar_lea.vmem %s0, %s293
      %s295 = smul.u32 4, %s22
      %p296 = scmp.lt.s32.totalorder %s21, 1
      %s297 = scalar_select %p296, %s21, 1
      %s298 = smul.addr %s297, 8
      %s299 = smul.addr %s298, 4
      %s300 = scalar_lea.vmem %s1, %s299
      %s301 = smul.u32 4, %s22
      %p302 = scmp.lt.s32.totalorder %s21, 1
      %s303 = scalar_select %p302, %s21, 1
      %p304 = scmp.lt.s32.totalorder %s301, 7
      %s305 = scalar_select %p304, %s301, 7
      %s306 = smul.addr %s303, 8
      %s307 = sadd.s32 %s305, %s306
      %s308 = smul.addr %s307, 4
      %s309 = scalar_lea.vmem %s6, %s308
      %s310 = smul.u32 4, %s22
      %v311 = vld [vmem:[%s294] sm:$0x77]
      %v312 = vld [vmem:[%s294 + $0x8] sm:$0x77]
      %v313 = vld [vmem:[%s300] sm:$0xff]
      %v314 = vld [vmem:[%s300 + $0x8] sm:$0xff]
      %v315 = vld [vmem:[%s300 + $0x10] sm:$0xff]
      %v316 = vld [vmem:[%s300 + $0x18] sm:$0xff]
      %v317 = vadd.f32 %v311, 1.0
      %v318 = vadd.f32 %v312, 1.0
      %v319 = vmul.f32 %v317, 16.0
      %v320 = vmul.f32 %v318, 16.0
      %v321 = vsub.f32 %v319, 1.0
      %v322 = vsub.f32 %v320, 1.0
      %v323 = vmul.f32 %v321, 0.5
      %v324 = vmul.f32 %v322, 0.5
      %v325 = vfloor.f32 %v323
      %v326 = vfloor.f32 %v324
      %v327 = vadd.f32 %v325, 1.0
      %v328 = vadd.f32 %v326, 1.0
      %v329 = vsub.f32 %v323, %v325
      %v330 = vsub.f32 %v324, %v326
      %v331 = vsub.f32 1.0, %v329
      %v332 = vsub.f32 1.0, %v330
      %v333 = vlaneseq
      %v334 = vshrl.u32 %v333, 7
      %v335 = vadd.s32 %v334, 8
      %v336 = vadd.s32 %v334, 16
      %v337 = vadd.s32 %v334, 24
      %v338 = vadd.s32 %v334, 32
      %v339 = vadd.s32 %v334, 40
      %v340 = vadd.s32 %v334, 48
      %v341 = vadd.s32 %v334, 56
      %v342 = vadd.s32 %v334, 64
      %v343 = vadd.s32 %v334, 72
      %v344 = vadd.s32 %v334, 80
      %v345 = vadd.s32 %v334, 88
      %v346 = vadd.s32 %v334, 96
      %v347 = vadd.s32 %v334, 104
      %v348 = vadd.s32 %v334, 112
      %v349 = vadd.s32 %v334, 120
      %v350 = vadd.s32 %v334, 128
      %v351 = vadd.s32 %v334, 136
      %v352 = vadd.s32 %v334, 144
      %v353 = vadd.s32 %v334, 152
      %v354 = vadd.s32 %v334, 160
      %v355 = vadd.s32 %v334, 168
      %v356 = vadd.s32 %v334, 176
      %v357 = vadd.s32 %v334, 184
      %v358 = vadd.s32 %v334, 192
      %v359 = vadd.s32 %v334, 200
      %v360 = vadd.s32 %v334, 208
      %v361 = vadd.s32 %v334, 216
      %v362 = vadd.s32 %v334, 224
      %v363 = vadd.s32 %v334, 232
      %v364 = vadd.s32 %v334, 240
      %v365 = vadd.s32 %v334, 248
      %v368 = vrot.slane %v331, 5
      %v369 = vrot.slane %v368, 4
      %v370 = vrot.slane %v332, 5
      %v371 = vrot.slane %v370, 4
      %v374 = vmul.f32 %v331, %v369
      %v375 = vmul.f32 %v332, %v371
      %vm376 = vcmp.ge.f32.partialorder %v325, 0.0
      %vm377 = vcmp.ge.f32.partialorder %v326, 0.0
      %vm378 = vcmp.le.f32.partialorder %v325, 15.0
      %vm379 = vcmp.le.f32.partialorder %v326, 15.0
      %vm380 = vmand %vm376, %vm378
      %vm381 = vmand %vm377, %vm379
      %v382 = vsel %vm376, 1, 0
      %v383 = vsel %vm377, 1, 0
      %v384 = vrot.slane %v382, 5
      %v385 = vrot.slane %v384, 4
      %v386 = vrot.slane %v383, 5
      %v387 = vrot.slane %v386, 4
      %vm388 = vcmp.ne.s32.totalorder %v385, 0
      %vm389 = vcmp.ne.s32.totalorder %v387, 0
      %vm390 = vmand %vm380, %vm388
      %vm391 = vmand %vm381, %vm389
      %v392 = vsel %vm378, 1, 0
      %v393 = vsel %vm379, 1, 0
      %v394 = vrot.slane %v392, 5
      %v395 = vrot.slane %v394, 4
      %v396 = vrot.slane %v393, 5
      %v397 = vrot.slane %v396, 4
      %vm398 = vcmp.ne.s32.totalorder %v395, 0
      %vm399 = vcmp.ne.s32.totalorder %v397, 0
      %vm400 = vmand %vm390, %vm398
      %vm401 = vmand %vm391, %vm399
      %v402 = vcvt.f32.s32.to.zero.pseudo %v325
      %v403 = vcvt.f32.s32.to.zero.pseudo %v326
      %v404 = vmul.u32 %v402, 16
      %v405 = vmul.u32 %v403, 16
      %v406 = vrot.slane %v402, 7
      %v407 = vrot.slane %v403, 7
      %v408 = vadd.s32 %v404, %v406
      %v409 = vadd.s32 %v405, %v407
      %v410 = vrot.slane %v408, 5
      %v411 = vrot.slane %v410, 4
      %v412 = vrot.slane %v409, 5
      %v413 = vrot.slane %v412, 4
      %v414 = vsel %vm400, %v411, 4294967295
      %v415 = vsel %vm401, %v413, 4294967295
      %v416 = vlaneseq
      %v417 = vshrl.u32 %v416, 7
      %v418 = vsub.s32 0, %v417
      %v419 = vrot.slane %v414, %v418
      %v420 = vlaneseq
      %v421 = vshrl.u32 %v420, 7
      %v422 = vsub.s32 4, %v421
      %v423 = vrot.slane %v414, %v422
      %v424 = vlaneseq
      %v425 = vshrl.u32 %v424, 7
      %v426 = vsub.s32 0, %v425
      %v427 = vrot.slane %v415, %v426
      %v428 = vlaneseq
      %v429 = vshrl.u32 %v428, 7
      %v430 = vsub.s32 4, %v429
      %v431 = vrot.slane %v415, %v430
      %v432 = vlaneseq
      %v433 = vshrl.u32 %v432, 7
      %v434 = vsub.s32 0, %v433
      %v435 = vrot.slane %v419, %v434
      %v436 = vlaneseq
      %v437 = vshrl.u32 %v436, 7
      %v438 = vsub.s32 0, %v437
      %v439 = vrot.slane %v423, %v438
      %v440 = vlaneseq
      %v441 = vshrl.u32 %v440, 7
      %v442 = vsub.s32 0, %v441
      %v443 = vrot.slane %v427, %v442
      %v444 = vlaneseq
      %v445 = vshrl.u32 %v444, 7
      %v446 = vsub.s32 0, %v445
      %v447 = vrot.slane %v431, %v446
      %vm448 = vcmp.eq.s32.totalorder %v334, %v435
      %vm449 = vcmp.eq.s32.totalorder %v334, %v439
      %vm450 = vcmp.eq.s32.totalorder %v334, %v443
      %vm451 = vcmp.eq.s32.totalorder %v334, %v447
      %vm452 = vcmp.eq.s32.totalorder %v335, %v435
      %vm453 = vcmp.eq.s32.totalorder %v335, %v439
      %vm454 = vcmp.eq.s32.totalorder %v335, %v443
      %vm455 = vcmp.eq.s32.totalorder %v335, %v447
      %vm456 = vcmp.eq.s32.totalorder %v336, %v435
      %vm457 = vcmp.eq.s32.totalorder %v336, %v439
      %vm458 = vcmp.eq.s32.totalorder %v336, %v443
      %vm459 = vcmp.eq.s32.totalorder %v336, %v447
      %vm460 = vcmp.eq.s32.totalorder %v337, %v435
      %vm461 = vcmp.eq.s32.totalorder %v337, %v439
      %vm462 = vcmp.eq.s32.totalorder %v337, %v443
      %vm463 = vcmp.eq.s32.totalorder %v337, %v447
      %vm464 = vcmp.eq.s32.totalorder %v338, %v435
      %vm465 = vcmp.eq.s32.totalorder %v338, %v439
      %vm466 = vcmp.eq.s32.totalorder %v338, %v443
      %vm467 = vcmp.eq.s32.totalorder %v338, %v447
      %vm468 = vcmp.eq.s32.totalorder %v339, %v435
      %vm469 = vcmp.eq.s32.totalorder %v339, %v439
      %vm470 = vcmp.eq.s32.totalorder %v339, %v443
      %vm471 = vcmp.eq.s32.totalorder %v339, %v447
      %vm472 = vcmp.eq.s32.totalorder %v340, %v435
      %vm473 = vcmp.eq.s32.totalorder %v340, %v439
      %vm474 = vcmp.eq.s32.totalorder %v340, %v443
      %vm475 = vcmp.eq.s32.totalorder %v340, %v447
      %vm476 = vcmp.eq.s32.totalorder %v341, %v435
      %vm477 = vcmp.eq.s32.totalorder %v341, %v439
      %vm478 = vcmp.eq.s32.totalorder %v341, %v443
      %vm479 = vcmp.eq.s32.totalorder %v341, %v447
      %vm480 = vcmp.eq.s32.totalorder %v342, %v435
      %vm481 = vcmp.eq.s32.totalorder %v342, %v439
      %vm482 = vcmp.eq.s32.totalorder %v342, %v443
      %vm483 = vcmp.eq.s32.totalorder %v342, %v447
      %vm484 = vcmp.eq.s32.totalorder %v343, %v435
      %vm485 = vcmp.eq.s32.totalorder %v343, %v439
      %vm486 = vcmp.eq.s32.totalorder %v343, %v443
      %vm487 = vcmp.eq.s32.totalorder %v343, %v447
      %vm488 = vcmp.eq.s32.totalorder %v344, %v435
      %vm489 = vcmp.eq.s32.totalorder %v344, %v439
      %vm490 = vcmp.eq.s32.totalorder %v344, %v443
      %vm491 = vcmp.eq.s32.totalorder %v344, %v447
      %vm492 = vcmp.eq.s32.totalorder %v345, %v435
      %vm493 = vcmp.eq.s32.totalorder %v345, %v439
      %vm494 = vcmp.eq.s32.totalorder %v345, %v443
      %vm495 = vcmp.eq.s32.totalorder %v345, %v447
      %vm496 = vcmp.eq.s32.totalorder %v346, %v435
      %vm497 = vcmp.eq.s32.totalorder %v346, %v439
      %vm498 = vcmp.eq.s32.totalorder %v346, %v443
      %vm499 = vcmp.eq.s32.totalorder %v346, %v447
      %vm500 = vcmp.eq.s32.totalorder %v347, %v435
      %vm501 = vcmp.eq.s32.totalorder %v347, %v439
      %vm502 = vcmp.eq.s32.totalorder %v347, %v443
      %vm503 = vcmp.eq.s32.totalorder %v347, %v447
      %vm504 = vcmp.eq.s32.totalorder %v348, %v435
      %vm505 = vcmp.eq.s32.totalorder %v348, %v439
      %vm506 = vcmp.eq.s32.totalorder %v348, %v443
      %vm507 = vcmp.eq.s32.totalorder %v348, %v447
      %vm508 = vcmp.eq.s32.totalorder %v349, %v435
      %vm509 = vcmp.eq.s32.totalorder %v349, %v439
      %vm510 = vcmp.eq.s32.totalorder %v349, %v443
      %vm511 = vcmp.eq.s32.totalorder %v349, %v447
      %vm512 = vcmp.eq.s32.totalorder %v350, %v435
      %vm513 = vcmp.eq.s32.totalorder %v350, %v439
      %vm514 = vcmp.eq.s32.totalorder %v350, %v443
      %vm515 = vcmp.eq.s32.totalorder %v350, %v447
      %vm516 = vcmp.eq.s32.totalorder %v351, %v435
      %vm517 = vcmp.eq.s32.totalorder %v351, %v439
      %vm518 = vcmp.eq.s32.totalorder %v351, %v443
      %vm519 = vcmp.eq.s32.totalorder %v351, %v447
      %vm520 = vcmp.eq.s32.totalorder %v352, %v435
      %vm521 = vcmp.eq.s32.totalorder %v352, %v439
      %vm522 = vcmp.eq.s32.totalorder %v352, %v443
      %vm523 = vcmp.eq.s32.totalorder %v352, %v447
      %vm524 = vcmp.eq.s32.totalorder %v353, %v435
      %vm525 = vcmp.eq.s32.totalorder %v353, %v439
      %vm526 = vcmp.eq.s32.totalorder %v353, %v443
      %vm527 = vcmp.eq.s32.totalorder %v353, %v447
      %vm528 = vcmp.eq.s32.totalorder %v354, %v435
      %vm529 = vcmp.eq.s32.totalorder %v354, %v439
      %vm530 = vcmp.eq.s32.totalorder %v354, %v443
      %vm531 = vcmp.eq.s32.totalorder %v354, %v447
      %vm532 = vcmp.eq.s32.totalorder %v355, %v435
      %vm533 = vcmp.eq.s32.totalorder %v355, %v439
      %vm534 = vcmp.eq.s32.totalorder %v355, %v443
      %vm535 = vcmp.eq.s32.totalorder %v355, %v447
      %vm536 = vcmp.eq.s32.totalorder %v356, %v435
      %vm537 = vcmp.eq.s32.totalorder %v356, %v439
      %vm538 = vcmp.eq.s32.totalorder %v356, %v443
      %vm539 = vcmp.eq.s32.totalorder %v356, %v447
      %vm540 = vcmp.eq.s32.totalorder %v357, %v435
      %vm541 = vcmp.eq.s32.totalorder %v357, %v439
      %vm542 = vcmp.eq.s32.totalorder %v357, %v443
      %vm543 = vcmp.eq.s32.totalorder %v357, %v447
      %vm544 = vcmp.eq.s32.totalorder %v358, %v435
      %vm545 = vcmp.eq.s32.totalorder %v358, %v439
      %vm546 = vcmp.eq.s32.totalorder %v358, %v443
      %vm547 = vcmp.eq.s32.totalorder %v358, %v447
      %vm548 = vcmp.eq.s32.totalorder %v359, %v435
      %vm549 = vcmp.eq.s32.totalorder %v359, %v439
      %vm550 = vcmp.eq.s32.totalorder %v359, %v443
      %vm551 = vcmp.eq.s32.totalorder %v359, %v447
      %vm552 = vcmp.eq.s32.totalorder %v360, %v435
      %vm553 = vcmp.eq.s32.totalorder %v360, %v439
      %vm554 = vcmp.eq.s32.totalorder %v360, %v443
      %vm555 = vcmp.eq.s32.totalorder %v360, %v447
      %vm556 = vcmp.eq.s32.totalorder %v361, %v435
      %vm557 = vcmp.eq.s32.totalorder %v361, %v439
      %vm558 = vcmp.eq.s32.totalorder %v361, %v443
      %vm559 = vcmp.eq.s32.totalorder %v361, %v447
      %vm560 = vcmp.eq.s32.totalorder %v362, %v435
      %vm561 = vcmp.eq.s32.totalorder %v362, %v439
      %vm562 = vcmp.eq.s32.totalorder %v362, %v443
      %vm563 = vcmp.eq.s32.totalorder %v362, %v447
      %vm564 = vcmp.eq.s32.totalorder %v363, %v435
      %vm565 = vcmp.eq.s32.totalorder %v363, %v439
      %vm566 = vcmp.eq.s32.totalorder %v363, %v443
      %vm567 = vcmp.eq.s32.totalorder %v363, %v447
      %vm568 = vcmp.eq.s32.totalorder %v364, %v435
      %vm569 = vcmp.eq.s32.totalorder %v364, %v439
      %vm570 = vcmp.eq.s32.totalorder %v364, %v443
      %vm571 = vcmp.eq.s32.totalorder %v364, %v447
      %vm572 = vcmp.eq.s32.totalorder %v365, %v435
      %vm573 = vcmp.eq.s32.totalorder %v365, %v439
      %vm574 = vcmp.eq.s32.totalorder %v365, %v443
      %vm575 = vcmp.eq.s32.totalorder %v365, %v447
      %v578 = vlaneseq
      %v579 = vshrl.u32 %v578, 7
      %v580 = vsub.s32 0, %v579
      %v581 = vrot.slane %v374, %v580
      %v582 = vlaneseq
      %v583 = vshrl.u32 %v582, 7
      %v584 = vsub.s32 4, %v583
      %v585 = vrot.slane %v374, %v584
      %v586 = vlaneseq
      %v587 = vshrl.u32 %v586, 7
      %v588 = vsub.s32 0, %v587
      %v589 = vrot.slane %v375, %v588
      %v590 = vlaneseq
      %v591 = vshrl.u32 %v590, 7
      %v592 = vsub.s32 4, %v591
      %v593 = vrot.slane %v375, %v592
      %v598 = vlaneseq
      %v599 = vshrl.u32 %v598, 7
      %v600 = vsub.s32 0, %v599
      %v601 = vrot.slane %v581, %v600
      %v602 = vlaneseq
      %v603 = vshrl.u32 %v602, 7
      %v604 = vsub.s32 0, %v603
      %v605 = vrot.slane %v585, %v604
      %v606 = vlaneseq
      %v607 = vshrl.u32 %v606, 7
      %v608 = vsub.s32 0, %v607
      %v609 = vrot.slane %v589, %v608
      %v610 = vlaneseq
      %v611 = vshrl.u32 %v610, 7
      %v612 = vsub.s32 0, %v611
      %v613 = vrot.slane %v593, %v612
      %v614 = vsel %vm448, %v601, 0.0
      %v615 = vsel %vm449, %v605, 0.0
      %v616 = vsel %vm450, %v609, 0.0
      %v617 = vsel %vm451, %v613, 0.0
      %v618 = vsel %vm452, %v601, 0.0
      %v619 = vsel %vm453, %v605, 0.0
      %v620 = vsel %vm454, %v609, 0.0
      %v621 = vsel %vm455, %v613, 0.0
      %v622 = vsel %vm456, %v601, 0.0
      %v623 = vsel %vm457, %v605, 0.0
      %v624 = vsel %vm458, %v609, 0.0
      %v625 = vsel %vm459, %v613, 0.0
      %v626 = vsel %vm460, %v601, 0.0
      %v627 = vsel %vm461, %v605, 0.0
      %v628 = vsel %vm462, %v609, 0.0
      %v629 = vsel %vm463, %v613, 0.0
      %v630 = vsel %vm464, %v601, 0.0
      %v631 = vsel %vm465, %v605, 0.0
      %v632 = vsel %vm466, %v609, 0.0
      %v633 = vsel %vm467, %v613, 0.0
      %v634 = vsel %vm468, %v601, 0.0
      %v635 = vsel %vm469, %v605, 0.0
      %v636 = vsel %vm470, %v609, 0.0
      %v637 = vsel %vm471, %v613, 0.0
      %v638 = vsel %vm472, %v601, 0.0
      %v639 = vsel %vm473, %v605, 0.0
      %v640 = vsel %vm474, %v609, 0.0
      %v641 = vsel %vm475, %v613, 0.0
      %v642 = vsel %vm476, %v601, 0.0
      %v643 = vsel %vm477, %v605, 0.0
      %v644 = vsel %vm478, %v609, 0.0
      %v645 = vsel %vm479, %v613, 0.0
      %v646 = vsel %vm480, %v601, 0.0
      %v647 = vsel %vm481, %v605, 0.0
      %v648 = vsel %vm482, %v609, 0.0
      %v649 = vsel %vm483, %v613, 0.0
      %v650 = vsel %vm484, %v601, 0.0
      %v651 = vsel %vm485, %v605, 0.0
      %v652 = vsel %vm486, %v609, 0.0
      %v653 = vsel %vm487, %v613, 0.0
      %v654 = vsel %vm488, %v601, 0.0
      %v655 = vsel %vm489, %v605, 0.0
      %v656 = vsel %vm490, %v609, 0.0
      %v657 = vsel %vm491, %v613, 0.0
      %v658 = vsel %vm492, %v601, 0.0
      %v659 = vsel %vm493, %v605, 0.0
      %v660 = vsel %vm494, %v609, 0.0
      %v661 = vsel %vm495, %v613, 0.0
      %v662 = vsel %vm496, %v601, 0.0
      %v663 = vsel %vm497, %v605, 0.0
      %v664 = vsel %vm498, %v609, 0.0
      %v665 = vsel %vm499, %v613, 0.0
      %v666 = vsel %vm500, %v601, 0.0
      %v667 = vsel %vm501, %v605, 0.0
      %v668 = vsel %vm502, %v609, 0.0
      %v669 = vsel %vm503, %v613, 0.0
      %v670 = vsel %vm504, %v601, 0.0
      %v671 = vsel %vm505, %v605, 0.0
      %v672 = vsel %vm506, %v609, 0.0
      %v673 = vsel %vm507, %v613, 0.0
      %v674 = vsel %vm508, %v601, 0.0
      %v675 = vsel %vm509, %v605, 0.0
      %v676 = vsel %vm510, %v609, 0.0
      %v677 = vsel %vm511, %v613, 0.0
      %v678 = vsel %vm512, %v601, 0.0
      %v679 = vsel %vm513, %v605, 0.0
      %v680 = vsel %vm514, %v609, 0.0
      %v681 = vsel %vm515, %v613, 0.0
      %v682 = vsel %vm516, %v601, 0.0
      %v683 = vsel %vm517, %v605, 0.0
      %v684 = vsel %vm518, %v609, 0.0
      %v685 = vsel %vm519, %v613, 0.0
      %v686 = vsel %vm520, %v601, 0.0
      %v687 = vsel %vm521, %v605, 0.0
      %v688 = vsel %vm522, %v609, 0.0
      %v689 = vsel %vm523, %v613, 0.0
      %v690 = vsel %vm524, %v601, 0.0
      %v691 = vsel %vm525, %v605, 0.0
      %v692 = vsel %vm526, %v609, 0.0
      %v693 = vsel %vm527, %v613, 0.0
      %v694 = vsel %vm528, %v601, 0.0
      %v695 = vsel %vm529, %v605, 0.0
      %v696 = vsel %vm530, %v609, 0.0
      %v697 = vsel %vm531, %v613, 0.0
      %v698 = vsel %vm532, %v601, 0.0
      %v699 = vsel %vm533, %v605, 0.0
      %v700 = vsel %vm534, %v609, 0.0
      %v701 = vsel %vm535, %v613, 0.0
      %v702 = vsel %vm536, %v601, 0.0
      %v703 = vsel %vm537, %v605, 0.0
      %v704 = vsel %vm538, %v609, 0.0
      %v705 = vsel %vm539, %v613, 0.0
      %v706 = vsel %vm540, %v601, 0.0
      %v707 = vsel %vm541, %v605, 0.0
      %v708 = vsel %vm542, %v609, 0.0
      %v709 = vsel %vm543, %v613, 0.0
      %v710 = vsel %vm544, %v601, 0.0
      %v711 = vsel %vm545, %v605, 0.0
      %v712 = vsel %vm546, %v609, 0.0
      %v713 = vsel %vm547, %v613, 0.0
      %v714 = vsel %vm548, %v601, 0.0
      %v715 = vsel %vm549, %v605, 0.0
      %v716 = vsel %vm550, %v609, 0.0
      %v717 = vsel %vm551, %v613, 0.0
      %v718 = vsel %vm552, %v601, 0.0
      %v719 = vsel %vm553, %v605, 0.0
      %v720 = vsel %vm554, %v609, 0.0
      %v721 = vsel %vm555, %v613, 0.0
      %v722 = vsel %vm556, %v601, 0.0
      %v723 = vsel %vm557, %v605, 0.0
      %v724 = vsel %vm558, %v609, 0.0
      %v725 = vsel %vm559, %v613, 0.0
      %v726 = vsel %vm560, %v601, 0.0
      %v727 = vsel %vm561, %v605, 0.0
      %v728 = vsel %vm562, %v609, 0.0
      %v729 = vsel %vm563, %v613, 0.0
      %v730 = vsel %vm564, %v601, 0.0
      %v731 = vsel %vm565, %v605, 0.0
      %v732 = vsel %vm566, %v609, 0.0
      %v733 = vsel %vm567, %v613, 0.0
      %v734 = vsel %vm568, %v601, 0.0
      %v735 = vsel %vm569, %v605, 0.0
      %v736 = vsel %vm570, %v609, 0.0
      %v737 = vsel %vm571, %v613, 0.0
      %v738 = vsel %vm572, %v601, 0.0
      %v739 = vsel %vm573, %v605, 0.0
      %v740 = vsel %vm574, %v609, 0.0
      %v741 = vsel %vm575, %v613, 0.0
      %v742 = vmul.f32 %v329, %v369
      %v743 = vmul.f32 %v330, %v371
      %vm744 = vcmp.ge.f32.partialorder %v327, 0.0
      %vm745 = vcmp.ge.f32.partialorder %v328, 0.0
      %vm746 = vcmp.le.f32.partialorder %v327, 15.0
      %vm747 = vcmp.le.f32.partialorder %v328, 15.0
      %vm748 = vmand %vm744, %vm746
      %vm749 = vmand %vm745, %vm747
      %vm750 = vmand %vm748, %vm388
      %vm751 = vmand %vm749, %vm389
      %vm752 = vmand %vm750, %vm398
      %vm753 = vmand %vm751, %vm399
      %v754 = vcvt.f32.s32.to.zero.pseudo %v327
      %v755 = vcvt.f32.s32.to.zero.pseudo %v328
      %v756 = vrot.slane %v754, 7
      %v757 = vrot.slane %v755, 7
      %v758 = vadd.s32 %v404, %v756
      %v759 = vadd.s32 %v405, %v757
      %v760 = vrot.slane %v758, 5
      %v761 = vrot.slane %v760, 4
      %v762 = vrot.slane %v759, 5
      %v763 = vrot.slane %v762, 4
      %v764 = vsel %vm752, %v761, 4294967295
      %v765 = vsel %vm753, %v763, 4294967295
      %v766 = vlaneseq
      %v767 = vshrl.u32 %v766, 7
      %v768 = vsub.s32 0, %v767
      %v769 = vrot.slane %v764, %v768
      %v770 = vlaneseq
      %v771 = vshrl.u32 %v770, 7
      %v772 = vsub.s32 4, %v771
      %v773 = vrot.slane %v764, %v772
      %v774 = vlaneseq
      %v775 = vshrl.u32 %v774, 7
      %v776 = vsub.s32 0, %v775
      %v777 = vrot.slane %v765, %v776
      %v778 = vlaneseq
      %v779 = vshrl.u32 %v778, 7
      %v780 = vsub.s32 4, %v779
      %v781 = vrot.slane %v765, %v780
      %v782 = vlaneseq
      %v783 = vshrl.u32 %v782, 7
      %v784 = vsub.s32 0, %v783
      %v785 = vrot.slane %v769, %v784
      %v786 = vlaneseq
      %v787 = vshrl.u32 %v786, 7
      %v788 = vsub.s32 0, %v787
      %v789 = vrot.slane %v773, %v788
      %v790 = vlaneseq
      %v791 = vshrl.u32 %v790, 7
      %v792 = vsub.s32 0, %v791
      %v793 = vrot.slane %v777, %v792
      %v794 = vlaneseq
      %v795 = vshrl.u32 %v794, 7
      %v796 = vsub.s32 0, %v795
      %v797 = vrot.slane %v781, %v796
      %vm798 = vcmp.eq.s32.totalorder %v334, %v785
      %vm799 = vcmp.eq.s32.totalorder %v334, %v789
      %vm800 = vcmp.eq.s32.totalorder %v334, %v793
      %vm801 = vcmp.eq.s32.totalorder %v334, %v797
      %vm802 = vcmp.eq.s32.totalorder %v335, %v785
      %vm803 = vcmp.eq.s32.totalorder %v335, %v789
      %vm804 = vcmp.eq.s32.totalorder %v335, %v793
      %vm805 = vcmp.eq.s32.totalorder %v335, %v797
      %vm806 = vcmp.eq.s32.totalorder %v336, %v785
      %vm807 = vcmp.eq.s32.totalorder %v336, %v789
      %vm808 = vcmp.eq.s32.totalorder %v336, %v793
      %vm809 = vcmp.eq.s32.totalorder %v336, %v797
      %vm810 = vcmp.eq.s32.totalorder %v337, %v785
      %vm811 = vcmp.eq.s32.totalorder %v337, %v789
      %vm812 = vcmp.eq.s32.totalorder %v337, %v793
      %vm813 = vcmp.eq.s32.totalorder %v337, %v797
      %vm814 = vcmp.eq.s32.totalorder %v338, %v785
      %vm815 = vcmp.eq.s32.totalorder %v338, %v789
      %vm816 = vcmp.eq.s32.totalorder %v338, %v793
      %vm817 = vcmp.eq.s32.totalorder %v338, %v797
      %vm818 = vcmp.eq.s32.totalorder %v339, %v785
      %vm819 = vcmp.eq.s32.totalorder %v339, %v789
      %vm820 = vcmp.eq.s32.totalorder %v339, %v793
      %vm821 = vcmp.eq.s32.totalorder %v339, %v797
      %vm822 = vcmp.eq.s32.totalorder %v340, %v785
      %vm823 = vcmp.eq.s32.totalorder %v340, %v789
      %vm824 = vcmp.eq.s32.totalorder %v340, %v793
      %vm825 = vcmp.eq.s32.totalorder %v340, %v797
      %vm826 = vcmp.eq.s32.totalorder %v341, %v785
      %vm827 = vcmp.eq.s32.totalorder %v341, %v789
      %vm828 = vcmp.eq.s32.totalorder %v341, %v793
      %vm829 = vcmp.eq.s32.totalorder %v341, %v797
      %vm830 = vcmp.eq.s32.totalorder %v342, %v785
      %vm831 = vcmp.eq.s32.totalorder %v342, %v789
      %vm832 = vcmp.eq.s32.totalorder %v342, %v793
      %vm833 = vcmp.eq.s32.totalorder %v342, %v797
      %vm834 = vcmp.eq.s32.totalorder %v343, %v785
      %vm835 = vcmp.eq.s32.totalorder %v343, %v789
      %vm836 = vcmp.eq.s32.totalorder %v343, %v793
      %vm837 = vcmp.eq.s32.totalorder %v343, %v797
      %vm838 = vcmp.eq.s32.totalorder %v344, %v785
      %vm839 = vcmp.eq.s32.totalorder %v344, %v789
      %vm840 = vcmp.eq.s32.totalorder %v344, %v793
      %vm841 = vcmp.eq.s32.totalorder %v344, %v797
      %vm842 = vcmp.eq.s32.totalorder %v345, %v785
      %vm843 = vcmp.eq.s32.totalorder %v345, %v789
      %vm844 = vcmp.eq.s32.totalorder %v345, %v793
      %vm845 = vcmp.eq.s32.totalorder %v345, %v797
      %vm846 = vcmp.eq.s32.totalorder %v346, %v785
      %vm847 = vcmp.eq.s32.totalorder %v346, %v789
      %vm848 = vcmp.eq.s32.totalorder %v346, %v793
      %vm849 = vcmp.eq.s32.totalorder %v346, %v797
      %vm850 = vcmp.eq.s32.totalorder %v347, %v785
      %vm851 = vcmp.eq.s32.totalorder %v347, %v789
      %vm852 = vcmp.eq.s32.totalorder %v347, %v793
      %vm853 = vcmp.eq.s32.totalorder %v347, %v797
      %vm854 = vcmp.eq.s32.totalorder %v348, %v785
      %vm855 = vcmp.eq.s32.totalorder %v348, %v789
      %vm856 = vcmp.eq.s32.totalorder %v348, %v793
      %vm857 = vcmp.eq.s32.totalorder %v348, %v797
      %vm858 = vcmp.eq.s32.totalorder %v349, %v785
      %vm859 = vcmp.eq.s32.totalorder %v349, %v789
      %vm860 = vcmp.eq.s32.totalorder %v349, %v793
      %vm861 = vcmp.eq.s32.totalorder %v349, %v797
      %vm862 = vcmp.eq.s32.totalorder %v350, %v785
      %vm863 = vcmp.eq.s32.totalorder %v350, %v789
      %vm864 = vcmp.eq.s32.totalorder %v350, %v793
      %vm865 = vcmp.eq.s32.totalorder %v350, %v797
      %vm866 = vcmp.eq.s32.totalorder %v351, %v785
      %vm867 = vcmp.eq.s32.totalorder %v351, %v789
      %vm868 = vcmp.eq.s32.totalorder %v351, %v793
      %vm869 = vcmp.eq.s32.totalorder %v351, %v797
      %vm870 = vcmp.eq.s32.totalorder %v352, %v785
      %vm871 = vcmp.eq.s32.totalorder %v352, %v789
      %vm872 = vcmp.eq.s32.totalorder %v352, %v793
      %vm873 = vcmp.eq.s32.totalorder %v352, %v797
      %vm874 = vcmp.eq.s32.totalorder %v353, %v785
      %vm875 = vcmp.eq.s32.totalorder %v353, %v789
      %vm876 = vcmp.eq.s32.totalorder %v353, %v793
      %vm877 = vcmp.eq.s32.totalorder %v353, %v797
      %vm878 = vcmp.eq.s32.totalorder %v354, %v785
      %vm879 = vcmp.eq.s32.totalorder %v354, %v789
      %vm880 = vcmp.eq.s32.totalorder %v354, %v793
      %vm881 = vcmp.eq.s32.totalorder %v354, %v797
      %vm882 = vcmp.eq.s32.totalorder %v355, %v785
      %vm883 = vcmp.eq.s32.totalorder %v355, %v789
      %vm884 = vcmp.eq.s32.totalorder %v355, %v793
      %vm885 = vcmp.eq.s32.totalorder %v355, %v797
      %vm886 = vcmp.eq.s32.totalorder %v356, %v785
      %vm887 = vcmp.eq.s32.totalorder %v356, %v789
      %vm888 = vcmp.eq.s32.totalorder %v356, %v793
      %vm889 = vcmp.eq.s32.totalorder %v356, %v797
      %vm890 = vcmp.eq.s32.totalorder %v357, %v785
      %vm891 = vcmp.eq.s32.totalorder %v357, %v789
      %vm892 = vcmp.eq.s32.totalorder %v357, %v793
      %vm893 = vcmp.eq.s32.totalorder %v357, %v797
      %vm894 = vcmp.eq.s32.totalorder %v358, %v785
      %vm895 = vcmp.eq.s32.totalorder %v358, %v789
      %vm896 = vcmp.eq.s32.totalorder %v358, %v793
      %vm897 = vcmp.eq.s32.totalorder %v358, %v797
      %vm898 = vcmp.eq.s32.totalorder %v359, %v785
      %vm899 = vcmp.eq.s32.totalorder %v359, %v789
      %vm900 = vcmp.eq.s32.totalorder %v359, %v793
      %vm901 = vcmp.eq.s32.totalorder %v359, %v797
      %vm902 = vcmp.eq.s32.totalorder %v360, %v785
      %vm903 = vcmp.eq.s32.totalorder %v360, %v789
      %vm904 = vcmp.eq.s32.totalorder %v360, %v793
      %vm905 = vcmp.eq.s32.totalorder %v360, %v797
      %vm906 = vcmp.eq.s32.totalorder %v361, %v785
      %vm907 = vcmp.eq.s32.totalorder %v361, %v789
      %vm908 = vcmp.eq.s32.totalorder %v361, %v793
      %vm909 = vcmp.eq.s32.totalorder %v361, %v797
      %vm910 = vcmp.eq.s32.totalorder %v362, %v785
      %vm911 = vcmp.eq.s32.totalorder %v362, %v789
      %vm912 = vcmp.eq.s32.totalorder %v362, %v793
      %vm913 = vcmp.eq.s32.totalorder %v362, %v797
      %vm914 = vcmp.eq.s32.totalorder %v363, %v785
      %vm915 = vcmp.eq.s32.totalorder %v363, %v789
      %vm916 = vcmp.eq.s32.totalorder %v363, %v793
      %vm917 = vcmp.eq.s32.totalorder %v363, %v797
      %vm918 = vcmp.eq.s32.totalorder %v364, %v785
      %vm919 = vcmp.eq.s32.totalorder %v364, %v789
      %vm920 = vcmp.eq.s32.totalorder %v364, %v793
      %vm921 = vcmp.eq.s32.totalorder %v364, %v797
      %vm922 = vcmp.eq.s32.totalorder %v365, %v785
      %vm923 = vcmp.eq.s32.totalorder %v365, %v789
      %vm924 = vcmp.eq.s32.totalorder %v365, %v793
      %vm925 = vcmp.eq.s32.totalorder %v365, %v797
      %v928 = vlaneseq
      %v929 = vshrl.u32 %v928, 7
      %v930 = vsub.s32 0, %v929
      %v931 = vrot.slane %v742, %v930
      %v932 = vlaneseq
      %v933 = vshrl.u32 %v932, 7
      %v934 = vsub.s32 4, %v933
      %v935 = vrot.slane %v742, %v934
      %v936 = vlaneseq
      %v937 = vshrl.u32 %v936, 7
      %v938 = vsub.s32 0, %v937
      %v939 = vrot.slane %v743, %v938
      %v940 = vlaneseq
      %v941 = vshrl.u32 %v940, 7
      %v942 = vsub.s32 4, %v941
      %v943 = vrot.slane %v743, %v942
      %v948 = vlaneseq
      %v949 = vshrl.u32 %v948, 7
      %v950 = vsub.s32 0, %v949
      %v951 = vrot.slane %v931, %v950
      %v952 = vlaneseq
      %v953 = vshrl.u32 %v952, 7
      %v954 = vsub.s32 0, %v953
      %v955 = vrot.slane %v935, %v954
      %v956 = vlaneseq
      %v957 = vshrl.u32 %v956, 7
      %v958 = vsub.s32 0, %v957
      %v959 = vrot.slane %v939, %v958
      %v960 = vlaneseq
      %v961 = vshrl.u32 %v960, 7
      %v962 = vsub.s32 0, %v961
      %v963 = vrot.slane %v943, %v962
      %v964 = vsel %vm798, %v951, 0.0
      %v965 = vsel %vm799, %v955, 0.0
      %v966 = vsel %vm800, %v959, 0.0
      %v967 = vsel %vm801, %v963, 0.0
      %v968 = vsel %vm802, %v951, 0.0
      %v969 = vsel %vm803, %v955, 0.0
      %v970 = vsel %vm804, %v959, 0.0
      %v971 = vsel %vm805, %v963, 0.0
      %v972 = vsel %vm806, %v951, 0.0
      %v973 = vsel %vm807, %v955, 0.0
      %v974 = vsel %vm808, %v959, 0.0
      %v975 = vsel %vm809, %v963, 0.0
      %v976 = vsel %vm810, %v951, 0.0
      %v977 = vsel %vm811, %v955, 0.0
      %v978 = vsel %vm812, %v959, 0.0
      %v979 = vsel %vm813, %v963, 0.0
      %v980 = vsel %vm814, %v951, 0.0
      %v981 = vsel %vm815, %v955, 0.0
      %v982 = vsel %vm816, %v959, 0.0
      %v983 = vsel %vm817, %v963, 0.0
      %v984 = vsel %vm818, %v951, 0.0
      %v985 = vsel %vm819, %v955, 0.0
      %v986 = vsel %vm820, %v959, 0.0
      %v987 = vsel %vm821, %v963, 0.0
      %v988 = vsel %vm822, %v951, 0.0
      %v989 = vsel %vm823, %v955, 0.0
      %v990 = vsel %vm824, %v959, 0.0
      %v991 = vsel %vm825, %v963, 0.0
      %v992 = vsel %vm826, %v951, 0.0
      %v993 = vsel %vm827, %v955, 0.0
      %v994 = vsel %vm828, %v959, 0.0
      %v995 = vsel %vm829, %v963, 0.0
      %v996 = vsel %vm830, %v951, 0.0
      %v997 = vsel %vm831, %v955, 0.0
      %v998 = vsel %vm832, %v959, 0.0
      %v999 = vsel %vm833, %v963, 0.0
      %v1000 = vsel %vm834, %v951, 0.0
      %v1001 = vsel %vm835, %v955, 0.0
      %v1002 = vsel %vm836, %v959, 0.0
      %v1003 = vsel %vm837, %v963, 0.0
      %v1004 = vsel %vm838, %v951, 0.0
      %v1005 = vsel %vm839, %v955, 0.0
      %v1006 = vsel %vm840, %v959, 0.0
      %v1007 = vsel %vm841, %v963, 0.0
      %v1008 = vsel %vm842, %v951, 0.0
      %v1009 = vsel %vm843, %v955, 0.0
      %v1010 = vsel %vm844, %v959, 0.0
      %v1011 = vsel %vm845, %v963, 0.0
      %v1012 = vsel %vm846, %v951, 0.0
      %v1013 = vsel %vm847, %v955, 0.0
      %v1014 = vsel %vm848, %v959, 0.0
      %v1015 = vsel %vm849, %v963, 0.0
      %v1016 = vsel %vm850, %v951, 0.0
      %v1017 = vsel %vm851, %v955, 0.0
      %v1018 = vsel %vm852, %v959, 0.0
      %v1019 = vsel %vm853, %v963, 0.0
      %v1020 = vsel %vm854, %v951, 0.0
      %v1021 = vsel %vm855, %v955, 0.0
      %v1022 = vsel %vm856, %v959, 0.0
      %v1023 = vsel %vm857, %v963, 0.0
      %v1024 = vsel %vm858, %v951, 0.0
      %v1025 = vsel %vm859, %v955, 0.0
      %v1026 = vsel %vm860, %v959, 0.0
      %v1027 = vsel %vm861, %v963, 0.0
      %v1028 = vsel %vm862, %v951, 0.0
      %v1029 = vsel %vm863, %v955, 0.0
      %v1030 = vsel %vm864, %v959, 0.0
      %v1031 = vsel %vm865, %v963, 0.0
      %v1032 = vsel %vm866, %v951, 0.0
      %v1033 = vsel %vm867, %v955, 0.0
      %v1034 = vsel %vm868, %v959, 0.0
      %v1035 = vsel %vm869, %v963, 0.0
      %v1036 = vsel %vm870, %v951, 0.0
      %v1037 = vsel %vm871, %v955, 0.0
      %v1038 = vsel %vm872, %v959, 0.0
      %v1039 = vsel %vm873, %v963, 0.0
      %v1040 = vsel %vm874, %v951, 0.0
      %v1041 = vsel %vm875, %v955, 0.0
      %v1042 = vsel %vm876, %v959, 0.0
      %v1043 = vsel %vm877, %v963, 0.0
      %v1044 = vsel %vm878, %v951, 0.0
      %v1045 = vsel %vm879, %v955, 0.0
      %v1046 = vsel %vm880, %v959, 0.0
      %v1047 = vsel %vm881, %v963, 0.0
      %v1048 = vsel %vm882, %v951, 0.0
      %v1049 = vsel %vm883, %v955, 0.0
      %v1050 = vsel %vm884, %v959, 0.0
      %v1051 = vsel %vm885, %v963, 0.0
      %v1052 = vsel %vm886, %v951, 0.0
      %v1053 = vsel %vm887, %v955, 0.0
      %v1054 = vsel %vm888, %v959, 0.0
      %v1055 = vsel %vm889, %v963, 0.0
      %v1056 = vsel %vm890, %v951, 0.0
      %v1057 = vsel %vm891, %v955, 0.0
      %v1058 = vsel %vm892, %v959, 0.0
      %v1059 = vsel %vm893, %v963, 0.0
      %v1060 = vsel %vm894, %v951, 0.0
      %v1061 = vsel %vm895, %v955, 0.0
      %v1062 = vsel %vm896, %v959, 0.0
      %v1063 = vsel %vm897, %v963, 0.0
      %v1064 = vsel %vm898, %v951, 0.0
      %v1065 = vsel %vm899, %v955, 0.0
      %v1066 = vsel %vm900, %v959, 0.0
      %v1067 = vsel %vm901, %v963, 0.0
      %v1068 = vsel %vm902, %v951, 0.0
      %v1069 = vsel %vm903, %v955, 0.0
      %v1070 = vsel %vm904, %v959, 0.0
      %v1071 = vsel %vm905, %v963, 0.0
      %v1072 = vsel %vm906, %v951, 0.0
      %v1073 = vsel %vm907, %v955, 0.0
      %v1074 = vsel %vm908, %v959, 0.0
      %v1075 = vsel %vm909, %v963, 0.0
      %v1076 = vsel %vm910, %v951, 0.0
      %v1077 = vsel %vm911, %v955, 0.0
      %v1078 = vsel %vm912, %v959, 0.0
      %v1079 = vsel %vm913, %v963, 0.0
      %v1080 = vsel %vm914, %v951, 0.0
      %v1081 = vsel %vm915, %v955, 0.0
      %v1082 = vsel %vm916, %v959, 0.0
      %v1083 = vsel %vm917, %v963, 0.0
      %v1084 = vsel %vm918, %v951, 0.0
      %v1085 = vsel %vm919, %v955, 0.0
      %v1086 = vsel %vm920, %v959, 0.0
      %v1087 = vsel %vm921, %v963, 0.0
      %v1088 = vsel %vm922, %v951, 0.0
      %v1089 = vsel %vm923, %v955, 0.0
      %v1090 = vsel %vm924, %v959, 0.0
      %v1091 = vsel %vm925, %v963, 0.0
      %v1092 = vadd.f32 %v614, %v964
      %v1093 = vadd.f32 %v615, %v965
      %v1094 = vadd.f32 %v616, %v966
      %v1095 = vadd.f32 %v617, %v967
      %v1096 = vadd.f32 %v618, %v968
      %v1097 = vadd.f32 %v619, %v969
      %v1098 = vadd.f32 %v620, %v970
      %v1099 = vadd.f32 %v621, %v971
      %v1100 = vadd.f32 %v622, %v972
      %v1101 = vadd.f32 %v623, %v973
      %v1102 = vadd.f32 %v624, %v974
      %v1103 = vadd.f32 %v625, %v975
      %v1104 = vadd.f32 %v626, %v976
      %v1105 = vadd.f32 %v627, %v977
      %v1106 = vadd.f32 %v628, %v978
      %v1107 = vadd.f32 %v629, %v979
      %v1108 = vadd.f32 %v630, %v980
      %v1109 = vadd.f32 %v631, %v981
      %v1110 = vadd.f32 %v632, %v982
      %v1111 = vadd.f32 %v633, %v983
      %v1112 = vadd.f32 %v634, %v984
      %v1113 = vadd.f32 %v635, %v985
      %v1114 = vadd.f32 %v636, %v986
      %v1115 = vadd.f32 %v637, %v987
      %v1116 = vadd.f32 %v638, %v988
      %v1117 = vadd.f32 %v639, %v989
      %v1118 = vadd.f32 %v640, %v990
      %v1119 = vadd.f32 %v641, %v991
      %v1120 = vadd.f32 %v642, %v992
      %v1121 = vadd.f32 %v643, %v993
      %v1122 = vadd.f32 %v644, %v994
      %v1123 = vadd.f32 %v645, %v995
      %v1124 = vadd.f32 %v646, %v996
      %v1125 = vadd.f32 %v647, %v997
      %v1126 = vadd.f32 %v648, %v998
      %v1127 = vadd.f32 %v649, %v999
      %v1128 = vadd.f32 %v650, %v1000
      %v1129 = vadd.f32 %v651, %v1001
      %v1130 = vadd.f32 %v652, %v1002
      %v1131 = vadd.f32 %v653, %v1003
      %v1132 = vadd.f32 %v654, %v1004
      %v1133 = vadd.f32 %v655, %v1005
      %v1134 = vadd.f32 %v656, %v1006
      %v1135 = vadd.f32 %v657, %v1007
      %v1136 = vadd.f32 %v658, %v1008
      %v1137 = vadd.f32 %v659, %v1009
      %v1138 = vadd.f32 %v660, %v1010
      %v1139 = vadd.f32 %v661, %v1011
      %v1140 = vadd.f32 %v662, %v1012
      %v1141 = vadd.f32 %v663, %v1013
      %v1142 = vadd.f32 %v664, %v1014
      %v1143 = vadd.f32 %v665, %v1015
      %v1144 = vadd.f32 %v666, %v1016
      %v1145 = vadd.f32 %v667, %v1017
      %v1146 = vadd.f32 %v668, %v1018
      %v1147 = vadd.f32 %v669, %v1019
      %v1148 = vadd.f32 %v670, %v1020
      %v1149 = vadd.f32 %v671, %v1021
      %v1150 = vadd.f32 %v672, %v1022
      %v1151 = vadd.f32 %v673, %v1023
      %v1152 = vadd.f32 %v674, %v1024
      %v1153 = vadd.f32 %v675, %v1025
      %v1154 = vadd.f32 %v676, %v1026
      %v1155 = vadd.f32 %v677, %v1027
      %v1156 = vadd.f32 %v678, %v1028
      %v1157 = vadd.f32 %v679, %v1029
      %v1158 = vadd.f32 %v680, %v1030
      %v1159 = vadd.f32 %v681, %v1031
      %v1160 = vadd.f32 %v682, %v1032
      %v1161 = vadd.f32 %v683, %v1033
      %v1162 = vadd.f32 %v684, %v1034
      %v1163 = vadd.f32 %v685, %v1035
      %v1164 = vadd.f32 %v686, %v1036
      %v1165 = vadd.f32 %v687, %v1037
      %v1166 = vadd.f32 %v688, %v1038
      %v1167 = vadd.f32 %v689, %v1039
      %v1168 = vadd.f32 %v690, %v1040
      %v1169 = vadd.f32 %v691, %v1041
      %v1170 = vadd.f32 %v692, %v1042
      %v1171 = vadd.f32 %v693, %v1043
      %v1172 = vadd.f32 %v694, %v1044
      %v1173 = vadd.f32 %v695, %v1045
      %v1174 = vadd.f32 %v696, %v1046
      %v1175 = vadd.f32 %v697, %v1047
      %v1176 = vadd.f32 %v698, %v1048
      %v1177 = vadd.f32 %v699, %v1049
      %v1178 = vadd.f32 %v700, %v1050
      %v1179 = vadd.f32 %v701, %v1051
      %v1180 = vadd.f32 %v702, %v1052
      %v1181 = vadd.f32 %v703, %v1053
      %v1182 = vadd.f32 %v704, %v1054
      %v1183 = vadd.f32 %v705, %v1055
      %v1184 = vadd.f32 %v706, %v1056
      %v1185 = vadd.f32 %v707, %v1057
      %v1186 = vadd.f32 %v708, %v1058
      %v1187 = vadd.f32 %v709, %v1059
      %v1188 = vadd.f32 %v710, %v1060
      %v1189 = vadd.f32 %v711, %v1061
      %v1190 = vadd.f32 %v712, %v1062
      %v1191 = vadd.f32 %v713, %v1063
      %v1192 = vadd.f32 %v714, %v1064
      %v1193 = vadd.f32 %v715, %v1065
      %v1194 = vadd.f32 %v716, %v1066
      %v1195 = vadd.f32 %v717, %v1067
      %v1196 = vadd.f32 %v718, %v1068
      %v1197 = vadd.f32 %v719, %v1069
      %v1198 = vadd.f32 %v720, %v1070
      %v1199 = vadd.f32 %v721, %v1071
      %v1200 = vadd.f32 %v722, %v1072
      %v1201 = vadd.f32 %v723, %v1073
      %v1202 = vadd.f32 %v724, %v1074
      %v1203 = vadd.f32 %v725, %v1075
      %v1204 = vadd.f32 %v726, %v1076
      %v1205 = vadd.f32 %v727, %v1077
      %v1206 = vadd.f32 %v728, %v1078
      %v1207 = vadd.f32 %v729, %v1079
      %v1208 = vadd.f32 %v730, %v1080
      %v1209 = vadd.f32 %v731, %v1081
      %v1210 = vadd.f32 %v732, %v1082
      %v1211 = vadd.f32 %v733, %v1083
      %v1212 = vadd.f32 %v734, %v1084
      %v1213 = vadd.f32 %v735, %v1085
      %v1214 = vadd.f32 %v736, %v1086
      %v1215 = vadd.f32 %v737, %v1087
      %v1216 = vadd.f32 %v738, %v1088
      %v1217 = vadd.f32 %v739, %v1089
      %v1218 = vadd.f32 %v740, %v1090
      %v1219 = vadd.f32 %v741, %v1091
      %v1222 = vrot.slane %v329, 5
      %v1223 = vrot.slane %v1222, 4
      %v1224 = vrot.slane %v330, 5
      %v1225 = vrot.slane %v1224, 4
      %v1228 = vmul.f32 %v331, %v1223
      %v1229 = vmul.f32 %v332, %v1225
      %v1230 = vsel %vm744, 1, 0
      %v1231 = vsel %vm745, 1, 0
      %v1232 = vrot.slane %v1230, 5
      %v1233 = vrot.slane %v1232, 4
      %v1234 = vrot.slane %v1231, 5
      %v1235 = vrot.slane %v1234, 4
      %vm1236 = vcmp.ne.s32.totalorder %v1233, 0
      %vm1237 = vcmp.ne.s32.totalorder %v1235, 0
      %vm1238 = vmand %vm380, %vm1236
      %vm1239 = vmand %vm381, %vm1237
      %v1240 = vsel %vm746, 1, 0
      %v1241 = vsel %vm747, 1, 0
      %v1242 = vrot.slane %v1240, 5
      %v1243 = vrot.slane %v1242, 4
      %v1244 = vrot.slane %v1241, 5
      %v1245 = vrot.slane %v1244, 4
      %vm1246 = vcmp.ne.s32.totalorder %v1243, 0
      %vm1247 = vcmp.ne.s32.totalorder %v1245, 0
      %vm1248 = vmand %vm1238, %vm1246
      %vm1249 = vmand %vm1239, %vm1247
      %v1250 = vmul.u32 %v754, 16
      %v1251 = vmul.u32 %v755, 16
      %v1252 = vadd.s32 %v1250, %v406
      %v1253 = vadd.s32 %v1251, %v407
      %v1254 = vrot.slane %v1252, 5
      %v1255 = vrot.slane %v1254, 4
      %v1256 = vrot.slane %v1253, 5
      %v1257 = vrot.slane %v1256, 4
      %v1258 = vsel %vm1248, %v1255, 4294967295
      %v1259 = vsel %vm1249, %v1257, 4294967295
      %v1260 = vlaneseq
      %v1261 = vshrl.u32 %v1260, 7
      %v1262 = vsub.s32 0, %v1261
      %v1263 = vrot.slane %v1258, %v1262
      %v1264 = vlaneseq
      %v1265 = vshrl.u32 %v1264, 7
      %v1266 = vsub.s32 4, %v1265
      %v1267 = vrot.slane %v1258, %v1266
      %v1268 = vlaneseq
      %v1269 = vshrl.u32 %v1268, 7
      %v1270 = vsub.s32 0, %v1269
      %v1271 = vrot.slane %v1259, %v1270
      %v1272 = vlaneseq
      %v1273 = vshrl.u32 %v1272, 7
      %v1274 = vsub.s32 4, %v1273
      %v1275 = vrot.slane %v1259, %v1274
      %v1276 = vlaneseq
      %v1277 = vshrl.u32 %v1276, 7
      %v1278 = vsub.s32 0, %v1277
      %v1279 = vrot.slane %v1263, %v1278
      %v1280 = vlaneseq
      %v1281 = vshrl.u32 %v1280, 7
      %v1282 = vsub.s32 0, %v1281
      %v1283 = vrot.slane %v1267, %v1282
      %v1284 = vlaneseq
      %v1285 = vshrl.u32 %v1284, 7
      %v1286 = vsub.s32 0, %v1285
      %v1287 = vrot.slane %v1271, %v1286
      %v1288 = vlaneseq
      %v1289 = vshrl.u32 %v1288, 7
      %v1290 = vsub.s32 0, %v1289
      %v1291 = vrot.slane %v1275, %v1290
      %vm1292 = vcmp.eq.s32.totalorder %v334, %v1279
      %vm1293 = vcmp.eq.s32.totalorder %v334, %v1283
      %vm1294 = vcmp.eq.s32.totalorder %v334, %v1287
      %vm1295 = vcmp.eq.s32.totalorder %v334, %v1291
      %vm1296 = vcmp.eq.s32.totalorder %v335, %v1279
      %vm1297 = vcmp.eq.s32.totalorder %v335, %v1283
      %vm1298 = vcmp.eq.s32.totalorder %v335, %v1287
      %vm1299 = vcmp.eq.s32.totalorder %v335, %v1291
      %vm1300 = vcmp.eq.s32.totalorder %v336, %v1279
      %vm1301 = vcmp.eq.s32.totalorder %v336, %v1283
      %vm1302 = vcmp.eq.s32.totalorder %v336, %v1287
      %vm1303 = vcmp.eq.s32.totalorder %v336, %v1291
      %vm1304 = vcmp.eq.s32.totalorder %v337, %v1279
      %vm1305 = vcmp.eq.s32.totalorder %v337, %v1283
      %vm1306 = vcmp.eq.s32.totalorder %v337, %v1287
      %vm1307 = vcmp.eq.s32.totalorder %v337, %v1291
      %vm1308 = vcmp.eq.s32.totalorder %v338, %v1279
      %vm1309 = vcmp.eq.s32.totalorder %v338, %v1283
      %vm1310 = vcmp.eq.s32.totalorder %v338, %v1287
      %vm1311 = vcmp.eq.s32.totalorder %v338, %v1291
      %vm1312 = vcmp.eq.s32.totalorder %v339, %v1279
      %vm1313 = vcmp.eq.s32.totalorder %v339, %v1283
      %vm1314 = vcmp.eq.s32.totalorder %v339, %v1287
      %vm1315 = vcmp.eq.s32.totalorder %v339, %v1291
      %vm1316 = vcmp.eq.s32.totalorder %v340, %v1279
      %vm1317 = vcmp.eq.s32.totalorder %v340, %v1283
      %vm1318 = vcmp.eq.s32.totalorder %v340, %v1287
      %vm1319 = vcmp.eq.s32.totalorder %v340, %v1291
      %vm1320 = vcmp.eq.s32.totalorder %v341, %v1279
      %vm1321 = vcmp.eq.s32.totalorder %v341, %v1283
      %vm1322 = vcmp.eq.s32.totalorder %v341, %v1287
      %vm1323 = vcmp.eq.s32.totalorder %v341, %v1291
      %vm1324 = vcmp.eq.s32.totalorder %v342, %v1279
      %vm1325 = vcmp.eq.s32.totalorder %v342, %v1283
      %vm1326 = vcmp.eq.s32.totalorder %v342, %v1287
      %vm1327 = vcmp.eq.s32.totalorder %v342, %v1291
      %vm1328 = vcmp.eq.s32.totalorder %v343, %v1279
      %vm1329 = vcmp.eq.s32.totalorder %v343, %v1283
      %vm1330 = vcmp.eq.s32.totalorder %v343, %v1287
      %vm1331 = vcmp.eq.s32.totalorder %v343, %v1291
      %vm1332 = vcmp.eq.s32.totalorder %v344, %v1279
      %vm1333 = vcmp.eq.s32.totalorder %v344, %v1283
      %vm1334 = vcmp.eq.s32.totalorder %v344, %v1287
      %vm1335 = vcmp.eq.s32.totalorder %v344, %v1291
      %vm1336 = vcmp.eq.s32.totalorder %v345, %v1279
      %vm1337 = vcmp.eq.s32.totalorder %v345, %v1283
      %vm1338 = vcmp.eq.s32.totalorder %v345, %v1287
      %vm1339 = vcmp.eq.s32.totalorder %v345, %v1291
      %vm1340 = vcmp.eq.s32.totalorder %v346, %v1279
      %vm1341 = vcmp.eq.s32.totalorder %v346, %v1283
      %vm1342 = vcmp.eq.s32.totalorder %v346, %v1287
      %vm1343 = vcmp.eq.s32.totalorder %v346, %v1291
      %vm1344 = vcmp.eq.s32.totalorder %v347, %v1279
      %vm1345 = vcmp.eq.s32.totalorder %v347, %v1283
      %vm1346 = vcmp.eq.s32.totalorder %v347, %v1287
      %vm1347 = vcmp.eq.s32.totalorder %v347, %v1291
      %vm1348 = vcmp.eq.s32.totalorder %v348, %v1279
      %vm1349 = vcmp.eq.s32.totalorder %v348, %v1283
      %vm1350 = vcmp.eq.s32.totalorder %v348, %v1287
      %vm1351 = vcmp.eq.s32.totalorder %v348, %v1291
      %vm1352 = vcmp.eq.s32.totalorder %v349, %v1279
      %vm1353 = vcmp.eq.s32.totalorder %v349, %v1283
      %vm1354 = vcmp.eq.s32.totalorder %v349, %v1287
      %vm1355 = vcmp.eq.s32.totalorder %v349, %v1291
      %vm1356 = vcmp.eq.s32.totalorder %v350, %v1279
      %vm1357 = vcmp.eq.s32.totalorder %v350, %v1283
      %vm1358 = vcmp.eq.s32.totalorder %v350, %v1287
      %vm1359 = vcmp.eq.s32.totalorder %v350, %v1291
      %vm1360 = vcmp.eq.s32.totalorder %v351, %v1279
      %vm1361 = vcmp.eq.s32.totalorder %v351, %v1283
      %vm1362 = vcmp.eq.s32.totalorder %v351, %v1287
      %vm1363 = vcmp.eq.s32.totalorder %v351, %v1291
      %vm1364 = vcmp.eq.s32.totalorder %v352, %v1279
      %vm1365 = vcmp.eq.s32.totalorder %v352, %v1283
      %vm1366 = vcmp.eq.s32.totalorder %v352, %v1287
      %vm1367 = vcmp.eq.s32.totalorder %v352, %v1291
      %vm1368 = vcmp.eq.s32.totalorder %v353, %v1279
      %vm1369 = vcmp.eq.s32.totalorder %v353, %v1283
      %vm1370 = vcmp.eq.s32.totalorder %v353, %v1287
      %vm1371 = vcmp.eq.s32.totalorder %v353, %v1291
      %vm1372 = vcmp.eq.s32.totalorder %v354, %v1279
      %vm1373 = vcmp.eq.s32.totalorder %v354, %v1283
      %vm1374 = vcmp.eq.s32.totalorder %v354, %v1287
      %vm1375 = vcmp.eq.s32.totalorder %v354, %v1291
      %vm1376 = vcmp.eq.s32.totalorder %v355, %v1279
      %vm1377 = vcmp.eq.s32.totalorder %v355, %v1283
      %vm1378 = vcmp.eq.s32.totalorder %v355, %v1287
      %vm1379 = vcmp.eq.s32.totalorder %v355, %v1291
      %vm1380 = vcmp.eq.s32.totalorder %v356, %v1279
      %vm1381 = vcmp.eq.s32.totalorder %v356, %v1283
      %vm1382 = vcmp.eq.s32.totalorder %v356, %v1287
      %vm1383 = vcmp.eq.s32.totalorder %v356, %v1291
      %vm1384 = vcmp.eq.s32.totalorder %v357, %v1279
      %vm1385 = vcmp.eq.s32.totalorder %v357, %v1283
      %vm1386 = vcmp.eq.s32.totalorder %v357, %v1287
      %vm1387 = vcmp.eq.s32.totalorder %v357, %v1291
      %vm1388 = vcmp.eq.s32.totalorder %v358, %v1279
      %vm1389 = vcmp.eq.s32.totalorder %v358, %v1283
      %vm1390 = vcmp.eq.s32.totalorder %v358, %v1287
      %vm1391 = vcmp.eq.s32.totalorder %v358, %v1291
      %vm1392 = vcmp.eq.s32.totalorder %v359, %v1279
      %vm1393 = vcmp.eq.s32.totalorder %v359, %v1283
      %vm1394 = vcmp.eq.s32.totalorder %v359, %v1287
      %vm1395 = vcmp.eq.s32.totalorder %v359, %v1291
      %vm1396 = vcmp.eq.s32.totalorder %v360, %v1279
      %vm1397 = vcmp.eq.s32.totalorder %v360, %v1283
      %vm1398 = vcmp.eq.s32.totalorder %v360, %v1287
      %vm1399 = vcmp.eq.s32.totalorder %v360, %v1291
      %vm1400 = vcmp.eq.s32.totalorder %v361, %v1279
      %vm1401 = vcmp.eq.s32.totalorder %v361, %v1283
      %vm1402 = vcmp.eq.s32.totalorder %v361, %v1287
      %vm1403 = vcmp.eq.s32.totalorder %v361, %v1291
      %vm1404 = vcmp.eq.s32.totalorder %v362, %v1279
      %vm1405 = vcmp.eq.s32.totalorder %v362, %v1283
      %vm1406 = vcmp.eq.s32.totalorder %v362, %v1287
      %vm1407 = vcmp.eq.s32.totalorder %v362, %v1291
      %vm1408 = vcmp.eq.s32.totalorder %v363, %v1279
      %vm1409 = vcmp.eq.s32.totalorder %v363, %v1283
      %vm1410 = vcmp.eq.s32.totalorder %v363, %v1287
      %vm1411 = vcmp.eq.s32.totalorder %v363, %v1291
      %vm1412 = vcmp.eq.s32.totalorder %v364, %v1279
      %vm1413 = vcmp.eq.s32.totalorder %v364, %v1283
      %vm1414 = vcmp.eq.s32.totalorder %v364, %v1287
      %vm1415 = vcmp.eq.s32.totalorder %v364, %v1291
      %vm1416 = vcmp.eq.s32.totalorder %v365, %v1279
      %vm1417 = vcmp.eq.s32.totalorder %v365, %v1283
      %vm1418 = vcmp.eq.s32.totalorder %v365, %v1287
      %vm1419 = vcmp.eq.s32.totalorder %v365, %v1291
      %v1422 = vlaneseq
      %v1423 = vshrl.u32 %v1422, 7
      %v1424 = vsub.s32 0, %v1423
      %v1425 = vrot.slane %v1228, %v1424
      %v1426 = vlaneseq
      %v1427 = vshrl.u32 %v1426, 7
      %v1428 = vsub.s32 4, %v1427
      %v1429 = vrot.slane %v1228, %v1428
      %v1430 = vlaneseq
      %v1431 = vshrl.u32 %v1430, 7
      %v1432 = vsub.s32 0, %v1431
      %v1433 = vrot.slane %v1229, %v1432
      %v1434 = vlaneseq
      %v1435 = vshrl.u32 %v1434, 7
      %v1436 = vsub.s32 4, %v1435
      %v1437 = vrot.slane %v1229, %v1436
      %v1442 = vlaneseq
      %v1443 = vshrl.u32 %v1442, 7
      %v1444 = vsub.s32 0, %v1443
      %v1445 = vrot.slane %v1425, %v1444
      %v1446 = vlaneseq
      %v1447 = vshrl.u32 %v1446, 7
      %v1448 = vsub.s32 0, %v1447
      %v1449 = vrot.slane %v1429, %v1448
      %v1450 = vlaneseq
      %v1451 = vshrl.u32 %v1450, 7
      %v1452 = vsub.s32 0, %v1451
      %v1453 = vrot.slane %v1433, %v1452
      %v1454 = vlaneseq
      %v1455 = vshrl.u32 %v1454, 7
      %v1456 = vsub.s32 0, %v1455
      %v1457 = vrot.slane %v1437, %v1456
      %v1458 = vsel %vm1292, %v1445, 0.0
      %v1459 = vsel %vm1293, %v1449, 0.0
      %v1460 = vsel %vm1294, %v1453, 0.0
      %v1461 = vsel %vm1295, %v1457, 0.0
      %v1462 = vsel %vm1296, %v1445, 0.0
      %v1463 = vsel %vm1297, %v1449, 0.0
      %v1464 = vsel %vm1298, %v1453, 0.0
      %v1465 = vsel %vm1299, %v1457, 0.0
      %v1466 = vsel %vm1300, %v1445, 0.0
      %v1467 = vsel %vm1301, %v1449, 0.0
      %v1468 = vsel %vm1302, %v1453, 0.0
      %v1469 = vsel %vm1303, %v1457, 0.0
      %v1470 = vsel %vm1304, %v1445, 0.0
      %v1471 = vsel %vm1305, %v1449, 0.0
      %v1472 = vsel %vm1306, %v1453, 0.0
      %v1473 = vsel %vm1307, %v1457, 0.0
      %v1474 = vsel %vm1308, %v1445, 0.0
      %v1475 = vsel %vm1309, %v1449, 0.0
      %v1476 = vsel %vm1310, %v1453, 0.0
      %v1477 = vsel %vm1311, %v1457, 0.0
      %v1478 = vsel %vm1312, %v1445, 0.0
      %v1479 = vsel %vm1313, %v1449, 0.0
      %v1480 = vsel %vm1314, %v1453, 0.0
      %v1481 = vsel %vm1315, %v1457, 0.0
      %v1482 = vsel %vm1316, %v1445, 0.0
      %v1483 = vsel %vm1317, %v1449, 0.0
      %v1484 = vsel %vm1318, %v1453, 0.0
      %v1485 = vsel %vm1319, %v1457, 0.0
      %v1486 = vsel %vm1320, %v1445, 0.0
      %v1487 = vsel %vm1321, %v1449, 0.0
      %v1488 = vsel %vm1322, %v1453, 0.0
      %v1489 = vsel %vm1323, %v1457, 0.0
      %v1490 = vsel %vm1324, %v1445, 0.0
      %v1491 = vsel %vm1325, %v1449, 0.0
      %v1492 = vsel %vm1326, %v1453, 0.0
      %v1493 = vsel %vm1327, %v1457, 0.0
      %v1494 = vsel %vm1328, %v1445, 0.0
      %v1495 = vsel %vm1329, %v1449, 0.0
      %v1496 = vsel %vm1330, %v1453, 0.0
      %v1497 = vsel %vm1331, %v1457, 0.0
      %v1498 = vsel %vm1332, %v1445, 0.0
      %v1499 = vsel %vm1333, %v1449, 0.0
      %v1500 = vsel %vm1334, %v1453, 0.0
      %v1501 = vsel %vm1335, %v1457, 0.0
      %v1502 = vsel %vm1336, %v1445, 0.0
      %v1503 = vsel %vm1337, %v1449, 0.0
      %v1504 = vsel %vm1338, %v1453, 0.0
      %v1505 = vsel %vm1339, %v1457, 0.0
      %v1506 = vsel %vm1340, %v1445, 0.0
      %v1507 = vsel %vm1341, %v1449, 0.0
      %v1508 = vsel %vm1342, %v1453, 0.0
      %v1509 = vsel %vm1343, %v1457, 0.0
      %v1510 = vsel %vm1344, %v1445, 0.0
      %v1511 = vsel %vm1345, %v1449, 0.0
      %v1512 = vsel %vm1346, %v1453, 0.0
      %v1513 = vsel %vm1347, %v1457, 0.0
      %v1514 = vsel %vm1348, %v1445, 0.0
      %v1515 = vsel %vm1349, %v1449, 0.0
      %v1516 = vsel %vm1350, %v1453, 0.0
      %v1517 = vsel %vm1351, %v1457, 0.0
      %v1518 = vsel %vm1352, %v1445, 0.0
      %v1519 = vsel %vm1353, %v1449, 0.0
      %v1520 = vsel %vm1354, %v1453, 0.0
      %v1521 = vsel %vm1355, %v1457, 0.0
      %v1522 = vsel %vm1356, %v1445, 0.0
      %v1523 = vsel %vm1357, %v1449, 0.0
      %v1524 = vsel %vm1358, %v1453, 0.0
      %v1525 = vsel %vm1359, %v1457, 0.0
      %v1526 = vsel %vm1360, %v1445, 0.0
      %v1527 = vsel %vm1361, %v1449, 0.0
      %v1528 = vsel %vm1362, %v1453, 0.0
      %v1529 = vsel %vm1363, %v1457, 0.0
      %v1530 = vsel %vm1364, %v1445, 0.0
      %v1531 = vsel %vm1365, %v1449, 0.0
      %v1532 = vsel %vm1366, %v1453, 0.0
      %v1533 = vsel %vm1367, %v1457, 0.0
      %v1534 = vsel %vm1368, %v1445, 0.0
      %v1535 = vsel %vm1369, %v1449, 0.0
      %v1536 = vsel %vm1370, %v1453, 0.0
      %v1537 = vsel %vm1371, %v1457, 0.0
      %v1538 = vsel %vm1372, %v1445, 0.0
      %v1539 = vsel %vm1373, %v1449, 0.0
      %v1540 = vsel %vm1374, %v1453, 0.0
      %v1541 = vsel %vm1375, %v1457, 0.0
      %v1542 = vsel %vm1376, %v1445, 0.0
      %v1543 = vsel %vm1377, %v1449, 0.0
      %v1544 = vsel %vm1378, %v1453, 0.0
      %v1545 = vsel %vm1379, %v1457, 0.0
      %v1546 = vsel %vm1380, %v1445, 0.0
      %v1547 = vsel %vm1381, %v1449, 0.0
      %v1548 = vsel %vm1382, %v1453, 0.0
      %v1549 = vsel %vm1383, %v1457, 0.0
      %v1550 = vsel %vm1384, %v1445, 0.0
      %v1551 = vsel %vm1385, %v1449, 0.0
      %v1552 = vsel %vm1386, %v1453, 0.0
      %v1553 = vsel %vm1387, %v1457, 0.0
      %v1554 = vsel %vm1388, %v1445, 0.0
      %v1555 = vsel %vm1389, %v1449, 0.0
      %v1556 = vsel %vm1390, %v1453, 0.0
      %v1557 = vsel %vm1391, %v1457, 0.0
      %v1558 = vsel %vm1392, %v1445, 0.0
      %v1559 = vsel %vm1393, %v1449, 0.0
      %v1560 = vsel %vm1394, %v1453, 0.0
      %v1561 = vsel %vm1395, %v1457, 0.0
      %v1562 = vsel %vm1396, %v1445, 0.0
      %v1563 = vsel %vm1397, %v1449, 0.0
      %v1564 = vsel %vm1398, %v1453, 0.0
      %v1565 = vsel %vm1399, %v1457, 0.0
      %v1566 = vsel %vm1400, %v1445, 0.0
      %v1567 = vsel %vm1401, %v1449, 0.0
      %v1568 = vsel %vm1402, %v1453, 0.0
      %v1569 = vsel %vm1403, %v1457, 0.0
      %v1570 = vsel %vm1404, %v1445, 0.0
      %v1571 = vsel %vm1405, %v1449, 0.0
      %v1572 = vsel %vm1406, %v1453, 0.0
      %v1573 = vsel %vm1407, %v1457, 0.0
      %v1574 = vsel %vm1408, %v1445, 0.0
      %v1575 = vsel %vm1409, %v1449, 0.0
      %v1576 = vsel %vm1410, %v1453, 0.0
      %v1577 = vsel %vm1411, %v1457, 0.0
      %v1578 = vsel %vm1412, %v1445, 0.0
      %v1579 = vsel %vm1413, %v1449, 0.0
      %v1580 = vsel %vm1414, %v1453, 0.0
      %v1581 = vsel %vm1415, %v1457, 0.0
      %v1582 = vsel %vm1416, %v1445, 0.0
      %v1583 = vsel %vm1417, %v1449, 0.0
      %v1584 = vsel %vm1418, %v1453, 0.0
      %v1585 = vsel %vm1419, %v1457, 0.0
      %v1586 = vadd.f32 %v1092, %v1458
      %v1587 = vadd.f32 %v1093, %v1459
      %v1588 = vadd.f32 %v1094, %v1460
      %v1589 = vadd.f32 %v1095, %v1461
      %v1590 = vadd.f32 %v1096, %v1462
      %v1591 = vadd.f32 %v1097, %v1463
      %v1592 = vadd.f32 %v1098, %v1464
      %v1593 = vadd.f32 %v1099, %v1465
      %v1594 = vadd.f32 %v1100, %v1466
      %v1595 = vadd.f32 %v1101, %v1467
      %v1596 = vadd.f32 %v1102, %v1468
      %v1597 = vadd.f32 %v1103, %v1469
      %v1598 = vadd.f32 %v1104, %v1470
      %v1599 = vadd.f32 %v1105, %v1471
      %v1600 = vadd.f32 %v1106, %v1472
      %v1601 = vadd.f32 %v1107, %v1473
      %v1602 = vadd.f32 %v1108, %v1474
      %v1603 = vadd.f32 %v1109, %v1475
      %v1604 = vadd.f32 %v1110, %v1476
      %v1605 = vadd.f32 %v1111, %v1477
      %v1606 = vadd.f32 %v1112, %v1478
      %v1607 = vadd.f32 %v1113, %v1479
      %v1608 = vadd.f32 %v1114, %v1480
      %v1609 = vadd.f32 %v1115, %v1481
      %v1610 = vadd.f32 %v1116, %v1482
      %v1611 = vadd.f32 %v1117, %v1483
      %v1612 = vadd.f32 %v1118, %v1484
      %v1613 = vadd.f32 %v1119, %v1485
      %v1614 = vadd.f32 %v1120, %v1486
      %v1615 = vadd.f32 %v1121, %v1487
      %v1616 = vadd.f32 %v1122, %v1488
      %v1617 = vadd.f32 %v1123, %v1489
      %v1618 = vadd.f32 %v1124, %v1490
      %v1619 = vadd.f32 %v1125, %v1491
      %v1620 = vadd.f32 %v1126, %v1492
      %v1621 = vadd.f32 %v1127, %v1493
      %v1622 = vadd.f32 %v1128, %v1494
      %v1623 = vadd.f32 %v1129, %v1495
      %v1624 = vadd.f32 %v1130, %v1496
      %v1625 = vadd.f32 %v1131, %v1497
      %v1626 = vadd.f32 %v1132, %v1498
      %v1627 = vadd.f32 %v1133, %v1499
      %v1628 = vadd.f32 %v1134, %v1500
      %v1629 = vadd.f32 %v1135, %v1501
      %v1630 = vadd.f32 %v1136, %v1502
      %v1631 = vadd.f32 %v1137, %v1503
      %v1632 = vadd.f32 %v1138, %v1504
      %v1633 = vadd.f32 %v1139, %v1505
      %v1634 = vadd.f32 %v1140, %v1506
      %v1635 = vadd.f32 %v1141, %v1507
      %v1636 = vadd.f32 %v1142, %v1508
      %v1637 = vadd.f32 %v1143, %v1509
      %v1638 = vadd.f32 %v1144, %v1510
      %v1639 = vadd.f32 %v1145, %v1511
      %v1640 = vadd.f32 %v1146, %v1512
      %v1641 = vadd.f32 %v1147, %v1513
      %v1642 = vadd.f32 %v1148, %v1514
      %v1643 = vadd.f32 %v1149, %v1515
      %v1644 = vadd.f32 %v1150, %v1516
      %v1645 = vadd.f32 %v1151, %v1517
      %v1646 = vadd.f32 %v1152, %v1518
      %v1647 = vadd.f32 %v1153, %v1519
      %v1648 = vadd.f32 %v1154, %v1520
      %v1649 = vadd.f32 %v1155, %v1521
      %v1650 = vadd.f32 %v1156, %v1522
      %v1651 = vadd.f32 %v1157, %v1523
      %v1652 = vadd.f32 %v1158, %v1524
      %v1653 = vadd.f32 %v1159, %v1525
      %v1654 = vadd.f32 %v1160, %v1526
      %v1655 = vadd.f32 %v1161, %v1527
      %v1656 = vadd.f32 %v1162, %v1528
      %v1657 = vadd.f32 %v1163, %v1529
      %v1658 = vadd.f32 %v1164, %v1530
      %v1659 = vadd.f32 %v1165, %v1531
      %v1660 = vadd.f32 %v1166, %v1532
      %v1661 = vadd.f32 %v1167, %v1533
      %v1662 = vadd.f32 %v1168, %v1534
      %v1663 = vadd.f32 %v1169, %v1535
      %v1664 = vadd.f32 %v1170, %v1536
      %v1665 = vadd.f32 %v1171, %v1537
      %v1666 = vadd.f32 %v1172, %v1538
      %v1667 = vadd.f32 %v1173, %v1539
      %v1668 = vadd.f32 %v1174, %v1540
      %v1669 = vadd.f32 %v1175, %v1541
      %v1670 = vadd.f32 %v1176, %v1542
      %v1671 = vadd.f32 %v1177, %v1543
      %v1672 = vadd.f32 %v1178, %v1544
      %v1673 = vadd.f32 %v1179, %v1545
      %v1674 = vadd.f32 %v1180, %v1546
      %v1675 = vadd.f32 %v1181, %v1547
      %v1676 = vadd.f32 %v1182, %v1548
      %v1677 = vadd.f32 %v1183, %v1549
      %v1678 = vadd.f32 %v1184, %v1550
      %v1679 = vadd.f32 %v1185, %v1551
      %v1680 = vadd.f32 %v1186, %v1552
      %v1681 = vadd.f32 %v1187, %v1553
      %v1682 = vadd.f32 %v1188, %v1554
      %v1683 = vadd.f32 %v1189, %v1555
      %v1684 = vadd.f32 %v1190, %v1556
      %v1685 = vadd.f32 %v1191, %v1557
      %v1686 = vadd.f32 %v1192, %v1558
      %v1687 = vadd.f32 %v1193, %v1559
      %v1688 = vadd.f32 %v1194, %v1560
      %v1689 = vadd.f32 %v1195, %v1561
      %v1690 = vadd.f32 %v1196, %v1562
      %v1691 = vadd.f32 %v1197, %v1563
      %v1692 = vadd.f32 %v1198, %v1564
      %v1693 = vadd.f32 %v1199, %v1565
      %v1694 = vadd.f32 %v1200, %v1566
      %v1695 = vadd.f32 %v1201, %v1567
      %v1696 = vadd.f32 %v1202, %v1568
      %v1697 = vadd.f32 %v1203, %v1569
      %v1698 = vadd.f32 %v1204, %v1570
      %v1699 = vadd.f32 %v1205, %v1571
      %v1700 = vadd.f32 %v1206, %v1572
      %v1701 = vadd.f32 %v1207, %v1573
      %v1702 = vadd.f32 %v1208, %v1574
      %v1703 = vadd.f32 %v1209, %v1575
      %v1704 = vadd.f32 %v1210, %v1576
      %v1705 = vadd.f32 %v1211, %v1577
      %v1706 = vadd.f32 %v1212, %v1578
      %v1707 = vadd.f32 %v1213, %v1579
      %v1708 = vadd.f32 %v1214, %v1580
      %v1709 = vadd.f32 %v1215, %v1581
      %v1710 = vadd.f32 %v1216, %v1582
      %v1711 = vadd.f32 %v1217, %v1583
      %v1712 = vadd.f32 %v1218, %v1584
      %v1713 = vadd.f32 %v1219, %v1585
      %v1714 = vmul.f32 %v329, %v1223
      %v1715 = vmul.f32 %v330, %v1225
      %vm1716 = vmand %vm748, %vm1236
      %vm1717 = vmand %vm749, %vm1237
      %vm1718 = vmand %vm1716, %vm1246
      %vm1719 = vmand %vm1717, %vm1247
      %v1720 = vadd.s32 %v1250, %v756
      %v1721 = vadd.s32 %v1251, %v757
      %v1722 = vrot.slane %v1720, 5
      %v1723 = vrot.slane %v1722, 4
      %v1724 = vrot.slane %v1721, 5
      %v1725 = vrot.slane %v1724, 4
      %v1726 = vsel %vm1718, %v1723, 4294967295
      %v1727 = vsel %vm1719, %v1725, 4294967295
      %v1728 = vlaneseq
      %v1729 = vshrl.u32 %v1728, 7
      %v1730 = vsub.s32 0, %v1729
      %v1731 = vrot.slane %v1726, %v1730
      %v1732 = vlaneseq
      %v1733 = vshrl.u32 %v1732, 7
      %v1734 = vsub.s32 4, %v1733
      %v1735 = vrot.slane %v1726, %v1734
      %v1736 = vlaneseq
      %v1737 = vshrl.u32 %v1736, 7
      %v1738 = vsub.s32 0, %v1737
      %v1739 = vrot.slane %v1727, %v1738
      %v1740 = vlaneseq
      %v1741 = vshrl.u32 %v1740, 7
      %v1742 = vsub.s32 4, %v1741
      %v1743 = vrot.slane %v1727, %v1742
      %v1744 = vlaneseq
      %v1745 = vshrl.u32 %v1744, 7
      %v1746 = vsub.s32 0, %v1745
      %v1747 = vrot.slane %v1731, %v1746
      %v1748 = vlaneseq
      %v1749 = vshrl.u32 %v1748, 7
      %v1750 = vsub.s32 0, %v1749
      %v1751 = vrot.slane %v1735, %v1750
      %v1752 = vlaneseq
      %v1753 = vshrl.u32 %v1752, 7
      %v1754 = vsub.s32 0, %v1753
      %v1755 = vrot.slane %v1739, %v1754
      %v1756 = vlaneseq
      %v1757 = vshrl.u32 %v1756, 7
      %v1758 = vsub.s32 0, %v1757
      %v1759 = vrot.slane %v1743, %v1758
      %vm1760 = vcmp.eq.s32.totalorder %v334, %v1747
      %vm1761 = vcmp.eq.s32.totalorder %v334, %v1751
      %vm1762 = vcmp.eq.s32.totalorder %v334, %v1755
      %vm1763 = vcmp.eq.s32.totalorder %v334, %v1759
      %vm1764 = vcmp.eq.s32.totalorder %v335, %v1747
      %vm1765 = vcmp.eq.s32.totalorder %v335, %v1751
      %vm1766 = vcmp.eq.s32.totalorder %v335, %v1755
      %vm1767 = vcmp.eq.s32.totalorder %v335, %v1759
      %vm1768 = vcmp.eq.s32.totalorder %v336, %v1747
      %vm1769 = vcmp.eq.s32.totalorder %v336, %v1751
      %vm1770 = vcmp.eq.s32.totalorder %v336, %v1755
      %vm1771 = vcmp.eq.s32.totalorder %v336, %v1759
      %vm1772 = vcmp.eq.s32.totalorder %v337, %v1747
      %vm1773 = vcmp.eq.s32.totalorder %v337, %v1751
      %vm1774 = vcmp.eq.s32.totalorder %v337, %v1755
      %vm1775 = vcmp.eq.s32.totalorder %v337, %v1759
      %vm1776 = vcmp.eq.s32.totalorder %v338, %v1747
      %vm1777 = vcmp.eq.s32.totalorder %v338, %v1751
      %vm1778 = vcmp.eq.s32.totalorder %v338, %v1755
      %vm1779 = vcmp.eq.s32.totalorder %v338, %v1759
      %vm1780 = vcmp.eq.s32.totalorder %v339, %v1747
      %vm1781 = vcmp.eq.s32.totalorder %v339, %v1751
      %vm1782 = vcmp.eq.s32.totalorder %v339, %v1755
      %vm1783 = vcmp.eq.s32.totalorder %v339, %v1759
      %vm1784 = vcmp.eq.s32.totalorder %v340, %v1747
      %vm1785 = vcmp.eq.s32.totalorder %v340, %v1751
      %vm1786 = vcmp.eq.s32.totalorder %v340, %v1755
      %vm1787 = vcmp.eq.s32.totalorder %v340, %v1759
      %vm1788 = vcmp.eq.s32.totalorder %v341, %v1747
      %vm1789 = vcmp.eq.s32.totalorder %v341, %v1751
      %vm1790 = vcmp.eq.s32.totalorder %v341, %v1755
      %vm1791 = vcmp.eq.s32.totalorder %v341, %v1759
      %vm1792 = vcmp.eq.s32.totalorder %v342, %v1747
      %vm1793 = vcmp.eq.s32.totalorder %v342, %v1751
      %vm1794 = vcmp.eq.s32.totalorder %v342, %v1755
      %vm1795 = vcmp.eq.s32.totalorder %v342, %v1759
      %vm1796 = vcmp.eq.s32.totalorder %v343, %v1747
      %vm1797 = vcmp.eq.s32.totalorder %v343, %v1751
      %vm1798 = vcmp.eq.s32.totalorder %v343, %v1755
      %vm1799 = vcmp.eq.s32.totalorder %v343, %v1759
      %vm1800 = vcmp.eq.s32.totalorder %v344, %v1747
      %vm1801 = vcmp.eq.s32.totalorder %v344, %v1751
      %vm1802 = vcmp.eq.s32.totalorder %v344, %v1755
      %vm1803 = vcmp.eq.s32.totalorder %v344, %v1759
      %vm1804 = vcmp.eq.s32.totalorder %v345, %v1747
      %vm1805 = vcmp.eq.s32.totalorder %v345, %v1751
      %vm1806 = vcmp.eq.s32.totalorder %v345, %v1755
      %vm1807 = vcmp.eq.s32.totalorder %v345, %v1759
      %vm1808 = vcmp.eq.s32.totalorder %v346, %v1747
      %vm1809 = vcmp.eq.s32.totalorder %v346, %v1751
      %vm1810 = vcmp.eq.s32.totalorder %v346, %v1755
      %vm1811 = vcmp.eq.s32.totalorder %v346, %v1759
      %vm1812 = vcmp.eq.s32.totalorder %v347, %v1747
      %vm1813 = vcmp.eq.s32.totalorder %v347, %v1751
      %vm1814 = vcmp.eq.s32.totalorder %v347, %v1755
      %vm1815 = vcmp.eq.s32.totalorder %v347, %v1759
      %vm1816 = vcmp.eq.s32.totalorder %v348, %v1747
      %vm1817 = vcmp.eq.s32.totalorder %v348, %v1751
      %vm1818 = vcmp.eq.s32.totalorder %v348, %v1755
      %vm1819 = vcmp.eq.s32.totalorder %v348, %v1759
      %vm1820 = vcmp.eq.s32.totalorder %v349, %v1747
      %vm1821 = vcmp.eq.s32.totalorder %v349, %v1751
      %vm1822 = vcmp.eq.s32.totalorder %v349, %v1755
      %vm1823 = vcmp.eq.s32.totalorder %v349, %v1759
      %vm1824 = vcmp.eq.s32.totalorder %v350, %v1747
      %vm1825 = vcmp.eq.s32.totalorder %v350, %v1751
      %vm1826 = vcmp.eq.s32.totalorder %v350, %v1755
      %vm1827 = vcmp.eq.s32.totalorder %v350, %v1759
      %vm1828 = vcmp.eq.s32.totalorder %v351, %v1747
      %vm1829 = vcmp.eq.s32.totalorder %v351, %v1751
      %vm1830 = vcmp.eq.s32.totalorder %v351, %v1755
      %vm1831 = vcmp.eq.s32.totalorder %v351, %v1759
      %vm1832 = vcmp.eq.s32.totalorder %v352, %v1747
      %vm1833 = vcmp.eq.s32.totalorder %v352, %v1751
      %vm1834 = vcmp.eq.s32.totalorder %v352, %v1755
      %vm1835 = vcmp.eq.s32.totalorder %v352, %v1759
      %vm1836 = vcmp.eq.s32.totalorder %v353, %v1747
      %vm1837 = vcmp.eq.s32.totalorder %v353, %v1751
      %vm1838 = vcmp.eq.s32.totalorder %v353, %v1755
      %vm1839 = vcmp.eq.s32.totalorder %v353, %v1759
      %vm1840 = vcmp.eq.s32.totalorder %v354, %v1747
      %vm1841 = vcmp.eq.s32.totalorder %v354, %v1751
      %vm1842 = vcmp.eq.s32.totalorder %v354, %v1755
      %vm1843 = vcmp.eq.s32.totalorder %v354, %v1759
      %vm1844 = vcmp.eq.s32.totalorder %v355, %v1747
      %vm1845 = vcmp.eq.s32.totalorder %v355, %v1751
      %vm1846 = vcmp.eq.s32.totalorder %v355, %v1755
      %vm1847 = vcmp.eq.s32.totalorder %v355, %v1759
      %vm1848 = vcmp.eq.s32.totalorder %v356, %v1747
      %vm1849 = vcmp.eq.s32.totalorder %v356, %v1751
      %vm1850 = vcmp.eq.s32.totalorder %v356, %v1755
      %vm1851 = vcmp.eq.s32.totalorder %v356, %v1759
      %vm1852 = vcmp.eq.s32.totalorder %v357, %v1747
      %vm1853 = vcmp.eq.s32.totalorder %v357, %v1751
      %vm1854 = vcmp.eq.s32.totalorder %v357, %v1755
      %vm1855 = vcmp.eq.s32.totalorder %v357, %v1759
      %vm1856 = vcmp.eq.s32.totalorder %v358, %v1747
      %vm1857 = vcmp.eq.s32.totalorder %v358, %v1751
      %vm1858 = vcmp.eq.s32.totalorder %v358, %v1755
      %vm1859 = vcmp.eq.s32.totalorder %v358, %v1759
      %vm1860 = vcmp.eq.s32.totalorder %v359, %v1747
      %vm1861 = vcmp.eq.s32.totalorder %v359, %v1751
      %vm1862 = vcmp.eq.s32.totalorder %v359, %v1755
      %vm1863 = vcmp.eq.s32.totalorder %v359, %v1759
      %vm1864 = vcmp.eq.s32.totalorder %v360, %v1747
      %vm1865 = vcmp.eq.s32.totalorder %v360, %v1751
      %vm1866 = vcmp.eq.s32.totalorder %v360, %v1755
      %vm1867 = vcmp.eq.s32.totalorder %v360, %v1759
      %vm1868 = vcmp.eq.s32.totalorder %v361, %v1747
      %vm1869 = vcmp.eq.s32.totalorder %v361, %v1751
      %vm1870 = vcmp.eq.s32.totalorder %v361, %v1755
      %vm1871 = vcmp.eq.s32.totalorder %v361, %v1759
      %vm1872 = vcmp.eq.s32.totalorder %v362, %v1747
      %vm1873 = vcmp.eq.s32.totalorder %v362, %v1751
      %vm1874 = vcmp.eq.s32.totalorder %v362, %v1755
      %vm1875 = vcmp.eq.s32.totalorder %v362, %v1759
      %vm1876 = vcmp.eq.s32.totalorder %v363, %v1747
      %vm1877 = vcmp.eq.s32.totalorder %v363, %v1751
      %vm1878 = vcmp.eq.s32.totalorder %v363, %v1755
      %vm1879 = vcmp.eq.s32.totalorder %v363, %v1759
      %vm1880 = vcmp.eq.s32.totalorder %v364, %v1747
      %vm1881 = vcmp.eq.s32.totalorder %v364, %v1751
      %vm1882 = vcmp.eq.s32.totalorder %v364, %v1755
      %vm1883 = vcmp.eq.s32.totalorder %v364, %v1759
      %vm1884 = vcmp.eq.s32.totalorder %v365, %v1747
      %vm1885 = vcmp.eq.s32.totalorder %v365, %v1751
      %vm1886 = vcmp.eq.s32.totalorder %v365, %v1755
      %vm1887 = vcmp.eq.s32.totalorder %v365, %v1759
      %v1890 = vlaneseq
      %v1891 = vshrl.u32 %v1890, 7
      %v1892 = vsub.s32 0, %v1891
      %v1893 = vrot.slane %v1714, %v1892
      %v1894 = vlaneseq
      %v1895 = vshrl.u32 %v1894, 7
      %v1896 = vsub.s32 4, %v1895
      %v1897 = vrot.slane %v1714, %v1896
      %v1898 = vlaneseq
      %v1899 = vshrl.u32 %v1898, 7
      %v1900 = vsub.s32 0, %v1899
      %v1901 = vrot.slane %v1715, %v1900
      %v1902 = vlaneseq
      %v1903 = vshrl.u32 %v1902, 7
      %v1904 = vsub.s32 4, %v1903
      %v1905 = vrot.slane %v1715, %v1904
      %v1910 = vlaneseq
      %v1911 = vshrl.u32 %v1910, 7
      %v1912 = vsub.s32 0, %v1911
      %v1913 = vrot.slane %v1893, %v1912
      %v1914 = vlaneseq
      %v1915 = vshrl.u32 %v1914, 7
      %v1916 = vsub.s32 0, %v1915
      %v1917 = vrot.slane %v1897, %v1916
      %v1918 = vlaneseq
      %v1919 = vshrl.u32 %v1918, 7
      %v1920 = vsub.s32 0, %v1919
      %v1921 = vrot.slane %v1901, %v1920
      %v1922 = vlaneseq
      %v1923 = vshrl.u32 %v1922, 7
      %v1924 = vsub.s32 0, %v1923
      %v1925 = vrot.slane %v1905, %v1924
      %v1926 = vsel %vm1760, %v1913, 0.0
      %v1927 = vsel %vm1761, %v1917, 0.0
      %v1928 = vsel %vm1762, %v1921, 0.0
      %v1929 = vsel %vm1763, %v1925, 0.0
      %v1930 = vsel %vm1764, %v1913, 0.0
      %v1931 = vsel %vm1765, %v1917, 0.0
      %v1932 = vsel %vm1766, %v1921, 0.0
      %v1933 = vsel %vm1767, %v1925, 0.0
      %v1934 = vsel %vm1768, %v1913, 0.0
      %v1935 = vsel %vm1769, %v1917, 0.0
      %v1936 = vsel %vm1770, %v1921, 0.0
      %v1937 = vsel %vm1771, %v1925, 0.0
      %v1938 = vsel %vm1772, %v1913, 0.0
      %v1939 = vsel %vm1773, %v1917, 0.0
      %v1940 = vsel %vm1774, %v1921, 0.0
      %v1941 = vsel %vm1775, %v1925, 0.0
      %v1942 = vsel %vm1776, %v1913, 0.0
      %v1943 = vsel %vm1777, %v1917, 0.0
      %v1944 = vsel %vm1778, %v1921, 0.0
      %v1945 = vsel %vm1779, %v1925, 0.0
      %v1946 = vsel %vm1780, %v1913, 0.0
      %v1947 = vsel %vm1781, %v1917, 0.0
      %v1948 = vsel %vm1782, %v1921, 0.0
      %v1949 = vsel %vm1783, %v1925, 0.0
      %v1950 = vsel %vm1784, %v1913, 0.0
      %v1951 = vsel %vm1785, %v1917, 0.0
      %v1952 = vsel %vm1786, %v1921, 0.0
      %v1953 = vsel %vm1787, %v1925, 0.0
      %v1954 = vsel %vm1788, %v1913, 0.0
      %v1955 = vsel %vm1789, %v1917, 0.0
      %v1956 = vsel %vm1790, %v1921, 0.0
      %v1957 = vsel %vm1791, %v1925, 0.0
      %v1958 = vsel %vm1792, %v1913, 0.0
      %v1959 = vsel %vm1793, %v1917, 0.0
      %v1960 = vsel %vm1794, %v1921, 0.0
      %v1961 = vsel %vm1795, %v1925, 0.0
      %v1962 = vsel %vm1796, %v1913, 0.0
      %v1963 = vsel %vm1797, %v1917, 0.0
      %v1964 = vsel %vm1798, %v1921, 0.0
      %v1965 = vsel %vm1799, %v1925, 0.0
      %v1966 = vsel %vm1800, %v1913, 0.0
      %v1967 = vsel %vm1801, %v1917, 0.0
      %v1968 = vsel %vm1802, %v1921, 0.0
      %v1969 = vsel %vm1803, %v1925, 0.0
      %v1970 = vsel %vm1804, %v1913, 0.0
      %v1971 = vsel %vm1805, %v1917, 0.0
      %v1972 = vsel %vm1806, %v1921, 0.0
      %v1973 = vsel %vm1807, %v1925, 0.0
      %v1974 = vsel %vm1808, %v1913, 0.0
      %v1975 = vsel %vm1809, %v1917, 0.0
      %v1976 = vsel %vm1810, %v1921, 0.0
      %v1977 = vsel %vm1811, %v1925, 0.0
      %v1978 = vsel %vm1812, %v1913, 0.0
      %v1979 = vsel %vm1813, %v1917, 0.0
      %v1980 = vsel %vm1814, %v1921, 0.0
      %v1981 = vsel %vm1815, %v1925, 0.0
      %v1982 = vsel %vm1816, %v1913, 0.0
      %v1983 = vsel %vm1817, %v1917, 0.0
      %v1984 = vsel %vm1818, %v1921, 0.0
      %v1985 = vsel %vm1819, %v1925, 0.0
      %v1986 = vsel %vm1820, %v1913, 0.0
      %v1987 = vsel %vm1821, %v1917, 0.0
      %v1988 = vsel %vm1822, %v1921, 0.0
      %v1989 = vsel %vm1823, %v1925, 0.0
      %v1990 = vsel %vm1824, %v1913, 0.0
      %v1991 = vsel %vm1825, %v1917, 0.0
      %v1992 = vsel %vm1826, %v1921, 0.0
      %v1993 = vsel %vm1827, %v1925, 0.0
      %v1994 = vsel %vm1828, %v1913, 0.0
      %v1995 = vsel %vm1829, %v1917, 0.0
      %v1996 = vsel %vm1830, %v1921, 0.0
      %v1997 = vsel %vm1831, %v1925, 0.0
      %v1998 = vsel %vm1832, %v1913, 0.0
      %v1999 = vsel %vm1833, %v1917, 0.0
      %v2000 = vsel %vm1834, %v1921, 0.0
      %v2001 = vsel %vm1835, %v1925, 0.0
      %v2002 = vsel %vm1836, %v1913, 0.0
      %v2003 = vsel %vm1837, %v1917, 0.0
      %v2004 = vsel %vm1838, %v1921, 0.0
      %v2005 = vsel %vm1839, %v1925, 0.0
      %v2006 = vsel %vm1840, %v1913, 0.0
      %v2007 = vsel %vm1841, %v1917, 0.0
      %v2008 = vsel %vm1842, %v1921, 0.0
      %v2009 = vsel %vm1843, %v1925, 0.0
      %v2010 = vsel %vm1844, %v1913, 0.0
      %v2011 = vsel %vm1845, %v1917, 0.0
      %v2012 = vsel %vm1846, %v1921, 0.0
      %v2013 = vsel %vm1847, %v1925, 0.0
      %v2014 = vsel %vm1848, %v1913, 0.0
      %v2015 = vsel %vm1849, %v1917, 0.0
      %v2016 = vsel %vm1850, %v1921, 0.0
      %v2017 = vsel %vm1851, %v1925, 0.0
      %v2018 = vsel %vm1852, %v1913, 0.0
      %v2019 = vsel %vm1853, %v1917, 0.0
      %v2020 = vsel %vm1854, %v1921, 0.0
      %v2021 = vsel %vm1855, %v1925, 0.0
      %v2022 = vsel %vm1856, %v1913, 0.0
      %v2023 = vsel %vm1857, %v1917, 0.0
      %v2024 = vsel %vm1858, %v1921, 0.0
      %v2025 = vsel %vm1859, %v1925, 0.0
      %v2026 = vsel %vm1860, %v1913, 0.0
      %v2027 = vsel %vm1861, %v1917, 0.0
      %v2028 = vsel %vm1862, %v1921, 0.0
      %v2029 = vsel %vm1863, %v1925, 0.0
      %v2030 = vsel %vm1864, %v1913, 0.0
      %v2031 = vsel %vm1865, %v1917, 0.0
      %v2032 = vsel %vm1866, %v1921, 0.0
      %v2033 = vsel %vm1867, %v1925, 0.0
      %v2034 = vsel %vm1868, %v1913, 0.0
      %v2035 = vsel %vm1869, %v1917, 0.0
      %v2036 = vsel %vm1870, %v1921, 0.0
      %v2037 = vsel %vm1871, %v1925, 0.0
      %v2038 = vsel %vm1872, %v1913, 0.0
      %v2039 = vsel %vm1873, %v1917, 0.0
      %v2040 = vsel %vm1874, %v1921, 0.0
      %v2041 = vsel %vm1875, %v1925, 0.0
      %v2042 = vsel %vm1876, %v1913, 0.0
      %v2043 = vsel %vm1877, %v1917, 0.0
      %v2044 = vsel %vm1878, %v1921, 0.0
      %v2045 = vsel %vm1879, %v1925, 0.0
      %v2046 = vsel %vm1880, %v1913, 0.0
      %v2047 = vsel %vm1881, %v1917, 0.0
      %v2048 = vsel %vm1882, %v1921, 0.0
      %v2049 = vsel %vm1883, %v1925, 0.0
      %v2050 = vsel %vm1884, %v1913, 0.0
      %v2051 = vsel %vm1885, %v1917, 0.0
      %v2052 = vsel %vm1886, %v1921, 0.0
      %v2053 = vsel %vm1887, %v1925, 0.0
      %v2054 = vadd.f32 %v1586, %v1926
      %v2055 = vadd.f32 %v1587, %v1927
      %v2056 = vadd.f32 %v1588, %v1928
      %v2057 = vadd.f32 %v1589, %v1929
      %v2058 = vadd.f32 %v1590, %v1930
      %v2059 = vadd.f32 %v1591, %v1931
      %v2060 = vadd.f32 %v1592, %v1932
      %v2061 = vadd.f32 %v1593, %v1933
      %v2062 = vadd.f32 %v1594, %v1934
      %v2063 = vadd.f32 %v1595, %v1935
      %v2064 = vadd.f32 %v1596, %v1936
      %v2065 = vadd.f32 %v1597, %v1937
      %v2066 = vadd.f32 %v1598, %v1938
      %v2067 = vadd.f32 %v1599, %v1939
      %v2068 = vadd.f32 %v1600, %v1940
      %v2069 = vadd.f32 %v1601, %v1941
      %v2070 = vadd.f32 %v1602, %v1942
      %v2071 = vadd.f32 %v1603, %v1943
      %v2072 = vadd.f32 %v1604, %v1944
      %v2073 = vadd.f32 %v1605, %v1945
      %v2074 = vadd.f32 %v1606, %v1946
      %v2075 = vadd.f32 %v1607, %v1947
      %v2076 = vadd.f32 %v1608, %v1948
      %v2077 = vadd.f32 %v1609, %v1949
      %v2078 = vadd.f32 %v1610, %v1950
      %v2079 = vadd.f32 %v1611, %v1951
      %v2080 = vadd.f32 %v1612, %v1952
      %v2081 = vadd.f32 %v1613, %v1953
      %v2082 = vadd.f32 %v1614, %v1954
      %v2083 = vadd.f32 %v1615, %v1955
      %v2084 = vadd.f32 %v1616, %v1956
      %v2085 = vadd.f32 %v1617, %v1957
      %v2086 = vadd.f32 %v1618, %v1958
      %v2087 = vadd.f32 %v1619, %v1959
      %v2088 = vadd.f32 %v1620, %v1960
      %v2089 = vadd.f32 %v1621, %v1961
      %v2090 = vadd.f32 %v1622, %v1962
      %v2091 = vadd.f32 %v1623, %v1963
      %v2092 = vadd.f32 %v1624, %v1964
      %v2093 = vadd.f32 %v1625, %v1965
      %v2094 = vadd.f32 %v1626, %v1966
      %v2095 = vadd.f32 %v1627, %v1967
      %v2096 = vadd.f32 %v1628, %v1968
      %v2097 = vadd.f32 %v1629, %v1969
      %v2098 = vadd.f32 %v1630, %v1970
      %v2099 = vadd.f32 %v1631, %v1971
      %v2100 = vadd.f32 %v1632, %v1972
      %v2101 = vadd.f32 %v1633, %v1973
      %v2102 = vadd.f32 %v1634, %v1974
      %v2103 = vadd.f32 %v1635, %v1975
      %v2104 = vadd.f32 %v1636, %v1976
      %v2105 = vadd.f32 %v1637, %v1977
      %v2106 = vadd.f32 %v1638, %v1978
      %v2107 = vadd.f32 %v1639, %v1979
      %v2108 = vadd.f32 %v1640, %v1980
      %v2109 = vadd.f32 %v1641, %v1981
      %v2110 = vadd.f32 %v1642, %v1982
      %v2111 = vadd.f32 %v1643, %v1983
      %v2112 = vadd.f32 %v1644, %v1984
      %v2113 = vadd.f32 %v1645, %v1985
      %v2114 = vadd.f32 %v1646, %v1986
      %v2115 = vadd.f32 %v1647, %v1987
      %v2116 = vadd.f32 %v1648, %v1988
      %v2117 = vadd.f32 %v1649, %v1989
      %v2118 = vadd.f32 %v1650, %v1990
      %v2119 = vadd.f32 %v1651, %v1991
      %v2120 = vadd.f32 %v1652, %v1992
      %v2121 = vadd.f32 %v1653, %v1993
      %v2122 = vadd.f32 %v1654, %v1994
      %v2123 = vadd.f32 %v1655, %v1995
      %v2124 = vadd.f32 %v1656, %v1996
      %v2125 = vadd.f32 %v1657, %v1997
      %v2126 = vadd.f32 %v1658, %v1998
      %v2127 = vadd.f32 %v1659, %v1999
      %v2128 = vadd.f32 %v1660, %v2000
      %v2129 = vadd.f32 %v1661, %v2001
      %v2130 = vadd.f32 %v1662, %v2002
      %v2131 = vadd.f32 %v1663, %v2003
      %v2132 = vadd.f32 %v1664, %v2004
      %v2133 = vadd.f32 %v1665, %v2005
      %v2134 = vadd.f32 %v1666, %v2006
      %v2135 = vadd.f32 %v1667, %v2007
      %v2136 = vadd.f32 %v1668, %v2008
      %v2137 = vadd.f32 %v1669, %v2009
      %v2138 = vadd.f32 %v1670, %v2010
      %v2139 = vadd.f32 %v1671, %v2011
      %v2140 = vadd.f32 %v1672, %v2012
      %v2141 = vadd.f32 %v1673, %v2013
      %v2142 = vadd.f32 %v1674, %v2014
      %v2143 = vadd.f32 %v1675, %v2015
      %v2144 = vadd.f32 %v1676, %v2016
      %v2145 = vadd.f32 %v1677, %v2017
      %v2146 = vadd.f32 %v1678, %v2018
      %v2147 = vadd.f32 %v1679, %v2019
      %v2148 = vadd.f32 %v1680, %v2020
      %v2149 = vadd.f32 %v1681, %v2021
      %v2150 = vadd.f32 %v1682, %v2022
      %v2151 = vadd.f32 %v1683, %v2023
      %v2152 = vadd.f32 %v1684, %v2024
      %v2153 = vadd.f32 %v1685, %v2025
      %v2154 = vadd.f32 %v1686, %v2026
      %v2155 = vadd.f32 %v1687, %v2027
      %v2156 = vadd.f32 %v1688, %v2028
      %v2157 = vadd.f32 %v1689, %v2029
      %v2158 = vadd.f32 %v1690, %v2030
      %v2159 = vadd.f32 %v1691, %v2031
      %v2160 = vadd.f32 %v1692, %v2032
      %v2161 = vadd.f32 %v1693, %v2033
      %v2162 = vadd.f32 %v1694, %v2034
      %v2163 = vadd.f32 %v1695, %v2035
      %v2164 = vadd.f32 %v1696, %v2036
      %v2165 = vadd.f32 %v1697, %v2037
      %v2166 = vadd.f32 %v1698, %v2038
      %v2167 = vadd.f32 %v1699, %v2039
      %v2168 = vadd.f32 %v1700, %v2040
      %v2169 = vadd.f32 %v1701, %v2041
      %v2170 = vadd.f32 %v1702, %v2042
      %v2171 = vadd.f32 %v1703, %v2043
      %v2172 = vadd.f32 %v1704, %v2044
      %v2173 = vadd.f32 %v1705, %v2045
      %v2174 = vadd.f32 %v1706, %v2046
      %v2175 = vadd.f32 %v1707, %v2047
      %v2176 = vadd.f32 %v1708, %v2048
      %v2177 = vadd.f32 %v1709, %v2049
      %v2178 = vadd.f32 %v1710, %v2050
      %v2179 = vadd.f32 %v1711, %v2051
      %v2180 = vadd.f32 %v1712, %v2052
      %v2181 = vadd.f32 %v1713, %v2053
      %v2182 = vpack.c.bf16 %v2058, %v2054
      %v2183 = vpack.c.bf16 %v2059, %v2055
      %v2184 = vpack.c.bf16 %v2060, %v2056
      %v2185 = vpack.c.bf16 %v2061, %v2057
      %v2186 = vpack.c.bf16 %v2066, %v2062
      %v2187 = vpack.c.bf16 %v2067, %v2063
      %v2188 = vpack.c.bf16 %v2068, %v2064
      %v2189 = vpack.c.bf16 %v2069, %v2065
      %v2190 = vpack.c.bf16 %v2074, %v2070
      %v2191 = vpack.c.bf16 %v2075, %v2071
      %v2192 = vpack.c.bf16 %v2076, %v2072
      %v2193 = vpack.c.bf16 %v2077, %v2073
      %v2194 = vpack.c.bf16 %v2082, %v2078
      %v2195 = vpack.c.bf16 %v2083, %v2079
      %v2196 = vpack.c.bf16 %v2084, %v2080
      %v2197 = vpack.c.bf16 %v2085, %v2081
      %v2198 = vpack.c.bf16 %v2090, %v2086
      %v2199 = vpack.c.bf16 %v2091, %v2087
      %v2200 = vpack.c.bf16 %v2092, %v2088
      %v2201 = vpack.c.bf16 %v2093, %v2089
      %v2202 = vpack.c.bf16 %v2098, %v2094
      %v2203 = vpack.c.bf16 %v2099, %v2095
      %v2204 = vpack.c.bf16 %v2100, %v2096
      %v2205 = vpack.c.bf16 %v2101, %v2097
      %v2206 = vpack.c.bf16 %v2106, %v2102
      %v2207 = vpack.c.bf16 %v2107, %v2103
      %v2208 = vpack.c.bf16 %v2108, %v2104
      %v2209 = vpack.c.bf16 %v2109, %v2105
      %v2210 = vpack.c.bf16 %v2114, %v2110
      %v2211 = vpack.c.bf16 %v2115, %v2111
      %v2212 = vpack.c.bf16 %v2116, %v2112
      %v2213 = vpack.c.bf16 %v2117, %v2113
      %v2214 = vpack.c.bf16 %v2122, %v2118
      %v2215 = vpack.c.bf16 %v2123, %v2119
      %v2216 = vpack.c.bf16 %v2124, %v2120
      %v2217 = vpack.c.bf16 %v2125, %v2121
      %v2218 = vpack.c.bf16 %v2130, %v2126
      %v2219 = vpack.c.bf16 %v2131, %v2127
      %v2220 = vpack.c.bf16 %v2132, %v2128
      %v2221 = vpack.c.bf16 %v2133, %v2129
      %v2222 = vpack.c.bf16 %v2138, %v2134
      %v2223 = vpack.c.bf16 %v2139, %v2135
      %v2224 = vpack.c.bf16 %v2140, %v2136
      %v2225 = vpack.c.bf16 %v2141, %v2137
      %v2226 = vpack.c.bf16 %v2146, %v2142
      %v2227 = vpack.c.bf16 %v2147, %v2143
      %v2228 = vpack.c.bf16 %v2148, %v2144
      %v2229 = vpack.c.bf16 %v2149, %v2145
      %v2230 = vpack.c.bf16 %v2154, %v2150
      %v2231 = vpack.c.bf16 %v2155, %v2151
      %v2232 = vpack.c.bf16 %v2156, %v2152
      %v2233 = vpack.c.bf16 %v2157, %v2153
      %v2234 = vpack.c.bf16 %v2162, %v2158
      %v2235 = vpack.c.bf16 %v2163, %v2159
      %v2236 = vpack.c.bf16 %v2164, %v2160
      %v2237 = vpack.c.bf16 %v2165, %v2161
      %v2238 = vpack.c.bf16 %v2170, %v2166
      %v2239 = vpack.c.bf16 %v2171, %v2167
      %v2240 = vpack.c.bf16 %v2172, %v2168
      %v2241 = vpack.c.bf16 %v2173, %v2169
      %v2242 = vpack.c.bf16 %v2178, %v2174
      %v2243 = vpack.c.bf16 %v2179, %v2175
      %v2244 = vpack.c.bf16 %v2180, %v2176
      %v2245 = vpack.c.bf16 %v2181, %v2177
      %v2250 = vunpack.c.l.b16 %v313
      %v2251 = vunpack.c.h.b16 %v313
      %v2252 = vunpack.c.l.b16 %v314
      %v2253 = vunpack.c.h.b16 %v314
      %v2254 = vunpack.c.l.b16 %v315
      %v2255 = vunpack.c.h.b16 %v315
      %v2256 = vunpack.c.l.b16 %v316
      %v2257 = vunpack.c.h.b16 %v316
      %v2258 = vpack.c.b16 %v2252, %v2250
      %v2259 = vpack.c.b16 %v2253, %v2251
      %v2260 = vpack.c.b16 %v2256, %v2254
      %v2261 = vpack.c.b16 %v2257, %v2255
      %2266 = vmatprep.subr.bf16.mxu0 %v2183
      %2267 = vmatpush1.bf16.msra.mxu0 %v2182
      %2268 = vmatprep.subr.bf16.mxu0 %v2187
      %2269 = vmatpush1.bf16.msra.mxu0 %v2186
      %2270 = vmatprep.subr.bf16.mxu0 %v2191
      %2271 = vmatpush1.bf16.msra.mxu0 %v2190
      %2272 = vmatprep.subr.bf16.mxu0 %v2195
      %2273 = vmatpush1.bf16.msra.mxu0 %v2194
      %2274 = vmatprep.subr.bf16.mxu0 %v2199
      %2275 = vmatpush1.bf16.msra.mxu0 %v2198
      %2276 = vmatprep.subr.bf16.mxu0 %v2203
      %2277 = vmatpush1.bf16.msra.mxu0 %v2202
      %2278 = vmatprep.subr.bf16.mxu0 %v2207
      %2279 = vmatpush1.bf16.msra.mxu0 %v2206
      %2280 = vmatprep.subr.bf16.mxu0 %v2211
      %2281 = vmatpush1.bf16.msra.mxu0 %v2210
      %2282 = vmatprep.subr.bf16.mxu0 %v2215
      %2283 = vmatpush1.bf16.msra.mxu0 %v2214
      %2284 = vmatprep.subr.bf16.mxu0 %v2219
      %2285 = vmatpush1.bf16.msra.mxu0 %v2218
      %2286 = vmatprep.subr.bf16.mxu0 %v2223
      %2287 = vmatpush1.bf16.msra.mxu0 %v2222
      %2288 = vmatprep.subr.bf16.mxu0 %v2227
      %2289 = vmatpush1.bf16.msra.mxu0 %v2226
      %2290 = vmatprep.subr.bf16.mxu0 %v2231
      %2291 = vmatpush1.bf16.msra.mxu0 %v2230
      %2292 = vmatprep.subr.bf16.mxu0 %v2235
      %2293 = vmatpush1.bf16.msra.mxu0 %v2234
      %2294 = vmatprep.subr.bf16.mxu0 %v2239
      %2295 = vmatpush1.bf16.msra.mxu0 %v2238
      %2296 = vmatprep.subr.bf16.mxu0 %v2243
      %2297 = vmatpush1.bf16.msra.mxu0 %v2242
      %2298 = vmatprep.mubr.bf16.mxu0 %v2259
      %2299 = vmatmul.mubr.bf16.gmra.mrb[0].mxu0 %v2258
      %v2300 = vpop.f32.mrb[0].mxu0
      %v2301 = vadd.f32 0.0, %v2300
      %v2302 = vpop.f32.mrb[0].mxu0
      %v2303 = vadd.f32 0.0, %v2302
      %v2304 = vpop.f32.mrb[0].mxu0
      %v2305 = vadd.f32 0.0, %v2304
      %v2306 = vpop.f32.mrb[0].mxu0
      %v2307 = vadd.f32 0.0, %v2306
      %2308 = vmatprep.mubr.bf16.mxu0 %v2261
      %2309 = vmatmul.mubr.bf16.gmra.mrb[0].mxu0 %v2260
      %v2310 = vpop.f32.mrb[0].mxu0
      %v2311 = vadd.f32 0.0, %v2310
      %v2312 = vpop.f32.mrb[0].mxu0
      %v2313 = vadd.f32 0.0, %v2312
      %v2314 = vpop.f32.mrb[0].mxu0
      %v2315 = vadd.f32 0.0, %v2314
      %v2316 = vpop.f32.mrb[0].mxu0
      %v2317 = vadd.f32 0.0, %v2316
      %2318 = vdwg.mxu0
      %2319 = vmatprep.subr.bf16.mxu0 %v2185
      %2320 = vmatpush1.bf16.msra.mxu0 %v2184
      %2321 = vmatprep.subr.bf16.mxu0 %v2189
      %2322 = vmatpush1.bf16.msra.mxu0 %v2188
      %2323 = vmatprep.subr.bf16.mxu0 %v2193
      %2324 = vmatpush1.bf16.msra.mxu0 %v2192
      %2325 = vmatprep.subr.bf16.mxu0 %v2197
      %2326 = vmatpush1.bf16.msra.mxu0 %v2196
      %2327 = vmatprep.subr.bf16.mxu0 %v2201
      %2328 = vmatpush1.bf16.msra.mxu0 %v2200
      %2329 = vmatprep.subr.bf16.mxu0 %v2205
      %2330 = vmatpush1.bf16.msra.mxu0 %v2204
      %2331 = vmatprep.subr.bf16.mxu0 %v2209
      %2332 = vmatpush1.bf16.msra.mxu0 %v2208
      %2333 = vmatprep.subr.bf16.mxu0 %v2213
      %2334 = vmatpush1.bf16.msra.mxu0 %v2212
      %2335 = vmatprep.subr.bf16.mxu0 %v2217
      %2336 = vmatpush1.bf16.msra.mxu0 %v2216
      %2337 = vmatprep.subr.bf16.mxu0 %v2221
      %2338 = vmatpush1.bf16.msra.mxu0 %v2220
      %2339 = vmatprep.subr.bf16.mxu0 %v2225
      %2340 = vmatpush1.bf16.msra.mxu0 %v2224
      %2341 = vmatprep.subr.bf16.mxu0 %v2229
      %2342 = vmatpush1.bf16.msra.mxu0 %v2228
      %2343 = vmatprep.subr.bf16.mxu0 %v2233
      %2344 = vmatpush1.bf16.msra.mxu0 %v2232
      %2345 = vmatprep.subr.bf16.mxu0 %v2237
      %2346 = vmatpush1.bf16.msra.mxu0 %v2236
      %2347 = vmatprep.subr.bf16.mxu0 %v2241
      %2348 = vmatpush1.bf16.msra.mxu0 %v2240
      %2349 = vmatprep.subr.bf16.mxu0 %v2245
      %2350 = vmatpush1.bf16.msra.mxu0 %v2244
      %2351 = vmatprep.mubr.bf16.mxu0 %v2259
      %2352 = vmatmul.mubr.bf16.gmra.mrb[0].mxu0 %v2258
      %v2353 = vpop.f32.mrb[0].mxu0
      %v2354 = vadd.f32 0.0, %v2353
      %v2355 = vpop.f32.mrb[0].mxu0
      %v2356 = vadd.f32 0.0, %v2355
      %v2357 = vpop.f32.mrb[0].mxu0
      %v2358 = vadd.f32 0.0, %v2357
      %v2359 = vpop.f32.mrb[0].mxu0
      %v2360 = vadd.f32 0.0, %v2359
      %2361 = vmatprep.mubr.bf16.mxu0 %v2261
      %2362 = vmatmul.mubr.bf16.gmra.mrb[0].mxu0 %v2260
      %v2363 = vpop.f32.mrb[0].mxu0
      %v2364 = vadd.f32 0.0, %v2363
      %v2365 = vpop.f32.mrb[0].mxu0
      %v2366 = vadd.f32 0.0, %v2365
      %v2367 = vpop.f32.mrb[0].mxu0
      %v2368 = vadd.f32 0.0, %v2367
      %v2369 = vpop.f32.mrb[0].mxu0
      %v2370 = vadd.f32 0.0, %v2369
      %2371 = vdwg.mxu0
      %v2372 = vld [vmem:[%s2] sm:$0xff]
      %v2373 = vld [vmem:[%s2 + $0x8] sm:$0xff]
      %v2374 = vld [vmem:[%s2 + $0x10] sm:$0xff]
      %v2375 = vld [vmem:[%s2 + $0x18] sm:$0xff]
      %v2376 = vld [vmem:[%s2 + $0x20] sm:$0xff]
      %v2377 = vld [vmem:[%s2 + $0x28] sm:$0xff]
      %v2378 = vld [vmem:[%s2 + $0x30] sm:$0xff]
      %v2379 = vld [vmem:[%s2 + $0x38] sm:$0xff]
      %v2380 = vld [vmem:[%s3] sm:$0xff]
      %v2381 = vld [vmem:[%s3 + $0x8] sm:$0xff]
      %v2382 = vld [vmem:[%s3 + $0x10] sm:$0xff]
      %v2383 = vld [vmem:[%s3 + $0x18] sm:$0xff]
      %v2384 = vld [vmem:[%s3 + $0x20] sm:$0xff]
      %v2385 = vld [vmem:[%s3 + $0x28] sm:$0xff]
      %v2386 = vld [vmem:[%s3 + $0x30] sm:$0xff]
      %v2387 = vld [vmem:[%s3 + $0x38] sm:$0xff]
      %2389 = vset.pattern.permute.xlu0 0
      %2390 = vperm.xlu0 %2389, %v2380
      %v2391 = vpop.permute.xlu0 %2390
      %2394 = vset.pattern.permute.xlu0 0
      %2395 = vperm.xlu0 %2394, %v2381
      %v2396 = vpop.permute.xlu0 %2395
      %2399 = vset.pattern.permute.xlu0 0
      %2400 = vperm.xlu0 %2399, %v2382
      %v2401 = vpop.permute.xlu0 %2400
      %2404 = vset.pattern.permute.xlu0 0
      %2405 = vperm.xlu0 %2404, %v2383
      %v2406 = vpop.permute.xlu0 %2405
      %2409 = vset.pattern.permute.xlu0 0
      %2410 = vperm.xlu0 %2409, %v2384
      %v2411 = vpop.permute.xlu0 %2410
      %2414 = vset.pattern.permute.xlu0 0
      %2415 = vperm.xlu0 %2414, %v2385
      %v2416 = vpop.permute.xlu0 %2415
      %2419 = vset.pattern.permute.xlu0 0
      %2420 = vperm.xlu0 %2419, %v2386
      %v2421 = vpop.permute.xlu0 %2420
      %2424 = vset.pattern.permute.xlu0 0
      %2425 = vperm.xlu0 %2424, %v2387
      %v2426 = vpop.permute.xlu0 %2425
      %vm2428 = vcmask 261120
      %v2430 = vsel %vm2428, %v2372, 0
      %v2433 = vsel %vm2428, %v2373, 0
      %v2436 = vsel %vm2428, %v2374, 0
      %v2439 = vsel %vm2428, %v2375, 0
      %v2442 = vsel %vm2428, %v2376, 0
      %v2445 = vsel %vm2428, %v2377, 0
      %v2448 = vsel %vm2428, %v2378, 0
      %v2451 = vsel %vm2428, %v2379, 0
      %2453 = vmatprep.subr.mxu0 %v2303
      %2454 = vmatpush1.msra.mxu0 %v2301
      %2455 = vmatprep.subr.mxu0 %v2307
      %2456 = vmatpush1.msra.mxu0 %v2305
      %2457 = vmatprep.subr.mxu0 %v2313
      %2458 = vmatpush1.msra.mxu0 %v2311
      %2459 = vmatprep.subr.mxu0 %v2317
      %2460 = vmatpush1.msra.mxu0 %v2315
      %2461 = vmatprep.subr.mxu0 0.0
      %2462 = vmatpush1.msra.mxu0 0.0
      %2463 = vmatprep.subr.mxu0 0.0
      %2464 = vmatpush1.msra.mxu0 0.0
      %2465 = vmatprep.subr.mxu0 0.0
      %2466 = vmatpush1.msra.mxu0 0.0
      %2467 = vmatprep.subr.mxu0 0.0
      %2468 = vmatpush1.msra.mxu0 0.0
      %2469 = vmatprep.subr.mxu0 0.0
      %2470 = vmatpush1.msra.mxu0 0.0
      %2471 = vmatprep.subr.mxu0 0.0
      %2472 = vmatpush1.msra.mxu0 0.0
      %2473 = vmatprep.subr.mxu0 0.0
      %2474 = vmatpush1.msra.mxu0 0.0
      %2475 = vmatprep.subr.mxu0 0.0
      %2476 = vmatpush1.msra.mxu0 0.0
      %2477 = vmatprep.subr.mxu0 0.0
      %2478 = vmatpush1.msra.mxu0 0.0
      %2479 = vmatprep.subr.mxu0 0.0
      %2480 = vmatpush1.msra.mxu0 0.0
      %2481 = vmatprep.subr.mxu0 0.0
      %2482 = vmatpush1.msra.mxu0 0.0
      %2483 = vmatprep.subr.mxu0 0.0
      %2484 = vmatpush1.msra.mxu0 0.0
      %2485 = vmatprep.subr.mxu0 0.0
      %2486 = vmatpush1.msra.mxu0 0.0
      %2487 = vmatprep.subr.mxu0 0.0
      %2488 = vmatpush1.msra.mxu0 0.0
      %2489 = vmatprep.subr.mxu0 0.0
      %2490 = vmatpush1.msra.mxu0 0.0
      %2491 = vmatprep.subr.mxu0 0.0
      %2492 = vmatpush1.msra.mxu0 0.0
      %2493 = vmatprep.subr.mxu0 0.0
      %2494 = vmatpush1.msra.mxu0 0.0
      %2495 = vmatprep.subr.mxu0 0.0
      %2496 = vmatpush1.msra.mxu0 0.0
      %2497 = vmatprep.subr.mxu0 0.0
      %2498 = vmatpush1.msra.mxu0 0.0
      %2499 = vmatprep.subr.mxu0 0.0
      %2500 = vmatpush1.msra.mxu0 0.0
      %2501 = vmatprep.subr.mxu0 0.0
      %2502 = vmatpush1.msra.mxu0 0.0
      %2503 = vmatprep.subr.mxu0 0.0
      %2504 = vmatpush1.msra.mxu0 0.0
      %2505 = vmatprep.subr.mxu0 0.0
      %2506 = vmatpush1.msra.mxu0 0.0
      %2507 = vmatprep.subr.mxu0 0.0
      %2508 = vmatpush1.msra.mxu0 0.0
      %2509 = vmatprep.subr.mxu0 0.0
      %2510 = vmatpush1.msra.mxu0 0.0
      %2511 = vmatprep.subr.mxu0 0.0
      %2512 = vmatpush1.msra.mxu0 0.0
      %2513 = vmatprep.subr.mxu0 0.0
      %2514 = vmatpush1.msra.mxu0 0.0
      %2515 = vmatprep.subr.mxu0 0.0
      %2516 = vmatpush1.msra.mxu0 0.0
      %2517 = vmatprep.mubr.f32.mxu0 0.0
      %2518 = vmatmul.mubr.f32.gmra.mrb[0].mxu0 %v2430
      %v2519 = vpop.f32.mrb[0].mxu0
      %v2520 = vadd.f32 %v2391, %v2519
      %v2521 = vpop.f32.mrb[0].mxu0
      %v2522 = vadd.f32 %v2391, %v2521
      %2523 = vmatprep.mubr.f32.mxu0 0.0
      %2524 = vmatmul.mubr.f32.gmra.mrb[0].mxu0 %v2433
      %v2525 = vpop.f32.mrb[0].mxu0
      %v2526 = vadd.f32 %v2396, %v2525
      %v2527 = vpop.f32.mrb[0].mxu0
      %v2528 = vadd.f32 %v2396, %v2527
      %2529 = vmatprep.mubr.f32.mxu0 0.0
      %2530 = vmatmul.mubr.f32.gmra.mrb[0].mxu0 %v2436
      %v2531 = vpop.f32.mrb[0].mxu0
      %v2532 = vadd.f32 %v2401, %v2531
      %v2533 = vpop.f32.mrb[0].mxu0
      %v2534 = vadd.f32 %v2401, %v2533
      %2535 = vmatprep.mubr.f32.mxu0 0.0
      %2536 = vmatmul.mubr.f32.gmra.mrb[0].mxu0 %v2439
      %v2537 = vpop.f32.mrb[0].mxu0
      %v2538 = vadd.f32 %v2406, %v2537
      %v2539 = vpop.f32.mrb[0].mxu0
      %v2540 = vadd.f32 %v2406, %v2539
      %2541 = vmatprep.mubr.f32.mxu0 0.0
      %2542 = vmatmul.mubr.f32.gmra.mrb[0].mxu0 %v2442
      %v2543 = vpop.f32.mrb[0].mxu0
      %v2544 = vadd.f32 %v2411, %v2543
      %v2545 = vpop.f32.mrb[0].mxu0
      %v2546 = vadd.f32 %v2411, %v2545
      %2547 = vmatprep.mubr.f32.mxu0 0.0
      %2548 = vmatmul.mubr.f32.gmra.mrb[0].mxu0 %v2445
      %v2549 = vpop.f32.mrb[0].mxu0
      %v2550 = vadd.f32 %v2416, %v2549
      %v2551 = vpop.f32.mrb[0].mxu0
      %v2552 = vadd.f32 %v2416, %v2551
      %2553 = vmatprep.mubr.f32.mxu0 0.0
      %2554 = vmatmul.mubr.f32.gmra.mrb[0].mxu0 %v2448
      %v2555 = vpop.f32.mrb[0].mxu0
      %v2556 = vadd.f32 %v2421, %v2555
      %v2557 = vpop.f32.mrb[0].mxu0
      %v2558 = vadd.f32 %v2421, %v2557
      %2559 = vmatprep.mubr.f32.mxu0 0.0
      %2560 = vmatmul.mubr.f32.gmra.mrb[0].mxu0 %v2451
      %v2561 = vpop.f32.mrb[0].mxu0
      %v2562 = vadd.f32 %v2426, %v2561
      %v2563 = vpop.f32.mrb[0].mxu0
      %v2564 = vadd.f32 %v2426, %v2563
      %2565 = vdwg.mxu0
      %2566 = vmatprep.subr.mxu0 %v2356
      %2567 = vmatpush1.msra.mxu0 %v2354
      %2568 = vmatprep.subr.mxu0 %v2360
      %2569 = vmatpush1.msra.mxu0 %v2358
      %2570 = vmatprep.subr.mxu0 %v2366
      %2571 = vmatpush1.msra.mxu0 %v2364
      %2572 = vmatprep.subr.mxu0 %v2370
      %2573 = vmatpush1.msra.mxu0 %v2368
      %2574 = vmatprep.subr.mxu0 0.0
      %2575 = vmatpush1.msra.mxu0 0.0
      %2576 = vmatprep.subr.mxu0 0.0
      %2577 = vmatpush1.msra.mxu0 0.0
      %2578 = vmatprep.subr.mxu0 0.0
      %2579 = vmatpush1.msra.mxu0 0.0
      %2580 = vmatprep.subr.mxu0 0.0
      %2581 = vmatpush1.msra.mxu0 0.0
      %2582 = vmatprep.subr.mxu0 0.0
      %2583 = vmatpush1.msra.mxu0 0.0
      %2584 = vmatprep.subr.mxu0 0.0
      %2585 = vmatpush1.msra.mxu0 0.0
      %2586 = vmatprep.subr.mxu0 0.0
      %2587 = vmatpush1.msra.mxu0 0.0
      %2588 = vmatprep.subr.mxu0 0.0
      %2589 = vmatpush1.msra.mxu0 0.0
      %2590 = vmatprep.subr.mxu0 0.0
      %2591 = vmatpush1.msra.mxu0 0.0
      %2592 = vmatprep.subr.mxu0 0.0
      %2593 = vmatpush1.msra.mxu0 0.0
      %2594 = vmatprep.subr.mxu0 0.0
      %2595 = vmatpush1.msra.mxu0 0.0
      %2596 = vmatprep.subr.mxu0 0.0
      %2597 = vmatpush1.msra.mxu0 0.0
      %2598 = vmatprep.subr.mxu0 0.0
      %2599 = vmatpush1.msra.mxu0 0.0
      %2600 = vmatprep.subr.mxu0 0.0
      %2601 = vmatpush1.msra.mxu0 0.0
      %2602 = vmatprep.subr.mxu0 0.0
      %2603 = vmatpush1.msra.mxu0 0.0
      %2604 = vmatprep.subr.mxu0 0.0
      %2605 = vmatpush1.msra.mxu0 0.0
      %2606 = vmatprep.subr.mxu0 0.0
      %2607 = vmatpush1.msra.mxu0 0.0
      %2608 = vmatprep.subr.mxu0 0.0
      %2609 = vmatpush1.msra.mxu0 0.0
      %2610 = vmatprep.subr.mxu0 0.0
      %2611 = vmatpush1.msra.mxu0 0.0
      %2612 = vmatprep.subr.mxu0 0.0
      %2613 = vmatpush1.msra.mxu0 0.0
      %2614 = vmatprep.subr.mxu0 0.0
      %2615 = vmatpush1.msra.mxu0 0.0
      %2616 = vmatprep.subr.mxu0 0.0
      %2617 = vmatpush1.msra.mxu0 0.0
      %2618 = vmatprep.subr.mxu0 0.0
      %2619 = vmatpush1.msra.mxu0 0.0
      %2620 = vmatprep.subr.mxu0 0.0
      %2621 = vmatpush1.msra.mxu0 0.0
      %2622 = vmatprep.subr.mxu0 0.0
      %2623 = vmatpush1.msra.mxu0 0.0
      %2624 = vmatprep.subr.mxu0 0.0
      %2625 = vmatpush1.msra.mxu0 0.0
      %2626 = vmatprep.subr.mxu0 0.0
      %2627 = vmatpush1.msra.mxu0 0.0
      %2628 = vmatprep.subr.mxu0 0.0
      %2629 = vmatpush1.msra.mxu0 0.0
      %2630 = vmatprep.mubr.f32.mxu0 0.0
      %2631 = vmatmul.mubr.f32.gmra.mrb[0].mxu0 %v2430
      %v2632 = vpop.f32.mrb[0].mxu0
      %v2633 = vadd.f32 %v2391, %v2632
      %v2634 = vpop.f32.mrb[0].mxu0
      %v2635 = vadd.f32 %v2391, %v2634
      %2636 = vmatprep.mubr.f32.mxu0 0.0
      %2637 = vmatmul.mubr.f32.gmra.mrb[0].mxu0 %v2433
      %v2638 = vpop.f32.mrb[0].mxu0
      %v2639 = vadd.f32 %v2396, %v2638
      %v2640 = vpop.f32.mrb[0].mxu0
      %v2641 = vadd.f32 %v2396, %v2640
      %2642 = vmatprep.mubr.f32.mxu0 0.0
      %2643 = vmatmul.mubr.f32.gmra.mrb[0].mxu0 %v2436
      %v2644 = vpop.f32.mrb[0].mxu0
      %v2645 = vadd.f32 %v2401, %v2644
      %v2646 = vpop.f32.mrb[0].mxu0
      %v2647 = vadd.f32 %v2401, %v2646
      %2648 = vmatprep.mubr.f32.mxu0 0.0
      %2649 = vmatmul.mubr.f32.gmra.mrb[0].mxu0 %v2439
      %v2650 = vpop.f32.mrb[0].mxu0
      %v2651 = vadd.f32 %v2406, %v2650
      %v2652 = vpop.f32.mrb[0].mxu0
      %v2653 = vadd.f32 %v2406, %v2652
      %2654 = vmatprep.mubr.f32.mxu0 0.0
      %2655 = vmatmul.mubr.f32.gmra.mrb[0].mxu0 %v2442
      %v2656 = vpop.f32.mrb[0].mxu0
      %v2657 = vadd.f32 %v2411, %v2656
      %v2658 = vpop.f32.mrb[0].mxu0
      %v2659 = vadd.f32 %v2411, %v2658
      %2660 = vmatprep.mubr.f32.mxu0 0.0
      %2661 = vmatmul.mubr.f32.gmra.mrb[0].mxu0 %v2445
      %v2662 = vpop.f32.mrb[0].mxu0
      %v2663 = vadd.f32 %v2416, %v2662
      %v2664 = vpop.f32.mrb[0].mxu0
      %v2665 = vadd.f32 %v2416, %v2664
      %2666 = vmatprep.mubr.f32.mxu0 0.0
      %2667 = vmatmul.mubr.f32.gmra.mrb[0].mxu0 %v2448
      %v2668 = vpop.f32.mrb[0].mxu0
      %v2669 = vadd.f32 %v2421, %v2668
      %v2670 = vpop.f32.mrb[0].mxu0
      %v2671 = vadd.f32 %v2421, %v2670
      %2672 = vmatprep.mubr.f32.mxu0 0.0
      %2673 = vmatmul.mubr.f32.gmra.mrb[0].mxu0 %v2451
      %v2674 = vpop.f32.mrb[0].mxu0
      %v2675 = vadd.f32 %v2426, %v2674
      %v2676 = vpop.f32.mrb[0].mxu0
      %v2677 = vadd.f32 %v2426, %v2676
      %2678 = vdwg.mxu0
      %v2679 = vmax.f32 %v2520, 0.0
      %v2680 = vmax.f32 %v2522, 0.0
      %v2681 = vmax.f32 %v2633, 0.0
      %v2682 = vmax.f32 %v2635, 0.0
      %v2683 = vmax.f32 %v2526, 0.0
      %v2684 = vmax.f32 %v2528, 0.0
      %v2685 = vmax.f32 %v2639, 0.0
      %v2686 = vmax.f32 %v2641, 0.0
      %v2687 = vmax.f32 %v2532, 0.0
      %v2688 = vmax.f32 %v2534, 0.0
      %v2689 = vmax.f32 %v2645, 0.0
      %v2690 = vmax.f32 %v2647, 0.0
      %v2691 = vmax.f32 %v2538, 0.0
      %v2692 = vmax.f32 %v2540, 0.0
      %v2693 = vmax.f32 %v2651, 0.0
      %v2694 = vmax.f32 %v2653, 0.0
      %v2695 = vmax.f32 %v2544, 0.0
      %v2696 = vmax.f32 %v2546, 0.0
      %v2697 = vmax.f32 %v2657, 0.0
      %v2698 = vmax.f32 %v2659, 0.0
      %v2699 = vmax.f32 %v2550, 0.0
      %v2700 = vmax.f32 %v2552, 0.0
      %v2701 = vmax.f32 %v2663, 0.0
      %v2702 = vmax.f32 %v2665, 0.0
      %v2703 = vmax.f32 %v2556, 0.0
      %v2704 = vmax.f32 %v2558, 0.0
      %v2705 = vmax.f32 %v2669, 0.0
      %v2706 = vmax.f32 %v2671, 0.0
      %v2707 = vmax.f32 %v2562, 0.0
      %v2708 = vmax.f32 %v2564, 0.0
      %v2709 = vmax.f32 %v2675, 0.0
      %v2710 = vmax.f32 %v2677, 0.0
      %v2711 = vand.u32 2147483647, %v2520
      %v2712 = vand.u32 2147483647, %v2522
      %v2713 = vand.u32 2147483647, %v2633
      %v2714 = vand.u32 2147483647, %v2635
      %v2715 = vand.u32 2147483647, %v2526
      %v2716 = vand.u32 2147483647, %v2528
      %v2717 = vand.u32 2147483647, %v2639
      %v2718 = vand.u32 2147483647, %v2641
      %v2719 = vand.u32 2147483647, %v2532
      %v2720 = vand.u32 2147483647, %v2534
      %v2721 = vand.u32 2147483647, %v2645
      %v2722 = vand.u32 2147483647, %v2647
      %v2723 = vand.u32 2147483647, %v2538
      %v2724 = vand.u32 2147483647, %v2540
      %v2725 = vand.u32 2147483647, %v2651
      %v2726 = vand.u32 2147483647, %v2653
      %v2727 = vand.u32 2147483647, %v2544
      %v2728 = vand.u32 2147483647, %v2546
      %v2729 = vand.u32 2147483647, %v2657
      %v2730 = vand.u32 2147483647, %v2659
      %v2731 = vand.u32 2147483647, %v2550
      %v2732 = vand.u32 2147483647, %v2552
      %v2733 = vand.u32 2147483647, %v2663
      %v2734 = vand.u32 2147483647, %v2665
      %v2735 = vand.u32 2147483647, %v2556
      %v2736 = vand.u32 2147483647, %v2558
      %v2737 = vand.u32 2147483647, %v2669
      %v2738 = vand.u32 2147483647, %v2671
      %v2739 = vand.u32 2147483647, %v2562
      %v2740 = vand.u32 2147483647, %v2564
      %v2741 = vand.u32 2147483647, %v2675
      %v2742 = vand.u32 2147483647, %v2677
      %v2743 = vsub.f32 0.0, %v2711
      %v2744 = vsub.f32 0.0, %v2712
      %v2745 = vsub.f32 0.0, %v2713
      %v2746 = vsub.f32 0.0, %v2714
      %v2747 = vsub.f32 0.0, %v2715
      %v2748 = vsub.f32 0.0, %v2716
      %v2749 = vsub.f32 0.0, %v2717
      %v2750 = vsub.f32 0.0, %v2718
      %v2751 = vsub.f32 0.0, %v2719
      %v2752 = vsub.f32 0.0, %v2720
      %v2753 = vsub.f32 0.0, %v2721
      %v2754 = vsub.f32 0.0, %v2722
      %v2755 = vsub.f32 0.0, %v2723
      %v2756 = vsub.f32 0.0, %v2724
      %v2757 = vsub.f32 0.0, %v2725
      %v2758 = vsub.f32 0.0, %v2726
      %v2759 = vsub.f32 0.0, %v2727
      %v2760 = vsub.f32 0.0, %v2728
      %v2761 = vsub.f32 0.0, %v2729
      %v2762 = vsub.f32 0.0, %v2730
      %v2763 = vsub.f32 0.0, %v2731
      %v2764 = vsub.f32 0.0, %v2732
      %v2765 = vsub.f32 0.0, %v2733
      %v2766 = vsub.f32 0.0, %v2734
      %v2767 = vsub.f32 0.0, %v2735
      %v2768 = vsub.f32 0.0, %v2736
      %v2769 = vsub.f32 0.0, %v2737
      %v2770 = vsub.f32 0.0, %v2738
      %v2771 = vsub.f32 0.0, %v2739
      %v2772 = vsub.f32 0.0, %v2740
      %v2773 = vsub.f32 0.0, %v2741
      %v2774 = vsub.f32 0.0, %v2742
      %v2775 = vmul.f32 %v2743, 1.442695
      %v2776 = vpow.pop %v2775
      %v2777 = vmul.f32 %v2744, 1.442695
      %v2778 = vpow.pop %v2777
      %v2779 = vmul.f32 %v2745, 1.442695
      %v2780 = vpow.pop %v2779
      %v2781 = vmul.f32 %v2746, 1.442695
      %v2782 = vpow.pop %v2781
      %v2783 = vmul.f32 %v2747, 1.442695
      %v2784 = vpow.pop %v2783
      %v2785 = vmul.f32 %v2748, 1.442695
      %v2786 = vpow.pop %v2785
      %v2787 = vmul.f32 %v2749, 1.442695
      %v2788 = vpow.pop %v2787
      %v2789 = vmul.f32 %v2750, 1.442695
      %v2790 = vpow.pop %v2789
      %v2791 = vmul.f32 %v2751, 1.442695
      %v2792 = vpow.pop %v2791
      %v2793 = vmul.f32 %v2752, 1.442695
      %v2794 = vpow.pop %v2793
      %v2795 = vmul.f32 %v2753, 1.442695
      %v2796 = vpow.pop %v2795
      %v2797 = vmul.f32 %v2754, 1.442695
      %v2798 = vpow.pop %v2797
      %v2799 = vmul.f32 %v2755, 1.442695
      %v2800 = vpow.pop %v2799
      %v2801 = vmul.f32 %v2756, 1.442695
      %v2802 = vpow.pop %v2801
      %v2803 = vmul.f32 %v2757, 1.442695
      %v2804 = vpow.pop %v2803
      %v2805 = vmul.f32 %v2758, 1.442695
      %v2806 = vpow.pop %v2805
      %v2807 = vmul.f32 %v2759, 1.442695
      %v2808 = vpow.pop %v2807
      %v2809 = vmul.f32 %v2760, 1.442695
      %v2810 = vpow.pop %v2809
      %v2811 = vmul.f32 %v2761, 1.442695
      %v2812 = vpow.pop %v2811
      %v2813 = vmul.f32 %v2762, 1.442695
      %v2814 = vpow.pop %v2813
      %v2815 = vmul.f32 %v2763, 1.442695
      %v2816 = vpow.pop %v2815
      %v2817 = vmul.f32 %v2764, 1.442695
      %v2818 = vpow.pop %v2817
      %v2819 = vmul.f32 %v2765, 1.442695
      %v2820 = vpow.pop %v2819
      %v2821 = vmul.f32 %v2766, 1.442695
      %v2822 = vpow.pop %v2821
      %v2823 = vmul.f32 %v2767, 1.442695
      %v2824 = vpow.pop %v2823
      %v2825 = vmul.f32 %v2768, 1.442695
      %v2826 = vpow.pop %v2825
      %v2827 = vmul.f32 %v2769, 1.442695
      %v2828 = vpow.pop %v2827
      %v2829 = vmul.f32 %v2770, 1.442695
      %v2830 = vpow.pop %v2829
      %v2831 = vmul.f32 %v2771, 1.442695
      %v2832 = vpow.pop %v2831
      %v2833 = vmul.f32 %v2772, 1.442695
      %v2834 = vpow.pop %v2833
      %v2835 = vmul.f32 %v2773, 1.442695
      %v2836 = vpow.pop %v2835
      %v2837 = vmul.f32 %v2774, 1.442695
      %v2838 = vpow.pop %v2837
      %v2839 = vadd.f32 %v2776, 1.0
      %v2840 = vadd.f32 %v2778, 1.0
      %v2841 = vadd.f32 %v2780, 1.0
      %v2842 = vadd.f32 %v2782, 1.0
      %v2843 = vadd.f32 %v2784, 1.0
      %v2844 = vadd.f32 %v2786, 1.0
      %v2845 = vadd.f32 %v2788, 1.0
      %v2846 = vadd.f32 %v2790, 1.0
      %v2847 = vadd.f32 %v2792, 1.0
      %v2848 = vadd.f32 %v2794, 1.0
      %v2849 = vadd.f32 %v2796, 1.0
      %v2850 = vadd.f32 %v2798, 1.0
      %v2851 = vadd.f32 %v2800, 1.0
      %v2852 = vadd.f32 %v2802, 1.0
      %v2853 = vadd.f32 %v2804, 1.0
      %v2854 = vadd.f32 %v2806, 1.0
      %v2855 = vadd.f32 %v2808, 1.0
      %v2856 = vadd.f32 %v2810, 1.0
      %v2857 = vadd.f32 %v2812, 1.0
      %v2858 = vadd.f32 %v2814, 1.0
      %v2859 = vadd.f32 %v2816, 1.0
      %v2860 = vadd.f32 %v2818, 1.0
      %v2861 = vadd.f32 %v2820, 1.0
      %v2862 = vadd.f32 %v2822, 1.0
      %v2863 = vadd.f32 %v2824, 1.0
      %v2864 = vadd.f32 %v2826, 1.0
      %v2865 = vadd.f32 %v2828, 1.0
      %v2866 = vadd.f32 %v2830, 1.0
      %v2867 = vadd.f32 %v2832, 1.0
      %v2868 = vadd.f32 %v2834, 1.0
      %v2869 = vadd.f32 %v2836, 1.0
      %v2870 = vadd.f32 %v2838, 1.0
      %v2871 = vlog2.pop %v2839
      %v2872 = vmul.f32 %v2871, 0.6931472
      %v2873 = vlog2.pop %v2840
      %v2874 = vmul.f32 %v2873, 0.6931472
      %v2875 = vlog2.pop %v2841
      %v2876 = vmul.f32 %v2875, 0.6931472
      %v2877 = vlog2.pop %v2842
      %v2878 = vmul.f32 %v2877, 0.6931472
      %v2879 = vlog2.pop %v2843
      %v2880 = vmul.f32 %v2879, 0.6931472
      %v2881 = vlog2.pop %v2844
      %v2882 = vmul.f32 %v2881, 0.6931472
      %v2883 = vlog2.pop %v2845
      %v2884 = vmul.f32 %v2883, 0.6931472
      %v2885 = vlog2.pop %v2846
      %v2886 = vmul.f32 %v2885, 0.6931472
      %v2887 = vlog2.pop %v2847
      %v2888 = vmul.f32 %v2887, 0.6931472
      %v2889 = vlog2.pop %v2848
      %v2890 = vmul.f32 %v2889, 0.6931472
      %v2891 = vlog2.pop %v2849
      %v2892 = vmul.f32 %v2891, 0.6931472
      %v2893 = vlog2.pop %v2850
      %v2894 = vmul.f32 %v2893, 0.6931472
      %v2895 = vlog2.pop %v2851
      %v2896 = vmul.f32 %v2895, 0.6931472
      %v2897 = vlog2.pop %v2852
      %v2898 = vmul.f32 %v2897, 0.6931472
      %v2899 = vlog2.pop %v2853
      %v2900 = vmul.f32 %v2899, 0.6931472
      %v2901 = vlog2.pop %v2854
      %v2902 = vmul.f32 %v2901, 0.6931472
      %v2903 = vlog2.pop %v2855
      %v2904 = vmul.f32 %v2903, 0.6931472
      %v2905 = vlog2.pop %v2856
      %v2906 = vmul.f32 %v2905, 0.6931472
      %v2907 = vlog2.pop %v2857
      %v2908 = vmul.f32 %v2907, 0.6931472
      %v2909 = vlog2.pop %v2858
      %v2910 = vmul.f32 %v2909, 0.6931472
      %v2911 = vlog2.pop %v2859
      %v2912 = vmul.f32 %v2911, 0.6931472
      %v2913 = vlog2.pop %v2860
      %v2914 = vmul.f32 %v2913, 0.6931472
      %v2915 = vlog2.pop %v2861
      %v2916 = vmul.f32 %v2915, 0.6931472
      %v2917 = vlog2.pop %v2862
      %v2918 = vmul.f32 %v2917, 0.6931472
      %v2919 = vlog2.pop %v2863
      %v2920 = vmul.f32 %v2919, 0.6931472
      %v2921 = vlog2.pop %v2864
      %v2922 = vmul.f32 %v2921, 0.6931472
      %v2923 = vlog2.pop %v2865
      %v2924 = vmul.f32 %v2923, 0.6931472
      %v2925 = vlog2.pop %v2866
      %v2926 = vmul.f32 %v2925, 0.6931472
      %v2927 = vlog2.pop %v2867
      %v2928 = vmul.f32 %v2927, 0.6931472
      %v2929 = vlog2.pop %v2868
      %v2930 = vmul.f32 %v2929, 0.6931472
      %v2931 = vlog2.pop %v2869
      %v2932 = vmul.f32 %v2931, 0.6931472
      %v2933 = vlog2.pop %v2870
      %v2934 = vmul.f32 %v2933, 0.6931472
      %v2935 = vadd.f32 %v2679, %v2872
      %v2936 = vadd.f32 %v2680, %v2874
      %v2937 = vadd.f32 %v2681, %v2876
      %v2938 = vadd.f32 %v2682, %v2878
      %v2939 = vadd.f32 %v2683, %v2880
      %v2940 = vadd.f32 %v2684, %v2882
      %v2941 = vadd.f32 %v2685, %v2884
      %v2942 = vadd.f32 %v2686, %v2886
      %v2943 = vadd.f32 %v2687, %v2888
      %v2944 = vadd.f32 %v2688, %v2890
      %v2945 = vadd.f32 %v2689, %v2892
      %v2946 = vadd.f32 %v2690, %v2894
      %v2947 = vadd.f32 %v2691, %v2896
      %v2948 = vadd.f32 %v2692, %v2898
      %v2949 = vadd.f32 %v2693, %v2900
      %v2950 = vadd.f32 %v2694, %v2902
      %v2951 = vadd.f32 %v2695, %v2904
      %v2952 = vadd.f32 %v2696, %v2906
      %v2953 = vadd.f32 %v2697, %v2908
      %v2954 = vadd.f32 %v2698, %v2910
      %v2955 = vadd.f32 %v2699, %v2912
      %v2956 = vadd.f32 %v2700, %v2914
      %v2957 = vadd.f32 %v2701, %v2916
      %v2958 = vadd.f32 %v2702, %v2918
      %v2959 = vadd.f32 %v2703, %v2920
      %v2960 = vadd.f32 %v2704, %v2922
      %v2961 = vadd.f32 %v2705, %v2924
      %v2962 = vadd.f32 %v2706, %v2926
      %v2963 = vadd.f32 %v2707, %v2928
      %v2964 = vadd.f32 %v2708, %v2930
      %v2965 = vadd.f32 %v2709, %v2932
      %v2966 = vadd.f32 %v2710, %v2934
      %v2967 = vld [vmem:[%s4] sm:$0xf]
      %v2968 = vld [vmem:[%s5] sm:$0xf]
      %2970 = vset.pattern.permute.xlu0 0
      %2971 = vperm.xlu0 %2970, %v2968
      %v2972 = vpop.permute.xlu0 %2971
      %vm2974 = vcmask 523264
      %v2976 = vsel %vm2974, %v2967, 0
      %2978 = vmatprep.subr.mxu0 %v2936
      %2979 = vmatpush1.msra.mxu0 %v2935
      %2980 = vmatprep.subr.mxu0 %v2940
      %2981 = vmatpush1.msra.mxu0 %v2939
      %2982 = vmatprep.subr.mxu0 %v2944
      %2983 = vmatpush1.msra.mxu0 %v2943
      %2984 = vmatprep.subr.mxu0 %v2948
      %2985 = vmatpush1.msra.mxu0 %v2947
      %2986 = vmatprep.subr.mxu0 %v2952
      %2987 = vmatpush1.msra.mxu0 %v2951
      %2988 = vmatprep.subr.mxu0 %v2956
      %2989 = vmatpush1.msra.mxu0 %v2955
      %2990 = vmatprep.subr.mxu0 %v2960
      %2991 = vmatpush1.msra.mxu0 %v2959
      %2992 = vmatprep.subr.mxu0 %v2964
      %2993 = vmatpush1.msra.mxu0 %v2963
      %2994 = vmatprep.subr.mxu0 0.0
      %2995 = vmatpush1.msra.mxu0 0.0
      %2996 = vmatprep.subr.mxu0 0.0
      %2997 = vmatpush1.msra.mxu0 0.0
      %2998 = vmatprep.subr.mxu0 0.0
      %2999 = vmatpush1.msra.mxu0 0.0
      %3000 = vmatprep.subr.mxu0 0.0
      %3001 = vmatpush1.msra.mxu0 0.0
      %3002 = vmatprep.subr.mxu0 0.0
      %3003 = vmatpush1.msra.mxu0 0.0
      %3004 = vmatprep.subr.mxu0 0.0
      %3005 = vmatpush1.msra.mxu0 0.0
      %3006 = vmatprep.subr.mxu0 0.0
      %3007 = vmatpush1.msra.mxu0 0.0
      %3008 = vmatprep.subr.mxu0 0.0
      %3009 = vmatpush1.msra.mxu0 0.0
      %3010 = vmatprep.subr.mxu0 0.0
      %3011 = vmatpush1.msra.mxu0 0.0
      %3012 = vmatprep.subr.mxu0 0.0
      %3013 = vmatpush1.msra.mxu0 0.0
      %3014 = vmatprep.subr.mxu0 0.0
      %3015 = vmatpush1.msra.mxu0 0.0
      %3016 = vmatprep.subr.mxu0 0.0
      %3017 = vmatpush1.msra.mxu0 0.0
      %3018 = vmatprep.subr.mxu0 0.0
      %3019 = vmatpush1.msra.mxu0 0.0
      %3020 = vmatprep.subr.mxu0 0.0
      %3021 = vmatpush1.msra.mxu0 0.0
      %3022 = vmatprep.subr.mxu0 0.0
      %3023 = vmatpush1.msra.mxu0 0.0
      %3024 = vmatprep.subr.mxu0 0.0
      %3025 = vmatpush1.msra.mxu0 0.0
      %3026 = vmatprep.subr.mxu0 0.0
      %3027 = vmatpush1.msra.mxu0 0.0
      %3028 = vmatprep.subr.mxu0 0.0
      %3029 = vmatpush1.msra.mxu0 0.0
      %3030 = vmatprep.subr.mxu0 0.0
      %3031 = vmatpush1.msra.mxu0 0.0
      %3032 = vmatprep.subr.mxu0 0.0
      %3033 = vmatpush1.msra.mxu0 0.0
      %3034 = vmatprep.subr.mxu0 0.0
      %3035 = vmatpush1.msra.mxu0 0.0
      %3036 = vmatprep.subr.mxu0 0.0
      %3037 = vmatpush1.msra.mxu0 0.0
      %3038 = vmatprep.subr.mxu0 0.0
      %3039 = vmatpush1.msra.mxu0 0.0
      %3040 = vmatprep.subr.mxu0 0.0
      %3041 = vmatpush1.msra.mxu0 0.0
      %3042 = vmatprep.mubr.f32.mxu0 0.0
      %3043 = vmatmul.mubr.f32.gmra.mrb[0].mxu0 %v2976
      %v3044 = vpop.f32.mrb[0].mxu0
      %v3045 = vadd.f32 %v2972, %v3044
      %v3046 = vpop.f32.mrb[0].mxu0
      %v3047 = vadd.f32 %v2972, %v3046
      %3048 = vdwg.mxu0
      %3049 = vmatprep.subr.mxu0 %v2938
      %3050 = vmatpush1.msra.mxu0 %v2937
      %3051 = vmatprep.subr.mxu0 %v2942
      %3052 = vmatpush1.msra.mxu0 %v2941
      %3053 = vmatprep.subr.mxu0 %v2946
      %3054 = vmatpush1.msra.mxu0 %v2945
      %3055 = vmatprep.subr.mxu0 %v2950
      %3056 = vmatpush1.msra.mxu0 %v2949
      %3057 = vmatprep.subr.mxu0 %v2954
      %3058 = vmatpush1.msra.mxu0 %v2953
      %3059 = vmatprep.subr.mxu0 %v2958
      %3060 = vmatpush1.msra.mxu0 %v2957
      %3061 = vmatprep.subr.mxu0 %v2962
      %3062 = vmatpush1.msra.mxu0 %v2961
      %3063 = vmatprep.subr.mxu0 %v2966
      %3064 = vmatpush1.msra.mxu0 %v2965
      %3065 = vmatprep.subr.mxu0 0.0
      %3066 = vmatpush1.msra.mxu0 0.0
      %3067 = vmatprep.subr.mxu0 0.0
      %3068 = vmatpush1.msra.mxu0 0.0
      %3069 = vmatprep.subr.mxu0 0.0
      %3070 = vmatpush1.msra.mxu0 0.0
      %3071 = vmatprep.subr.mxu0 0.0
      %3072 = vmatpush1.msra.mxu0 0.0
      %3073 = vmatprep.subr.mxu0 0.0
      %3074 = vmatpush1.msra.mxu0 0.0
      %3075 = vmatprep.subr.mxu0 0.0
      %3076 = vmatpush1.msra.mxu0 0.0
      %3077 = vmatprep.subr.mxu0 0.0
      %3078 = vmatpush1.msra.mxu0 0.0
      %3079 = vmatprep.subr.mxu0 0.0
      %3080 = vmatpush1.msra.mxu0 0.0
      %3081 = vmatprep.subr.mxu0 0.0
      %3082 = vmatpush1.msra.mxu0 0.0
      %3083 = vmatprep.subr.mxu0 0.0
      %3084 = vmatpush1.msra.mxu0 0.0
      %3085 = vmatprep.subr.mxu0 0.0
      %3086 = vmatpush1.msra.mxu0 0.0
      %3087 = vmatprep.subr.mxu0 0.0
      %3088 = vmatpush1.msra.mxu0 0.0
      %3089 = vmatprep.subr.mxu0 0.0
      %3090 = vmatpush1.msra.mxu0 0.0
      %3091 = vmatprep.subr.mxu0 0.0
      %3092 = vmatpush1.msra.mxu0 0.0
      %3093 = vmatprep.subr.mxu0 0.0
      %3094 = vmatpush1.msra.mxu0 0.0
      %3095 = vmatprep.subr.mxu0 0.0
      %3096 = vmatpush1.msra.mxu0 0.0
      %3097 = vmatprep.subr.mxu0 0.0
      %3098 = vmatpush1.msra.mxu0 0.0
      %3099 = vmatprep.subr.mxu0 0.0
      %3100 = vmatpush1.msra.mxu0 0.0
      %3101 = vmatprep.subr.mxu0 0.0
      %3102 = vmatpush1.msra.mxu0 0.0
      %3103 = vmatprep.subr.mxu0 0.0
      %3104 = vmatpush1.msra.mxu0 0.0
      %3105 = vmatprep.subr.mxu0 0.0
      %3106 = vmatpush1.msra.mxu0 0.0
      %3107 = vmatprep.subr.mxu0 0.0
      %3108 = vmatpush1.msra.mxu0 0.0
      %3109 = vmatprep.subr.mxu0 0.0
      %3110 = vmatpush1.msra.mxu0 0.0
      %3111 = vmatprep.subr.mxu0 0.0
      %3112 = vmatpush1.msra.mxu0 0.0
      %3113 = vmatprep.mubr.f32.mxu0 0.0
      %3114 = vmatmul.mubr.f32.gmra.mrb[0].mxu0 %v2976
      %v3115 = vpop.f32.mrb[0].mxu0
      %v3116 = vadd.f32 %v2972, %v3115
      %v3117 = vpop.f32.mrb[0].mxu0
      %v3118 = vadd.f32 %v2972, %v3117
      %3119 = vdwg.mxu0
      %vm3120 = vcmp.eq.s32.totalorder %v334, 0
      %v3121 = vsub.f32 0.0, %v3045
      %v3122 = vsub.f32 0.0, %v3047
      %v3123 = vsub.f32 0.0, %v3116
      %v3124 = vsub.f32 0.0, %v3118
      %v3125 = vmul.f32 %v3121, 1.442695
      %v3126 = vpow.pop %v3125
      %v3127 = vmul.f32 %v3122, 1.442695
      %v3128 = vpow.pop %v3127
      %v3129 = vmul.f32 %v3123, 1.442695
      %v3130 = vpow.pop %v3129
      %v3131 = vmul.f32 %v3124, 1.442695
      %v3132 = vpow.pop %v3131
      %v3133 = vadd.f32 %v3126, 1.0
      %v3134 = vadd.f32 %v3128, 1.0
      %v3135 = vadd.f32 %v3130, 1.0
      %v3136 = vadd.f32 %v3132, 1.0
      %v3137 = vrcp.pop %v3133
      %v3138 = vrcp.pop %v3134
      %v3139 = vrcp.pop %v3135
      %v3140 = vrcp.pop %v3136
      %v3141 = vmul.f32 %v3137, 1.002
      %v3142 = vmul.f32 %v3138, 1.002
      %v3143 = vmul.f32 %v3139, 1.002
      %v3144 = vmul.f32 %v3140, 1.002
      %v3145 = vsub.f32 %v3141, 0.001
      %v3146 = vsub.f32 %v3142, 0.001
      %v3147 = vsub.f32 %v3143, 0.001
      %v3148 = vsub.f32 %v3144, 0.001
      %v3149 = vsel %vm3120, %v3045, %v3145
      %v3150 = vsel %vm3120, %v3047, %v3146
      %v3151 = vsel %vm3120, %v3116, %v3147
      %v3152 = vsel %vm3120, %v3118, %v3148
      %v3157 = vcombine.low %v3149, %v3150
      %v3158 = vcombine.low %v3151, %v3152
      %3161 = vst [vmem:[%s309] sm:$0xff] %v3157
      %3162 = vst [vmem:[%s309 + $0x8] sm:$0xff] %v3158
      %s3163 = smul.u32 4, %s22
      %p3164 = scmp.lt.s32.totalorder %s21, 1
      %s3165 = scalar_select %p3164, %s21, 1
      %p3166 = scmp.lt.s32.totalorder %s3163, 7
      %s3167 = scalar_select %p3166, %s3163, 7
      %s3168 = smul.addr %s3165, 8
      %s3169 = sadd.s32 %s3167, %s3168
      %s3170 = smul.addr %s3169, 4
      %s3171 = scalar_lea.vmem %s6, %s3170
      // Predicated region
      $region45: #{forward.4} parent=43 // pred_check
        %p3172 = pneg %p187
      $region46: #{forward.4} parent=43 // pred_check_branch
        %3174 = sbr.rel (%p3172) target = $region48
      $region47: #{forward.4} parent=43 // pred_region
        %s3175 = smul.u32 4, %s22
      $region48: #{forward.4} parent=43 // pred_fallthru
        _
    $region44: #{forward.4} parent=5 // pred_fallthru
      _
    %p3176 = scmp.le.s32.totalorder 2, %s12
    // Predicated region
    $region49: #{forward.4} parent=5 // pred_check
      %p3177 = pneg %p3176
    $region50: #{forward.4} parent=5 // pred_check_branch
      %3179 = sbr.rel (%p3177) target = $region52
    $region51: #{forward.4} parent=5 // pred_region
      %s3180 = ssub.s32 %s12, 2
      // Predicated region
      $region53: #{forward.4} parent=51 // pred_check
        %p3181 = pneg %p193
      $region54: #{forward.4} parent=51 // pred_check_branch
        %3183 = sbr.rel (%p3181) target = $region56
      $region55: #{forward.4} parent=51 // pred_region
        %s3184 = smul.u32 4, %s24
        %p3185 = scmp.lt.s32.totalorder %s23, 1
        %s3186 = scalar_select %p3185, %s23, 1
        %p3187 = scmp.lt.s32.totalorder %s3184, 7
        %s3188 = scalar_select %p3187, %s3184, 7
        %s3189 = smul.addr %s3186, 8
        %s3190 = sadd.s32 %s3188, %s3189
        %s3191 = smul.addr %s3190, 4
        %s3192 = scalar_lea.vmem %s6, %s3191
      $region56: #{forward.4} parent=51 // pred_fallthru
        _
    $region52: #{forward.4} parent=5 // pred_fallthru
      _
  $region6: #{forward.4} parent=0 // loop_footer
    %s16 = sadd.s32 1, %s12
  $region7: #{forward.4} parent=0 // loop_footer_branch
    %11 = sbr.rel target = $region3
  $region8: #{forward.4} parent=0 // loop_exit
    _

// kernel: forward.7
$region0: #{forward.7}
  #allocation0 [shape = 'u32[]', space=smem, size = 0x4, offset = 0x4, fixed_abs, tag = 'smem constant byte address 0x4 - core index']
  #allocation1 [shape = 'u32[144,128]{1,0:T(1,128)}', space=vmem, size = 0x12000, scoped, tag = 'internal scratch']
  %s0 = inlined_call_operand.vmem [shape: f32[2,3,96,128], index: 0, kind: input, shape index: {}]
  %s1 = inlined_call_operand.vmem [shape: f32[2,96,128], index: 1, kind: input, shape index: {}]
  %s2 = inlined_call_operand.vmem [shape: f32[2,96,128], index: 2, kind: input, shape index: {}]
  %s3 = inlined_call_operand.vmem [shape: f32[95,95], index: 3, kind: input, shape index: {}]
  %s4 = inlined_call_operand.vmem [shape: f32[2,8,128], index: 4, kind: output, shape index: {0}]
  %s5 = inlined_call_operand.hbm [shape: f32[2,95,128], index: 5, kind: output, shape index: {1}]
  %6 = xla_tuple %s4, %s5
  %s7 = sld [smem:[#allocation0]]
  $region57: #{forward.7} parent=0
    _
  %s9 = ssub.s32 1, %s7
  %s10 = scalar_select 0, %s9, %s7
  $region1: #{forward.7} parent=0
    #allocation2 [shape = 'u8[98304]{0}', space=vmem, size = 0x18000, scoped, tag = 'output window, operand 1']
    #allocation3 [shape = 's32[2]{0}', space=sflag, size = 0x8, scoped, tag = 'scoped memory for forward.7']
    %11 = vsyncpa [#allocation3], 0
    %s12 = scalar_lea.sflag [#allocation3], 1
    %13 = vsyncpa %s12, 0
    loop: start=0, step=1, limit=4
    $region2: #{forward.7} parent=1 // loop_pre_header
      _
    $region3: #{forward.7} parent=1 // loop_header
      %s15 = sphi 0, %s19
      %p16 = scmp.ge.s32.totalorder %s15, 4
      %s22 = sphi 0, %s34
      %s23 = sphi 0, %s30
      %s24 = sphi 0, %s22
      %s25 = sphi 0, %s23
      %s26 = sphi 0, %s24
      %s27 = sphi 0, %s25
      %s39 = sphi 0, %s41
      %s42 = sphi 0, %s39
      %s43 = sphi 0, %s42
      %s59 = sphi 0, %s43
      %s67 = sphi 0, %s69
      %s70 = sphi 0, %s67
      %s71 = sphi 0, %s70
      %s87 = sphi 0, %s71
      %s95 = sphi 0, %s97
      %s98 = sphi 0, %s95
      %s99 = sphi 0, %s98
      %s115 = sphi 0, %s99
      %s119 = sphi 0, %s119
      %s121 = sphi 0, %s119
      %s122 = sphi 0, %s121
      %s136 = sphi 0, %s122
      %s144 = sphi 0, %s146
      %s147 = sphi 0, %s144
      %s148 = sphi 0, %s147
      %s164 = sphi 0, %s148
      %s172 = sphi 0, %s174
      %s175 = sphi 0, %s172
      %s176 = sphi 0, %s175
      %s192 = sphi 0, %s176
    $region4: #{forward.7} parent=1 // loop_header_branch
      %18 = sbr.rel (%p16) target = $region8
    $region5: #{forward.7} parent=1 // loop_body
      %s20 = ssub.s32 %s15, 1
      %s21 = ssub.s32 %s15, 2
      %s28 = sadd.s32 1, %s23
      %p29 = scmp.ge.s32.totalorder %s28, 1
      %s30 = scalar_select %p29, 0, %s28
      %s31 = sadd.s32 1, %s22
      %s32 = scalar_select %p29, %s31, %s22
      %p33 = scmp.ge.s32.totalorder %s32, 2
      %s34 = scalar_select %p33, 0, %s32
      %s35 = ssub.s32 %s22, %s34
      %s36 = ssub.s32 %s23, %s30
      %s37 = sor.u32 %s35, %s36
      %p38 = scmp.eq.s32.totalorder %s37, 0
      %s40 = sadd.s32 %s39, 1
      %s41 = scalar_select %p38, %s39, %s40
      %p44 = pneg %p38
      %p45 = scmp.eq.s32.totalorder %s15, 1
      %p46 = por %p44, %p45
      %p47 = scmp.ne.s32.totalorder %s39, %s42
      %p48 = scmp.eq.s32.totalorder %s15, 0
      %p49 = por %p47, %p48
      %p50 = scmp.ne.s32.totalorder %s39, %s42
      %p51 = scmp.eq.s32.totalorder %s20, 1
      %p52 = por %p50, %p51
      %p53 = scmp.ne.s32.totalorder %s42, %s43
      %p54 = scmp.eq.s32.totalorder %s20, 0
      %p55 = por %p53, %p54
      %p56 = scmp.ne.s32.totalorder %s42, %s43
      %p57 = scmp.eq.s32.totalorder %s21, 1
      %p58 = por %p56, %p57
      %p60 = scmp.ne.s32.totalorder %s43, %s59
      %p61 = scmp.eq.s32.totalorder %s21, 0
      %p62 = por %p60, %p61
      %s63 = ssub.s32 %s22, %s34
      %s64 = ssub.s32 %s23, %s30
      %s65 = sor.u32 %s63, %s64
      %p66 = scmp.eq.s32.totalorder %s65, 0
      %s68 = sadd.s32 %s67, 1
      %s69 = scalar_select %p66, %s67, %s68
      %p72 = pneg %p66
      %p73 = scmp.eq.s32.totalorder %s15, 1
      %p74 = por %p72, %p73
      %p75 = scmp.ne.s32.totalorder %s67, %s70
      %p76 = scmp.eq.s32.totalorder %s15, 0
      %p77 = por %p75, %p76
      %p78 = scmp.ne.s32.totalorder %s67, %s70
      %p79 = scmp.eq.s32.totalorder %s20, 1
      %p80 = por %p78, %p79
      %p81 = scmp.ne.s32.totalorder %s70, %s71
      %p82 = scmp.eq.s32.totalorder %s20, 0
      %p83 = por %p81, %p82
      %p84 = scmp.ne.s32.totalorder %s70, %s71
      %p85 = scmp.eq.s32.totalorder %s21, 1
      %p86 = por %p84, %p85
      %p88 = scmp.ne.s32.totalorder %s71, %s87
      %p89 = scmp.eq.s32.totalorder %s21, 0
      %p90 = por %p88, %p89
      %s91 = ssub.s32 %s22, %s34
      %s92 = ssub.s32 %s23, %s30
      %s93 = sor.u32 %s91, %s92
      %p94 = scmp.eq.s32.totalorder %s93, 0
      %s96 = sadd.s32 %s95, 1
      %s97 = scalar_select %p94, %s95, %s96
      %p100 = pneg %p94
      %p101 = scmp.eq.s32.totalorder %s15, 1
      %p102 = por %p100, %p101
      %p103 = scmp.ne.s32.totalorder %s95, %s98
      %p104 = scmp.eq.s32.totalorder %s15, 0
      %p105 = por %p103, %p104
      %p106 = scmp.ne.s32.totalorder %s95, %s98
      %p107 = scmp.eq.s32.totalorder %s20, 1
      %p108 = por %p106, %p107
      %p109 = scmp.ne.s32.totalorder %s98, %s99
      %p110 = scmp.eq.s32.totalorder %s20, 0
      %p111 = por %p109, %p110
      %p112 = scmp.ne.s32.totalorder %s98, %s99
      %p113 = scmp.eq.s32.totalorder %s21, 1
      %p114 = por %p112, %p113
      %p116 = scmp.ne.s32.totalorder %s99, %s115
      %p117 = scmp.eq.s32.totalorder %s21, 0
      %p118 = por %p116, %p117
      %s120 = sadd.s32 %s119, 1
      %p123 = scmp.eq.s32.totalorder %s15, 1
      %p124 = scmp.ne.s32.totalorder %s119, %s121
      %p125 = scmp.eq.s32.totalorder %s15, 0
      %p126 = por %p124, %p125
      %p127 = scmp.ne.s32.totalorder %s119, %s121
      %p128 = scmp.eq.s32.totalorder %s20, 1
      %p129 = por %p127, %p128
      %p130 = scmp.ne.s32.totalorder %s121, %s122
      %p131 = scmp.eq.s32.totalorder %s20, 0
      %p132 = por %p130, %p131
      %p133 = scmp.ne.s32.totalorder %s121, %s122
      %p134 = scmp.eq.s32.totalorder %s21, 1
      %p135 = por %p133, %p134
      %p137 = scmp.ne.s32.totalorder %s122, %s136
      %p138 = scmp.eq.s32.totalorder %s21, 0
      %p139 = por %p137, %p138
      %s140 = ssub.s32 %s22, %s34
      %s141 = ssub.s32 %s23, %s30
      %s142 = sor.u32 %s140, %s141
      %p143 = scmp.eq.s32.totalorder %s142, 0
      %s145 = sadd.s32 %s144, 1
      %s146 = scalar_select %p143, %s144, %s145
      %p149 = pneg %p143
      %p150 = scmp.eq.s32.totalorder %s15, 1
      %p151 = por %p149, %p150
      %p152 = scmp.ne.s32.totalorder %s144, %s147
      %p153 = scmp.eq.s32.totalorder %s15, 0
      %p154 = por %p152, %p153
      %p155 = scmp.ne.s32.totalorder %s144, %s147
      %p156 = scmp.eq.s32.totalorder %s20, 1
      %p157 = por %p155, %p156
      %p158 = scmp.ne.s32.totalorder %s147, %s148
      %p159 = scmp.eq.s32.totalorder %s20, 0
      %p160 = por %p158, %p159
      %p161 = scmp.ne.s32.totalorder %s147, %s148
      %p162 = scmp.eq.s32.totalorder %s21, 1
      %p163 = por %p161, %p162
      %p165 = scmp.ne.s32.totalorder %s148, %s164
      %p166 = scmp.eq.s32.totalorder %s21, 0
      %p167 = por %p165, %p166
      %s168 = ssub.s32 %s22, %s34
      %s169 = ssub.s32 %s23, %s30
      %s170 = sor.u32 %s168, %s169
      %p171 = scmp.eq.s32.totalorder %s170, 0
      %s173 = sadd.s32 %s172, 1
      %s174 = scalar_select %p171, %s172, %s173
      %p177 = pneg %p171
      %p178 = scmp.eq.s32.totalorder %s15, 1
      %p179 = por %p177, %p178
      %p180 = scmp.ne.s32.totalorder %s172, %s175
      %p181 = scmp.eq.s32.totalorder %s15, 0
      %p182 = por %p180, %p181
      %p183 = scmp.ne.s32.totalorder %s172, %s175
      %p184 = scmp.eq.s32.totalorder %s20, 1
      %p185 = por %p183, %p184
      %p186 = scmp.ne.s32.totalorder %s175, %s176
      %p187 = scmp.eq.s32.totalorder %s20, 0
      %p188 = por %p186, %p187
      %p189 = scmp.ne.s32.totalorder %s175, %s176
      %p190 = scmp.eq.s32.totalorder %s21, 1
      %p191 = por %p189, %p190
      %p193 = scmp.ne.s32.totalorder %s176, %s192
      %p194 = scmp.eq.s32.totalorder %s21, 0
      %p195 = por %p193, %p194
      %p196 = scmp.le.s32.totalorder 1, %s15
      %p197 = scmp.lt.s32.totalorder %s15, 3
      %p198 = pnand %p196, %p197
      %p199 = pneg %p198
      // Predicated region
      $region9: #{forward.7} parent=5 // pred_check
        _
      $region10: #{forward.7} parent=5 // pred_check_branch
        %201 = sbr.rel (%p198) target = $region12
      $region11: #{forward.7} parent=5 // pred_region
        %s202 = ssub.s32 %s15, 1
        // Predicated region
        $region13: #{forward.7} parent=11 // pred_check
          %p203 = pneg %p132
        $region14: #{forward.7} parent=11 // pred_check_branch
          %205 = sbr.rel (%p203) target = $region16
        $region15: #{forward.7} parent=11 // pred_region
          _
        $region16: #{forward.7} parent=11 // pred_fallthru
          _
      $region12: #{forward.7} parent=5 // pred_fallthru
        _
      %p206 = scmp.lt.s32.totalorder %s15, 2
      // Predicated region
      $region17: #{forward.7} parent=5 // pred_check
        %p207 = pneg %p206
      $region18: #{forward.7} parent=5 // pred_check_branch
        %209 = sbr.rel (%p207) target = $region20
      $region19: #{forward.7} parent=5 // pred_region
        // Predicated region
        $region21: #{forward.7} parent=19 // pred_check
          %p210 = pneg %p49
        $region22: #{forward.7} parent=19 // pred_check_branch
          %212 = sbr.rel (%p210) target = $region24
        $region23: #{forward.7} parent=19 // pred_region
          %p213 = scmp.lt.s32.totalorder %s22, 1
          %s214 = scalar_select %p213, %s22, 1
          %p215 = scmp.lt.s32.totalorder %s23, 0
          %s216 = scalar_select %p215, %s23, 0
          %s217 = smul.addr %s214, 36
          %s218 = sadd.s32 %s216, %s217
          %s219 = smul.addr %s218, 8
          %s220 = scalar_lea.vmem %s0, %s219
        $region24: #{forward.7} parent=19 // pred_fallthru
          _
        // Predicated region
        $region25: #{forward.7} parent=19 // pred_check
          %p221 = pneg %p77
        $region26: #{forward.7} parent=19 // pred_check_branch
          %223 = sbr.rel (%p221) target = $region28
        $region27: #{forward.7} parent=19 // pred_region
          %p224 = scmp.lt.s32.totalorder %s22, 1
          %s225 = scalar_select %p224, %s22, 1
          %p226 = scmp.lt.s32.totalorder %s23, 0
          %s227 = scalar_select %p226, %s23, 0
          %s228 = smul.addr %s225, 12
          %s229 = sadd.s32 %s227, %s228
          %s230 = smul.addr %s229, 8
          %s231 = scalar_lea.vmem %s1, %s230
        $region28: #{forward.7} parent=19 // pred_fallthru
          _
        // Predicated region
        $region29: #{forward.7} parent=19 // pred_check
          %p232 = pneg %p105
        $region30: #{forward.7} parent=19 // pred_check_branch
          %234 = sbr.rel (%p232) target = $region32
        $region31: #{forward.7} parent=19 // pred_region
          %p235 = scmp.lt.s32.totalorder %s22, 1
          %s236 = scalar_select %p235, %s22, 1
          %p237 = scmp.lt.s32.totalorder %s23, 0
          %s238 = scalar_select %p237, %s23, 0
          %s239 = smul.addr %s236, 12
          %s240 = sadd.s32 %s238, %s239
          %s241 = smul.addr %s240, 8
          %s242 = scalar_lea.vmem %s2, %s241
        $region32: #{forward.7} parent=19 // pred_fallthru
          _
      $region20: #{forward.7} parent=5 // pred_fallthru
        _
      %p243 = scmp.le.s32.totalorder 1, %s15
      %p244 = scmp.lt.s32.totalorder %s15, 3
      %p245 = pnand %p243, %p244
      %p246 = pneg %p245
      // Predicated region
      $region33: #{forward.7} parent=5 // pred_check
        _
      $region34: #{forward.7} parent=5 // pred_check_branch
        %248 = sbr.rel (%p245) target = $region36
      $region35: #{forward.7} parent=5 // pred_region
        %s249 = ssub.s32 %s15, 1
        %p250 = scmp.lt.s32.totalorder %s24, 1
        %s251 = scalar_select %p250, %s24, 1
        %p252 = scmp.lt.s32.totalorder %s25, 0
        %s253 = scalar_select %p252, %s25, 0
        %s254 = smul.addr %s251, 36
        %s255 = sadd.s32 %s253, %s254
        %s256 = smul.addr %s255, 8
        %s257 = scalar_lea.vmem %s0, %s256
        %p258 = pneg %p55
        %p259 = pneg %p52
        %p260 = scmp.lt.s32.totalorder %s24, 1
        %s261 = scalar_select %p260, %s24, 1
        %p262 = scmp.lt.s32.totalorder %s25, 0
        %s263 = scalar_select %p262, %s25, 0
        %s264 = smul.addr %s261, 12
        %s265 = sadd.s32 %s263, %s264
        %s266 = smul.addr %s265, 8
        %s267 = scalar_lea.vmem %s1, %s266
        %p268 = pneg %p83
        %p269 = pneg %p80
        %p270 = scmp.lt.s32.totalorder %s24, 1
        %s271 = scalar_select %p270, %s24, 1
        %p272 = scmp.lt.s32.totalorder %s25, 0
        %s273 = scalar_select %p272, %s25, 0
        %s274 = smul.addr %s271, 12
        %s275 = sadd.s32 %s273, %s274
        %s276 = smul.addr %s275, 8
        %s277 = scalar_lea.vmem %s2, %s276
        %p278 = pneg %p111
        %p279 = pneg %p108
        %p280 = pneg %p132
        %p281 = pneg %p129
        %p282 = pneg %p160
        %p283 = pneg %p157
        %p284 = scmp.lt.s32.totalorder %s24, 1
        %s285 = scalar_select %p284, %s24, 1
        %p286 = scmp.lt.s32.totalorder %s25, 0
        %s287 = scalar_select %p286, %s25, 0
        %s288 = sadd.s32 %s287, %s285
        %s289 = smul.addr %s288, 8
        %s290 = scalar_lea.vmem %s4, %s289
        %p291 = pneg %p188
        %p292 = pneg %p185
        %s293 = sand.u32 %s175, 1
        %s294 = scalar_lea.sflag [#allocation3], %s293
        %s295 = sand.u32 %s175, 1
        %s296 = smul.addr %s295, 96
        %s297 = scalar_lea.vmem [#allocation2], %s296
        %p298 = scmp.lt.s32.totalorder %s24, 1
        %s299 = scalar_select %p298, %s24, 1
        %p300 = scmp.lt.s32.totalorder %s25, 0
        %s301 = scalar_select %p300, %s25, 0
        %s302 = smul.addr %s299, 36
        %s303 = sadd.s32 %s301, %s302
        %s304 = smul.addr %s303, 8
        %s305 = scalar_lea.vmem %s0, %s304
        %p306 = scmp.lt.s32.totalorder %s24, 1
        %s307 = scalar_select %p306, %s24, 1
        %p308 = scmp.lt.s32.totalorder %s25, 0
        %s309 = scalar_select %p308, %s25, 0
        %s310 = smul.addr %s307, 12
        %s311 = sadd.s32 %s309, %s310
        %s312 = smul.addr %s311, 8
        %s313 = scalar_lea.vmem %s1, %s312
        %p314 = scmp.lt.s32.totalorder %s24, 1
        %s315 = scalar_select %p314, %s24, 1
        %p316 = scmp.lt.s32.totalorder %s25, 0
        %s317 = scalar_select %p316, %s25, 0
        %s318 = smul.addr %s315, 12
        %s319 = sadd.s32 %s317, %s318
        %s320 = smul.addr %s319, 8
        %s321 = scalar_lea.vmem %s2, %s320
        %p322 = scmp.lt.s32.totalorder %s24, 1
        %s323 = scalar_select %p322, %s24, 1
        %p324 = scmp.lt.s32.totalorder %s25, 0
        %s325 = scalar_select %p324, %s25, 0
        %s326 = sadd.s32 %s325, %s323
        %s327 = smul.addr %s326, 8
        %s328 = scalar_lea.vmem %s4, %s327
        %v329 = vld [vmem:[%s321] sm:$0xff]
        %v330 = vld [vmem:[%s321 + $0x8] sm:$0xff]
        %v331 = vld [vmem:[%s321 + $0x10] sm:$0xff]
        %v332 = vld [vmem:[%s321 + $0x18] sm:$0xff]
        %v333 = vld [vmem:[%s321 + $0x20] sm:$0xff]
        %v334 = vld [vmem:[%s321 + $0x28] sm:$0xff]
        %v335 = vld [vmem:[%s321 + $0x30] sm:$0xff]
        %v336 = vld [vmem:[%s321 + $0x38] sm:$0xff]
        %v337 = vld [vmem:[%s321 + $0x40] sm:$0xff]
        %v338 = vld [vmem:[%s321 + $0x48] sm:$0xff]
        %v339 = vld [vmem:[%s321 + $0x50] sm:$0xff]
        %v340 = vld [vmem:[%s321 + $0x58] sm:$0xff]
        %vm353 = vcmask 1040384
        %v354 = vrot.slane %v329, 7
        %v355 = vrot.slane %v330, 7
        %v356 = vsel %vm353, %v354, %v355
        %v357 = vrot.slane %v331, 7
        %v358 = vsel %vm353, %v355, %v357
        %v359 = vrot.slane %v332, 7
        %v360 = vsel %vm353, %v357, %v359
        %v361 = vrot.slane %v333, 7
        %v362 = vsel %vm353, %v359, %v361
        %v363 = vrot.slane %v334, 7
        %v364 = vsel %vm353, %v361, %v363
        %v365 = vrot.slane %v335, 7
        %v366 = vsel %vm353, %v363, %v365
        %v367 = vrot.slane %v336, 7
        %v368 = vsel %vm353, %v365, %v367
        %v369 = vrot.slane %v337, 7
        %v370 = vsel %vm353, %v367, %v369
        %v371 = vrot.slane %v338, 7
        %v372 = vsel %vm353, %v369, %v371
        %v373 = vrot.slane %v339, 7
        %v374 = vsel %vm353, %v371, %v373
        %v375 = vrot.slane %v340, 7
        %v376 = vsel %vm353, %v373, %v375
        %v389 = vsub.f32 %v329, %v354
        %v390 = vsub.f32 %v330, %v356
        %v391 = vsub.f32 %v331, %v358
        %v392 = vsub.f32 %v332, %v360
        %v393 = vsub.f32 %v333, %v362
        %v394 = vsub.f32 %v334, %v364
        %v395 = vsub.f32 %v335, %v366
        %v396 = vsub.f32 %v336, %v368
        %v397 = vsub.f32 %v337, %v370
        %v398 = vsub.f32 %v338, %v372
        %v399 = vsub.f32 %v339, %v374
        %v400 = vsub.f32 %v340, %v376
        %vm401 = vcmask 1046528
        %v402 = vrot.slane %v329, 1
        %v403 = vrot.slane %v330, 1
        %v404 = vsel %vm401, %v402, %v403
        %v405 = vrot.slane %v331, 1
        %v406 = vsel %vm401, %v403, %v405
        %v407 = vrot.slane %v332, 1
        %v408 = vsel %vm401, %v405, %v407
        %v409 = vrot.slane %v333, 1
        %v410 = vsel %vm401, %v407, %v409
        %v411 = vrot.slane %v334, 1
        %v412 = vsel %vm401, %v409, %v411
        %v413 = vrot.slane %v335, 1
        %v414 = vsel %vm401, %v411, %v413
        %v415 = vrot.slane %v336, 1
        %v416 = vsel %vm401, %v413, %v415
        %v417 = vrot.slane %v337, 1
        %v418 = vsel %vm401, %v415, %v417
        %v419 = vrot.slane %v338, 1
        %v420 = vsel %vm401, %v417, %v419
        %v421 = vrot.slane %v339, 1
        %v422 = vsel %vm401, %v419, %v421
        %v423 = vrot.slane %v340, 1
        %v424 = vsel %vm401, %v421, %v423
        %v437 = vadd.f32 %v329, %v404
        %v438 = vadd.f32 %v330, %v406
        %v439 = vadd.f32 %v331, %v408
        %v440 = vadd.f32 %v332, %v410
        %v441 = vadd.f32 %v333, %v412
        %v442 = vadd.f32 %v334, %v414
        %v443 = vadd.f32 %v335, %v416
        %v444 = vadd.f32 %v336, %v418
        %v445 = vadd.f32 %v337, %v420
        %v446 = vadd.f32 %v338, %v422
        %v447 = vadd.f32 %v339, %v424
        %v448 = vadd.f32 %v340, %v423
        %v449 = vmul.f32 %v437, 0.5
        %v450 = vmul.f32 %v438, 0.5
        %v451 = vmul.f32 %v439, 0.5
        %v452 = vmul.f32 %v440, 0.5
        %v453 = vmul.f32 %v441, 0.5
        %v454 = vmul.f32 %v442, 0.5
        %v455 = vmul.f32 %v443, 0.5
        %v456 = vmul.f32 %v444, 0.5
        %v457 = vmul.f32 %v445, 0.5
        %v458 = vmul.f32 %v446, 0.5
        %v459 = vmul.f32 %v447, 0.5
        %v460 = vmul.f32 %v448, 0.5
        %v461 = vld [vmem:[%s313] sm:$0xff]
        %v462 = vld [vmem:[%s313 + $0x8] sm:$0xff]
        %v463 = vld [vmem:[%s313 + $0x10] sm:$0xff]
        %v464 = vld [vmem:[%s313 + $0x18] sm:$0xff]
        %v465 = vld [vmem:[%s313 + $0x20] sm:$0xff]
        %v466 = vld [vmem:[%s313 + $0x28] sm:$0xff]
        %v467 = vld [vmem:[%s313 + $0x30] sm:$0xff]
        %v468 = vld [vmem:[%s313 + $0x38] sm:$0xff]
        %v469 = vld [vmem:[%s313 + $0x40] sm:$0xff]
        %v470 = vld [vmem:[%s313 + $0x48] sm:$0xff]
        %v471 = vld [vmem:[%s313 + $0x50] sm:$0xff]
        %v472 = vld [vmem:[%s313 + $0x58] sm:$0xff]
        %v485 = vrot.slane %v461, 1
        %v486 = vrot.slane %v462, 1
        %v487 = vsel %vm401, %v485, %v486
        %v488 = vrot.slane %v463, 1
        %v489 = vsel %vm401, %v486, %v488
        %v490 = vrot.slane %v464, 1
        %v491 = vsel %vm401, %v488, %v490
        %v492 = vrot.slane %v465, 1
        %v493 = vsel %vm401, %v490, %v492
        %v494 = vrot.slane %v466, 1
        %v495 = vsel %vm401, %v492, %v494
        %v496 = vrot.slane %v467, 1
        %v497 = vsel %vm401, %v494, %v496
        %v498 = vrot.slane %v468, 1
        %v499 = vsel %vm401, %v496, %v498
        %v500 = vrot.slane %v469, 1
        %v501 = vsel %vm401, %v498, %v500
        %v502 = vrot.slane %v470, 1
        %v503 = vsel %vm401, %v500, %v502
        %v504 = vrot.slane %v471, 1
        %v505 = vsel %vm401, %v502, %v504
        %v506 = vrot.slane %v472, 1
        %v507 = vsel %vm401, %v504, %v506
        %v520 = vadd.f32 %v461, %v487
        %v521 = vadd.f32 %v462, %v489
        %v522 = vadd.f32 %v463, %v491
        %v523 = vadd.f32 %v464, %v493
        %v524 = vadd.f32 %v465, %v495
        %v525 = vadd.f32 %v466, %v497
        %v526 = vadd.f32 %v467, %v499
        %v527 = vadd.f32 %v468, %v501
        %v528 = vadd.f32 %v469, %v503
        %v529 = vadd.f32 %v470, %v505
        %v530 = vadd.f32 %v471, %v507
        %v531 = vadd.f32 %v472, %v506
        %v532 = vmul.f32 %v520, 0.5
        %v533 = vmul.f32 %v521, 0.5
        %v534 = vmul.f32 %v522, 0.5
        %v535 = vmul.f32 %v523, 0.5
        %v536 = vmul.f32 %v524, 0.5
        %v537 = vmul.f32 %v525, 0.5
        %v538 = vmul.f32 %v526, 0.5
        %v539 = vmul.f32 %v527, 0.5
        %v540 = vmul.f32 %v528, 0.5
        %v541 = vmul.f32 %v529, 0.5
        %v542 = vmul.f32 %v530, 0.5
        %v543 = vmul.f32 %v531, 0.5
        %v544 = vsub.f32 %v532, 1.0
        %v545 = vsub.f32 %v533, 1.0
        %v546 = vsub.f32 %v534, 1.0
        %v547 = vsub.f32 %v535, 1.0
        %v548 = vsub.f32 %v536, 1.0
        %v549 = vsub.f32 %v537, 1.0
        %v550 = vsub.f32 %v538, 1.0
        %v551 = vsub.f32 %v539, 1.0
        %v552 = vsub.f32 %v540, 1.0
        %v553 = vsub.f32 %v541, 1.0
        %v554 = vsub.f32 %v542, 1.0
        %v555 = vsub.f32 %v543, 1.0
        %v556 = vmax.f32 %v544, 0.0
        %v557 = vmax.f32 %v545, 0.0
        %v558 = vmax.f32 %v546, 0.0
        %v559 = vmax.f32 %v547, 0.0
        %v560 = vmax.f32 %v548, 0.0
        %v561 = vmax.f32 %v549, 0.0
        %v562 = vmax.f32 %v550, 0.0
        %v563 = vmax.f32 %v551, 0.0
        %v564 = vmax.f32 %v552, 0.0
        %v565 = vmax.f32 %v553, 0.0
        %v566 = vmax.f32 %v554, 0.0
        %v567 = vmax.f32 %v555, 0.0
        %v568 = vand.u32 2147483647, %v544
        %v569 = vand.u32 2147483647, %v545
        %v570 = vand.u32 2147483647, %v546
        %v571 = vand.u32 2147483647, %v547
        %v572 = vand.u32 2147483647, %v548
        %v573 = vand.u32 2147483647, %v549
        %v574 = vand.u32 2147483647, %v550
        %v575 = vand.u32 2147483647, %v551
        %v576 = vand.u32 2147483647, %v552
        %v577 = vand.u32 2147483647, %v553
        %v578 = vand.u32 2147483647, %v554
        %v579 = vand.u32 2147483647, %v555
        %v580 = vsub.f32 0.0, %v568
        %v581 = vsub.f32 0.0, %v569
        %v582 = vsub.f32 0.0, %v570
        %v583 = vsub.f32 0.0, %v571
        %v584 = vsub.f32 0.0, %v572
        %v585 = vsub.f32 0.0, %v573
        %v586 = vsub.f32 0.0, %v574
        %v587 = vsub.f32 0.0, %v575
        %v588 = vsub.f32 0.0, %v576
        %v589 = vsub.f32 0.0, %v577
        %v590 = vsub.f32 0.0, %v578
        %v591 = vsub.f32 0.0, %v579
        %v592 = vmul.f32 %v580, 1.442695
        %v593 = vpow.pop %v592
        %v594 = vmul.f32 %v581, 1.442695
        %v595 = vpow.pop %v594
        %v596 = vmul.f32 %v582, 1.442695
        %v597 = vpow.pop %v596
        %v598 = vmul.f32 %v583, 1.442695
        %v599 = vpow.pop %v598
        %v600 = vmul.f32 %v584, 1.442695
        %v601 = vpow.pop %v600
        %v602 = vmul.f32 %v585, 1.442695
        %v603 = vpow.pop %v602
        %v604 = vmul.f32 %v586, 1.442695
        %v605 = vpow.pop %v604
        %v606 = vmul.f32 %v587, 1.442695
        %v607 = vpow.pop %v606
        %v608 = vmul.f32 %v588, 1.442695
        %v609 = vpow.pop %v608
        %v610 = vmul.f32 %v589, 1.442695
        %v611 = vpow.pop %v610
        %v612 = vmul.f32 %v590, 1.442695
        %v613 = vpow.pop %v612
        %v614 = vmul.f32 %v591, 1.442695
        %v615 = vpow.pop %v614
        %v616 = vadd.f32 %v593, 1.0
        %v617 = vadd.f32 %v595, 1.0
        %v618 = vadd.f32 %v597, 1.0
        %v619 = vadd.f32 %v599, 1.0
        %v620 = vadd.f32 %v601, 1.0
        %v621 = vadd.f32 %v603, 1.0
        %v622 = vadd.f32 %v605, 1.0
        %v623 = vadd.f32 %v607, 1.0
        %v624 = vadd.f32 %v609, 1.0
        %v625 = vadd.f32 %v611, 1.0
        %v626 = vadd.f32 %v613, 1.0
        %v627 = vadd.f32 %v615, 1.0
        %v628 = vlog2.pop %v616
        %v629 = vmul.f32 %v628, 0.6931472
        %v630 = vlog2.pop %v617
        %v631 = vmul.f32 %v630, 0.6931472
        %v632 = vlog2.pop %v618
        %v633 = vmul.f32 %v632, 0.6931472
        %v634 = vlog2.pop %v619
        %v635 = vmul.f32 %v634, 0.6931472
        %v636 = vlog2.pop %v620
        %v637 = vmul.f32 %v636, 0.6931472
        %v638 = vlog2.pop %v621
        %v639 = vmul.f32 %v638, 0.6931472
        %v640 = vlog2.pop %v622
        %v641 = vmul.f32 %v640, 0.6931472
        %v642 = vlog2.pop %v623
        %v643 = vmul.f32 %v642, 0.6931472
        %v644 = vlog2.pop %v624
        %v645 = vmul.f32 %v644, 0.6931472
        %v646 = vlog2.pop %v625
        %v647 = vmul.f32 %v646, 0.6931472
        %v648 = vlog2.pop %v626
        %v649 = vmul.f32 %v648, 0.6931472
        %v650 = vlog2.pop %v627
        %v651 = vmul.f32 %v650, 0.6931472
        %v652 = vadd.f32 %v556, %v629
        %v653 = vadd.f32 %v557, %v631
        %v654 = vadd.f32 %v558, %v633
        %v655 = vadd.f32 %v559, %v635
        %v656 = vadd.f32 %v560, %v637
        %v657 = vadd.f32 %v561, %v639
        %v658 = vadd.f32 %v562, %v641
        %v659 = vadd.f32 %v563, %v643
        %v660 = vadd.f32 %v564, %v645
        %v661 = vadd.f32 %v565, %v647
        %v662 = vadd.f32 %v566, %v649
        %v663 = vadd.f32 %v567, %v651
        %v664 = vsub.f32 0.0, %v652
        %v665 = vsub.f32 0.0, %v653
        %v666 = vsub.f32 0.0, %v654
        %v667 = vsub.f32 0.0, %v655
        %v668 = vsub.f32 0.0, %v656
        %v669 = vsub.f32 0.0, %v657
        %v670 = vsub.f32 0.0, %v658
        %v671 = vsub.f32 0.0, %v659
        %v672 = vsub.f32 0.0, %v660
        %v673 = vsub.f32 0.0, %v661
        %v674 = vsub.f32 0.0, %v662
        %v675 = vsub.f32 0.0, %v663
        %v688 = vrot.slane %v389, 1
        %v689 = vrot.slane %v390, 1
        %v690 = vsel %vm401, %v688, %v689
        %v691 = vrot.slane %v391, 1
        %v692 = vsel %vm401, %v689, %v691
        %v693 = vrot.slane %v392, 1
        %v694 = vsel %vm401, %v691, %v693
        %v695 = vrot.slane %v393, 1
        %v696 = vsel %vm401, %v693, %v695
        %v697 = vrot.slane %v394, 1
        %v698 = vsel %vm401, %v695, %v697
        %v699 = vrot.slane %v395, 1
        %v700 = vsel %vm401, %v697, %v699
        %v701 = vrot.slane %v396, 1
        %v702 = vsel %vm401, %v699, %v701
        %v703 = vrot.slane %v397, 1
        %v704 = vsel %vm401, %v701, %v703
        %v705 = vrot.slane %v398, 1
        %v706 = vsel %vm401, %v703, %v705
        %v707 = vrot.slane %v399, 1
        %v708 = vsel %vm401, %v705, %v707
        %v709 = vrot.slane %v400, 1
        %v710 = vsel %vm401, %v707, %v709
        %v723 = vmul.f32 %v664, %v690
        %v724 = vmul.f32 %v665, %v692
        %v725 = vmul.f32 %v666, %v694
        %v726 = vmul.f32 %v667, %v696
        %v727 = vmul.f32 %v668, %v698
        %v728 = vmul.f32 %v669, %v700
        %v729 = vmul.f32 %v670, %v702
        %v730 = vmul.f32 %v671, %v704
        %v731 = vmul.f32 %v672, %v706
        %v732 = vmul.f32 %v673, %v708
        %v733 = vmul.f32 %v674, %v710
        %v734 = vmul.f32 %v675, %v709
        %v735 = vmul.f32 %v723, 1.442695
        %v736 = vpow.pop %v735
        %v737 = vmul.f32 %v724, 1.442695
        %v738 = vpow.pop %v737
        %v739 = vmul.f32 %v725, 1.442695
        %v740 = vpow.pop %v739
        %v741 = vmul.f32 %v726, 1.442695
        %v742 = vpow.pop %v741
        %v743 = vmul.f32 %v727, 1.442695
        %v744 = vpow.pop %v743
        %v745 = vmul.f32 %v728, 1.442695
        %v746 = vpow.pop %v745
        %v747 = vmul.f32 %v729, 1.442695
        %v748 = vpow.pop %v747
        %v749 = vmul.f32 %v730, 1.442695
        %v750 = vpow.pop %v749
        %v751 = vmul.f32 %v731, 1.442695
        %v752 = vpow.pop %v751
        %v753 = vmul.f32 %v732, 1.442695
        %v754 = vpow.pop %v753
        %v755 = vmul.f32 %v733, 1.442695
        %v756 = vpow.pop %v755
        %v757 = vmul.f32 %v734, 1.442695
        %v758 = vpow.pop %v757
        %v759 = vsub.f32 1.0, %v736
        %v760 = vsub.f32 1.0, %v738
        %v761 = vsub.f32 1.0, %v740
        %v762 = vsub.f32 1.0, %v742
        %v763 = vsub.f32 1.0, %v744
        %v764 = vsub.f32 1.0, %v746
        %v765 = vsub.f32 1.0, %v748
        %v766 = vsub.f32 1.0, %v750
        %v767 = vsub.f32 1.0, %v752
        %v768 = vsub.f32 1.0, %v754
        %v769 = vsub.f32 1.0, %v756
        %v770 = vsub.f32 1.0, %v758
        %v771 = vsub.f32 1.0, %v759
        %v772 = vsub.f32 1.0, %v760
        %v773 = vsub.f32 1.0, %v761
        %v774 = vsub.f32 1.0, %v762
        %v775 = vsub.f32 1.0, %v763
        %v776 = vsub.f32 1.0, %v764
        %v777 = vsub.f32 1.0, %v765
        %v778 = vsub.f32 1.0, %v766
        %v779 = vsub.f32 1.0, %v767
        %v780 = vsub.f32 1.0, %v768
        %v781 = vsub.f32 1.0, %v769
        %v782 = vsub.f32 1.0, %v770
        %v783 = vadd.f32 %v771, 1e-10
        %v784 = vadd.f32 %v772, 1e-10
        %v785 = vadd.f32 %v773, 1e-10
        %v786 = vadd.f32 %v774, 1e-10
        %v787 = vadd.f32 %v775, 1e-10
        %v788 = vadd.f32 %v776, 1e-10
        %v789 = vadd.f32 %v777, 1e-10
        %v790 = vadd.f32 %v778, 1e-10
        %v791 = vadd.f32 %v779, 1e-10
        %v792 = vadd.f32 %v780, 1e-10
        %v793 = vadd.f32 %v781, 1e-10
        %v794 = vadd.f32 %v782, 1e-10
        %v795 = vlog2.pop %v783
        %v796 = vmul.f32 %v795, 0.6931472
        %v797 = vlog2.pop %v784
        %v798 = vmul.f32 %v797, 0.6931472
        %v799 = vlog2.pop %v785
        %v800 = vmul.f32 %v799, 0.6931472
        %v801 = vlog2.pop %v786
        %v802 = vmul.f32 %v801, 0.6931472
        %v803 = vlog2.pop %v787
        %v804 = vmul.f32 %v803, 0.6931472
        %v805 = vlog2.pop %v788
        %v806 = vmul.f32 %v805, 0.6931472
        %v807 = vlog2.pop %v789
        %v808 = vmul.f32 %v807, 0.6931472
        %v809 = vlog2.pop %v790
        %v810 = vmul.f32 %v809, 0.6931472
        %v811 = vlog2.pop %v791
        %v812 = vmul.f32 %v811, 0.6931472
        %v813 = vlog2.pop %v792
        %v814 = vmul.f32 %v813, 0.6931472
        %v815 = vlog2.pop %v793
        %v816 = vmul.f32 %v815, 0.6931472
        %v817 = vlog2.pop %v794
        %v818 = vmul.f32 %v817, 0.6931472
        %v819 = vld [vmem:[%s3] sm:$0xff]
        %v820 = vld [vmem:[%s3 + $0x8] sm:$0xff]
        %v821 = vld [vmem:[%s3 + $0x10] sm:$0xff]
        %v822 = vld [vmem:[%s3 + $0x18] sm:$0xff]
        %v823 = vld [vmem:[%s3 + $0x20] sm:$0xff]
        %v824 = vld [vmem:[%s3 + $0x28] sm:$0xff]
        %v825 = vld [vmem:[%s3 + $0x30] sm:$0xff]
        %v826 = vld [vmem:[%s3 + $0x38] sm:$0xff]
        %v827 = vld [vmem:[%s3 + $0x40] sm:$0xff]
        %v828 = vld [vmem:[%s3 + $0x48] sm:$0xff]
        %v829 = vld [vmem:[%s3 + $0x50] sm:$0xff]
        %v830 = vld [vmem:[%s3 + $0x58] sm:$0x7f]
        %vm831 = vcmask 777216
        %v833 = vsel %vm831, %v819, 0
        %v836 = vsel %vm831, %v820, 0
        %v839 = vsel %vm831, %v821, 0
        %v842 = vsel %vm831, %v822, 0
        %v845 = vsel %vm831, %v823, 0
        %v848 = vsel %vm831, %v824, 0
        %v851 = vsel %vm831, %v825, 0
        %v854 = vsel %vm831, %v826, 0
        %v857 = vsel %vm831, %v827, 0
        %v860 = vsel %vm831, %v828, 0
        %v863 = vsel %vm831, %v829, 0
        %v866 = vsel %vm831, %v830, 0
        %v869 = vsel %vm401, %v818, 0
        %871 = vmatprep.subr.mxu0 0.0
        %872 = vmatpush1.msra.mxu0 %v796
        %873 = vmatprep.subr.mxu0 0.0
        %874 = vmatpush1.msra.mxu0 %v798
        %875 = vmatprep.subr.mxu0 0.0
        %876 = vmatpush1.msra.mxu0 %v800
        %877 = vmatprep.subr.mxu0 0.0
        %878 = vmatpush1.msra.mxu0 %v802
        %879 = vmatprep.subr.mxu0 0.0
        %880 = vmatpush1.msra.mxu0 %v804
        %881 = vmatprep.subr.mxu0 0.0
        %882 = vmatpush1.msra.mxu0 %v806
        %883 = vmatprep.subr.mxu0 0.0
        %884 = vmatpush1.msra.mxu0 %v808
        %885 = vmatprep.subr.mxu0 0.0
        %886 = vmatpush1.msra.mxu0 %v810
        %887 = vmatprep.subr.mxu0 0.0
        %888 = vmatpush1.msra.mxu0 %v812
        %889 = vmatprep.subr.mxu0 0.0
        %890 = vmatpush1.msra.mxu0 %v814
        %891 = vmatprep.subr.mxu0 0.0
        %892 = vmatpush1.msra.mxu0 %v816
        %893 = vmatprep.subr.mxu0 0.0
        %894 = vmatpush1.msra.mxu0 %v869
        %895 = vmatprep.subr.mxu0 0.0
        %896 = vmatpush1.msra.mxu0 0.0
        %897 = vmatprep.subr.mxu0 0.0
        %898 = vmatpush1.msra.mxu0 0.0
        %899 = vmatprep.subr.mxu0 0.0
        %900 = vmatpush1.msra.mxu0 0.0
        %901 = vmatprep.subr.mxu0 0.0
        %902 = vmatpush1.msra.mxu0 0.0
        %903 = vmatprep.subr.mxu0 0.0
        %904 = vmatpush1.msra.mxu0 0.0
        %905 = vmatprep.subr.mxu0 0.0
        %906 = vmatpush1.msra.mxu0 0.0
        %907 = vmatprep.subr.mxu0 0.0
        %908 = vmatpush1.msra.mxu0 0.0
        %909 = vmatprep.subr.mxu0 0.0
        %910 = vmatpush1.msra.mxu0 0.0
        %911 = vmatprep.subr.mxu0 0.0
        %912 = vmatpush1.msra.mxu0 0.0
        %913 = vmatprep.subr.mxu0 0.0
        %914 = vmatpush1.msra.mxu0 0.0
        %915 = vmatprep.subr.mxu0 0.0
        %916 = vmatpush1.msra.mxu0 0.0
        %917 = vmatprep.subr.mxu0 0.0
        %918 = vmatpush1.msra.mxu0 0.0
        %919 = vmatprep.subr.mxu0 0.0
        %920 = vmatpush1.msra.mxu0 0.0
        %921 = vmatprep.subr.mxu0 0.0
        %922 = vmatpush1.msra.mxu0 0.0
        %923 = vmatprep.subr.mxu0 0.0
        %924 = vmatpush1.msra.mxu0 0.0
        %925 = vmatprep.subr.mxu0 0.0
        %926 = vmatpush1.msra.mxu0 0.0
        %927 = vmatprep.subr.mxu0 0.0
        %928 = vmatpush1.msra.mxu0 0.0
        %929 = vmatprep.subr.mxu0 0.0
        %930 = vmatpush1.msra.mxu0 0.0
        %931 = vmatprep.subr.mxu0 0.0
        %932 = vmatpush1.msra.mxu0 0.0
        %933 = vmatprep.subr.mxu0 0.0
        %934 = vmatpush1.msra.mxu0 0.0
        %935 = vmatprep.mubr.f32.mxu0 0.0
        %936 = vmatmul.mubr.f32.gmra.mrb[0].mxu0 %v833
        %v937 = vpop.f32.mrb[0].mxu0
        %v938 = vadd.f32 0.0, %v937
        %v939 = vpop.f32.mrb[0].mxu0
        %940 = vmatprep.mubr.f32.mxu0 0.0
        %941 = vmatmul.mubr.f32.gmra.mrb[0].mxu0 %v836
        %v942 = vpop.f32.mrb[0].mxu0
        %v943 = vadd.f32 0.0, %v942
        %v944 = vpop.f32.mrb[0].mxu0
        %945 = vmatprep.mubr.f32.mxu0 0.0
        %946 = vmatmul.mubr.f32.gmra.mrb[0].mxu0 %v839
        %v947 = vpop.f32.mrb[0].mxu0
        %v948 = vadd.f32 0.0, %v947
        %v949 = vpop.f32.mrb[0].mxu0
        %950 = vmatprep.mubr.f32.mxu0 0.0
        %951 = vmatmul.mubr.f32.gmra.mrb[0].mxu0 %v842
        %v952 = vpop.f32.mrb[0].mxu0
        %v953 = vadd.f32 0.0, %v952
        %v954 = vpop.f32.mrb[0].mxu0
        %955 = vmatprep.mubr.f32.mxu0 0.0
        %956 = vmatmul.mubr.f32.gmra.mrb[0].mxu0 %v845
        %v957 = vpop.f32.mrb[0].mxu0
        %v958 = vadd.f32 0.0, %v957
        %v959 = vpop.f32.mrb[0].mxu0
        %960 = vmatprep.mubr.f32.mxu0 0.0
        %961 = vmatmul.mubr.f32.gmra.mrb[0].mxu0 %v848
        %v962 = vpop.f32.mrb[0].mxu0
        %v963 = vadd.f32 0.0, %v962
        %v964 = vpop.f32.mrb[0].mxu0
        %965 = vmatprep.mubr.f32.mxu0 0.0
        %966 = vmatmul.mubr.f32.gmra.mrb[0].mxu0 %v851
        %v967 = vpop.f32.mrb[0].mxu0
        %v968 = vadd.f32 0.0, %v967
        %v969 = vpop.f32.mrb[0].mxu0
        %970 = vmatprep.mubr.f32.mxu0 0.0
        %971 = vmatmul.mubr.f32.gmra.mrb[0].mxu0 %v854
        %v972 = vpop.f32.mrb[0].mxu0
        %v973 = vadd.f32 0.0, %v972
        %v974 = vpop.f32.mrb[0].mxu0
        %975 = vmatprep.mubr.f32.mxu0 0.0
        %976 = vmatmul.mubr.f32.gmra.mrb[0].mxu0 %v857
        %v977 = vpop.f32.mrb[0].mxu0
        %v978 = vadd.f32 0.0, %v977
        %v979 = vpop.f32.mrb[0].mxu0
        %980 = vmatprep.mubr.f32.mxu0 0.0
        %981 = vmatmul.mubr.f32.gmra.mrb[0].mxu0 %v860
        %v982 = vpop.f32.mrb[0].mxu0
        %v983 = vadd.f32 0.0, %v982
        %v984 = vpop.f32.mrb[0].mxu0
        %985 = vmatprep.mubr.f32.mxu0 0.0
        %986 = vmatmul.mubr.f32.gmra.mrb[0].mxu0 %v863
        %v987 = vpop.f32.mrb[0].mxu0
        %v988 = vadd.f32 0.0, %v987
        %v989 = vpop.f32.mrb[0].mxu0
        %990 = vmatprep.mubr.f32.mxu0 0.0
        %991 = vmatmul.mubr.f32.gmra.mrb[0].mxu0 %v866
        %v992 = vpop.f32.mrb[0].mxu0
        %v993 = vadd.f32 0.0, %v992
        %v994 = vpop.f32.mrb[0].mxu0
        %995 = vdwg.mxu0
        %v996 = vmul.f32 %v938, 1.442695
        %v997 = vpow.pop %v996
        %v998 = vmul.f32 %v943, 1.442695
        %v999 = vpow.pop %v998
        %v1000 = vmul.f32 %v948, 1.442695
        %v1001 = vpow.pop %v1000
        %v1002 = vmul.f32 %v953, 1.442695
        %v1003 = vpow.pop %v1002
        %v1004 = vmul.f32 %v958, 1.442695
        %v1005 = vpow.pop %v1004
        %v1006 = vmul.f32 %v963, 1.442695
        %v1007 = vpow.pop %v1006
        %v1008 = vmul.f32 %v968, 1.442695
        %v1009 = vpow.pop %v1008
        %v1010 = vmul.f32 %v973, 1.442695
        %v1011 = vpow.pop %v1010
        %v1012 = vmul.f32 %v978, 1.442695
        %v1013 = vpow.pop %v1012
        %v1014 = vmul.f32 %v983, 1.442695
        %v1015 = vpow.pop %v1014
        %v1016 = vmul.f32 %v988, 1.442695
        %v1017 = vpow.pop %v1016
        %v1018 = vmul.f32 %v993, 1.442695
        %v1019 = vpow.pop %v1018
        %v1020 = vmul.f32 %v759, %v997
        %v1021 = vmul.f32 %v760, %v999
        %v1022 = vmul.f32 %v761, %v1001
        %v1023 = vmul.f32 %v762, %v1003
        %v1024 = vmul.f32 %v763, %v1005
        %v1025 = vmul.f32 %v764, %v1007
        %v1026 = vmul.f32 %v765, %v1009
        %v1027 = vmul.f32 %v766, %v1011
        %v1028 = vmul.f32 %v767, %v1013
        %v1029 = vmul.f32 %v768, %v1015
        %v1030 = vmul.f32 %v769, %v1017
        %v1031 = vmul.f32 %v770, %v1019
        %1032 = vst [vmem:[%s297] sm:$0xff] %v1020
        %1033 = vst [vmem:[%s297 + $0x8] sm:$0xff] %v1021
        %1034 = vst [vmem:[%s297 + $0x10] sm:$0xff] %v1022
        %1035 = vst [vmem:[%s297 + $0x18] sm:$0xff] %v1023
        %1036 = vst [vmem:[%s297 + $0x20] sm:$0xff] %v1024
        %1037 = vst [vmem:[%s297 + $0x28] sm:$0xff] %v1025
        %1038 = vst [vmem:[%s297 + $0x30] sm:$0xff] %v1026
        %1039 = vst [vmem:[%s297 + $0x38] sm:$0xff] %v1027
        %1040 = vst [vmem:[%s297 + $0x40] sm:$0xff] %v1028
        %1041 = vst [vmem:[%s297 + $0x48] sm:$0xff] %v1029
        %1042 = vst [vmem:[%s297 + $0x50] sm:$0xff] %v1030
        %1043 = vst [vmem:[%s297 + $0x58] sm:$0x7f] %v1031
        %v1044 = vadd.f32 %v1020, %v1021
        %v1045 = vadd.f32 %v1044, %v1022
        %v1046 = vadd.f32 %v1045, %v1023
        %v1047 = vadd.f32 %v1046, %v1024
        %v1048 = vadd.f32 %v1047, %v1025
        %v1049 = vadd.f32 %v1048, %v1026
        %v1050 = vadd.f32 %v1049, %v1027
        %v1051 = vadd.f32 %v1050, %v1028
        %v1052 = vadd.f32 %v1051, %v1029
        %v1053 = vadd.f32 %v1052, %v1030
        %v1054 = vsel %vm401, %v1031, 0.0
        %v1055 = vadd.f32 %v1053, %v1054
        %v1056 = vrot.slane %v1055, 4
        %v1057 = vadd.f32 %v1055, %v1056
        %v1058 = vrot.slane %v1057, 2
        %v1059 = vadd.f32 %v1057, %v1058
        %v1060 = vrot.slane %v1059, 1
        %v1061 = vadd.f32 %v1059, %v1060
        %v1062 = vmul.f32 %v1020, %v449
        %v1063 = vmul.f32 %v1021, %v450
        %v1064 = vmul.f32 %v1022, %v451
        %v1065 = vmul.f32 %v1023, %v452
        %v1066 = vmul.f32 %v1024, %v453
        %v1067 = vmul.f32 %v1025, %v454
        %v1068 = vmul.f32 %v1026, %v455
        %v1069 = vmul.f32 %v1027, %v456
        %v1070 = vmul.f32 %v1028, %v457
        %v1071 = vmul.f32 %v1029, %v458
        %v1072 = vmul.f32 %v1030, %v459
        %v1073 = vmul.f32 %v1031, %v460
        %v1074 = vadd.f32 %v1062, %v1063
        %v1075 = vadd.f32 %v1074, %v1064
        %v1076 = vadd.f32 %v1075, %v1065
        %v1077 = vadd.f32 %v1076, %v1066
        %v1078 = vadd.f32 %v1077, %v1067
        %v1079 = vadd.f32 %v1078, %v1068
        %v1080 = vadd.f32 %v1079, %v1069
        %v1081 = vadd.f32 %v1080, %v1070
        %v1082 = vadd.f32 %v1081, %v1071
        %v1083 = vadd.f32 %v1082, %v1072
        %v1084 = vsel %vm401, %v1073, 0.0
        %v1085 = vadd.f32 %v1083, %v1084
        %v1086 = vrot.slane %v1085, 4
        %v1087 = vadd.f32 %v1085, %v1086
        %v1088 = vrot.slane %v1087, 2
        %v1089 = vadd.f32 %v1087, %v1088
        %v1090 = vrot.slane %v1089, 1
        %v1091 = vadd.f32 %v1089, %v1090
        %v1092 = vrcp.pop %v1061
        %v1093 = vmul.f32 %v1061, %v1092
        %v1094 = vsub.f32 2.0, %v1093
        %v1095 = vmul.f32 %v1092, %v1094
        %vm1096 = vcmp.gt.f32.partialorder %v1061, 0.0
        %v1097 = vmul.f32 %v1091, %v1095
        %v1098 = vsel %vm1096, %v1097, inf
        %v1099 = vld [vmem:[%s305] sm:$0xff]
        %v1100 = vld [vmem:[%s305 + $0x8] sm:$0xff]
        %v1101 = vld [vmem:[%s305 + $0x10] sm:$0xff]
        %v1102 = vld [vmem:[%s305 + $0x18] sm:$0xff]
        %v1103 = vld [vmem:[%s305 + $0x20] sm:$0xff]
        %v1104 = vld [vmem:[%s305 + $0x28] sm:$0xff]
        %v1105 = vld [vmem:[%s305 + $0x30] sm:$0xff]
        %v1106 = vld [vmem:[%s305 + $0x38] sm:$0xff]
        %v1107 = vld [vmem:[%s305 + $0x40] sm:$0xff]
        %v1108 = vld [vmem:[%s305 + $0x48] sm:$0xff]
        %v1109 = vld [vmem:[%s305 + $0x50] sm:$0xff]
        %v1110 = vld [vmem:[%s305 + $0x58] sm:$0xff]
        %v1111 = vld [vmem:[%s305 + $0x60] sm:$0xff]
        %v1112 = vld [vmem:[%s305 + $0x68] sm:$0xff]
        %v1113 = vld [vmem:[%s305 + $0x70] sm:$0xff]
        %v1114 = vld [vmem:[%s305 + $0x78] sm:$0xff]
        %v1115 = vld [vmem:[%s305 + $0x80] sm:$0xff]
        %v1116 = vld [vmem:[%s305 + $0x88] sm:$0xff]
        %v1117 = vld [vmem:[%s305 + $0x90] sm:$0xff]
        %v1118 = vld [vmem:[%s305 + $0x98] sm:$0xff]
        %v1119 = vld [vmem:[%s305 + $0xa0] sm:$0xff]
        %v1120 = vld [vmem:[%s305 + $0xa8] sm:$0xff]
        %v1121 = vld [vmem:[%s305 + $0xb0] sm:$0xff]
        %v1122 = vld [vmem:[%s305 + $0xb8] sm:$0xff]
        %v1123 = vld [vmem:[%s305 + $0xc0] sm:$0xff]
        %v1124 = vld [vmem:[%s305 + $0xc8] sm:$0xff]
        %v1125 = vld [vmem:[%s305 + $0xd0] sm:$0xff]
        %v1126 = vld [vmem:[%s305 + $0xd8] sm:$0xff]
        %v1127 = vld [vmem:[%s305 + $0xe0] sm:$0xff]
        %v1128 = vld [vmem:[%s305 + $0xe8] sm:$0xff]
        %v1129 = vld [vmem:[%s305 + $0xf0] sm:$0xff]
        %v1130 = vld [vmem:[%s305 + $0xf8] sm:$0xff]
        %v1131 = vld [vmem:[%s305 + $0x100] sm:$0xff]
        %v1132 = vld [vmem:[%s305 + $0x108] sm:$0xff]
        %v1133 = vld [vmem:[%s305 + $0x110] sm:$0xff]
        %v1134 = vld [vmem:[%s305 + $0x118] sm:$0xff]
        %v1147 = vrot.slane %v1099, 1
        %v1148 = vrot.slane %v1100, 1
        %v1149 = vsel %vm401, %v1147, %v1148
        %v1150 = vrot.slane %v1101, 1
        %v1151 = vsel %vm401, %v1148, %v1150
        %v1152 = vrot.slane %v1102, 1
        %v1153 = vsel %vm401, %v1150, %v1152
        %v1154 = vrot.slane %v1103, 1
        %v1155 = vsel %vm401, %v1152, %v1154
        %v1156 = vrot.slane %v1104, 1
        %v1157 = vsel %vm401, %v1154, %v1156
        %v1158 = vrot.slane %v1105, 1
        %v1159 = vsel %vm401, %v1156, %v1158
        %v1160 = vrot.slane %v1106, 1
        %v1161 = vsel %vm401, %v1158, %v1160
        %v1162 = vrot.slane %v1107, 1
        %v1163 = vsel %vm401, %v1160, %v1162
        %v1164 = vrot.slane %v1108, 1
        %v1165 = vsel %vm401, %v1162, %v1164
        %v1166 = vrot.slane %v1109, 1
        %v1167 = vsel %vm401, %v1164, %v1166
        %v1168 = vrot.slane %v1110, 1
        %v1169 = vsel %vm401, %v1166, %v1168
        %v1182 = vadd.f32 %v1099, %v1149
        %v1183 = vadd.f32 %v1100, %v1151
        %v1184 = vadd.f32 %v1101, %v1153
        %v1185 = vadd.f32 %v1102, %v1155
        %v1186 = vadd.f32 %v1103, %v1157
        %v1187 = vadd.f32 %v1104, %v1159
        %v1188 = vadd.f32 %v1105, %v1161
        %v1189 = vadd.f32 %v1106, %v1163
        %v1190 = vadd.f32 %v1107, %v1165
        %v1191 = vadd.f32 %v1108, %v1167
        %v1192 = vadd.f32 %v1109, %v1169
        %v1193 = vadd.f32 %v1110, %v1168
        %v1194 = vmul.f32 %v1182, 0.5
        %v1195 = vmul.f32 %v1183, 0.5
        %v1196 = vmul.f32 %v1184, 0.5
        %v1197 = vmul.f32 %v1185, 0.5
        %v1198 = vmul.f32 %v1186, 0.5
        %v1199 = vmul.f32 %v1187, 0.5
        %v1200 = vmul.f32 %v1188, 0.5
        %v1201 = vmul.f32 %v1189, 0.5
        %v1202 = vmul.f32 %v1190, 0.5
        %v1203 = vmul.f32 %v1191, 0.5
        %v1204 = vmul.f32 %v1192, 0.5
        %v1205 = vmul.f32 %v1193, 0.5
        %v1206 = vmul.f32 %v1020, %v1194
        %v1207 = vmul.f32 %v1021, %v1195
        %v1208 = vmul.f32 %v1022, %v1196
        %v1209 = vmul.f32 %v1023, %v1197
        %v1210 = vmul.f32 %v1024, %v1198
        %v1211 = vmul.f32 %v1025, %v1199
        %v1212 = vmul.f32 %v1026, %v1200
        %v1213 = vmul.f32 %v1027, %v1201
        %v1214 = vmul.f32 %v1028, %v1202
        %v1215 = vmul.f32 %v1029, %v1203
        %v1216 = vmul.f32 %v1030, %v1204
        %v1217 = vmul.f32 %v1031, %v1205
        %v1218 = vadd.f32 %v1206, %v1207
        %v1219 = vadd.f32 %v1218, %v1208
        %v1220 = vadd.f32 %v1219, %v1209
        %v1221 = vadd.f32 %v1220, %v1210
        %v1222 = vadd.f32 %v1221, %v1211
        %v1223 = vadd.f32 %v1222, %v1212
        %v1224 = vadd.f32 %v1223, %v1213
        %v1225 = vadd.f32 %v1224, %v1214
        %v1226 = vadd.f32 %v1225, %v1215
        %v1227 = vadd.f32 %v1226, %v1216
        %v1228 = vsel %vm401, %v1217, 0.0
        %v1229 = vadd.f32 %v1227, %v1228
        %v1230 = vrot.slane %v1229, 4
        %v1231 = vadd.f32 %v1229, %v1230
        %v1232 = vrot.slane %v1231, 2
        %v1233 = vadd.f32 %v1231, %v1232
        %v1234 = vrot.slane %v1233, 1
        %v1235 = vadd.f32 %v1233, %v1234
        %v1236 = vmul.f32 %v1235, 2.0
        %v1237 = vsub.f32 %v1236, 1.0
        %v1250 = vrot.slane %v1111, 1
        %v1251 = vrot.slane %v1112, 1
        %v1252 = vsel %vm401, %v1250, %v1251
        %v1253 = vrot.slane %v1113, 1
        %v1254 = vsel %vm401, %v1251, %v1253
        %v1255 = vrot.slane %v1114, 1
        %v1256 = vsel %vm401, %v1253, %v1255
        %v1257 = vrot.slane %v1115, 1
        %v1258 = vsel %vm401, %v1255, %v1257
        %v1259 = vrot.slane %v1116, 1
        %v1260 = vsel %vm401, %v1257, %v1259
        %v1261 = vrot.slane %v1117, 1
        %v1262 = vsel %vm401, %v1259, %v1261
        %v1263 = vrot.slane %v1118, 1
        %v1264 = vsel %vm401, %v1261, %v1263
        %v1265 = vrot.slane %v1119, 1
        %v1266 = vsel %vm401, %v1263, %v1265
        %v1267 = vrot.slane %v1120, 1
        %v1268 = vsel %vm401, %v1265, %v1267
        %v1269 = vrot.slane %v1121, 1
        %v1270 = vsel %vm401, %v1267, %v1269
        %v1271 = vrot.slane %v1122, 1
        %v1272 = vsel %vm401, %v1269, %v1271
        %v1285 = vadd.f32 %v1111, %v1252
        %v1286 = vadd.f32 %v1112, %v1254
        %v1287 = vadd.f32 %v1113, %v1256
        %v1288 = vadd.f32 %v1114, %v1258
        %v1289 = vadd.f32 %v1115, %v1260
        %v1290 = vadd.f32 %v1116, %v1262
        %v1291 = vadd.f32 %v1117, %v1264
        %v1292 = vadd.f32 %v1118, %v1266
        %v1293 = vadd.f32 %v1119, %v1268
        %v1294 = vadd.f32 %v1120, %v1270
        %v1295 = vadd.f32 %v1121, %v1272
        %v1296 = vadd.f32 %v1122, %v1271
        %v1297 = vmul.f32 %v1285, 0.5
        %v1298 = vmul.f32 %v1286, 0.5
        %v1299 = vmul.f32 %v1287, 0.5
        %v1300 = vmul.f32 %v1288, 0.5
        %v1301 = vmul.f32 %v1289, 0.5
        %v1302 = vmul.f32 %v1290, 0.5
        %v1303 = vmul.f32 %v1291, 0.5
        %v1304 = vmul.f32 %v1292, 0.5
        %v1305 = vmul.f32 %v1293, 0.5
        %v1306 = vmul.f32 %v1294, 0.5
        %v1307 = vmul.f32 %v1295, 0.5
        %v1308 = vmul.f32 %v1296, 0.5
        %v1309 = vmul.f32 %v1020, %v1297
        %v1310 = vmul.f32 %v1021, %v1298
        %v1311 = vmul.f32 %v1022, %v1299
        %v1312 = vmul.f32 %v1023, %v1300
        %v1313 = vmul.f32 %v1024, %v1301
        %v1314 = vmul.f32 %v1025, %v1302
        %v1315 = vmul.f32 %v1026, %v1303
        %v1316 = vmul.f32 %v1027, %v1304
        %v1317 = vmul.f32 %v1028, %v1305
        %v1318 = vmul.f32 %v1029, %v1306
        %v1319 = vmul.f32 %v1030, %v1307
        %v1320 = vmul.f32 %v1031, %v1308
        %v1321 = vadd.f32 %v1309, %v1310
        %v1322 = vadd.f32 %v1321, %v1311
        %v1323 = vadd.f32 %v1322, %v1312
        %v1324 = vadd.f32 %v1323, %v1313
        %v1325 = vadd.f32 %v1324, %v1314
        %v1326 = vadd.f32 %v1325, %v1315
        %v1327 = vadd.f32 %v1326, %v1316
        %v1328 = vadd.f32 %v1327, %v1317
        %v1329 = vadd.f32 %v1328, %v1318
        %v1330 = vadd.f32 %v1329, %v1319
        %v1331 = vsel %vm401, %v1320, 0.0
        %v1332 = vadd.f32 %v1330, %v1331
        %v1333 = vrot.slane %v1332, 4
        %v1334 = vadd.f32 %v1332, %v1333
        %v1335 = vrot.slane %v1334, 2
        %v1336 = vadd.f32 %v1334, %v1335
        %v1337 = vrot.slane %v1336, 1
        %v1338 = vadd.f32 %v1336, %v1337
        %v1339 = vmul.f32 %v1338, 2.0
        %v1340 = vsub.f32 %v1339, 1.0
        %v1353 = vrot.slane %v1123, 1
        %v1354 = vrot.slane %v1124, 1
        %v1355 = vsel %vm401, %v1353, %v1354
        %v1356 = vrot.slane %v1125, 1
        %v1357 = vsel %vm401, %v1354, %v1356
        %v1358 = vrot.slane %v1126, 1
        %v1359 = vsel %vm401, %v1356, %v1358
        %v1360 = vrot.slane %v1127, 1
        %v1361 = vsel %vm401, %v1358, %v1360
        %v1362 = vrot.slane %v1128, 1
        %v1363 = vsel %vm401, %v1360, %v1362
        %v1364 = vrot.slane %v1129, 1
        %v1365 = vsel %vm401, %v1362, %v1364
        %v1366 = vrot.slane %v1130, 1
        %v1367 = vsel %vm401, %v1364, %v1366
        %v1368 = vrot.slane %v1131, 1
        %v1369 = vsel %vm401, %v1366, %v1368
        %v1370 = vrot.slane %v1132, 1
        %v1371 = vsel %vm401, %v1368, %v1370
        %v1372 = vrot.slane %v1133, 1
        %v1373 = vsel %vm401, %v1370, %v1372
        %v1374 = vrot.slane %v1134, 1
        %v1375 = vsel %vm401, %v1372, %v1374
        %v1388 = vadd.f32 %v1123, %v1355
        %v1389 = vadd.f32 %v1124, %v1357
        %v1390 = vadd.f32 %v1125, %v1359
        %v1391 = vadd.f32 %v1126, %v1361
        %v1392 = vadd.f32 %v1127, %v1363
        %v1393 = vadd.f32 %v1128, %v1365
        %v1394 = vadd.f32 %v1129, %v1367
        %v1395 = vadd.f32 %v1130, %v1369
        %v1396 = vadd.f32 %v1131, %v1371
        %v1397 = vadd.f32 %v1132, %v1373
        %v1398 = vadd.f32 %v1133, %v1375
        %v1399 = vadd.f32 %v1134, %v1374
        %v1400 = vmul.f32 %v1388, 0.5
        %v1401 = vmul.f32 %v1389, 0.5
        %v1402 = vmul.f32 %v1390, 0.5
        %v1403 = vmul.f32 %v1391, 0.5
        %v1404 = vmul.f32 %v1392, 0.5
        %v1405 = vmul.f32 %v1393, 0.5
        %v1406 = vmul.f32 %v1394, 0.5
        %v1407 = vmul.f32 %v1395, 0.5
        %v1408 = vmul.f32 %v1396, 0.5
        %v1409 = vmul.f32 %v1397, 0.5
        %v1410 = vmul.f32 %v1398, 0.5
        %v1411 = vmul.f32 %v1399, 0.5
        %v1412 = vmul.f32 %v1020, %v1400
        %v1413 = vmul.f32 %v1021, %v1401
        %v1414 = vmul.f32 %v1022, %v1402
        %v1415 = vmul.f32 %v1023, %v1403
        %v1416 = vmul.f32 %v1024, %v1404
        %v1417 = vmul.f32 %v1025, %v1405
        %v1418 = vmul.f32 %v1026, %v1406
        %v1419 = vmul.f32 %v1027, %v1407
        %v1420 = vmul.f32 %v1028, %v1408
        %v1421 = vmul.f32 %v1029, %v1409
        %v1422 = vmul.f32 %v1030, %v1410
        %v1423 = vmul.f32 %v1031, %v1411
        %v1424 = vadd.f32 %v1412, %v1413
        %v1425 = vadd.f32 %v1424, %v1414
        %v1426 = vadd.f32 %v1425, %v1415
        %v1427 = vadd.f32 %v1426, %v1416
        %v1428 = vadd.f32 %v1427, %v1417
        %v1429 = vadd.f32 %v1428, %v1418
        %v1430 = vadd.f32 %v1429, %v1419
        %v1431 = vadd.f32 %v1430, %v1420
        %v1432 = vadd.f32 %v1431, %v1421
        %v1433 = vadd.f32 %v1432, %v1422
        %v1434 = vsel %vm401, %v1423, 0.0
        %v1435 = vadd.f32 %v1433, %v1434
        %v1436 = vrot.slane %v1435, 4
        %v1437 = vadd.f32 %v1435, %v1436
        %v1438 = vrot.slane %v1437, 2
        %v1439 = vadd.f32 %v1437, %v1438
        %v1440 = vrot.slane %v1439, 1
        %v1441 = vadd.f32 %v1439, %v1440
        %v1442 = vmul.f32 %v1441, 2.0
        %v1443 = vsub.f32 %v1442, 1.0
        %v1444 = vsel %vm353, %v1237, %v1340
        %vm1445 = vcmask 1041408
        %v1446 = vsel %vm1445, %v1444, %v1443
        %vm1447 = vcmask 1042432
        %v1448 = vsel %vm1447, %v1446, %v1098
        %vm1449 = vcmask 1043456
        %v1450 = vsel %vm1449, %v1448, %v1061
        %vm1451 = vcmask 1044480
        %v1452 = vsel %vm1451, %v1450, 0.0
        %1453 = vst [vmem:[%s328] sm:$0xff] %v1452
        %p1454 = scmp.lt.s32.totalorder %s24, 1
        %s1455 = scalar_select %p1454, %s24, 1
        %p1456 = scmp.lt.s32.totalorder %s25, 0
        %s1457 = scalar_select %p1456, %s25, 0
        %s1458 = sadd.s32 %s1457, %s1455
        %s1459 = smul.addr %s1458, 8
        %s1460 = scalar_lea.vmem %s4, %s1459
        %s1461 = sand.u32 %s175, 1
        %s1462 = scalar_lea.sflag [#allocation3], %s1461
        %s1463 = sand.u32 %s175, 1
        %s1464 = smul.addr %s1463, 96
        %s1465 = scalar_lea.vmem [#allocation2], %s1464
        // Predicated region
        $region37: #{forward.7} parent=35 // pred_check
          %p1466 = pneg %p157
        $region38: #{forward.7} parent=35 // pred_check_branch
          %1468 = sbr.rel (%p1466) target = $region40
        $region39: #{forward.7} parent=35 // pred_region
          _
        $region40: #{forward.7} parent=35 // pred_fallthru
          _
        // Predicated region
        $region41: #{forward.7} parent=35 // pred_check
          %p1469 = pneg %p185
        $region42: #{forward.7} parent=35 // pred_check_branch
          %1471 = sbr.rel (%p1469) target = $region44
        $region43: #{forward.7} parent=35 // pred_region
          %s1473 = ssub.s32 1536, 1536
          %1474 = vsyncadd %s1462, %s1473
          %s1475 = smul.addr %s24, 12
          %s1476 = sadd.s32 %s25, %s1475
          %s1477 = smul.addr %s1476, 128
          %s1478 = scalar_lea.hbm %s5, %s1477
          %s1479 = sshll.u32 %s1465, 4
          %s1480 = int_to_ptr.vmem [resolvable:$true] %s1479
          %1485 = dma.vmem_to_hbm [thread:$0]  %s1480, 1536, %s1478, %s1462, 128, 128, 8
        $region44: #{forward.7} parent=35 // pred_fallthru
          _
      $region36: #{forward.7} parent=5 // pred_fallthru
        _
      %p1486 = scmp.le.s32.totalorder 2, %s15
      // Predicated region
      $region45: #{forward.7} parent=5 // pred_check
        %p1487 = pneg %p1486
      $region46: #{forward.7} parent=5 // pred_check_branch
        %1489 = sbr.rel (%p1487) target = $region48
      $region47: #{forward.7} parent=5 // pred_region
        %s1490 = ssub.s32 %s15, 2
        // Predicated region
        $region49: #{forward.7} parent=47 // pred_check
          %p1491 = pneg %p163
        $region50: #{forward.7} parent=47 // pred_check_branch
          %1493 = sbr.rel (%p1491) target = $region52
        $region51: #{forward.7} parent=47 // pred_region
          %p1494 = scmp.lt.s32.totalorder %s26, 1
          %s1495 = scalar_select %p1494, %s26, 1
          %p1496 = scmp.lt.s32.totalorder %s27, 0
          %s1497 = scalar_select %p1496, %s27, 0
          %s1498 = sadd.s32 %s1497, %s1495
          %s1499 = smul.addr %s1498, 8
          %s1500 = scalar_lea.vmem %s4, %s1499
        $region52: #{forward.7} parent=47 // pred_fallthru
          _
        // Predicated region
        $region53: #{forward.7} parent=47 // pred_check
          %p1501 = pneg %p191
        $region54: #{forward.7} parent=47 // pred_check_branch
          %1503 = sbr.rel (%p1501) target = $region56
        $region55: #{forward.7} parent=47 // pred_region
          %s1504 = sand.u32 %s176, 1
          %s1505 = scalar_lea.sflag [#allocation3], %s1504
          %s1506 = sand.u32 %s176, 1
          %s1507 = smul.addr %s1506, 96
          %s1508 = scalar_lea.vmem [#allocation2], %s1507
          %1509 = dma.done %s1505, 1536
        $region56: #{forward.7} parent=47 // pred_fallthru
          _
      $region48: #{forward.7} parent=5 // pred_fallthru
        _
    $region6: #{forward.7} parent=1 // loop_footer
      %s19 = sadd.s32 1, %s15
    $region7: #{forward.7} parent=1 // loop_footer_branch
      %14 = sbr.rel target = $region3
    $region8: #{forward.7} parent=1 // loop_exit
      _
    %1510 = vsyncpa [#allocation3], 1
    %s1511 = scalar_lea.sflag [#allocation3], 1
    %1512 = vsyncpa %s1511, 1

</llo_original>
